<compile_context>
chip_gen: v6e
topology: v6e:2x2x1
jax: 0.10.0
libtpu: 0.0.40
codegen_flags: <defaults>
</compile_context>

<pallas_src>
import functools
import math

import numpy as np
import jax
import jax.numpy as jnp
from jax import lax
from jax.experimental import pallas as pl
from jax.experimental.pallas import tpu as pltpu


_LN_EPS = 1e-5
_K_PAD = 8                        # padded input-feature width for the embedding matmul
_C_PAD = 128                      # lane-dense padded width of the final projection output
_ROW_CAP = 512                    # target row-tile for per-token kernels
_VMEM_LIMIT = 32 * 1024 * 1024    # explicit scoped-VMEM budget (headroom on v7x's 64 MiB)


# ----------------------------------------------------------------------------- small helpers

def _cparams(*semantics):
    return pltpu.CompilerParams(dimension_semantics=tuple(semantics),
                                vmem_limit_bytes=_VMEM_LIMIT)


def _row_tile(m, cap=_ROW_CAP):
    """Largest row tile <= cap that divides m and is a multiple of 8 (falls back to full m)."""
    if m % 8:
        return m
    best, t = 8, 8
    while t <= min(m, cap):
        if m % t == 0:
            best = t
        t += 8
    return best


def _layernorm(z, g, b):
    mu = jnp.mean(z, axis=-1, keepdims=True)
    var = jnp.mean(jnp.square(z - mu), axis=-1, keepdims=True)
    return (z - mu) * lax.rsqrt(var + _LN_EPS) * g + b


# ----------------------------------------------------------------------------- kernels

def _embed_kernel(x_ref, w_ref, b_ref, pe_ref, o_ref):
    """value+mark embedding matmul + bias + positional embedding (PE reused across batches)."""
    x = x_ref[...].astype(jnp.bfloat16)                                   # (L, K_PAD)
    o = jnp.dot(x, w_ref[...], preferred_element_type=jnp.float32)
    o_ref[...] = (o + b_ref[...] + pe_ref[...]).astype(o_ref.dtype)


def _mha_kernel(causal, xq_ref, xkv_ref, w_ref, b_ref, p_ref, o_ref, acc_ref):
    """Fused per-(batch, head) attention step.

    grid = (B, H); H is an 'arbitrary' reduction axis into acc_ref.
      xq_ref  : (Lq, D)  bf16   xkv_ref : (Lk, D) bf16
      w_ref   : (1, 4D, Dh) bf16  head-packed [Wq_h | Wk_h | Wv_h | Wo_h^T]
      b_ref   : (1, 8, Dh) f32    rows 0..2 = bq_h, bk_h, bv_h
      p_ref   : (8, D) f32        rows 0..2 = bo, ln_gamma, ln_beta
    1/sqrt(Dh) is pre-folded into Wq_h / bq_h at init.
    """
    h = pl.program_id(1)

    @pl.when(h == 0)
    def _():
        acc_ref[...] = jnp.zeros_like(acc_ref)

    D = xq_ref.shape[-1]
    xq = xq_ref[...]                                  # (Lq, D) bf16
    xkv = xkv_ref[...]                                # (Lk, D) bf16
    w = w_ref[0]                                      # (4D, Dh) bf16
    bqkv = b_ref[0]                                   # (8, Dh) f32

    q = jnp.dot(xq, w[0:D], preferred_element_type=jnp.float32) + bqkv[0:1]        # (Lq, Dh)
    k = jnp.dot(xkv, w[D:2 * D], preferred_element_type=jnp.float32) + bqkv[1:2]   # (Lk, Dh)
    v = jnp.dot(xkv, w[2 * D:3 * D], preferred_element_type=jnp.float32) + bqkv[2:3]

    # scores = q @ k^T (bf16 on MXU, f32 accumulation); mask computed once per grid step.
    s = lax.dot_general(q.astype(jnp.bfloat16), k.astype(jnp.bfloat16),
                        (((1,), (1,)), ((), ())), preferred_element_type=jnp.float32)
    if causal:
        Lq, Lk = s.shape
        row = lax.broadcasted_iota(jnp.int32, (Lq, Lk), 0)
        col = lax.broadcasted_iota(jnp.int32, (Lq, Lk), 1)
        s = jnp.where(col <= row, s, jnp.float32(-1e30))

    m = jnp.max(s, axis=-1, keepdims=True)
    p = jnp.exp(s - m)
    p = p * pl.reciprocal(jnp.sum(p, axis=-1, keepdims=True), approx=True)

    oh = jnp.dot(p.astype(jnp.bfloat16), v.astype(jnp.bfloat16),
                 preferred_element_type=jnp.float32)                                # (Lq, Dh)
    # Folded output projection: concat_h(o_h) @ Wo == sum_h o_h @ Wo_h (Wo_h stored transposed).
    acc_ref[...] += lax.dot_general(oh.astype(jnp.bfloat16), w[3 * D:4 * D],
                                    (((1,), (1,)), ((), ())),
                                    preferred_element_type=jnp.float32)             # (Lq, D)

    @pl.when(h == pl.num_programs(1) - 1)
    def _():
        pp = p_ref[...]                                                # (8, D) f32
        z = xq.astype(jnp.float32) + acc_ref[...] + pp[0:1]            # residual + bo
        o_ref[...] = _layernorm(z, pp[1:2], pp[2:3]).astype(o_ref.dtype)


def _ffn_kernel(x_ref, w1_ref, b1_ref, w2_ref, p_ref, o_ref):
    """Fused FFN: x@W1+b1 -> GELU -> @W2+b2 -> residual -> LayerNorm (d_ff stays in VMEM)."""
    x = x_ref[...]                                                     # (TM, D) bf16
    hid = jnp.dot(x, w1_ref[...], preferred_element_type=jnp.float32) + b1_ref[...]
    hid = jax.nn.gelu(hid, approximate=True)
    y = jnp.dot(hid.astype(jnp.bfloat16), w2_ref[...], preferred_element_type=jnp.float32)
    pp = p_ref[...]
    z = x.astype(jnp.float32) + y + pp[0:1]
    o_ref[...] = _layernorm(z, pp[1:2], pp[2:3]).astype(o_ref.dtype)


def _ln_kernel(x_ref, p_ref, o_ref):
    pp = p_ref[...]
    o_ref[...] = _layernorm(x_ref[...].astype(jnp.float32), pp[1:2], pp[2:3]).astype(o_ref.dtype)


def _ln_proj_kernel(x_ref, p_ref, w_ref, bp_ref, o_ref):
    """Fused decoder-final LayerNorm + lane-dense (128-wide) output projection."""
    pp = p_ref[...]
    z = _layernorm(x_ref[...].astype(jnp.float32), pp[1:2], pp[2:3])
    o_ref[...] = (jnp.dot(z.astype(jnp.bfloat16), w_ref[...],
                          preferred_element_type=jnp.float32) + bp_ref[...]).astype(o_ref.dtype)


# ----------------------------------------------------------------------------- pallas wrappers

def embed(x_rows, p, pe, *, B, L):
    D = p["w"].shape[1]
    K = x_rows.shape[-1]
    return pl.pallas_call(
        _embed_kernel,
        out_shape=jax.ShapeDtypeStruct((B * L, D), jnp.bfloat16),
        grid=(B,),
        in_specs=[pl.BlockSpec((L, K), lambda b: (b, 0)),
                  pl.BlockSpec((K, D), lambda b: (0, 0)),
                  pl.BlockSpec((1, D), lambda b: (0, 0)),
                  pl.BlockSpec((L, D), lambda b: (0, 0))],     # PE: same block every batch step
        out_specs=pl.BlockSpec((L, D), lambda b: (b, 0)),
        compiler_params=_cparams("parallel"),
    )(x_rows, p["w"], p["b"], pe)


def mha_block(x_q, x_kv, p, *, B, Lq, Lk, n_heads, causal):
    D = x_q.shape[-1]
    Dh = D // n_heads
    kernel = functools.partial(_mha_kernel, causal)
    return pl.pallas_call(
        kernel,
        out_shape=jax.ShapeDtypeStruct((B * Lq, D), jnp.bfloat16),
        grid=(B, n_heads),
        in_specs=[pl.BlockSpec((Lq, D), lambda b, h: (b, 0)),
                  pl.BlockSpec((Lk, D), lambda b, h: (b, 0)),
                  pl.BlockSpec((1, 4 * D, Dh), lambda b, h: (h, 0, 0)),
                  pl.BlockSpec((1, 8, Dh), lambda b, h: (h, 0, 0)),
                  pl.BlockSpec((8, D), lambda b, h: (0, 0))],
        out_specs=pl.BlockSpec((Lq, D), lambda b, h: (b, 0)),
        scratch_shapes=[pltpu.VMEM((Lq, D), jnp.float32)],
        compiler_params=_cparams("parallel", "arbitrary"),
    )(x_q, x_kv, p["w"], p["b"], p["p"])


def ffn_block(x, p):
    M, D = x.shape
    F = p["w1"].shape[1]
    TM = _row_tile(M)
    return pl.pallas_call(
        _ffn_kernel,
        out_shape=jax.ShapeDtypeStruct((M, D), jnp.bfloat16),
        grid=(M // TM,),
        in_specs=[pl.BlockSpec((TM, D), lambda i: (i, 0)),
                  pl.BlockSpec((D, F), lambda i: (0, 0)),
                  pl.BlockSpec((1, F), lambda i: (0, 0)),
                  pl.BlockSpec((F, D), lambda i: (0, 0)),
                  pl.BlockSpec((8, D), lambda i: (0, 0))],
        out_specs=pl.BlockSpec((TM, D), lambda i: (i, 0)),
        compiler_params=_cparams("parallel"),
    )(x, p["w1"], p["b1"], p["w2"], p["p"])


def layernorm(x, p):
    M, D = x.shape
    TM = _row_tile(M)
    return pl.pallas_call(
        _ln_kernel,
        out_shape=jax.ShapeDtypeStruct((M, D), jnp.bfloat16),
        grid=(M // TM,),
        in_specs=[pl.BlockSpec((TM, D), lambda i: (i, 0)),
                  pl.BlockSpec((8, D), lambda i: (0, 0))],
        out_specs=pl.BlockSpec((TM, D), lambda i: (i, 0)),
        compiler_params=_cparams("parallel"),
    )(x, p)


def layernorm_project(x, p_ln, p_proj):
    M, D = x.shape
    C = p_proj["w"].shape[1]
    TM = _row_tile(M)
    return pl.pallas_call(
        _ln_proj_kernel,
        out_shape=jax.ShapeDtypeStruct((M, C), jnp.float32),
        grid=(M // TM,),
        in_specs=[pl.BlockSpec((TM, D), lambda i: (i, 0)),
                  pl.BlockSpec((8, D), lambda i: (0, 0)),
                  pl.BlockSpec((D, C), lambda i: (0, 0)),
                  pl.BlockSpec((1, C), lambda i: (0, 0))],
        out_specs=pl.BlockSpec((TM, C), lambda i: (i, 0)),
        compiler_params=_cparams("parallel"),
    )(x, p_ln, p_proj["w"], p_proj["b"])


# ----------------------------------------------------------------------------- model glue

def sinusoidal_pos_emb(L, D):
    pos = np.arange(L)[:, None].astype(np.float64)
    i = np.arange(D)[None, :].astype(np.float64)
    angle = pos / np.power(10000.0, (2 * (i // 2)) / D)
    pe = np.zeros((L, D), dtype=np.float32)
    pe[:, 0::2] = np.sin(angle[:, 0::2])
    pe[:, 1::2] = np.cos(angle[:, 1::2])
    return jnp.asarray(pe)


def _prep_embed_input(x_val, x_mark):
    """concat value + mark features, flatten (B, L) -> rows, zero-pad feature dim to _K_PAD."""
    B, L, _ = x_val.shape
    rows = jnp.concatenate([x_val, x_mark], axis=-1).reshape(B * L, -1)
    K = rows.shape[-1]
    assert K <= _K_PAD
    if K < _K_PAD:
        rows = jnp.pad(rows, ((0, 0), (0, _K_PAD - K)))
    return rows


def informer_forward(params, cfg, x_enc, x_mark_enc, x_dec, x_mark_dec):
    dm, H = cfg["d_model"], cfg["n_heads"]
    B, Le, _ = x_enc.shape
    Ld = x_dec.shape[1]

    # ---------------- encoder ----------------
    enc_rows = _prep_embed_input(x_enc, x_mark_enc)                        # (B*Le, K_PAD) f32
    enc = embed(enc_rows, params["enc_emb"], sinusoidal_pos_emb(Le, dm), B=B, L=Le)
    for lp in params["enc_layers"]:
        enc = mha_block(enc, enc, lp["attn"], B=B, Lq=Le, Lk=Le, n_heads=H, causal=False)
        enc = ffn_block(enc, lp["ffn"])
    enc = layernorm(enc, params["enc_norm"])

    # ---------------- decoder ----------------
    dec_rows = _prep_embed_input(x_dec, x_mark_dec)                        # (B*Ld, K_PAD) f32
    dec = embed(dec_rows, params["dec_emb"], sinusoidal_pos_emb(Ld, dm), B=B, L=Ld)
    for lp in params["dec_layers"]:
        dec = mha_block(dec, dec, lp["self_attn"], B=B, Lq=Ld, Lk=Ld, n_heads=H, causal=True)
        dec = mha_block(dec, enc, lp["cross_attn"], B=B, Lq=Ld, Lk=Le, n_heads=H, causal=False)
        dec = ffn_block(dec, lp["ffn"])

    out = layernorm_project(dec, params["dec_norm"], params["proj"])       # (B*Ld, 128) f32
    out = out.reshape(B, Ld, -1)[:, -cfg["pred_len"]:, :cfg["c_out"]]
    return out


def wr_xformer_single_forward(params, cfg, x, y):
    """Mirrors wr_xformer_single.forward.  x, y: (b, d, n, t) float32."""
    b, d, n, t = x.shape
    x = jnp.transpose(x, (0, 2, 3, 1))                   # (b, n, t, d)
    y = jnp.transpose(y, (0, 2, 3, 1))
    x_enc = x[:, :, :, :1]                               # (b, n, t, 1)
    x_mark_enc = x.reshape(b * n, t, d)[:, :, 1:]        # (b*n, t, d-1)
    x_dec = jnp.concatenate([x_enc, jnp.zeros_like(x_enc)], axis=2)             # (b, n, 2t, 1)
    x_mark_dec = jnp.concatenate([x_mark_enc, y.reshape(b * n, t, d)[:, :, 1:]], axis=1)
    x_enc = x_enc.reshape(b * n, t, 1)
    x_dec = x_dec.reshape(b * n, 2 * t, 1)
    return informer_forward(params, cfg, x_enc, x_mark_enc, x_dec, x_mark_dec)


# ----------------------------------------------------------------------------- parameters

def init_params(key, d_in, cfg):
    """Weights are bf16, head-packed and padded once so kernels see their final layouts."""
    dm, dff, H, c_out = cfg["d_model"], cfg["d_ff"], cfg["n_heads"], cfg["c_out"]
    assert dm % 128 == 0 and dm % H == 0, "lane-dense layout requires d_model % 128 == 0"
    dh = dm // H
    kit = iter(jax.random.split(key, 256))

    def dense(*shape):
        return 0.02 * jax.random.normal(next(kit), shape, jnp.float32)

    ones_d = jnp.ones((dm,), jnp.float32)
    zeros_d = jnp.zeros((dm,), jnp.float32)

    def pack_vec(bias=None, gamma=None, beta=None):
        p = jnp.zeros((8, dm), jnp.float32)
        if bias is not None:
            p = p.at[0].set(bias)
        if gamma is not None:
            p = p.at[1].set(gamma)
        if beta is not None:
            p = p.at[2].set(beta)
        return p

    def attn_p():
        scale = 1.0 / math.sqrt(dh)                       # folded into Wq / bq
        wq, wk, wv, wo = dense(dm, dm) * scale, dense(dm, dm), dense(dm, dm), dense(dm, dm)
        bq, bk, bv, bo = dense(dm) * scale, dense(dm), dense(dm), dense(dm)
        w_pack = jnp.stack(                                # (H, 4*dm, dh) head-major
            [jnp.concatenate([wq[:, h * dh:(h + 1) * dh], wk[:, h * dh:(h + 1) * dh],
                              wv[:, h * dh:(h + 1) * dh], wo[h * dh:(h + 1) * dh, :].T], axis=0)
             for h in range(H)], axis=0).astype(jnp.bfloat16)
        b_pack = jnp.zeros((H, 8, dh), jnp.float32)
        b_pack = b_pack.at[:, 0, :].set(bq.reshape(H, dh))
        b_pack = b_pack.at[:, 1, :].set(bk.reshape(H, dh))
        b_pack = b_pack.at[:, 2, :].set(bv.reshape(H, dh))
        return {"w": w_pack, "b": b_pack, "p": pack_vec(bias=bo, gamma=ones_d, beta=zeros_d)}

    def ffn_p():
        return {"w1": dense(dm, dff).astype(jnp.bfloat16),
                "b1": dense(1, dff),
                "w2": dense(dff, dm).astype(jnp.bfloat16),
                "p": pack_vec(bias=dense(dm), gamma=ones_d, beta=zeros_d)}

    def emb_p():
        return {"w": dense(_K_PAD, dm).astype(jnp.bfloat16), "b": dense(1, dm)}

    proj_w = jnp.zeros((dm, _C_PAD), jnp.float32).at[:, :c_out].set(dense(dm, c_out))
    proj_b = jnp.zeros((1, _C_PAD), jnp.float32).at[:, :c_out].set(dense(1, c_out))

    return {
        "enc_emb": emb_p(), "dec_emb": emb_p(),
        "enc_layers": [{"attn": attn_p(), "ffn": ffn_p()} for _ in range(cfg["e_layers"])],
        "dec_layers": [{"self_attn": attn_p(), "cross_attn": attn_p(), "ffn": ffn_p()}
                       for _ in range(cfg["d_layers"])],
        "enc_norm": pack_vec(gamma=ones_d, beta=zeros_d),
        "dec_norm": pack_vec(gamma=ones_d, beta=zeros_d),
        "proj": {"w": proj_w.astype(jnp.bfloat16), "b": proj_b},
    }


# ----------------------------------------------------------------------------- main

if __name__ == "__main__":
    b, d, n, t = 2, 2, 4, 8            # in_dim=2 as in the PyTorch module; B = b*n = 8
    cfg = dict(d_model=128, n_heads=4, d_ff=256, c_out=1,
               pred_len=t, e_layers=1, d_layers=1)

    key = jax.random.PRNGKey(0)
    kx, ky, kp = jax.random.split(key, 3)
    x = jax.random.normal(kx, (b, d, n, t), jnp.float32)
    y = jax.random.normal(ky, (b, d, n, t), jnp.float32)
    params = init_params(kp, d, cfg)

    fwd = jax.jit(functools.partial(wr_xformer_single_forward, params, cfg))
    out = jax.block_until_ready(fwd(x, y))

    assert out.shape == (b * n, cfg["pred_len"], cfg["c_out"]), out.shape
    assert bool(jnp.all(jnp.isfinite(out)))
    print("KERNEL_OK")
</pallas_src>

<mosaic_0001>
module attributes {stable_mosaic.version = 11 : i64} {
  func.func @_embed_kernel(%arg0: i32, %arg1: memref<16x8xf32, #tpu.memory_space<vmem>>, %arg2: memref<8x128xbf16, #tpu.memory_space<vmem>>, %arg3: memref<1x128xf32, #tpu.memory_space<vmem>>, %arg4: memref<16x128xf32, #tpu.memory_space<vmem>>, %arg5: memref<16x128xbf16, #tpu.memory_space<vmem>>) attributes {dimension_semantics = [#tpu.dimension_semantics<parallel>], iteration_bounds = array<i64: 8>, scalar_prefetch = 0 : i64, scratch_operands = 0 : i64, tpu.core_type = #tpu.core_type<tc>, window_params = [{transform_indices = @transform_0, window_bounds = array<i64: 16, 8>}, {pipeline_mode = #tpu.pipeline_mode<synchronous>, transform_indices = @transform_1, window_bounds = array<i64: 8, 128>}, {pipeline_mode = #tpu.pipeline_mode<synchronous>, transform_indices = @transform_2, window_bounds = array<i64: 1, 128>}, {pipeline_mode = #tpu.pipeline_mode<synchronous>, transform_indices = @transform_3, window_bounds = array<i64: 16, 128>}, {transform_indices = @transform_4, window_bounds = array<i64: 16, 128>}]} {
    %c0 = arith.constant 0 : index
    %c0_0 = arith.constant 0 : index
    %0 = vector.load %arg1[%c0, %c0_0] : memref<16x8xf32, #tpu.memory_space<vmem>>, vector<16x8xf32>
    %1 = arith.truncf %0 : vector<16x8xf32> to vector<16x8xbf16>
    %c0_1 = arith.constant 0 : index
    %c0_2 = arith.constant 0 : index
    %2 = vector.load %arg2[%c0_1, %c0_2] : memref<8x128xbf16, #tpu.memory_space<vmem>>, vector<8x128xbf16>
    %cst = arith.constant dense<0.000000e+00> : vector<16x128xf32>
    %3 = tpu.matmul %1, %2, %cst {dimension_numbers = #tpu.dot_dimension_numbers<[1], [0], [0], [1], [0, 0, 1, 1], [], []>} : vector<16x8xbf16>, vector<8x128xbf16>, vector<16x128xf32> -> vector<16x128xf32>
    %c0_3 = arith.constant 0 : index
    %c0_4 = arith.constant 0 : index
    %4 = vector.load %arg3[%c0_3, %c0_4] : memref<1x128xf32, #tpu.memory_space<vmem>>, vector<1x128xf32>
    %5 = vector.broadcast %4 : vector<1x128xf32> to vector<16x128xf32>
    %6 = arith.addf %3, %5 : vector<16x128xf32>
    %c0_5 = arith.constant 0 : index
    %c0_6 = arith.constant 0 : index
    %7 = vector.load %arg4[%c0_5, %c0_6] : memref<16x128xf32, #tpu.memory_space<vmem>>, vector<16x128xf32>
    %8 = arith.addf %6, %7 : vector<16x128xf32>
    %9 = arith.truncf %8 : vector<16x128xf32> to vector<16x128xbf16>
    %c0_7 = arith.constant 0 : index
    %c0_8 = arith.constant 0 : index
    %10 = vector.load %arg5[%c0_7, %c0_8] : memref<16x128xbf16, #tpu.memory_space<vmem>>, vector<16x128xbf16>
    tpu.vector_store %arg5[%c0_7, %c0_8], %9 {strides = array<i32>} : memref<16x128xbf16, #tpu.memory_space<vmem>>, vector<16x128xbf16>,
    return
  }
  func.func @transform_0(%arg0: i32) -> (i32, i32) {
    %c0_i32 = arith.constant 0 : i32
    %c0_i32_0 = arith.constant 0 : i32
    return %arg0, %c0_i32 : i32, i32
  }
  func.func @transform_1(%arg0: i32) -> (i32, i32) {
    %c0_i32 = arith.constant 0 : i32
    %c0_i32_0 = arith.constant 0 : i32
    %c0_i32_1 = arith.constant 0 : i32
    return %c0_i32, %c0_i32_0 : i32, i32
  }
  func.func @transform_2(%arg0: i32) -> (i32, i32) {
    %c0_i32 = arith.constant 0 : i32
    %c0_i32_0 = arith.constant 0 : i32
    %c0_i32_1 = arith.constant 0 : i32
    return %c0_i32, %c0_i32_0 : i32, i32
  }
  func.func @transform_3(%arg0: i32) -> (i32, i32) {
    %c0_i32 = arith.constant 0 : i32
    %c0_i32_0 = arith.constant 0 : i32
    %c0_i32_1 = arith.constant 0 : i32
    return %c0_i32, %c0_i32_0 : i32, i32
  }
  func.func @transform_4(%arg0: i32) -> (i32, i32) {
    %c0_i32 = arith.constant 0 : i32
    %c0_i32_0 = arith.constant 0 : i32
    return %arg0, %c0_i32 : i32, i32
  }
}

module attributes {stable_mosaic.version = 11 : i64} {
  func.func @_mha_kernel(%arg0: i32, %arg1: i32, %arg2: memref<16x128xbf16, #tpu.memory_space<vmem>>, %arg3: memref<16x128xbf16, #tpu.memory_space<vmem>>, %arg4: memref<1x512x32xbf16, #tpu.memory_space<vmem>>, %arg5: memref<1x8x32xf32, #tpu.memory_space<vmem>>, %arg6: memref<8x128xf32, #tpu.memory_space<vmem>>, %arg7: memref<16x128xbf16, #tpu.memory_space<vmem>>, %arg8: memref<16x128xf32, #tpu.memory_space<vmem>>) attributes {dimension_semantics = [#tpu.dimension_semantics<parallel>, #tpu.dimension_semantics<arbitrary>], iteration_bounds = array<i64: 8, 4>, scalar_prefetch = 0 : i64, scratch_operands = 1 : i64, tpu.core_type = #tpu.core_type<tc>, window_params = [{transform_indices = @transform_0, window_bounds = array<i64: 16, 128>}, {transform_indices = @transform_1, window_bounds = array<i64: 16, 128>}, {transform_indices = @transform_2, window_bounds = array<i64: 1, 512, 32>}, {transform_indices = @transform_3, window_bounds = array<i64: 1, 8, 32>}, {pipeline_mode = #tpu.pipeline_mode<synchronous>, transform_indices = @transform_4, window_bounds = array<i64: 8, 128>}, {transform_indices = @transform_5, window_bounds = array<i64: 16, 128>}]} {
    %c0_i32 = arith.constant 0 : i32
    %0 = arith.cmpi eq, %arg1, %c0_i32 : i32
    %1 = arith.extui %0 : i1 to i32
    %c0_i32_0 = arith.constant 0 : i32
    %2 = arith.cmpi ne, %1, %c0_i32_0 : i32
    scf.if %2 {
      %cst_23 = arith.constant 0.000000e+00 : f32
      %54 = vector.broadcast %cst_23 : f32 to vector<16x128xf32>
      %c0_24 = arith.constant 0 : index
      %c0_25 = arith.constant 0 : index
      %55 = vector.load %arg8[%c0_24, %c0_25] : memref<16x128xf32, #tpu.memory_space<vmem>>, vector<16x128xf32>
      tpu.vector_store %arg8[%c0_24, %c0_25], %54 {strides = array<i32>} : memref<16x128xf32, #tpu.memory_space<vmem>>, vector<16x128xf32>,
    } else {
    }
    %c0 = arith.constant 0 : index
    %c0_1 = arith.constant 0 : index
    %3 = vector.load %arg2[%c0, %c0_1] : memref<16x128xbf16, #tpu.memory_space<vmem>>, vector<16x128xbf16>
    %c0_2 = arith.constant 0 : index
    %c0_3 = arith.constant 0 : index
    %4 = vector.load %arg3[%c0_2, %c0_3] : memref<16x128xbf16, #tpu.memory_space<vmem>>, vector<16x128xbf16>
    %c0_4 = arith.constant 0 : index
    %c0_5 = arith.constant 0 : index
    %c0_6 = arith.constant 0 : index
    %5 = vector.load %arg4[%c0_4, %c0_5, %c0_6] : memref<1x512x32xbf16, #tpu.memory_space<vmem>>, vector<1x512x32xbf16>
    %6 = vector.shape_cast %5 : vector<1x512x32xbf16> to vector<512x32xbf16>
    %c0_7 = arith.constant 0 : index
    %c0_8 = arith.constant 0 : index
    %c0_9 = arith.constant 0 : index
    %7 = vector.load %arg5[%c0_7, %c0_8, %c0_9] : memref<1x8x32xf32, #tpu.memory_space<vmem>>, vector<1x8x32xf32>
    %8 = vector.shape_cast %7 : vector<1x8x32xf32> to vector<8x32xf32>
    %9 = vector.extract_strided_slice %6 {offsets = [0, 0], sizes = [128, 32], strides = [1, 1]} : vector<512x32xbf16> to vector<128x32xbf16>
    %cst = arith.constant dense<0.000000e+00> : vector<16x32xf32>
    %10 = tpu.matmul %3, %9, %cst {dimension_numbers = #tpu.dot_dimension_numbers<[1], [0], [0], [1], [0, 0, 1, 1], [], []>} : vector<16x128xbf16>, vector<128x32xbf16>, vector<16x32xf32> -> vector<16x32xf32>
    %11 = vector.extract_strided_slice %8 {offsets = [0, 0], sizes = [1, 32], strides = [1, 1]} : vector<8x32xf32> to vector<1x32xf32>
    %12 = vector.broadcast %11 : vector<1x32xf32> to vector<16x32xf32>
    %13 = arith.addf %10, %12 : vector<16x32xf32>
    %14 = vector.extract_strided_slice %6 {offsets = [128, 0], sizes = [128, 32], strides = [1, 1]} : vector<512x32xbf16> to vector<128x32xbf16>
    %cst_10 = arith.constant dense<0.000000e+00> : vector<16x32xf32>
    %15 = tpu.matmul %4, %14, %cst_10 {dimension_numbers = #tpu.dot_dimension_numbers<[1], [0], [0], [1], [0, 0, 1, 1], [], []>} : vector<16x128xbf16>, vector<128x32xbf16>, vector<16x32xf32> -> vector<16x32xf32>
    %16 = vector.extract_strided_slice %8 {offsets = [1, 0], sizes = [1, 32], strides = [1, 1]} : vector<8x32xf32> to vector<1x32xf32>
    %17 = vector.broadcast %16 : vector<1x32xf32> to vector<16x32xf32>
    %18 = arith.addf %15, %17 : vector<16x32xf32>
    %19 = vector.extract_strided_slice %6 {offsets = [256, 0], sizes = [128, 32], strides = [1, 1]} : vector<512x32xbf16> to vector<128x32xbf16>
    %cst_11 = arith.constant dense<0.000000e+00> : vector<16x32xf32>
    %20 = tpu.matmul %4, %19, %cst_11 {dimension_numbers = #tpu.dot_dimension_numbers<[1], [0], [0], [1], [0, 0, 1, 1], [], []>} : vector<16x128xbf16>, vector<128x32xbf16>, vector<16x32xf32> -> vector<16x32xf32>
    %21 = vector.extract_strided_slice %8 {offsets = [2, 0], sizes = [1, 32], strides = [1, 1]} : vector<8x32xf32> to vector<1x32xf32>
    %22 = vector.broadcast %21 : vector<1x32xf32> to vector<16x32xf32>
    %23 = arith.addf %20, %22 : vector<16x32xf32>
    %24 = arith.truncf %13 : vector<16x32xf32> to vector<16x32xbf16>
    %25 = arith.truncf %18 : vector<16x32xf32> to vector<16x32xbf16>
    %cst_12 = arith.constant dense<0.000000e+00> : vector<16x16xf32>
    %26 = tpu.matmul %24, %25, %cst_12 {dimension_numbers = #tpu.dot_dimension_numbers<[1], [1], [0], [0], [0, 0, 1, 0], [], []>} : vector<16x32xbf16>, vector<16x32xbf16>, vector<16x16xf32> -> vector<16x16xf32>
    %27 = tpu.iota {dimensions = array<i32: 0>} : vector<16x16xi32>
    %28 = tpu.iota {dimensions = array<i32: 1>} : vector<16x16xi32>
    %29 = arith.cmpi sle, %28, %27 : vector<16x16xi32>
    %cst_13 = arith.constant -1.000000e+30 : f32
    %30 = vector.broadcast %cst_13 : f32 to vector<16x16xf32>
    %31 = arith.select %29, %26, %30 : vector<16x16xi1>, vector<16x16xf32>
    %cst_14 = arith.constant dense<0xFF800000> : vector<16xf32>
    %32 = vector.multi_reduction <maximumf>, %31, %cst_14 [1] : vector<16x16xf32> to vector<16xf32>
    %33 = vector.shape_cast %32 : vector<16xf32> to vector<16x1xf32>
    %34 = vector.broadcast %33 : vector<16x1xf32> to vector<16x16xf32>
    %35 = arith.subf %31, %34 : vector<16x16xf32>
    %36 = math.exp %35 : vector<16x16xf32>
    %cst_15 = arith.constant dense<0.000000e+00> : vector<16xf32>
    %37 = vector.multi_reduction <add>, %36, %cst_15 [1] : vector<16x16xf32> to vector<16xf32>
    %38 = vector.shape_cast %37 : vector<16xf32> to vector<16x1xf32>
    %39 = tpu.reciprocal %38 {approx = true} : vector<16x1xf32> -> vector<16x1xf32>
    %40 = vector.broadcast %39 : vector<16x1xf32> to vector<16x16xf32>
    %41 = arith.mulf %36, %40 : vector<16x16xf32>
    %42 = arith.truncf %41 : vector<16x16xf32> to vector<16x16xbf16>
    %43 = arith.truncf %23 : vector<16x32xf32> to vector<16x32xbf16>
    %cst_16 = arith.constant dense<0.000000e+00> : vector<16x32xf32>
    %44 = tpu.matmul %42, %43, %cst_16 {dimension_numbers = #tpu.dot_dimension_numbers<[1], [0], [0], [1], [0, 0, 1, 1], [], []>} : vector<16x16xbf16>, vector<16x32xbf16>, vector<16x32xf32> -> vector<16x32xf32>
    %c0_17 = arith.constant 0 : index
    %c0_18 = arith.constant 0 : index
    %45 = vector.load %arg8[%c0_17, %c0_18] : memref<16x128xf32, #tpu.memory_space<vmem>>, vector<16x128xf32>
    %46 = arith.truncf %44 : vector<16x32xf32> to vector<16x32xbf16>
    %47 = vector.extract_strided_slice %6 {offsets = [384, 0], sizes = [128, 32], strides = [1, 1]} : vector<512x32xbf16> to vector<128x32xbf16>
    %cst_19 = arith.constant dense<0.000000e+00> : vector<16x128xf32>
    %48 = tpu.matmul %46, %47, %cst_19 {dimension_numbers = #tpu.dot_dimension_numbers<[1], [1], [0], [0], [0, 0, 1, 0], [], []>} : vector<16x32xbf16>, vector<128x32xbf16>, vector<16x128xf32> -> vector<16x128xf32>
    %49 = arith.addf %45, %48 : vector<16x128xf32>
    %c0_20 = arith.constant 0 : index
    %c0_21 = arith.constant 0 : index
    %50 = vector.load %arg8[%c0_20, %c0_21] : memref<16x128xf32, #tpu.memory_space<vmem>>, vector<16x128xf32>
    tpu.vector_store %arg8[%c0_20, %c0_21], %49 {strides = array<i32>} : memref<16x128xf32, #tpu.memory_space<vmem>>, vector<16x128xf32>,
    %c3_i32 = arith.constant 3 : i32
    %51 = arith.cmpi eq, %arg1, %c3_i32 : i32
    %52 = arith.extui %51 : i1 to i32
    %c0_i32_22 = arith.constant 0 : i32
    %53 = arith.cmpi ne, %52, %c0_i32_22 : i32
    scf.if %53 {
      %c0_23 = arith.constant 0 : index
      %c0_24 = arith.constant 0 : index
      %54 = vector.load %arg6[%c0_23, %c0_24] : memref<8x128xf32, #tpu.memory_space<vmem>>, vector<8x128xf32>
      %55 = arith.extf %3 : vector<16x128xbf16> to vector<16x128xf32>
      %c0_25 = arith.constant 0 : index
      %c0_26 = arith.constant 0 : index
      %56 = vector.load %arg8[%c0_25, %c0_26] : memref<16x128xf32, #tpu.memory_space<vmem>>, vector<16x128xf32>
      %57 = arith.addf %55, %56 : vector<16x128xf32>
      %58 = vector.extract_strided_slice %54 {offsets = [0, 0], sizes = [1, 128], strides = [1, 1]} : vector<8x128xf32> to vector<1x128xf32>
      %59 = vector.broadcast %58 : vector<1x128xf32> to vector<16x128xf32>
      %60 = arith.addf %57, %59 : vector<16x128xf32>
      %61 = vector.extract_strided_slice %54 {offsets = [1, 0], sizes = [1, 128], strides = [1, 1]} : vector<8x128xf32> to vector<1x128xf32>
      %62 = vector.extract_strided_slice %54 {offsets = [2, 0], sizes = [1, 128], strides = [1, 1]} : vector<8x128xf32> to vector<1x128xf32>
      %cst_27 = arith.constant dense<0.000000e+00> : vector<16xf32>
      %63 = vector.multi_reduction <add>, %60, %cst_27 [1] : vector<16x128xf32> to vector<16xf32>
      %64 = vector.shape_cast %63 : vector<16xf32> to vector<16x1xf32>
      %cst_28 = arith.constant 1.280000e+02 : f32
      %65 = vector.broadcast %cst_28 : f32 to vector<16x1xf32>
      %66 = arith.divf %64, %65 : vector<16x1xf32>
      %67 = vector.broadcast %66 : vector<16x1xf32> to vector<16x128xf32>
      %68 = arith.subf %60, %67 : vector<16x128xf32>
      %69 = arith.mulf %68, %68 : vector<16x128xf32>
      %cst_29 = arith.constant dense<0.000000e+00> : vector<16xf32>
      %70 = vector.multi_reduction <add>, %69, %cst_29 [1] : vector<16x128xf32> to vector<16xf32>
      %71 = vector.shape_cast %70 : vector<16xf32> to vector<16x1xf32>
      %cst_30 = arith.constant 1.280000e+02 : f32
      %72 = vector.broadcast %cst_30 : f32 to vector<16x1xf32>
      %73 = arith.divf %71, %72 : vector<16x1xf32>
      %74 = vector.broadcast %66 : vector<16x1xf32> to vector<16x128xf32>
      %75 = arith.subf %60, %74 : vector<16x128xf32>
      %cst_31 = arith.constant 9.99999974E-6 : f32
      %76 = vector.broadcast %cst_31 : f32 to vector<16x1xf32>
      %77 = arith.addf %73, %76 : vector<16x1xf32>
      %78 = math.rsqrt %77 : vector<16x1xf32>
      %79 = vector.broadcast %78 : vector<16x1xf32> to vector<16x128xf32>
      %80 = arith.mulf %75, %79 : vector<16x128xf32>
      %81 = vector.broadcast %61 : vector<1x128xf32> to vector<16x128xf32>
      %82 = arith.mulf %80, %81 : vector<16x128xf32>
      %83 = vector.broadcast %62 : vector<1x128xf32> to vector<16x128xf32>
      %84 = arith.addf %82, %83 : vector<16x128xf32>
      %85 = arith.truncf %84 : vector<16x128xf32> to vector<16x128xbf16>
      %c0_32 = arith.constant 0 : index
      %c0_33 = arith.constant 0 : index
      %86 = vector.load %arg7[%c0_32, %c0_33] : memref<16x128xbf16, #tpu.memory_space<vmem>>, vector<16x128xbf16>
      tpu.vector_store %arg7[%c0_32, %c0_33], %85 {strides = array<i32>} : memref<16x128xbf16, #tpu.memory_space<vmem>>, vector<16x128xbf16>,
    } else {
    }
    return
  }
  func.func @transform_0(%arg0: i32, %arg1: i32) -> (i32, i32) {
    %c0_i32 = arith.constant 0 : i32
    %c0_i32_0 = arith.constant 0 : i32
    return %arg0, %c0_i32 : i32, i32
  }
  func.func @transform_1(%arg0: i32, %arg1: i32) -> (i32, i32) {
    %c0_i32 = arith.constant 0 : i32
    %c0_i32_0 = arith.constant 0 : i32
    return %arg0, %c0_i32 : i32, i32
  }
  func.func @transform_2(%arg0: i32, %arg1: i32) -> (i32, i32, i32) {
    %c0_i32 = arith.constant 0 : i32
    %c0_i32_0 = arith.constant 0 : i32
    %c0_i32_1 = arith.constant 0 : i32
    return %arg1, %c0_i32, %c0_i32_0 : i32, i32, i32
  }
  func.func @transform_3(%arg0: i32, %arg1: i32) -> (i32, i32, i32) {
    %c0_i32 = arith.constant 0 : i32
    %c0_i32_0 = arith.constant 0 : i32
    %c0_i32_1 = arith.constant 0 : i32
    return %arg1, %c0_i32, %c0_i32_0 : i32, i32, i32
  }
  func.func @transform_4(%arg0: i32, %arg1: i32) -> (i32, i32) {
    %c0_i32 = arith.constant 0 : i32
    %c0_i32_0 = arith.constant 0 : i32
    %c0_i32_1 = arith.constant 0 : i32
    return %c0_i32, %c0_i32_0 : i32, i32
  }
  func.func @transform_5(%arg0: i32, %arg1: i32) -> (i32, i32) {
    %c0_i32 = arith.constant 0 : i32
    %c0_i32_0 = arith.constant 0 : i32
    return %arg0, %c0_i32 : i32, i32
  }
}

module attributes {stable_mosaic.version = 11 : i64} {
  func.func @_embed_kernel(%arg0: i32, %arg1: memref<8x8xf32, #tpu.memory_space<vmem>>, %arg2: memref<8x128xbf16, #tpu.memory_space<vmem>>, %arg3: memref<1x128xf32, #tpu.memory_space<vmem>>, %arg4: memref<8x128xf32, #tpu.memory_space<vmem>>, %arg5: memref<8x128xbf16, #tpu.memory_space<vmem>>) attributes {dimension_semantics = [#tpu.dimension_semantics<parallel>], iteration_bounds = array<i64: 8>, scalar_prefetch = 0 : i64, scratch_operands = 0 : i64, tpu.core_type = #tpu.core_type<tc>, window_params = [{transform_indices = @transform_0, window_bounds = array<i64: 8, 8>}, {pipeline_mode = #tpu.pipeline_mode<synchronous>, transform_indices = @transform_1, window_bounds = array<i64: 8, 128>}, {pipeline_mode = #tpu.pipeline_mode<synchronous>, transform_indices = @transform_2, window_bounds = array<i64: 1, 128>}, {pipeline_mode = #tpu.pipeline_mode<synchronous>, transform_indices = @transform_3, window_bounds = array<i64: 8, 128>}, {transform_indices = @transform_4, window_bounds = array<i64: 8, 128>}]} {
    %c0 = arith.constant 0 : index
    %c0_0 = arith.constant 0 : index
    %0 = vector.load %arg1[%c0, %c0_0] : memref<8x8xf32, #tpu.memory_space<vmem>>, vector<8x8xf32>
    %1 = arith.truncf %0 : vector<8x8xf32> to vector<8x8xbf16>
    %c0_1 = arith.constant 0 : index
    %c0_2 = arith.constant 0 : index
    %2 = vector.load %arg2[%c0_1, %c0_2] : memref<8x128xbf16, #tpu.memory_space<vmem>>, vector<8x128xbf16>
    %cst = arith.constant dense<0.000000e+00> : vector<8x128xf32>
    %3 = tpu.matmul %1, %2, %cst {dimension_numbers = #tpu.dot_dimension_numbers<[1], [0], [0], [1], [0, 0, 1, 1], [], []>} : vector<8x8xbf16>, vector<8x128xbf16>, vector<8x128xf32> -> vector<8x128xf32>
    %c0_3 = arith.constant 0 : index
    %c0_4 = arith.constant 0 : index
    %4 = vector.load %arg3[%c0_3, %c0_4] : memref<1x128xf32, #tpu.memory_space<vmem>>, vector<1x128xf32>
    %5 = vector.broadcast %4 : vector<1x128xf32> to vector<8x128xf32>
    %6 = arith.addf %3, %5 : vector<8x128xf32>
    %c0_5 = arith.constant 0 : index
    %c0_6 = arith.constant 0 : index
    %7 = vector.load %arg4[%c0_5, %c0_6] : memref<8x128xf32, #tpu.memory_space<vmem>>, vector<8x128xf32>
    %8 = arith.addf %6, %7 : vector<8x128xf32>
    %9 = arith.truncf %8 : vector<8x128xf32> to vector<8x128xbf16>
    %c0_7 = arith.constant 0 : index
    %c0_8 = arith.constant 0 : index
    %10 = vector.load %arg5[%c0_7, %c0_8] : memref<8x128xbf16, #tpu.memory_space<vmem>>, vector<8x128xbf16>
    tpu.vector_store %arg5[%c0_7, %c0_8], %9 {strides = array<i32>} : memref<8x128xbf16, #tpu.memory_space<vmem>>, vector<8x128xbf16>,
    return
  }
  func.func @transform_0(%arg0: i32) -> (i32, i32) {
    %c0_i32 = arith.constant 0 : i32
    %c0_i32_0 = arith.constant 0 : i32
    return %arg0, %c0_i32 : i32, i32
  }
  func.func @transform_1(%arg0: i32) -> (i32, i32) {
    %c0_i32 = arith.constant 0 : i32
    %c0_i32_0 = arith.constant 0 : i32
    %c0_i32_1 = arith.constant 0 : i32
    return %c0_i32, %c0_i32_0 : i32, i32
  }
  func.func @transform_2(%arg0: i32) -> (i32, i32) {
    %c0_i32 = arith.constant 0 : i32
    %c0_i32_0 = arith.constant 0 : i32
    %c0_i32_1 = arith.constant 0 : i32
    return %c0_i32, %c0_i32_0 : i32, i32
  }
  func.func @transform_3(%arg0: i32) -> (i32, i32) {
    %c0_i32 = arith.constant 0 : i32
    %c0_i32_0 = arith.constant 0 : i32
    %c0_i32_1 = arith.constant 0 : i32
    return %c0_i32, %c0_i32_0 : i32, i32
  }
  func.func @transform_4(%arg0: i32) -> (i32, i32) {
    %c0_i32 = arith.constant 0 : i32
    %c0_i32_0 = arith.constant 0 : i32
    return %arg0, %c0_i32 : i32, i32
  }
}

module attributes {stable_mosaic.version = 11 : i64} {
  func.func @_mha_kernel(%arg0: i32, %arg1: i32, %arg2: memref<8x128xbf16, #tpu.memory_space<vmem>>, %arg3: memref<8x128xbf16, #tpu.memory_space<vmem>>, %arg4: memref<1x512x32xbf16, #tpu.memory_space<vmem>>, %arg5: memref<1x8x32xf32, #tpu.memory_space<vmem>>, %arg6: memref<8x128xf32, #tpu.memory_space<vmem>>, %arg7: memref<8x128xbf16, #tpu.memory_space<vmem>>, %arg8: memref<8x128xf32, #tpu.memory_space<vmem>>) attributes {dimension_semantics = [#tpu.dimension_semantics<parallel>, #tpu.dimension_semantics<arbitrary>], iteration_bounds = array<i64: 8, 4>, scalar_prefetch = 0 : i64, scratch_operands = 1 : i64, tpu.core_type = #tpu.core_type<tc>, window_params = [{transform_indices = @transform_0, window_bounds = array<i64: 8, 128>}, {transform_indices = @transform_1, window_bounds = array<i64: 8, 128>}, {transform_indices = @transform_2, window_bounds = array<i64: 1, 512, 32>}, {transform_indices = @transform_3, window_bounds = array<i64: 1, 8, 32>}, {pipeline_mode = #tpu.pipeline_mode<synchronous>, transform_indices = @transform_4, window_bounds = array<i64: 8, 128>}, {transform_indices = @transform_5, window_bounds = array<i64: 8, 128>}]} {
    %c0_i32 = arith.constant 0 : i32
    %0 = arith.cmpi eq, %arg1, %c0_i32 : i32
    %1 = arith.extui %0 : i1 to i32
    %c0_i32_0 = arith.constant 0 : i32
    %2 = arith.cmpi ne, %1, %c0_i32_0 : i32
    scf.if %2 {
      %cst_22 = arith.constant 0.000000e+00 : f32
      %49 = vector.broadcast %cst_22 : f32 to vector<8x128xf32>
      %c0_23 = arith.constant 0 : index
      %c0_24 = arith.constant 0 : index
      %50 = vector.load %arg8[%c0_23, %c0_24] : memref<8x128xf32, #tpu.memory_space<vmem>>, vector<8x128xf32>
      tpu.vector_store %arg8[%c0_23, %c0_24], %49 {strides = array<i32>} : memref<8x128xf32, #tpu.memory_space<vmem>>, vector<8x128xf32>,
    } else {
    }
    %c0 = arith.constant 0 : index
    %c0_1 = arith.constant 0 : index
    %3 = vector.load %arg2[%c0, %c0_1] : memref<8x128xbf16, #tpu.memory_space<vmem>>, vector<8x128xbf16>
    %c0_2 = arith.constant 0 : index
    %c0_3 = arith.constant 0 : index
    %4 = vector.load %arg3[%c0_2, %c0_3] : memref<8x128xbf16, #tpu.memory_space<vmem>>, vector<8x128xbf16>
    %c0_4 = arith.constant 0 : index
    %c0_5 = arith.constant 0 : index
    %c0_6 = arith.constant 0 : index
    %5 = vector.load %arg4[%c0_4, %c0_5, %c0_6] : memref<1x512x32xbf16, #tpu.memory_space<vmem>>, vector<1x512x32xbf16>
    %6 = vector.shape_cast %5 : vector<1x512x32xbf16> to vector<512x32xbf16>
    %c0_7 = arith.constant 0 : index
    %c0_8 = arith.constant 0 : index
    %c0_9 = arith.constant 0 : index
    %7 = vector.load %arg5[%c0_7, %c0_8, %c0_9] : memref<1x8x32xf32, #tpu.memory_space<vmem>>, vector<1x8x32xf32>
    %8 = vector.shape_cast %7 : vector<1x8x32xf32> to vector<8x32xf32>
    %9 = vector.extract_strided_slice %6 {offsets = [0, 0], sizes = [128, 32], strides = [1, 1]} : vector<512x32xbf16> to vector<128x32xbf16>
    %cst = arith.constant dense<0.000000e+00> : vector<8x32xf32>
    %10 = tpu.matmul %3, %9, %cst {dimension_numbers = #tpu.dot_dimension_numbers<[1], [0], [0], [1], [0, 0, 1, 1], [], []>} : vector<8x128xbf16>, vector<128x32xbf16>, vector<8x32xf32> -> vector<8x32xf32>
    %11 = vector.extract_strided_slice %8 {offsets = [0, 0], sizes = [1, 32], strides = [1, 1]} : vector<8x32xf32> to vector<1x32xf32>
    %12 = vector.broadcast %11 : vector<1x32xf32> to vector<8x32xf32>
    %13 = arith.addf %10, %12 : vector<8x32xf32>
    %14 = vector.extract_strided_slice %6 {offsets = [128, 0], sizes = [128, 32], strides = [1, 1]} : vector<512x32xbf16> to vector<128x32xbf16>
    %cst_10 = arith.constant dense<0.000000e+00> : vector<8x32xf32>
    %15 = tpu.matmul %4, %14, %cst_10 {dimension_numbers = #tpu.dot_dimension_numbers<[1], [0], [0], [1], [0, 0, 1, 1], [], []>} : vector<8x128xbf16>, vector<128x32xbf16>, vector<8x32xf32> -> vector<8x32xf32>
    %16 = vector.extract_strided_slice %8 {offsets = [1, 0], sizes = [1, 32], strides = [1, 1]} : vector<8x32xf32> to vector<1x32xf32>
    %17 = vector.broadcast %16 : vector<1x32xf32> to vector<8x32xf32>
    %18 = arith.addf %15, %17 : vector<8x32xf32>
    %19 = vector.extract_strided_slice %6 {offsets = [256, 0], sizes = [128, 32], strides = [1, 1]} : vector<512x32xbf16> to vector<128x32xbf16>
    %cst_11 = arith.constant dense<0.000000e+00> : vector<8x32xf32>
    %20 = tpu.matmul %4, %19, %cst_11 {dimension_numbers = #tpu.dot_dimension_numbers<[1], [0], [0], [1], [0, 0, 1, 1], [], []>} : vector<8x128xbf16>, vector<128x32xbf16>, vector<8x32xf32> -> vector<8x32xf32>
    %21 = vector.extract_strided_slice %8 {offsets = [2, 0], sizes = [1, 32], strides = [1, 1]} : vector<8x32xf32> to vector<1x32xf32>
    %22 = vector.broadcast %21 : vector<1x32xf32> to vector<8x32xf32>
    %23 = arith.addf %20, %22 : vector<8x32xf32>
    %24 = arith.truncf %13 : vector<8x32xf32> to vector<8x32xbf16>
    %25 = arith.truncf %18 : vector<8x32xf32> to vector<8x32xbf16>
    %cst_12 = arith.constant dense<0.000000e+00> : vector<8x8xf32>
    %26 = tpu.matmul %24, %25, %cst_12 {dimension_numbers = #tpu.dot_dimension_numbers<[1], [1], [0], [0], [0, 0, 1, 0], [], []>} : vector<8x32xbf16>, vector<8x32xbf16>, vector<8x8xf32> -> vector<8x8xf32>
    %cst_13 = arith.constant dense<0xFF800000> : vector<8xf32>
    %27 = vector.multi_reduction <maximumf>, %26, %cst_13 [1] : vector<8x8xf32> to vector<8xf32>
    %28 = vector.shape_cast %27 : vector<8xf32> to vector<8x1xf32>
    %29 = vector.broadcast %28 : vector<8x1xf32> to vector<8x8xf32>
    %30 = arith.subf %26, %29 : vector<8x8xf32>
    %31 = math.exp %30 : vector<8x8xf32>
    %cst_14 = arith.constant dense<0.000000e+00> : vector<8xf32>
    %32 = vector.multi_reduction <add>, %31, %cst_14 [1] : vector<8x8xf32> to vector<8xf32>
    %33 = vector.shape_cast %32 : vector<8xf32> to vector<8x1xf32>
    %34 = tpu.reciprocal %33 {approx = true} : vector<8x1xf32> -> vector<8x1xf32>
    %35 = vector.broadcast %34 : vector<8x1xf32> to vector<8x8xf32>
    %36 = arith.mulf %31, %35 : vector<8x8xf32>
    %37 = arith.truncf %36 : vector<8x8xf32> to vector<8x8xbf16>
    %38 = arith.truncf %23 : vector<8x32xf32> to vector<8x32xbf16>
    %cst_15 = arith.constant dense<0.000000e+00> : vector<8x32xf32>
    %39 = tpu.matmul %37, %38, %cst_15 {dimension_numbers = #tpu.dot_dimension_numbers<[1], [0], [0], [1], [0, 0, 1, 1], [], []>} : vector<8x8xbf16>, vector<8x32xbf16>, vector<8x32xf32> -> vector<8x32xf32>
    %c0_16 = arith.constant 0 : index
    %c0_17 = arith.constant 0 : index
    %40 = vector.load %arg8[%c0_16, %c0_17] : memref<8x128xf32, #tpu.memory_space<vmem>>, vector<8x128xf32>
    %41 = arith.truncf %39 : vector<8x32xf32> to vector<8x32xbf16>
    %42 = vector.extract_strided_slice %6 {offsets = [384, 0], sizes = [128, 32], strides = [1, 1]} : vector<512x32xbf16> to vector<128x32xbf16>
    %cst_18 = arith.constant dense<0.000000e+00> : vector<8x128xf32>
    %43 = tpu.matmul %41, %42, %cst_18 {dimension_numbers = #tpu.dot_dimension_numbers<[1], [1], [0], [0], [0, 0, 1, 0], [], []>} : vector<8x32xbf16>, vector<128x32xbf16>, vector<8x128xf32> -> vector<8x128xf32>
    %44 = arith.addf %40, %43 : vector<8x128xf32>
    %c0_19 = arith.constant 0 : index
    %c0_20 = arith.constant 0 : index
    %45 = vector.load %arg8[%c0_19, %c0_20] : memref<8x128xf32, #tpu.memory_space<vmem>>, vector<8x128xf32>
    tpu.vector_store %arg8[%c0_19, %c0_20], %44 {strides = array<i32>} : memref<8x128xf32, #tpu.memory_space<vmem>>, vector<8x128xf32>,
    %c3_i32 = arith.constant 3 : i32
    %46 = arith.cmpi eq, %arg1, %c3_i32 : i32
    %47 = arith.extui %46 : i1 to i32
    %c0_i32_21 = arith.constant 0 : i32
    %48 = arith.cmpi ne, %47, %c0_i32_21 : i32
    scf.if %48 {
      %c0_22 = arith.constant 0 : index
      %c0_23 = arith.constant 0 : index
      %49 = vector.load %arg6[%c0_22, %c0_23] : memref<8x128xf32, #tpu.memory_space<vmem>>, vector<8x128xf32>
      %50 = arith.extf %3 : vector<8x128xbf16> to vector<8x128xf32>
      %c0_24 = arith.constant 0 : index
      %c0_25 = arith.constant 0 : index
      %51 = vector.load %arg8[%c0_24, %c0_25] : memref<8x128xf32, #tpu.memory_space<vmem>>, vector<8x128xf32>
      %52 = arith.addf %50, %51 : vector<8x128xf32>
      %53 = vector.extract_strided_slice %49 {offsets = [0, 0], sizes = [1, 128], strides = [1, 1]} : vector<8x128xf32> to vector<1x128xf32>
      %54 = vector.broadcast %53 : vector<1x128xf32> to vector<8x128xf32>
      %55 = arith.addf %52, %54 : vector<8x128xf32>
      %56 = vector.extract_strided_slice %49 {offsets = [1, 0], sizes = [1, 128], strides = [1, 1]} : vector<8x128xf32> to vector<1x128xf32>
      %57 = vector.extract_strided_slice %49 {offsets = [2, 0], sizes = [1, 128], strides = [1, 1]} : vector<8x128xf32> to vector<1x128xf32>
      %cst_26 = arith.constant dense<0.000000e+00> : vector<8xf32>
      %58 = vector.multi_reduction <add>, %55, %cst_26 [1] : vector<8x128xf32> to vector<8xf32>
      %59 = vector.shape_cast %58 : vector<8xf32> to vector<8x1xf32>
      %cst_27 = arith.constant 1.280000e+02 : f32
      %60 = vector.broadcast %cst_27 : f32 to vector<8x1xf32>
      %61 = arith.divf %59, %60 : vector<8x1xf32>
      %62 = vector.broadcast %61 : vector<8x1xf32> to vector<8x128xf32>
      %63 = arith.subf %55, %62 : vector<8x128xf32>
      %64 = arith.mulf %63, %63 : vector<8x128xf32>
      %cst_28 = arith.constant dense<0.000000e+00> : vector<8xf32>
      %65 = vector.multi_reduction <add>, %64, %cst_28 [1] : vector<8x128xf32> to vector<8xf32>
      %66 = vector.shape_cast %65 : vector<8xf32> to vector<8x1xf32>
      %cst_29 = arith.constant 1.280000e+02 : f32
      %67 = vector.broadcast %cst_29 : f32 to vector<8x1xf32>
      %68 = arith.divf %66, %67 : vector<8x1xf32>
      %69 = vector.broadcast %61 : vector<8x1xf32> to vector<8x128xf32>
      %70 = arith.subf %55, %69 : vector<8x128xf32>
      %cst_30 = arith.constant 9.99999974E-6 : f32
      %71 = vector.broadcast %cst_30 : f32 to vector<8x1xf32>
      %72 = arith.addf %68, %71 : vector<8x1xf32>
      %73 = math.rsqrt %72 : vector<8x1xf32>
      %74 = vector.broadcast %73 : vector<8x1xf32> to vector<8x128xf32>
      %75 = arith.mulf %70, %74 : vector<8x128xf32>
      %76 = vector.broadcast %56 : vector<1x128xf32> to vector<8x128xf32>
      %77 = arith.mulf %75, %76 : vector<8x128xf32>
      %78 = vector.broadcast %57 : vector<1x128xf32> to vector<8x128xf32>
      %79 = arith.addf %77, %78 : vector<8x128xf32>
      %80 = arith.truncf %79 : vector<8x128xf32> to vector<8x128xbf16>
      %c0_31 = arith.constant 0 : index
      %c0_32 = arith.constant 0 : index
      %81 = vector.load %arg7[%c0_31, %c0_32] : memref<8x128xbf16, #tpu.memory_space<vmem>>, vector<8x128xbf16>
      tpu.vector_store %arg7[%c0_31, %c0_32], %80 {strides = array<i32>} : memref<8x128xbf16, #tpu.memory_space<vmem>>, vector<8x128xbf16>,
    } else {
    }
    return
  }
  func.func @transform_0(%arg0: i32, %arg1: i32) -> (i32, i32) {
    %c0_i32 = arith.constant 0 : i32
    %c0_i32_0 = arith.constant 0 : i32
    return %arg0, %c0_i32 : i32, i32
  }
  func.func @transform_1(%arg0: i32, %arg1: i32) -> (i32, i32) {
    %c0_i32 = arith.constant 0 : i32
    %c0_i32_0 = arith.constant 0 : i32
    return %arg0, %c0_i32 : i32, i32
  }
  func.func @transform_2(%arg0: i32, %arg1: i32) -> (i32, i32, i32) {
    %c0_i32 = arith.constant 0 : i32
    %c0_i32_0 = arith.constant 0 : i32
    %c0_i32_1 = arith.constant 0 : i32
    return %arg1, %c0_i32, %c0_i32_0 : i32, i32, i32
  }
  func.func @transform_3(%arg0: i32, %arg1: i32) -> (i32, i32, i32) {
    %c0_i32 = arith.constant 0 : i32
    %c0_i32_0 = arith.constant 0 : i32
    %c0_i32_1 = arith.constant 0 : i32
    return %arg1, %c0_i32, %c0_i32_0 : i32, i32, i32
  }
  func.func @transform_4(%arg0: i32, %arg1: i32) -> (i32, i32) {
    %c0_i32 = arith.constant 0 : i32
    %c0_i32_0 = arith.constant 0 : i32
    %c0_i32_1 = arith.constant 0 : i32
    return %c0_i32, %c0_i32_0 : i32, i32
  }
  func.func @transform_5(%arg0: i32, %arg1: i32) -> (i32, i32) {
    %c0_i32 = arith.constant 0 : i32
    %c0_i32_0 = arith.constant 0 : i32
    return %arg0, %c0_i32 : i32, i32
  }
}

module attributes {stable_mosaic.version = 11 : i64} {
  func.func @_ffn_kernel(%arg0: i32, %arg1: memref<64x128xbf16, #tpu.memory_space<vmem>>, %arg2: memref<128x256xbf16, #tpu.memory_space<vmem>>, %arg3: memref<1x256xf32, #tpu.memory_space<vmem>>, %arg4: memref<256x128xbf16, #tpu.memory_space<vmem>>, %arg5: memref<8x128xf32, #tpu.memory_space<vmem>>, %arg6: memref<64x128xbf16, #tpu.memory_space<vmem>>) attributes {dimension_semantics = [#tpu.dimension_semantics<parallel>], iteration_bounds = array<i64: 1>, scalar_prefetch = 0 : i64, scratch_operands = 0 : i64, tpu.core_type = #tpu.core_type<tc>, window_params = [{transform_indices = @transform_0, window_bounds = array<i64: 64, 128>}, {pipeline_mode = #tpu.pipeline_mode<synchronous>, transform_indices = @transform_1, window_bounds = array<i64: 128, 256>}, {pipeline_mode = #tpu.pipeline_mode<synchronous>, transform_indices = @transform_2, window_bounds = array<i64: 1, 256>}, {pipeline_mode = #tpu.pipeline_mode<synchronous>, transform_indices = @transform_3, window_bounds = array<i64: 256, 128>}, {pipeline_mode = #tpu.pipeline_mode<synchronous>, transform_indices = @transform_4, window_bounds = array<i64: 8, 128>}, {transform_indices = @transform_5, window_bounds = array<i64: 64, 128>}]} {
    %c0 = arith.constant 0 : index
    %c0_0 = arith.constant 0 : index
    %0 = vector.load %arg1[%c0, %c0_0] : memref<64x128xbf16, #tpu.memory_space<vmem>>, vector<64x128xbf16>
    %c0_1 = arith.constant 0 : index
    %c0_2 = arith.constant 0 : index
    %1 = vector.load %arg2[%c0_1, %c0_2] : memref<128x256xbf16, #tpu.memory_space<vmem>>, vector<128x256xbf16>
    %cst = arith.constant dense<0.000000e+00> : vector<64x256xf32>
    %2 = tpu.matmul %0, %1, %cst {dimension_numbers = #tpu.dot_dimension_numbers<[1], [0], [0], [1], [0, 0, 1, 1], [], []>} : vector<64x128xbf16>, vector<128x256xbf16>, vector<64x256xf32> -> vector<64x256xf32>
    %c0_3 = arith.constant 0 : index
    %c0_4 = arith.constant 0 : index
    %3 = vector.load %arg3[%c0_3, %c0_4] : memref<1x256xf32, #tpu.memory_space<vmem>>, vector<1x256xf32>
    %4 = vector.broadcast %3 : vector<1x256xf32> to vector<64x256xf32>
    %5 = arith.addf %2, %4 : vector<64x256xf32>
    %6 = arith.mulf %5, %5 : vector<64x256xf32>
    %7 = arith.mulf %5, %6 : vector<64x256xf32>
    %cst_5 = arith.constant 4.471500e-02 : f32
    %8 = vector.broadcast %cst_5 : f32 to vector<64x256xf32>
    %9 = arith.mulf %8, %7 : vector<64x256xf32>
    %10 = arith.addf %5, %9 : vector<64x256xf32>
    %cst_6 = arith.constant 0.797884583 : f32
    %11 = vector.broadcast %cst_6 : f32 to vector<64x256xf32>
    %12 = arith.mulf %11, %10 : vector<64x256xf32>
    %13 = math.tanh %12 : vector<64x256xf32>
    %cst_7 = arith.constant 1.000000e+00 : f32
    %14 = vector.broadcast %cst_7 : f32 to vector<64x256xf32>
    %15 = arith.addf %14, %13 : vector<64x256xf32>
    %cst_8 = arith.constant 5.000000e-01 : f32
    %16 = vector.broadcast %cst_8 : f32 to vector<64x256xf32>
    %17 = arith.mulf %16, %15 : vector<64x256xf32>
    %18 = arith.mulf %5, %17 : vector<64x256xf32>
    %19 = arith.truncf %18 : vector<64x256xf32> to vector<64x256xbf16>
    %c0_9 = arith.constant 0 : index
    %c0_10 = arith.constant 0 : index
    %20 = vector.load %arg4[%c0_9, %c0_10] : memref<256x128xbf16, #tpu.memory_space<vmem>>, vector<256x128xbf16>
    %cst_11 = arith.constant dense<0.000000e+00> : vector<64x128xf32>
    %21 = tpu.matmul %19, %20, %cst_11 {dimension_numbers = #tpu.dot_dimension_numbers<[1], [0], [0], [1], [0, 0, 1, 1], [], []>} : vector<64x256xbf16>, vector<256x128xbf16>, vector<64x128xf32> -> vector<64x128xf32>
    %c0_12 = arith.constant 0 : index
    %c0_13 = arith.constant 0 : index
    %22 = vector.load %arg5[%c0_12, %c0_13] : memref<8x128xf32, #tpu.memory_space<vmem>>, vector<8x128xf32>
    %23 = arith.extf %0 : vector<64x128xbf16> to vector<64x128xf32>
    %24 = arith.addf %23, %21 : vector<64x128xf32>
    %25 = vector.extract_strided_slice %22 {offsets = [0, 0], sizes = [1, 128], strides = [1, 1]} : vector<8x128xf32> to vector<1x128xf32>
    %26 = vector.broadcast %25 : vector<1x128xf32> to vector<64x128xf32>
    %27 = arith.addf %24, %26 : vector<64x128xf32>
    %28 = vector.extract_strided_slice %22 {offsets = [1, 0], sizes = [1, 128], strides = [1, 1]} : vector<8x128xf32> to vector<1x128xf32>
    %29 = vector.extract_strided_slice %22 {offsets = [2, 0], sizes = [1, 128], strides = [1, 1]} : vector<8x128xf32> to vector<1x128xf32>
    %cst_14 = arith.constant dense<0.000000e+00> : vector<64xf32>
    %30 = vector.multi_reduction <add>, %27, %cst_14 [1] : vector<64x128xf32> to vector<64xf32>
    %31 = vector.shape_cast %30 : vector<64xf32> to vector<64x1xf32>
    %cst_15 = arith.constant 1.280000e+02 : f32
    %32 = vector.broadcast %cst_15 : f32 to vector<64x1xf32>
    %33 = arith.divf %31, %32 : vector<64x1xf32>
    %34 = vector.broadcast %33 : vector<64x1xf32> to vector<64x128xf32>
    %35 = arith.subf %27, %34 : vector<64x128xf32>
    %36 = arith.mulf %35, %35 : vector<64x128xf32>
    %cst_16 = arith.constant dense<0.000000e+00> : vector<64xf32>
    %37 = vector.multi_reduction <add>, %36, %cst_16 [1] : vector<64x128xf32> to vector<64xf32>
    %38 = vector.shape_cast %37 : vector<64xf32> to vector<64x1xf32>
    %cst_17 = arith.constant 1.280000e+02 : f32
    %39 = vector.broadcast %cst_17 : f32 to vector<64x1xf32>
    %40 = arith.divf %38, %39 : vector<64x1xf32>
    %41 = vector.broadcast %33 : vector<64x1xf32> to vector<64x128xf32>
    %42 = arith.subf %27, %41 : vector<64x128xf32>
    %cst_18 = arith.constant 9.99999974E-6 : f32
    %43 = vector.broadcast %cst_18 : f32 to vector<64x1xf32>
    %44 = arith.addf %40, %43 : vector<64x1xf32>
    %45 = math.rsqrt %44 : vector<64x1xf32>
    %46 = vector.broadcast %45 : vector<64x1xf32> to vector<64x128xf32>
    %47 = arith.mulf %42, %46 : vector<64x128xf32>
    %48 = vector.broadcast %28 : vector<1x128xf32> to vector<64x128xf32>
    %49 = arith.mulf %47, %48 : vector<64x128xf32>
    %50 = vector.broadcast %29 : vector<1x128xf32> to vector<64x128xf32>
    %51 = arith.addf %49, %50 : vector<64x128xf32>
    %52 = arith.truncf %51 : vector<64x128xf32> to vector<64x128xbf16>
    %c0_19 = arith.constant 0 : index
    %c0_20 = arith.constant 0 : index
    %53 = vector.load %arg6[%c0_19, %c0_20] : memref<64x128xbf16, #tpu.memory_space<vmem>>, vector<64x128xbf16>
    tpu.vector_store %arg6[%c0_19, %c0_20], %52 {strides = array<i32>} : memref<64x128xbf16, #tpu.memory_space<vmem>>, vector<64x128xbf16>,
    return
  }
  func.func @transform_0(%arg0: i32) -> (i32, i32) {
    %c0_i32 = arith.constant 0 : i32
    %c0_i32_0 = arith.constant 0 : i32
    return %arg0, %c0_i32 : i32, i32
  }
  func.func @transform_1(%arg0: i32) -> (i32, i32) {
    %c0_i32 = arith.constant 0 : i32
    %c0_i32_0 = arith.constant 0 : i32
    %c0_i32_1 = arith.constant 0 : i32
    return %c0_i32, %c0_i32_0 : i32, i32
  }
  func.func @transform_2(%arg0: i32) -> (i32, i32) {
    %c0_i32 = arith.constant 0 : i32
    %c0_i32_0 = arith.constant 0 : i32
    %c0_i32_1 = arith.constant 0 : i32
    return %c0_i32, %c0_i32_0 : i32, i32
  }
  func.func @transform_3(%arg0: i32) -> (i32, i32) {
    %c0_i32 = arith.constant 0 : i32
    %c0_i32_0 = arith.constant 0 : i32
    %c0_i32_1 = arith.constant 0 : i32
    return %c0_i32, %c0_i32_0 : i32, i32
  }
  func.func @transform_4(%arg0: i32) -> (i32, i32) {
    %c0_i32 = arith.constant 0 : i32
    %c0_i32_0 = arith.constant 0 : i32
    %c0_i32_1 = arith.constant 0 : i32
    return %c0_i32, %c0_i32_0 : i32, i32
  }
  func.func @transform_5(%arg0: i32) -> (i32, i32) {
    %c0_i32 = arith.constant 0 : i32
    %c0_i32_0 = arith.constant 0 : i32
    return %arg0, %c0_i32 : i32, i32
  }
}

module attributes {stable_mosaic.version = 11 : i64} {
  func.func @_ln_kernel(%arg0: i32, %arg1: memref<64x128xbf16, #tpu.memory_space<vmem>>, %arg2: memref<8x128xf32, #tpu.memory_space<vmem>>, %arg3: memref<64x128xbf16, #tpu.memory_space<vmem>>) attributes {dimension_semantics = [#tpu.dimension_semantics<parallel>], iteration_bounds = array<i64: 1>, scalar_prefetch = 0 : i64, scratch_operands = 0 : i64, tpu.core_type = #tpu.core_type<tc>, window_params = [{transform_indices = @transform_0, window_bounds = array<i64: 64, 128>}, {pipeline_mode = #tpu.pipeline_mode<synchronous>, transform_indices = @transform_1, window_bounds = array<i64: 8, 128>}, {transform_indices = @transform_2, window_bounds = array<i64: 64, 128>}]} {
    %c0 = arith.constant 0 : index
    %c0_0 = arith.constant 0 : index
    %0 = vector.load %arg2[%c0, %c0_0] : memref<8x128xf32, #tpu.memory_space<vmem>>, vector<8x128xf32>
    %c0_1 = arith.constant 0 : index
    %c0_2 = arith.constant 0 : index
    %1 = vector.load %arg1[%c0_1, %c0_2] : memref<64x128xbf16, #tpu.memory_space<vmem>>, vector<64x128xbf16>
    %2 = arith.extf %1 : vector<64x128xbf16> to vector<64x128xf32>
    %3 = vector.extract_strided_slice %0 {offsets = [1, 0], sizes = [1, 128], strides = [1, 1]} : vector<8x128xf32> to vector<1x128xf32>
    %4 = vector.extract_strided_slice %0 {offsets = [2, 0], sizes = [1, 128], strides = [1, 1]} : vector<8x128xf32> to vector<1x128xf32>
    %cst = arith.constant dense<0.000000e+00> : vector<64xf32>
    %5 = vector.multi_reduction <add>, %2, %cst [1] : vector<64x128xf32> to vector<64xf32>
    %6 = vector.shape_cast %5 : vector<64xf32> to vector<64x1xf32>
    %cst_3 = arith.constant 1.280000e+02 : f32
    %7 = vector.broadcast %cst_3 : f32 to vector<64x1xf32>
    %8 = arith.divf %6, %7 : vector<64x1xf32>
    %9 = vector.broadcast %8 : vector<64x1xf32> to vector<64x128xf32>
    %10 = arith.subf %2, %9 : vector<64x128xf32>
    %11 = arith.mulf %10, %10 : vector<64x128xf32>
    %cst_4 = arith.constant dense<0.000000e+00> : vector<64xf32>
    %12 = vector.multi_reduction <add>, %11, %cst_4 [1] : vector<64x128xf32> to vector<64xf32>
    %13 = vector.shape_cast %12 : vector<64xf32> to vector<64x1xf32>
    %cst_5 = arith.constant 1.280000e+02 : f32
    %14 = vector.broadcast %cst_5 : f32 to vector<64x1xf32>
    %15 = arith.divf %13, %14 : vector<64x1xf32>
    %16 = vector.broadcast %8 : vector<64x1xf32> to vector<64x128xf32>
    %17 = arith.subf %2, %16 : vector<64x128xf32>
    %cst_6 = arith.constant 9.99999974E-6 : f32
    %18 = vector.broadcast %cst_6 : f32 to vector<64x1xf32>
    %19 = arith.addf %15, %18 : vector<64x1xf32>
    %20 = math.rsqrt %19 : vector<64x1xf32>
    %21 = vector.broadcast %20 : vector<64x1xf32> to vector<64x128xf32>
    %22 = arith.mulf %17, %21 : vector<64x128xf32>
    %23 = vector.broadcast %3 : vector<1x128xf32> to vector<64x128xf32>
    %24 = arith.mulf %22, %23 : vector<64x128xf32>
    %25 = vector.broadcast %4 : vector<1x128xf32> to vector<64x128xf32>
    %26 = arith.addf %24, %25 : vector<64x128xf32>
    %27 = arith.truncf %26 : vector<64x128xf32> to vector<64x128xbf16>
    %c0_7 = arith.constant 0 : index
    %c0_8 = arith.constant 0 : index
    %28 = vector.load %arg3[%c0_7, %c0_8] : memref<64x128xbf16, #tpu.memory_space<vmem>>, vector<64x128xbf16>
    tpu.vector_store %arg3[%c0_7, %c0_8], %27 {strides = array<i32>} : memref<64x128xbf16, #tpu.memory_space<vmem>>, vector<64x128xbf16>,
    return
  }
  func.func @transform_0(%arg0: i32) -> (i32, i32) {
    %c0_i32 = arith.constant 0 : i32
    %c0_i32_0 = arith.constant 0 : i32
    return %arg0, %c0_i32 : i32, i32
  }
  func.func @transform_1(%arg0: i32) -> (i32, i32) {
    %c0_i32 = arith.constant 0 : i32
    %c0_i32_0 = arith.constant 0 : i32
    %c0_i32_1 = arith.constant 0 : i32
    return %c0_i32, %c0_i32_0 : i32, i32
  }
  func.func @transform_2(%arg0: i32) -> (i32, i32) {
    %c0_i32 = arith.constant 0 : i32
    %c0_i32_0 = arith.constant 0 : i32
    return %arg0, %c0_i32 : i32, i32
  }
}

module attributes {stable_mosaic.version = 11 : i64} {
  func.func @_mha_kernel(%arg0: i32, %arg1: i32, %arg2: memref<16x128xbf16, #tpu.memory_space<vmem>>, %arg3: memref<8x128xbf16, #tpu.memory_space<vmem>>, %arg4: memref<1x512x32xbf16, #tpu.memory_space<vmem>>, %arg5: memref<1x8x32xf32, #tpu.memory_space<vmem>>, %arg6: memref<8x128xf32, #tpu.memory_space<vmem>>, %arg7: memref<16x128xbf16, #tpu.memory_space<vmem>>, %arg8: memref<16x128xf32, #tpu.memory_space<vmem>>) attributes {dimension_semantics = [#tpu.dimension_semantics<parallel>, #tpu.dimension_semantics<arbitrary>], iteration_bounds = array<i64: 8, 4>, scalar_prefetch = 0 : i64, scratch_operands = 1 : i64, tpu.core_type = #tpu.core_type<tc>, window_params = [{transform_indices = @transform_0, window_bounds = array<i64: 16, 128>}, {transform_indices = @transform_1, window_bounds = array<i64: 8, 128>}, {transform_indices = @transform_2, window_bounds = array<i64: 1, 512, 32>}, {transform_indices = @transform_3, window_bounds = array<i64: 1, 8, 32>}, {pipeline_mode = #tpu.pipeline_mode<synchronous>, transform_indices = @transform_4, window_bounds = array<i64: 8, 128>}, {transform_indices = @transform_5, window_bounds = array<i64: 16, 128>}]} {
    %c0_i32 = arith.constant 0 : i32
    %0 = arith.cmpi eq, %arg1, %c0_i32 : i32
    %1 = arith.extui %0 : i1 to i32
    %c0_i32_0 = arith.constant 0 : i32
    %2 = arith.cmpi ne, %1, %c0_i32_0 : i32
    scf.if %2 {
      %cst_22 = arith.constant 0.000000e+00 : f32
      %49 = vector.broadcast %cst_22 : f32 to vector<16x128xf32>
      %c0_23 = arith.constant 0 : index
      %c0_24 = arith.constant 0 : index
      %50 = vector.load %arg8[%c0_23, %c0_24] : memref<16x128xf32, #tpu.memory_space<vmem>>, vector<16x128xf32>
      tpu.vector_store %arg8[%c0_23, %c0_24], %49 {strides = array<i32>} : memref<16x128xf32, #tpu.memory_space<vmem>>, vector<16x128xf32>,
    } else {
    }
    %c0 = arith.constant 0 : index
    %c0_1 = arith.constant 0 : index
    %3 = vector.load %arg2[%c0, %c0_1] : memref<16x128xbf16, #tpu.memory_space<vmem>>, vector<16x128xbf16>
    %c0_2 = arith.constant 0 : index
    %c0_3 = arith.constant 0 : index
    %4 = vector.load %arg3[%c0_2, %c0_3] : memref<8x128xbf16, #tpu.memory_space<vmem>>, vector<8x128xbf16>
    %c0_4 = arith.constant 0 : index
    %c0_5 = arith.constant 0 : index
    %c0_6 = arith.constant 0 : index
    %5 = vector.load %arg4[%c0_4, %c0_5, %c0_6] : memref<1x512x32xbf16, #tpu.memory_space<vmem>>, vector<1x512x32xbf16>
    %6 = vector.shape_cast %5 : vector<1x512x32xbf16> to vector<512x32xbf16>
    %c0_7 = arith.constant 0 : index
    %c0_8 = arith.constant 0 : index
    %c0_9 = arith.constant 0 : index
    %7 = vector.load %arg5[%c0_7, %c0_8, %c0_9] : memref<1x8x32xf32, #tpu.memory_space<vmem>>, vector<1x8x32xf32>
    %8 = vector.shape_cast %7 : vector<1x8x32xf32> to vector<8x32xf32>
    %9 = vector.extract_strided_slice %6 {offsets = [0, 0], sizes = [128, 32], strides = [1, 1]} : vector<512x32xbf16> to vector<128x32xbf16>
    %cst = arith.constant dense<0.000000e+00> : vector<16x32xf32>
    %10 = tpu.matmul %3, %9, %cst {dimension_numbers = #tpu.dot_dimension_numbers<[1], [0], [0], [1], [0, 0, 1, 1], [], []>} : vector<16x128xbf16>, vector<128x32xbf16>, vector<16x32xf32> -> vector<16x32xf32>
    %11 = vector.extract_strided_slice %8 {offsets = [0, 0], sizes = [1, 32], strides = [1, 1]} : vector<8x32xf32> to vector<1x32xf32>
    %12 = vector.broadcast %11 : vector<1x32xf32> to vector<16x32xf32>
    %13 = arith.addf %10, %12 : vector<16x32xf32>
    %14 = vector.extract_strided_slice %6 {offsets = [128, 0], sizes = [128, 32], strides = [1, 1]} : vector<512x32xbf16> to vector<128x32xbf16>
    %cst_10 = arith.constant dense<0.000000e+00> : vector<8x32xf32>
    %15 = tpu.matmul %4, %14, %cst_10 {dimension_numbers = #tpu.dot_dimension_numbers<[1], [0], [0], [1], [0, 0, 1, 1], [], []>} : vector<8x128xbf16>, vector<128x32xbf16>, vector<8x32xf32> -> vector<8x32xf32>
    %16 = vector.extract_strided_slice %8 {offsets = [1, 0], sizes = [1, 32], strides = [1, 1]} : vector<8x32xf32> to vector<1x32xf32>
    %17 = vector.broadcast %16 : vector<1x32xf32> to vector<8x32xf32>
    %18 = arith.addf %15, %17 : vector<8x32xf32>
    %19 = vector.extract_strided_slice %6 {offsets = [256, 0], sizes = [128, 32], strides = [1, 1]} : vector<512x32xbf16> to vector<128x32xbf16>
    %cst_11 = arith.constant dense<0.000000e+00> : vector<8x32xf32>
    %20 = tpu.matmul %4, %19, %cst_11 {dimension_numbers = #tpu.dot_dimension_numbers<[1], [0], [0], [1], [0, 0, 1, 1], [], []>} : vector<8x128xbf16>, vector<128x32xbf16>, vector<8x32xf32> -> vector<8x32xf32>
    %21 = vector.extract_strided_slice %8 {offsets = [2, 0], sizes = [1, 32], strides = [1, 1]} : vector<8x32xf32> to vector<1x32xf32>
    %22 = vector.broadcast %21 : vector<1x32xf32> to vector<8x32xf32>
    %23 = arith.addf %20, %22 : vector<8x32xf32>
    %24 = arith.truncf %13 : vector<16x32xf32> to vector<16x32xbf16>
    %25 = arith.truncf %18 : vector<8x32xf32> to vector<8x32xbf16>
    %cst_12 = arith.constant dense<0.000000e+00> : vector<16x8xf32>
    %26 = tpu.matmul %24, %25, %cst_12 {dimension_numbers = #tpu.dot_dimension_numbers<[1], [1], [0], [0], [0, 0, 1, 0], [], []>} : vector<16x32xbf16>, vector<8x32xbf16>, vector<16x8xf32> -> vector<16x8xf32>
    %cst_13 = arith.constant dense<0xFF800000> : vector<16xf32>
    %27 = vector.multi_reduction <maximumf>, %26, %cst_13 [1] : vector<16x8xf32> to vector<16xf32>
    %28 = vector.shape_cast %27 : vector<16xf32> to vector<16x1xf32>
    %29 = vector.broadcast %28 : vector<16x1xf32> to vector<16x8xf32>
    %30 = arith.subf %26, %29 : vector<16x8xf32>
    %31 = math.exp %30 : vector<16x8xf32>
    %cst_14 = arith.constant dense<0.000000e+00> : vector<16xf32>
    %32 = vector.multi_reduction <add>, %31, %cst_14 [1] : vector<16x8xf32> to vector<16xf32>
    %33 = vector.shape_cast %32 : vector<16xf32> to vector<16x1xf32>
    %34 = tpu.reciprocal %33 {approx = true} : vector<16x1xf32> -> vector<16x1xf32>
    %35 = vector.broadcast %34 : vector<16x1xf32> to vector<16x8xf32>
    %36 = arith.mulf %31, %35 : vector<16x8xf32>
    %37 = arith.truncf %36 : vector<16x8xf32> to vector<16x8xbf16>
    %38 = arith.truncf %23 : vector<8x32xf32> to vector<8x32xbf16>
    %cst_15 = arith.constant dense<0.000000e+00> : vector<16x32xf32>
    %39 = tpu.matmul %37, %38, %cst_15 {dimension_numbers = #tpu.dot_dimension_numbers<[1], [0], [0], [1], [0, 0, 1, 1], [], []>} : vector<16x8xbf16>, vector<8x32xbf16>, vector<16x32xf32> -> vector<16x32xf32>
    %c0_16 = arith.constant 0 : index
    %c0_17 = arith.constant 0 : index
    %40 = vector.load %arg8[%c0_16, %c0_17] : memref<16x128xf32, #tpu.memory_space<vmem>>, vector<16x128xf32>
    %41 = arith.truncf %39 : vector<16x32xf32> to vector<16x32xbf16>
    %42 = vector.extract_strided_slice %6 {offsets = [384, 0], sizes = [128, 32], strides = [1, 1]} : vector<512x32xbf16> to vector<128x32xbf16>
    %cst_18 = arith.constant dense<0.000000e+00> : vector<16x128xf32>
    %43 = tpu.matmul %41, %42, %cst_18 {dimension_numbers = #tpu.dot_dimension_numbers<[1], [1], [0], [0], [0, 0, 1, 0], [], []>} : vector<16x32xbf16>, vector<128x32xbf16>, vector<16x128xf32> -> vector<16x128xf32>
    %44 = arith.addf %40, %43 : vector<16x128xf32>
    %c0_19 = arith.constant 0 : index
    %c0_20 = arith.constant 0 : index
    %45 = vector.load %arg8[%c0_19, %c0_20] : memref<16x128xf32, #tpu.memory_space<vmem>>, vector<16x128xf32>
    tpu.vector_store %arg8[%c0_19, %c0_20], %44 {strides = array<i32>} : memref<16x128xf32, #tpu.memory_space<vmem>>, vector<16x128xf32>,
    %c3_i32 = arith.constant 3 : i32
    %46 = arith.cmpi eq, %arg1, %c3_i32 : i32
    %47 = arith.extui %46 : i1 to i32
    %c0_i32_21 = arith.constant 0 : i32
    %48 = arith.cmpi ne, %47, %c0_i32_21 : i32
    scf.if %48 {
      %c0_22 = arith.constant 0 : index
      %c0_23 = arith.constant 0 : index
      %49 = vector.load %arg6[%c0_22, %c0_23] : memref<8x128xf32, #tpu.memory_space<vmem>>, vector<8x128xf32>
      %50 = arith.extf %3 : vector<16x128xbf16> to vector<16x128xf32>
      %c0_24 = arith.constant 0 : index
      %c0_25 = arith.constant 0 : index
      %51 = vector.load %arg8[%c0_24, %c0_25] : memref<16x128xf32, #tpu.memory_space<vmem>>, vector<16x128xf32>
      %52 = arith.addf %50, %51 : vector<16x128xf32>
      %53 = vector.extract_strided_slice %49 {offsets = [0, 0], sizes = [1, 128], strides = [1, 1]} : vector<8x128xf32> to vector<1x128xf32>
      %54 = vector.broadcast %53 : vector<1x128xf32> to vector<16x128xf32>
      %55 = arith.addf %52, %54 : vector<16x128xf32>
      %56 = vector.extract_strided_slice %49 {offsets = [1, 0], sizes = [1, 128], strides = [1, 1]} : vector<8x128xf32> to vector<1x128xf32>
      %57 = vector.extract_strided_slice %49 {offsets = [2, 0], sizes = [1, 128], strides = [1, 1]} : vector<8x128xf32> to vector<1x128xf32>
      %cst_26 = arith.constant dense<0.000000e+00> : vector<16xf32>
      %58 = vector.multi_reduction <add>, %55, %cst_26 [1] : vector<16x128xf32> to vector<16xf32>
      %59 = vector.shape_cast %58 : vector<16xf32> to vector<16x1xf32>
      %cst_27 = arith.constant 1.280000e+02 : f32
      %60 = vector.broadcast %cst_27 : f32 to vector<16x1xf32>
      %61 = arith.divf %59, %60 : vector<16x1xf32>
      %62 = vector.broadcast %61 : vector<16x1xf32> to vector<16x128xf32>
      %63 = arith.subf %55, %62 : vector<16x128xf32>
      %64 = arith.mulf %63, %63 : vector<16x128xf32>
      %cst_28 = arith.constant dense<0.000000e+00> : vector<16xf32>
      %65 = vector.multi_reduction <add>, %64, %cst_28 [1] : vector<16x128xf32> to vector<16xf32>
      %66 = vector.shape_cast %65 : vector<16xf32> to vector<16x1xf32>
      %cst_29 = arith.constant 1.280000e+02 : f32
      %67 = vector.broadcast %cst_29 : f32 to vector<16x1xf32>
      %68 = arith.divf %66, %67 : vector<16x1xf32>
      %69 = vector.broadcast %61 : vector<16x1xf32> to vector<16x128xf32>
      %70 = arith.subf %55, %69 : vector<16x128xf32>
      %cst_30 = arith.constant 9.99999974E-6 : f32
      %71 = vector.broadcast %cst_30 : f32 to vector<16x1xf32>
      %72 = arith.addf %68, %71 : vector<16x1xf32>
      %73 = math.rsqrt %72 : vector<16x1xf32>
      %74 = vector.broadcast %73 : vector<16x1xf32> to vector<16x128xf32>
      %75 = arith.mulf %70, %74 : vector<16x128xf32>
      %76 = vector.broadcast %56 : vector<1x128xf32> to vector<16x128xf32>
      %77 = arith.mulf %75, %76 : vector<16x128xf32>
      %78 = vector.broadcast %57 : vector<1x128xf32> to vector<16x128xf32>
      %79 = arith.addf %77, %78 : vector<16x128xf32>
      %80 = arith.truncf %79 : vector<16x128xf32> to vector<16x128xbf16>
      %c0_31 = arith.constant 0 : index
      %c0_32 = arith.constant 0 : index
      %81 = vector.load %arg7[%c0_31, %c0_32] : memref<16x128xbf16, #tpu.memory_space<vmem>>, vector<16x128xbf16>
      tpu.vector_store %arg7[%c0_31, %c0_32], %80 {strides = array<i32>} : memref<16x128xbf16, #tpu.memory_space<vmem>>, vector<16x128xbf16>,
    } else {
    }
    return
  }
  func.func @transform_0(%arg0: i32, %arg1: i32) -> (i32, i32) {
    %c0_i32 = arith.constant 0 : i32
    %c0_i32_0 = arith.constant 0 : i32
    return %arg0, %c0_i32 : i32, i32
  }
  func.func @transform_1(%arg0: i32, %arg1: i32) -> (i32, i32) {
    %c0_i32 = arith.constant 0 : i32
    %c0_i32_0 = arith.constant 0 : i32
    return %arg0, %c0_i32 : i32, i32
  }
  func.func @transform_2(%arg0: i32, %arg1: i32) -> (i32, i32, i32) {
    %c0_i32 = arith.constant 0 : i32
    %c0_i32_0 = arith.constant 0 : i32
    %c0_i32_1 = arith.constant 0 : i32
    return %arg1, %c0_i32, %c0_i32_0 : i32, i32, i32
  }
  func.func @transform_3(%arg0: i32, %arg1: i32) -> (i32, i32, i32) {
    %c0_i32 = arith.constant 0 : i32
    %c0_i32_0 = arith.constant 0 : i32
    %c0_i32_1 = arith.constant 0 : i32
    return %arg1, %c0_i32, %c0_i32_0 : i32, i32, i32
  }
  func.func @transform_4(%arg0: i32, %arg1: i32) -> (i32, i32) {
    %c0_i32 = arith.constant 0 : i32
    %c0_i32_0 = arith.constant 0 : i32
    %c0_i32_1 = arith.constant 0 : i32
    return %c0_i32, %c0_i32_0 : i32, i32
  }
  func.func @transform_5(%arg0: i32, %arg1: i32) -> (i32, i32) {
    %c0_i32 = arith.constant 0 : i32
    %c0_i32_0 = arith.constant 0 : i32
    return %arg0, %c0_i32 : i32, i32
  }
}

module attributes {stable_mosaic.version = 11 : i64} {
  func.func @_ffn_kernel(%arg0: i32, %arg1: memref<128x128xbf16, #tpu.memory_space<vmem>>, %arg2: memref<128x256xbf16, #tpu.memory_space<vmem>>, %arg3: memref<1x256xf32, #tpu.memory_space<vmem>>, %arg4: memref<256x128xbf16, #tpu.memory_space<vmem>>, %arg5: memref<8x128xf32, #tpu.memory_space<vmem>>, %arg6: memref<128x128xbf16, #tpu.memory_space<vmem>>) attributes {dimension_semantics = [#tpu.dimension_semantics<parallel>], iteration_bounds = array<i64: 1>, scalar_prefetch = 0 : i64, scratch_operands = 0 : i64, tpu.core_type = #tpu.core_type<tc>, window_params = [{transform_indices = @transform_0, window_bounds = array<i64: 128, 128>}, {pipeline_mode = #tpu.pipeline_mode<synchronous>, transform_indices = @transform_1, window_bounds = array<i64: 128, 256>}, {pipeline_mode = #tpu.pipeline_mode<synchronous>, transform_indices = @transform_2, window_bounds = array<i64: 1, 256>}, {pipeline_mode = #tpu.pipeline_mode<synchronous>, transform_indices = @transform_3, window_bounds = array<i64: 256, 128>}, {pipeline_mode = #tpu.pipeline_mode<synchronous>, transform_indices = @transform_4, window_bounds = array<i64: 8, 128>}, {transform_indices = @transform_5, window_bounds = array<i64: 128, 128>}]} {
    %c0 = arith.constant 0 : index
    %c0_0 = arith.constant 0 : index
    %0 = vector.load %arg1[%c0, %c0_0] : memref<128x128xbf16, #tpu.memory_space<vmem>>, vector<128x128xbf16>
    %c0_1 = arith.constant 0 : index
    %c0_2 = arith.constant 0 : index
    %1 = vector.load %arg2[%c0_1, %c0_2] : memref<128x256xbf16, #tpu.memory_space<vmem>>, vector<128x256xbf16>
    %cst = arith.constant dense<0.000000e+00> : vector<128x256xf32>
    %2 = tpu.matmul %0, %1, %cst {dimension_numbers = #tpu.dot_dimension_numbers<[1], [0], [0], [1], [0, 0, 1, 1], [], []>} : vector<128x128xbf16>, vector<128x256xbf16>, vector<128x256xf32> -> vector<128x256xf32>
    %c0_3 = arith.constant 0 : index
    %c0_4 = arith.constant 0 : index
    %3 = vector.load %arg3[%c0_3, %c0_4] : memref<1x256xf32, #tpu.memory_space<vmem>>, vector<1x256xf32>
    %4 = vector.broadcast %3 : vector<1x256xf32> to vector<128x256xf32>
    %5 = arith.addf %2, %4 : vector<128x256xf32>
    %6 = arith.mulf %5, %5 : vector<128x256xf32>
    %7 = arith.mulf %5, %6 : vector<128x256xf32>
    %cst_5 = arith.constant 4.471500e-02 : f32
    %8 = vector.broadcast %cst_5 : f32 to vector<128x256xf32>
    %9 = arith.mulf %8, %7 : vector<128x256xf32>
    %10 = arith.addf %5, %9 : vector<128x256xf32>
    %cst_6 = arith.constant 0.797884583 : f32
    %11 = vector.broadcast %cst_6 : f32 to vector<128x256xf32>
    %12 = arith.mulf %11, %10 : vector<128x256xf32>
    %13 = math.tanh %12 : vector<128x256xf32>
    %cst_7 = arith.constant 1.000000e+00 : f32
    %14 = vector.broadcast %cst_7 : f32 to vector<128x256xf32>
    %15 = arith.addf %14, %13 : vector<128x256xf32>
    %cst_8 = arith.constant 5.000000e-01 : f32
    %16 = vector.broadcast %cst_8 : f32 to vector<128x256xf32>
    %17 = arith.mulf %16, %15 : vector<128x256xf32>
    %18 = arith.mulf %5, %17 : vector<128x256xf32>
    %19 = arith.truncf %18 : vector<128x256xf32> to vector<128x256xbf16>
    %c0_9 = arith.constant 0 : index
    %c0_10 = arith.constant 0 : index
    %20 = vector.load %arg4[%c0_9, %c0_10] : memref<256x128xbf16, #tpu.memory_space<vmem>>, vector<256x128xbf16>
    %cst_11 = arith.constant dense<0.000000e+00> : vector<128x128xf32>
    %21 = tpu.matmul %19, %20, %cst_11 {dimension_numbers = #tpu.dot_dimension_numbers<[1], [0], [0], [1], [0, 0, 1, 1], [], []>} : vector<128x256xbf16>, vector<256x128xbf16>, vector<128x128xf32> -> vector<128x128xf32>
    %c0_12 = arith.constant 0 : index
    %c0_13 = arith.constant 0 : index
    %22 = vector.load %arg5[%c0_12, %c0_13] : memref<8x128xf32, #tpu.memory_space<vmem>>, vector<8x128xf32>
    %23 = arith.extf %0 : vector<128x128xbf16> to vector<128x128xf32>
    %24 = arith.addf %23, %21 : vector<128x128xf32>
    %25 = vector.extract_strided_slice %22 {offsets = [0, 0], sizes = [1, 128], strides = [1, 1]} : vector<8x128xf32> to vector<1x128xf32>
    %26 = vector.broadcast %25 : vector<1x128xf32> to vector<128x128xf32>
    %27 = arith.addf %24, %26 : vector<128x128xf32>
    %28 = vector.extract_strided_slice %22 {offsets = [1, 0], sizes = [1, 128], strides = [1, 1]} : vector<8x128xf32> to vector<1x128xf32>
    %29 = vector.extract_strided_slice %22 {offsets = [2, 0], sizes = [1, 128], strides = [1, 1]} : vector<8x128xf32> to vector<1x128xf32>
    %cst_14 = arith.constant dense<0.000000e+00> : vector<128xf32>
    %30 = vector.multi_reduction <add>, %27, %cst_14 [1] : vector<128x128xf32> to vector<128xf32>
    %31 = vector.shape_cast %30 : vector<128xf32> to vector<128x1xf32>
    %cst_15 = arith.constant 1.280000e+02 : f32
    %32 = vector.broadcast %cst_15 : f32 to vector<128x1xf32>
    %33 = arith.divf %31, %32 : vector<128x1xf32>
    %34 = vector.broadcast %33 : vector<128x1xf32> to vector<128x128xf32>
    %35 = arith.subf %27, %34 : vector<128x128xf32>
    %36 = arith.mulf %35, %35 : vector<128x128xf32>
    %cst_16 = arith.constant dense<0.000000e+00> : vector<128xf32>
    %37 = vector.multi_reduction <add>, %36, %cst_16 [1] : vector<128x128xf32> to vector<128xf32>
    %38 = vector.shape_cast %37 : vector<128xf32> to vector<128x1xf32>
    %cst_17 = arith.constant 1.280000e+02 : f32
    %39 = vector.broadcast %cst_17 : f32 to vector<128x1xf32>
    %40 = arith.divf %38, %39 : vector<128x1xf32>
    %41 = vector.broadcast %33 : vector<128x1xf32> to vector<128x128xf32>
    %42 = arith.subf %27, %41 : vector<128x128xf32>
    %cst_18 = arith.constant 9.99999974E-6 : f32
    %43 = vector.broadcast %cst_18 : f32 to vector<128x1xf32>
    %44 = arith.addf %40, %43 : vector<128x1xf32>
    %45 = math.rsqrt %44 : vector<128x1xf32>
    %46 = vector.broadcast %45 : vector<128x1xf32> to vector<128x128xf32>
    %47 = arith.mulf %42, %46 : vector<128x128xf32>
    %48 = vector.broadcast %28 : vector<1x128xf32> to vector<128x128xf32>
    %49 = arith.mulf %47, %48 : vector<128x128xf32>
    %50 = vector.broadcast %29 : vector<1x128xf32> to vector<128x128xf32>
    %51 = arith.addf %49, %50 : vector<128x128xf32>
    %52 = arith.truncf %51 : vector<128x128xf32> to vector<128x128xbf16>
    %c0_19 = arith.constant 0 : index
    %c0_20 = arith.constant 0 : index
    %53 = vector.load %arg6[%c0_19, %c0_20] : memref<128x128xbf16, #tpu.memory_space<vmem>>, vector<128x128xbf16>
    tpu.vector_store %arg6[%c0_19, %c0_20], %52 {strides = array<i32>} : memref<128x128xbf16, #tpu.memory_space<vmem>>, vector<128x128xbf16>,
    return
  }
  func.func @transform_0(%arg0: i32) -> (i32, i32) {
    %c0_i32 = arith.constant 0 : i32
    %c0_i32_0 = arith.constant 0 : i32
    return %arg0, %c0_i32 : i32, i32
  }
  func.func @transform_1(%arg0: i32) -> (i32, i32) {
    %c0_i32 = arith.constant 0 : i32
    %c0_i32_0 = arith.constant 0 : i32
    %c0_i32_1 = arith.constant 0 : i32
    return %c0_i32, %c0_i32_0 : i32, i32
  }
  func.func @transform_2(%arg0: i32) -> (i32, i32) {
    %c0_i32 = arith.constant 0 : i32
    %c0_i32_0 = arith.constant 0 : i32
    %c0_i32_1 = arith.constant 0 : i32
    return %c0_i32, %c0_i32_0 : i32, i32
  }
  func.func @transform_3(%arg0: i32) -> (i32, i32) {
    %c0_i32 = arith.constant 0 : i32
    %c0_i32_0 = arith.constant 0 : i32
    %c0_i32_1 = arith.constant 0 : i32
    return %c0_i32, %c0_i32_0 : i32, i32
  }
  func.func @transform_4(%arg0: i32) -> (i32, i32) {
    %c0_i32 = arith.constant 0 : i32
    %c0_i32_0 = arith.constant 0 : i32
    %c0_i32_1 = arith.constant 0 : i32
    return %c0_i32, %c0_i32_0 : i32, i32
  }
  func.func @transform_5(%arg0: i32) -> (i32, i32) {
    %c0_i32 = arith.constant 0 : i32
    %c0_i32_0 = arith.constant 0 : i32
    return %arg0, %c0_i32 : i32, i32
  }
}

module attributes {stable_mosaic.version = 11 : i64} {
  func.func @_ln_proj_kernel(%arg0: i32, %arg1: memref<128x128xbf16, #tpu.memory_space<vmem>>, %arg2: memref<8x128xf32, #tpu.memory_space<vmem>>, %arg3: memref<128x128xbf16, #tpu.memory_space<vmem>>, %arg4: memref<1x128xf32, #tpu.memory_space<vmem>>, %arg5: memref<128x128xf32, #tpu.memory_space<vmem>>) attributes {dimension_semantics = [#tpu.dimension_semantics<parallel>], iteration_bounds = array<i64: 1>, scalar_prefetch = 0 : i64, scratch_operands = 0 : i64, tpu.core_type = #tpu.core_type<tc>, window_params = [{transform_indices = @transform_0, window_bounds = array<i64: 128, 128>}, {pipeline_mode = #tpu.pipeline_mode<synchronous>, transform_indices = @transform_1, window_bounds = array<i64: 8, 128>}, {pipeline_mode = #tpu.pipeline_mode<synchronous>, transform_indices = @transform_2, window_bounds = array<i64: 128, 128>}, {pipeline_mode = #tpu.pipeline_mode<synchronous>, transform_indices = @transform_3, window_bounds = array<i64: 1, 128>}, {transform_indices = @transform_4, window_bounds = array<i64: 128, 128>}]} {
    %c0 = arith.constant 0 : index
    %c0_0 = arith.constant 0 : index
    %0 = vector.load %arg2[%c0, %c0_0] : memref<8x128xf32, #tpu.memory_space<vmem>>, vector<8x128xf32>
    %c0_1 = arith.constant 0 : index
    %c0_2 = arith.constant 0 : index
    %1 = vector.load %arg1[%c0_1, %c0_2] : memref<128x128xbf16, #tpu.memory_space<vmem>>, vector<128x128xbf16>
    %2 = arith.extf %1 : vector<128x128xbf16> to vector<128x128xf32>
    %3 = vector.extract_strided_slice %0 {offsets = [1, 0], sizes = [1, 128], strides = [1, 1]} : vector<8x128xf32> to vector<1x128xf32>
    %4 = vector.extract_strided_slice %0 {offsets = [2, 0], sizes = [1, 128], strides = [1, 1]} : vector<8x128xf32> to vector<1x128xf32>
    %cst = arith.constant dense<0.000000e+00> : vector<128xf32>
    %5 = vector.multi_reduction <add>, %2, %cst [1] : vector<128x128xf32> to vector<128xf32>
    %6 = vector.shape_cast %5 : vector<128xf32> to vector<128x1xf32>
    %cst_3 = arith.constant 1.280000e+02 : f32
    %7 = vector.broadcast %cst_3 : f32 to vector<128x1xf32>
    %8 = arith.divf %6, %7 : vector<128x1xf32>
    %9 = vector.broadcast %8 : vector<128x1xf32> to vector<128x128xf32>
    %10 = arith.subf %2, %9 : vector<128x128xf32>
    %11 = arith.mulf %10, %10 : vector<128x128xf32>
    %cst_4 = arith.constant dense<0.000000e+00> : vector<128xf32>
    %12 = vector.multi_reduction <add>, %11, %cst_4 [1] : vector<128x128xf32> to vector<128xf32>
    %13 = vector.shape_cast %12 : vector<128xf32> to vector<128x1xf32>
    %cst_5 = arith.constant 1.280000e+02 : f32
    %14 = vector.broadcast %cst_5 : f32 to vector<128x1xf32>
    %15 = arith.divf %13, %14 : vector<128x1xf32>
    %16 = vector.broadcast %8 : vector<128x1xf32> to vector<128x128xf32>
    %17 = arith.subf %2, %16 : vector<128x128xf32>
    %cst_6 = arith.constant 9.99999974E-6 : f32
    %18 = vector.broadcast %cst_6 : f32 to vector<128x1xf32>
    %19 = arith.addf %15, %18 : vector<128x1xf32>
    %20 = math.rsqrt %19 : vector<128x1xf32>
    %21 = vector.broadcast %20 : vector<128x1xf32> to vector<128x128xf32>
    %22 = arith.mulf %17, %21 : vector<128x128xf32>
    %23 = vector.broadcast %3 : vector<1x128xf32> to vector<128x128xf32>
    %24 = arith.mulf %22, %23 : vector<128x128xf32>
    %25 = vector.broadcast %4 : vector<1x128xf32> to vector<128x128xf32>
    %26 = arith.addf %24, %25 : vector<128x128xf32>
    %27 = arith.truncf %26 : vector<128x128xf32> to vector<128x128xbf16>
    %c0_7 = arith.constant 0 : index
    %c0_8 = arith.constant 0 : index
    %28 = vector.load %arg3[%c0_7, %c0_8] : memref<128x128xbf16, #tpu.memory_space<vmem>>, vector<128x128xbf16>
    %cst_9 = arith.constant dense<0.000000e+00> : vector<128x128xf32>
    %29 = tpu.matmul %27, %28, %cst_9 {dimension_numbers = #tpu.dot_dimension_numbers<[1], [0], [0], [1], [0, 0, 1, 1], [], []>} : vector<128x128xbf16>, vector<128x128xbf16>, vector<128x128xf32> -> vector<128x128xf32>
    %c0_10 = arith.constant 0 : index
    %c0_11 = arith.constant 0 : index
    %30 = vector.load %arg4[%c0_10, %c0_11] : memref<1x128xf32, #tpu.memory_space<vmem>>, vector<1x128xf32>
    %31 = vector.broadcast %30 : vector<1x128xf32> to vector<128x128xf32>
    %32 = arith.addf %29, %31 : vector<128x128xf32>
    %c0_12 = arith.constant 0 : index
    %c0_13 = arith.constant 0 : index
    %33 = vector.load %arg5[%c0_12, %c0_13] : memref<128x128xf32, #tpu.memory_space<vmem>>, vector<128x128xf32>
    tpu.vector_store %arg5[%c0_12, %c0_13], %32 {strides = array<i32>} : memref<128x128xf32, #tpu.memory_space<vmem>>, vector<128x128xf32>,
    return
  }
  func.func @transform_0(%arg0: i32) -> (i32, i32) {
    %c0_i32 = arith.constant 0 : i32
    %c0_i32_0 = arith.constant 0 : i32
    return %arg0, %c0_i32 : i32, i32
  }
  func.func @transform_1(%arg0: i32) -> (i32, i32) {
    %c0_i32 = arith.constant 0 : i32
    %c0_i32_0 = arith.constant 0 : i32
    %c0_i32_1 = arith.constant 0 : i32
    return %c0_i32, %c0_i32_0 : i32, i32
  }
  func.func @transform_2(%arg0: i32) -> (i32, i32) {
    %c0_i32 = arith.constant 0 : i32
    %c0_i32_0 = arith.constant 0 : i32
    %c0_i32_1 = arith.constant 0 : i32
    return %c0_i32, %c0_i32_0 : i32, i32
  }
  func.func @transform_3(%arg0: i32) -> (i32, i32) {
    %c0_i32 = arith.constant 0 : i32
    %c0_i32_0 = arith.constant 0 : i32
    %c0_i32_1 = arith.constant 0 : i32
    return %c0_i32, %c0_i32_0 : i32, i32
  }
  func.func @transform_4(%arg0: i32) -> (i32, i32) {
    %c0_i32 = arith.constant 0 : i32
    %c0_i32_0 = arith.constant 0 : i32
    return %arg0, %c0_i32 : i32, i32
  }
}

</mosaic_0001>

<llo_original>
// kernel: wr_xformer_single_forward.9
$region0: #{wr_xformer_single_forward.9}
  #allocation0 [shape = 'u32[]', space=smem, size = 0x4, offset = 0x4, fixed_abs, tag = 'smem constant byte address 0x4 - core index']
  #allocation1 [shape = 'u32[144,128]{1,0:T(1,128)}', space=vmem, size = 0x12000, scoped, tag = 'internal scratch']
  %s0 = inlined_call_operand.vmem [shape: f32[64,8], index: 0, kind: input, shape index: {}]
  %s1 = inlined_call_operand.vmem [shape: bf16[8,128], index: 1, kind: input, shape index: {}]
  %s2 = inlined_call_operand.vmem [shape: f32[1,128], index: 2, kind: input, shape index: {}]
  %s3 = inlined_call_operand.vmem [shape: f32[8,128], index: 3, kind: input, shape index: {}]
  %s4 = inlined_call_operand.vmem [shape: bf16[64,128], index: 4, kind: output, shape index: {}]
  %s5 = sld [smem:[#allocation0]]
  $region49: #{wr_xformer_single_forward.9} parent=0
    _
  %s7 = ssub.s32 1, %s5
  %s8 = scalar_select 0, %s7, %s5
  loop: start=0, step=1, limit=10
  $region2: #{wr_xformer_single_forward.9} parent=0 // loop_pre_header
    _
  $region3: #{wr_xformer_single_forward.9} parent=0 // loop_header
    %s10 = sphi 0, %s14
    %p11 = scmp.ge.s32.totalorder %s10, 10
    %s20 = sphi 0, %s22
    %s23 = sphi 0, %s20
    %s24 = sphi 0, %s23
    %s40 = sphi 0, %s24
    %s44 = sphi 0, %s44
    %s46 = sphi 0, %s44
    %s47 = sphi 0, %s46
    %s61 = sphi 0, %s47
    %s65 = sphi 0, %s65
    %s67 = sphi 0, %s65
    %s68 = sphi 0, %s67
    %s82 = sphi 0, %s68
    %s86 = sphi 0, %s86
    %s88 = sphi 0, %s86
    %s89 = sphi 0, %s88
    %s103 = sphi 0, %s89
    %s109 = sphi 0, %s111
    %s112 = sphi 0, %s109
    %s113 = sphi 0, %s112
    %s129 = sphi 0, %s113
  $region4: #{wr_xformer_single_forward.9} parent=0 // loop_header_branch
    %13 = sbr.rel (%p11) target = $region8
  $region5: #{wr_xformer_single_forward.9} parent=0 // loop_body
    %s15 = ssub.s32 %s10, 1
    %s16 = ssub.s32 %s10, 2
    %s17 = sadd.s32 %s10, 1
    %s18 = ssub.s32 %s10, %s17
    %p19 = scmp.eq.s32.totalorder %s18, 0
    %s21 = sadd.s32 %s20, 1
    %s22 = scalar_select %p19, %s20, %s21
    %p25 = pneg %p19
    %p26 = scmp.eq.s32.totalorder %s10, 7
    %p27 = por %p25, %p26
    %p28 = scmp.ne.s32.totalorder %s20, %s23
    %p29 = scmp.eq.s32.totalorder %s10, 0
    %p30 = por %p28, %p29
    %p31 = scmp.ne.s32.totalorder %s20, %s23
    %p32 = scmp.eq.s32.totalorder %s15, 7
    %p33 = por %p31, %p32
    %p34 = scmp.ne.s32.totalorder %s23, %s24
    %p35 = scmp.eq.s32.totalorder %s15, 0
    %p36 = por %p34, %p35
    %p37 = scmp.ne.s32.totalorder %s23, %s24
    %p38 = scmp.eq.s32.totalorder %s16, 7
    %p39 = por %p37, %p38
    %p41 = scmp.ne.s32.totalorder %s24, %s40
    %p42 = scmp.eq.s32.totalorder %s16, 0
    %p43 = por %p41, %p42
    %s45 = sadd.s32 %s44, 1
    %p48 = scmp.eq.s32.totalorder %s10, 7
    %p49 = scmp.ne.s32.totalorder %s44, %s46
    %p50 = scmp.eq.s32.totalorder %s10, 0
    %p51 = por %p49, %p50
    %p52 = scmp.ne.s32.totalorder %s44, %s46
    %p53 = scmp.eq.s32.totalorder %s15, 7
    %p54 = por %p52, %p53
    %p55 = scmp.ne.s32.totalorder %s46, %s47
    %p56 = scmp.eq.s32.totalorder %s15, 0
    %p57 = por %p55, %p56
    %p58 = scmp.ne.s32.totalorder %s46, %s47
    %p59 = scmp.eq.s32.totalorder %s16, 7
    %p60 = por %p58, %p59
    %p62 = scmp.ne.s32.totalorder %s47, %s61
    %p63 = scmp.eq.s32.totalorder %s16, 0
    %p64 = por %p62, %p63
    %s66 = sadd.s32 %s65, 1
    %p69 = scmp.eq.s32.totalorder %s10, 7
    %p70 = scmp.ne.s32.totalorder %s65, %s67
    %p71 = scmp.eq.s32.totalorder %s10, 0
    %p72 = por %p70, %p71
    %p73 = scmp.ne.s32.totalorder %s65, %s67
    %p74 = scmp.eq.s32.totalorder %s15, 7
    %p75 = por %p73, %p74
    %p76 = scmp.ne.s32.totalorder %s67, %s68
    %p77 = scmp.eq.s32.totalorder %s15, 0
    %p78 = por %p76, %p77
    %p79 = scmp.ne.s32.totalorder %s67, %s68
    %p80 = scmp.eq.s32.totalorder %s16, 7
    %p81 = por %p79, %p80
    %p83 = scmp.ne.s32.totalorder %s68, %s82
    %p84 = scmp.eq.s32.totalorder %s16, 0
    %p85 = por %p83, %p84
    %s87 = sadd.s32 %s86, 1
    %p90 = scmp.eq.s32.totalorder %s10, 7
    %p91 = scmp.ne.s32.totalorder %s86, %s88
    %p92 = scmp.eq.s32.totalorder %s10, 0
    %p93 = por %p91, %p92
    %p94 = scmp.ne.s32.totalorder %s86, %s88
    %p95 = scmp.eq.s32.totalorder %s15, 7
    %p96 = por %p94, %p95
    %p97 = scmp.ne.s32.totalorder %s88, %s89
    %p98 = scmp.eq.s32.totalorder %s15, 0
    %p99 = por %p97, %p98
    %p100 = scmp.ne.s32.totalorder %s88, %s89
    %p101 = scmp.eq.s32.totalorder %s16, 7
    %p102 = por %p100, %p101
    %p104 = scmp.ne.s32.totalorder %s89, %s103
    %p105 = scmp.eq.s32.totalorder %s16, 0
    %p106 = por %p104, %p105
    %s107 = ssub.s32 %s10, %s17
    %p108 = scmp.eq.s32.totalorder %s107, 0
    %s110 = sadd.s32 %s109, 1
    %s111 = scalar_select %p108, %s109, %s110
    %p114 = pneg %p108
    %p115 = scmp.eq.s32.totalorder %s10, 7
    %p116 = por %p114, %p115
    %p117 = scmp.ne.s32.totalorder %s109, %s112
    %p118 = scmp.eq.s32.totalorder %s10, 0
    %p119 = por %p117, %p118
    %p120 = scmp.ne.s32.totalorder %s109, %s112
    %p121 = scmp.eq.s32.totalorder %s15, 7
    %p122 = por %p120, %p121
    %p123 = scmp.ne.s32.totalorder %s112, %s113
    %p124 = scmp.eq.s32.totalorder %s15, 0
    %p125 = por %p123, %p124
    %p126 = scmp.ne.s32.totalorder %s112, %s113
    %p127 = scmp.eq.s32.totalorder %s16, 7
    %p128 = por %p126, %p127
    %p130 = scmp.ne.s32.totalorder %s113, %s129
    %p131 = scmp.eq.s32.totalorder %s16, 0
    %p132 = por %p130, %p131
    %p133 = scmp.le.s32.totalorder 1, %s10
    %p134 = scmp.lt.s32.totalorder %s10, 9
    %p135 = pnand %p133, %p134
    %p136 = pneg %p135
    // Predicated region
    $region9: #{wr_xformer_single_forward.9} parent=5 // pred_check
      _
    $region10: #{wr_xformer_single_forward.9} parent=5 // pred_check_branch
      %138 = sbr.rel (%p135) target = $region12
    $region11: #{wr_xformer_single_forward.9} parent=5 // pred_region
      %s139 = ssub.s32 %s10, 1
      // Predicated region
      $region13: #{wr_xformer_single_forward.9} parent=11 // pred_check
        %p140 = pneg %p57
      $region14: #{wr_xformer_single_forward.9} parent=11 // pred_check_branch
        %142 = sbr.rel (%p140) target = $region16
      $region15: #{wr_xformer_single_forward.9} parent=11 // pred_region
        _
      $region16: #{wr_xformer_single_forward.9} parent=11 // pred_fallthru
        _
      // Predicated region
      $region17: #{wr_xformer_single_forward.9} parent=11 // pred_check
        %p143 = pneg %p78
      $region18: #{wr_xformer_single_forward.9} parent=11 // pred_check_branch
        %145 = sbr.rel (%p143) target = $region20
      $region19: #{wr_xformer_single_forward.9} parent=11 // pred_region
        _
      $region20: #{wr_xformer_single_forward.9} parent=11 // pred_fallthru
        _
      // Predicated region
      $region21: #{wr_xformer_single_forward.9} parent=11 // pred_check
        %p146 = pneg %p99
      $region22: #{wr_xformer_single_forward.9} parent=11 // pred_check_branch
        %148 = sbr.rel (%p146) target = $region24
      $region23: #{wr_xformer_single_forward.9} parent=11 // pred_region
        _
      $region24: #{wr_xformer_single_forward.9} parent=11 // pred_fallthru
        _
    $region12: #{wr_xformer_single_forward.9} parent=5 // pred_fallthru
      _
    %p149 = scmp.lt.s32.totalorder %s10, 8
    // Predicated region
    $region25: #{wr_xformer_single_forward.9} parent=5 // pred_check
      %p150 = pneg %p149
    $region26: #{wr_xformer_single_forward.9} parent=5 // pred_check_branch
      %152 = sbr.rel (%p150) target = $region28
    $region27: #{wr_xformer_single_forward.9} parent=5 // pred_region
      // Predicated region
      $region29: #{wr_xformer_single_forward.9} parent=27 // pred_check
        %p153 = pneg %p30
      $region30: #{wr_xformer_single_forward.9} parent=27 // pred_check_branch
        %155 = sbr.rel (%p153) target = $region32
      $region31: #{wr_xformer_single_forward.9} parent=27 // pred_region
        %p156 = scmp.lt.s32.totalorder %s10, 7
        %s157 = scalar_select %p156, %s10, 7
        %s158 = smul.addr %s157, 8
        %s159 = scalar_lea.vmem %s0, %s158
      $region32: #{wr_xformer_single_forward.9} parent=27 // pred_fallthru
        _
    $region28: #{wr_xformer_single_forward.9} parent=5 // pred_fallthru
      _
    %p160 = scmp.le.s32.totalorder 1, %s10
    %p161 = scmp.lt.s32.totalorder %s10, 9
    %p162 = pnand %p160, %p161
    %p163 = pneg %p162
    // Predicated region
    $region33: #{wr_xformer_single_forward.9} parent=5 // pred_check
      _
    $region34: #{wr_xformer_single_forward.9} parent=5 // pred_check_branch
      %165 = sbr.rel (%p162) target = $region36
    $region35: #{wr_xformer_single_forward.9} parent=5 // pred_region
      %s166 = ssub.s32 %s10, 1
      %p167 = scmp.lt.s32.totalorder %s15, 7
      %s168 = scalar_select %p167, %s15, 7
      %s169 = smul.addr %s168, 8
      %s170 = scalar_lea.vmem %s0, %s169
      %p171 = pneg %p36
      %p172 = pneg %p33
      %p173 = pneg %p57
      %p174 = pneg %p54
      %p175 = pneg %p78
      %p176 = pneg %p75
      %p177 = pneg %p99
      %p178 = pneg %p96
      %p179 = pneg %p125
      %p180 = pneg %p122
      %p181 = scmp.lt.s32.totalorder %s15, 7
      %s182 = scalar_select %p181, %s15, 7
      %s183 = smul.addr %s182, 4
      %s184 = scalar_lea.vmem %s4, %s183
      %p185 = scmp.lt.s32.totalorder %s15, 7
      %s186 = scalar_select %p185, %s15, 7
      %s187 = smul.addr %s186, 8
      %s188 = scalar_lea.vmem %s0, %s187
      %p189 = scmp.lt.s32.totalorder %s15, 7
      %s190 = scalar_select %p189, %s15, 7
      %s191 = smul.addr %s190, 4
      %s192 = scalar_lea.vmem %s4, %s191
      %v194 = vld [vmem:[%s188] sm:$0xff]
      %v195 = vpack.c.bf16 %v194, %v194
      %v196 = vld [vmem:[%s1] sm:$0xf]
      %v197 = vld [vmem:[%s2] sm:$0x1]
      %v199 = vlaneseq
      %v200 = vshrl.u32 %v199, 7
      %v201 = vsub.s32 0, %v200
      %v202 = vrot.slane %v197, %v201
      %vm204 = vcmask 64512
      %v206 = vsel %vm204, %v195, 0
      %vm208 = vcmask 1043456
      %v210 = vsel %vm208, %v196, 0
      %212 = vmatprep.subr.bf16.mxu0 0
      %213 = vmatpush1.bf16.msra.mxu0 0
      %214 = vmatprep.subr.bf16.mxu0 0
      %215 = vmatpush1.bf16.msra.mxu0 0
      %216 = vmatprep.subr.bf16.mxu0 0
      %217 = vmatpush1.bf16.msra.mxu0 0
      %218 = vmatprep.subr.bf16.mxu0 0
      %219 = vmatpush1.bf16.msra.mxu0 0
      %220 = vmatprep.subr.bf16.mxu0 0
      %221 = vmatpush1.bf16.msra.mxu0 0
      %222 = vmatprep.subr.bf16.mxu0 0
      %223 = vmatpush1.bf16.msra.mxu0 0
      %224 = vmatprep.subr.bf16.mxu0 0
      %225 = vmatpush1.bf16.msra.mxu0 0
      %226 = vmatprep.subr.bf16.mxu0 0
      %227 = vmatpush1.bf16.msra.mxu0 %v210
      %228 = vmatprep.subr.bf16.mxu0 0
      %229 = vmatpush2.bf16.msra.mxu0 0
      %230 = vmatprep.subr.bf16.mxu0 0
      %231 = vmatpush2.bf16.msra.mxu0 0
      %232 = vmatprep.subr.bf16.mxu0 0
      %233 = vmatpush2.bf16.msra.mxu0 0
      %234 = vmatprep.subr.bf16.mxu0 0
      %235 = vmatpush2.bf16.msra.mxu0 0
      %236 = vmatprep.subr.bf16.mxu0 0
      %237 = vmatpush2.bf16.msra.mxu0 0
      %238 = vmatprep.subr.bf16.mxu0 0
      %239 = vmatpush2.bf16.msra.mxu0 0
      %240 = vmatprep.subr.bf16.mxu0 0
      %241 = vmatpush2.bf16.msra.mxu0 0
      %242 = vmatprep.subr.bf16.mxu0 0
      %243 = vmatpush2.bf16.msra.mxu0 0
      %244 = vmatprep.mubr.bf16.mxu0 0
      %245 = vmatmul.mubr.bf16.gmra.mxu0 %v206
      %v246 = vpop.f32.mrf.mxu0
      %v247 = vadd.f32 %v202, %v246
      %v248 = vpop.f32.mrf.mxu0
      %v249 = vpop.f32.mrf.mxu0
      %v250 = vpop.f32.mrf.mxu0
      %251 = vdwg.mxu0
      %v252 = vld [vmem:[%s3] sm:$0xff]
      %v253 = vadd.f32 %v247, %v252
      %v254 = vpack.c.bf16 %v253, %v253
      %255 = vst [vmem:[%s192] sm:$0xf] %v254
      %p256 = scmp.lt.s32.totalorder %s15, 7
      %s257 = scalar_select %p256, %s15, 7
      %s258 = smul.addr %s257, 4
      %s259 = scalar_lea.vmem %s4, %s258
      // Predicated region
      $region37: #{wr_xformer_single_forward.9} parent=35 // pred_check
        %p260 = pneg %p122
      $region38: #{wr_xformer_single_forward.9} parent=35 // pred_check_branch
        %262 = sbr.rel (%p260) target = $region40
      $region39: #{wr_xformer_single_forward.9} parent=35 // pred_region
        _
      $region40: #{wr_xformer_single_forward.9} parent=35 // pred_fallthru
        _
    $region36: #{wr_xformer_single_forward.9} parent=5 // pred_fallthru
      _
    %p263 = scmp.le.s32.totalorder 2, %s10
    // Predicated region
    $region41: #{wr_xformer_single_forward.9} parent=5 // pred_check
      %p264 = pneg %p263
    $region42: #{wr_xformer_single_forward.9} parent=5 // pred_check_branch
      %266 = sbr.rel (%p264) target = $region44
    $region43: #{wr_xformer_single_forward.9} parent=5 // pred_region
      %s267 = ssub.s32 %s10, 2
      // Predicated region
      $region45: #{wr_xformer_single_forward.9} parent=43 // pred_check
        %p268 = pneg %p128
      $region46: #{wr_xformer_single_forward.9} parent=43 // pred_check_branch
        %270 = sbr.rel (%p268) target = $region48
      $region47: #{wr_xformer_single_forward.9} parent=43 // pred_region
        %p271 = scmp.lt.s32.totalorder %s16, 7
        %s272 = scalar_select %p271, %s16, 7
        %s273 = smul.addr %s272, 4
        %s274 = scalar_lea.vmem %s4, %s273
      $region48: #{wr_xformer_single_forward.9} parent=43 // pred_fallthru
        _
    $region44: #{wr_xformer_single_forward.9} parent=5 // pred_fallthru
      _
  $region6: #{wr_xformer_single_forward.9} parent=0 // loop_footer
    %s14 = sadd.s32 1, %s10
  $region7: #{wr_xformer_single_forward.9} parent=0 // loop_footer_branch
    %9 = sbr.rel target = $region3
  $region8: #{wr_xformer_single_forward.9} parent=0 // loop_exit
    _

// kernel: wr_xformer_single_forward.13
$region0: #{wr_xformer_single_forward.13}
  #allocation0 [shape = 'u32[]', space=smem, size = 0x4, offset = 0x4, fixed_abs, tag = 'smem constant byte address 0x4 - core index']
  #allocation1 [shape = 'u32[144,128]{1,0:T(1,128)}', space=vmem, size = 0x12000, scoped, tag = 'internal scratch']
  %s0 = inlined_call_operand.vmem [shape: f32[128,8], index: 0, kind: input, shape index: {}]
  %s1 = inlined_call_operand.vmem [shape: bf16[8,128], index: 1, kind: input, shape index: {}]
  %s2 = inlined_call_operand.vmem [shape: f32[1,128], index: 2, kind: input, shape index: {}]
  %s3 = inlined_call_operand.vmem [shape: f32[16,128], index: 3, kind: input, shape index: {}]
  %s4 = inlined_call_operand.vmem [shape: bf16[128,128], index: 4, kind: output, shape index: {}]
  %s5 = sld [smem:[#allocation0]]
  $region49: #{wr_xformer_single_forward.13} parent=0
    _
  %s7 = ssub.s32 1, %s5
  %s8 = scalar_select 0, %s7, %s5
  loop: start=0, step=1, limit=10
  $region2: #{wr_xformer_single_forward.13} parent=0 // loop_pre_header
    _
  $region3: #{wr_xformer_single_forward.13} parent=0 // loop_header
    %s10 = sphi 0, %s14
    %p11 = scmp.ge.s32.totalorder %s10, 10
    %s20 = sphi 0, %s22
    %s23 = sphi 0, %s20
    %s24 = sphi 0, %s23
    %s40 = sphi 0, %s24
    %s44 = sphi 0, %s44
    %s46 = sphi 0, %s44
    %s47 = sphi 0, %s46
    %s61 = sphi 0, %s47
    %s65 = sphi 0, %s65
    %s67 = sphi 0, %s65
    %s68 = sphi 0, %s67
    %s82 = sphi 0, %s68
    %s86 = sphi 0, %s86
    %s88 = sphi 0, %s86
    %s89 = sphi 0, %s88
    %s103 = sphi 0, %s89
    %s109 = sphi 0, %s111
    %s112 = sphi 0, %s109
    %s113 = sphi 0, %s112
    %s129 = sphi 0, %s113
  $region4: #{wr_xformer_single_forward.13} parent=0 // loop_header_branch
    %13 = sbr.rel (%p11) target = $region8
  $region5: #{wr_xformer_single_forward.13} parent=0 // loop_body
    %s15 = ssub.s32 %s10, 1
    %s16 = ssub.s32 %s10, 2
    %s17 = sadd.s32 %s10, 1
    %s18 = ssub.s32 %s10, %s17
    %p19 = scmp.eq.s32.totalorder %s18, 0
    %s21 = sadd.s32 %s20, 1
    %s22 = scalar_select %p19, %s20, %s21
    %p25 = pneg %p19
    %p26 = scmp.eq.s32.totalorder %s10, 7
    %p27 = por %p25, %p26
    %p28 = scmp.ne.s32.totalorder %s20, %s23
    %p29 = scmp.eq.s32.totalorder %s10, 0
    %p30 = por %p28, %p29
    %p31 = scmp.ne.s32.totalorder %s20, %s23
    %p32 = scmp.eq.s32.totalorder %s15, 7
    %p33 = por %p31, %p32
    %p34 = scmp.ne.s32.totalorder %s23, %s24
    %p35 = scmp.eq.s32.totalorder %s15, 0
    %p36 = por %p34, %p35
    %p37 = scmp.ne.s32.totalorder %s23, %s24
    %p38 = scmp.eq.s32.totalorder %s16, 7
    %p39 = por %p37, %p38
    %p41 = scmp.ne.s32.totalorder %s24, %s40
    %p42 = scmp.eq.s32.totalorder %s16, 0
    %p43 = por %p41, %p42
    %s45 = sadd.s32 %s44, 1
    %p48 = scmp.eq.s32.totalorder %s10, 7
    %p49 = scmp.ne.s32.totalorder %s44, %s46
    %p50 = scmp.eq.s32.totalorder %s10, 0
    %p51 = por %p49, %p50
    %p52 = scmp.ne.s32.totalorder %s44, %s46
    %p53 = scmp.eq.s32.totalorder %s15, 7
    %p54 = por %p52, %p53
    %p55 = scmp.ne.s32.totalorder %s46, %s47
    %p56 = scmp.eq.s32.totalorder %s15, 0
    %p57 = por %p55, %p56
    %p58 = scmp.ne.s32.totalorder %s46, %s47
    %p59 = scmp.eq.s32.totalorder %s16, 7
    %p60 = por %p58, %p59
    %p62 = scmp.ne.s32.totalorder %s47, %s61
    %p63 = scmp.eq.s32.totalorder %s16, 0
    %p64 = por %p62, %p63
    %s66 = sadd.s32 %s65, 1
    %p69 = scmp.eq.s32.totalorder %s10, 7
    %p70 = scmp.ne.s32.totalorder %s65, %s67
    %p71 = scmp.eq.s32.totalorder %s10, 0
    %p72 = por %p70, %p71
    %p73 = scmp.ne.s32.totalorder %s65, %s67
    %p74 = scmp.eq.s32.totalorder %s15, 7
    %p75 = por %p73, %p74
    %p76 = scmp.ne.s32.totalorder %s67, %s68
    %p77 = scmp.eq.s32.totalorder %s15, 0
    %p78 = por %p76, %p77
    %p79 = scmp.ne.s32.totalorder %s67, %s68
    %p80 = scmp.eq.s32.totalorder %s16, 7
    %p81 = por %p79, %p80
    %p83 = scmp.ne.s32.totalorder %s68, %s82
    %p84 = scmp.eq.s32.totalorder %s16, 0
    %p85 = por %p83, %p84
    %s87 = sadd.s32 %s86, 1
    %p90 = scmp.eq.s32.totalorder %s10, 7
    %p91 = scmp.ne.s32.totalorder %s86, %s88
    %p92 = scmp.eq.s32.totalorder %s10, 0
    %p93 = por %p91, %p92
    %p94 = scmp.ne.s32.totalorder %s86, %s88
    %p95 = scmp.eq.s32.totalorder %s15, 7
    %p96 = por %p94, %p95
    %p97 = scmp.ne.s32.totalorder %s88, %s89
    %p98 = scmp.eq.s32.totalorder %s15, 0
    %p99 = por %p97, %p98
    %p100 = scmp.ne.s32.totalorder %s88, %s89
    %p101 = scmp.eq.s32.totalorder %s16, 7
    %p102 = por %p100, %p101
    %p104 = scmp.ne.s32.totalorder %s89, %s103
    %p105 = scmp.eq.s32.totalorder %s16, 0
    %p106 = por %p104, %p105
    %s107 = ssub.s32 %s10, %s17
    %p108 = scmp.eq.s32.totalorder %s107, 0
    %s110 = sadd.s32 %s109, 1
    %s111 = scalar_select %p108, %s109, %s110
    %p114 = pneg %p108
    %p115 = scmp.eq.s32.totalorder %s10, 7
    %p116 = por %p114, %p115
    %p117 = scmp.ne.s32.totalorder %s109, %s112
    %p118 = scmp.eq.s32.totalorder %s10, 0
    %p119 = por %p117, %p118
    %p120 = scmp.ne.s32.totalorder %s109, %s112
    %p121 = scmp.eq.s32.totalorder %s15, 7
    %p122 = por %p120, %p121
    %p123 = scmp.ne.s32.totalorder %s112, %s113
    %p124 = scmp.eq.s32.totalorder %s15, 0
    %p125 = por %p123, %p124
    %p126 = scmp.ne.s32.totalorder %s112, %s113
    %p127 = scmp.eq.s32.totalorder %s16, 7
    %p128 = por %p126, %p127
    %p130 = scmp.ne.s32.totalorder %s113, %s129
    %p131 = scmp.eq.s32.totalorder %s16, 0
    %p132 = por %p130, %p131
    %p133 = scmp.le.s32.totalorder 1, %s10
    %p134 = scmp.lt.s32.totalorder %s10, 9
    %p135 = pnand %p133, %p134
    %p136 = pneg %p135
    // Predicated region
    $region9: #{wr_xformer_single_forward.13} parent=5 // pred_check
      _
    $region10: #{wr_xformer_single_forward.13} parent=5 // pred_check_branch
      %138 = sbr.rel (%p135) target = $region12
    $region11: #{wr_xformer_single_forward.13} parent=5 // pred_region
      %s139 = ssub.s32 %s10, 1
      // Predicated region
      $region13: #{wr_xformer_single_forward.13} parent=11 // pred_check
        %p140 = pneg %p57
      $region14: #{wr_xformer_single_forward.13} parent=11 // pred_check_branch
        %142 = sbr.rel (%p140) target = $region16
      $region15: #{wr_xformer_single_forward.13} parent=11 // pred_region
        _
      $region16: #{wr_xformer_single_forward.13} parent=11 // pred_fallthru
        _
      // Predicated region
      $region17: #{wr_xformer_single_forward.13} parent=11 // pred_check
        %p143 = pneg %p78
      $region18: #{wr_xformer_single_forward.13} parent=11 // pred_check_branch
        %145 = sbr.rel (%p143) target = $region20
      $region19: #{wr_xformer_single_forward.13} parent=11 // pred_region
        _
      $region20: #{wr_xformer_single_forward.13} parent=11 // pred_fallthru
        _
      // Predicated region
      $region21: #{wr_xformer_single_forward.13} parent=11 // pred_check
        %p146 = pneg %p99
      $region22: #{wr_xformer_single_forward.13} parent=11 // pred_check_branch
        %148 = sbr.rel (%p146) target = $region24
      $region23: #{wr_xformer_single_forward.13} parent=11 // pred_region
        _
      $region24: #{wr_xformer_single_forward.13} parent=11 // pred_fallthru
        _
    $region12: #{wr_xformer_single_forward.13} parent=5 // pred_fallthru
      _
    %p149 = scmp.lt.s32.totalorder %s10, 8
    // Predicated region
    $region25: #{wr_xformer_single_forward.13} parent=5 // pred_check
      %p150 = pneg %p149
    $region26: #{wr_xformer_single_forward.13} parent=5 // pred_check_branch
      %152 = sbr.rel (%p150) target = $region28
    $region27: #{wr_xformer_single_forward.13} parent=5 // pred_region
      // Predicated region
      $region29: #{wr_xformer_single_forward.13} parent=27 // pred_check
        %p153 = pneg %p30
      $region30: #{wr_xformer_single_forward.13} parent=27 // pred_check_branch
        %155 = sbr.rel (%p153) target = $region32
      $region31: #{wr_xformer_single_forward.13} parent=27 // pred_region
        %s156 = smul.u32 2, %s10
        %p157 = scmp.lt.s32.totalorder %s156, 15
        %s158 = scalar_select %p157, %s156, 15
        %s159 = smul.addr %s158, 8
        %s160 = scalar_lea.vmem %s0, %s159
        %s161 = smul.u32 2, %s10
      $region32: #{wr_xformer_single_forward.13} parent=27 // pred_fallthru
        _
    $region28: #{wr_xformer_single_forward.13} parent=5 // pred_fallthru
      _
    %p162 = scmp.le.s32.totalorder 1, %s10
    %p163 = scmp.lt.s32.totalorder %s10, 9
    %p164 = pnand %p162, %p163
    %p165 = pneg %p164
    // Predicated region
    $region33: #{wr_xformer_single_forward.13} parent=5 // pred_check
      _
    $region34: #{wr_xformer_single_forward.13} parent=5 // pred_check_branch
      %167 = sbr.rel (%p164) target = $region36
    $region35: #{wr_xformer_single_forward.13} parent=5 // pred_region
      %s168 = ssub.s32 %s10, 1
      %s169 = smul.u32 2, %s15
      %p170 = scmp.lt.s32.totalorder %s169, 15
      %s171 = scalar_select %p170, %s169, 15
      %s172 = smul.addr %s171, 8
      %s173 = scalar_lea.vmem %s0, %s172
      %p174 = pneg %p36
      %p175 = pneg %p33
      %p176 = pneg %p57
      %p177 = pneg %p54
      %p178 = pneg %p78
      %p179 = pneg %p75
      %p180 = pneg %p99
      %p181 = pneg %p96
      %p182 = pneg %p125
      %p183 = pneg %p122
      %s184 = smul.u32 2, %s15
      %p185 = scmp.lt.s32.totalorder %s184, 15
      %s186 = scalar_select %p185, %s184, 15
      %s187 = smul.addr %s186, 4
      %s188 = scalar_lea.vmem %s4, %s187
      %s189 = smul.u32 2, %s15
      %p190 = scmp.lt.s32.totalorder %s189, 15
      %s191 = scalar_select %p190, %s189, 15
      %s192 = smul.addr %s191, 8
      %s193 = scalar_lea.vmem %s0, %s192
      %s194 = smul.u32 2, %s15
      %s195 = smul.u32 2, %s15
      %p196 = scmp.lt.s32.totalorder %s195, 15
      %s197 = scalar_select %p196, %s195, 15
      %s198 = smul.addr %s197, 4
      %s199 = scalar_lea.vmem %s4, %s198
      %s200 = smul.u32 2, %s15
      %v202 = vld [vmem:[%s193] sm:$0xff]
      %v203 = vld [vmem:[%s193 + $0x8] sm:$0xff]
      %v204 = vpack.c.bf16 %v203, %v202
      %v205 = vld [vmem:[%s1] sm:$0xf]
      %v206 = vld [vmem:[%s2] sm:$0x1]
      %v208 = vlaneseq
      %v209 = vshrl.u32 %v208, 7
      %v210 = vsub.s32 0, %v209
      %v211 = vrot.slane %v206, %v210
      %vm213 = vcmask 64512
      %v215 = vsel %vm213, %v204, 0
      %vm217 = vcmask 1043456
      %v219 = vsel %vm217, %v205, 0
      %221 = vmatprep.subr.bf16.mxu0 0
      %222 = vmatpush1.bf16.msra.mxu0 0
      %223 = vmatprep.subr.bf16.mxu0 0
      %224 = vmatpush1.bf16.msra.mxu0 0
      %225 = vmatprep.subr.bf16.mxu0 0
      %226 = vmatpush1.bf16.msra.mxu0 0
      %227 = vmatprep.subr.bf16.mxu0 0
      %228 = vmatpush1.bf16.msra.mxu0 0
      %229 = vmatprep.subr.bf16.mxu0 0
      %230 = vmatpush1.bf16.msra.mxu0 0
      %231 = vmatprep.subr.bf16.mxu0 0
      %232 = vmatpush1.bf16.msra.mxu0 0
      %233 = vmatprep.subr.bf16.mxu0 0
      %234 = vmatpush1.bf16.msra.mxu0 0
      %235 = vmatprep.subr.bf16.mxu0 0
      %236 = vmatpush1.bf16.msra.mxu0 %v219
      %237 = vmatprep.subr.bf16.mxu0 0
      %238 = vmatpush2.bf16.msra.mxu0 0
      %239 = vmatprep.subr.bf16.mxu0 0
      %240 = vmatpush2.bf16.msra.mxu0 0
      %241 = vmatprep.subr.bf16.mxu0 0
      %242 = vmatpush2.bf16.msra.mxu0 0
      %243 = vmatprep.subr.bf16.mxu0 0
      %244 = vmatpush2.bf16.msra.mxu0 0
      %245 = vmatprep.subr.bf16.mxu0 0
      %246 = vmatpush2.bf16.msra.mxu0 0
      %247 = vmatprep.subr.bf16.mxu0 0
      %248 = vmatpush2.bf16.msra.mxu0 0
      %249 = vmatprep.subr.bf16.mxu0 0
      %250 = vmatpush2.bf16.msra.mxu0 0
      %251 = vmatprep.subr.bf16.mxu0 0
      %252 = vmatpush2.bf16.msra.mxu0 0
      %253 = vmatprep.mubr.bf16.mxu0 0
      %254 = vmatmul.mubr.bf16.gmra.mxu0 %v215
      %v255 = vpop.f32.mrf.mxu0
      %v256 = vadd.f32 %v211, %v255
      %v257 = vpop.f32.mrf.mxu0
      %v258 = vpop.f32.mrf.mxu0
      %v259 = vadd.f32 %v211, %v258
      %v260 = vpop.f32.mrf.mxu0
      %261 = vdwg.mxu0
      %v262 = vld [vmem:[%s3] sm:$0xff]
      %v263 = vld [vmem:[%s3 + $0x8] sm:$0xff]
      %v264 = vadd.f32 %v256, %v262
      %v265 = vadd.f32 %v259, %v263
      %v266 = vpack.c.bf16 %v265, %v264
      %v268 = vunpack.c.l.b16 %v266
      %v269 = vunpack.c.h.b16 %v266
      %v270 = vpack.c.b16 %v268, %v268
      %v271 = vpack.c.b16 %v269, %v269
      %274 = vst [vmem:[%s199] sm:$0xf] %v270
      %275 = vst [vmem:[%s199 + $0x4] sm:$0xf] %v271
      %s276 = smul.u32 2, %s15
      %p277 = scmp.lt.s32.totalorder %s276, 15
      %s278 = scalar_select %p277, %s276, 15
      %s279 = smul.addr %s278, 4
      %s280 = scalar_lea.vmem %s4, %s279
      // Predicated region
      $region37: #{wr_xformer_single_forward.13} parent=35 // pred_check
        %p281 = pneg %p122
      $region38: #{wr_xformer_single_forward.13} parent=35 // pred_check_branch
        %283 = sbr.rel (%p281) target = $region40
      $region39: #{wr_xformer_single_forward.13} parent=35 // pred_region
        %s284 = smul.u32 2, %s15
      $region40: #{wr_xformer_single_forward.13} parent=35 // pred_fallthru
        _
    $region36: #{wr_xformer_single_forward.13} parent=5 // pred_fallthru
      _
    %p285 = scmp.le.s32.totalorder 2, %s10
    // Predicated region
    $region41: #{wr_xformer_single_forward.13} parent=5 // pred_check
      %p286 = pneg %p285
    $region42: #{wr_xformer_single_forward.13} parent=5 // pred_check_branch
      %288 = sbr.rel (%p286) target = $region44
    $region43: #{wr_xformer_single_forward.13} parent=5 // pred_region
      %s289 = ssub.s32 %s10, 2
      // Predicated region
      $region45: #{wr_xformer_single_forward.13} parent=43 // pred_check
        %p290 = pneg %p128
      $region46: #{wr_xformer_single_forward.13} parent=43 // pred_check_branch
        %292 = sbr.rel (%p290) target = $region48
      $region47: #{wr_xformer_single_forward.13} parent=43 // pred_region
        %s293 = smul.u32 2, %s16
        %p294 = scmp.lt.s32.totalorder %s293, 15
        %s295 = scalar_select %p294, %s293, 15
        %s296 = smul.addr %s295, 4
        %s297 = scalar_lea.vmem %s4, %s296
      $region48: #{wr_xformer_single_forward.13} parent=43 // pred_fallthru
        _
    $region44: #{wr_xformer_single_forward.13} parent=5 // pred_fallthru
      _
  $region6: #{wr_xformer_single_forward.13} parent=0 // loop_footer
    %s14 = sadd.s32 1, %s10
  $region7: #{wr_xformer_single_forward.13} parent=0 // loop_footer_branch
    %9 = sbr.rel target = $region3
  $region8: #{wr_xformer_single_forward.13} parent=0 // loop_exit
    _

// kernel: wr_xformer_single_forward.14
$region0: #{wr_xformer_single_forward.14}
  #allocation0 [shape = 'u32[]', space=smem, size = 0x4, offset = 0x4, fixed_abs, tag = 'smem constant byte address 0x4 - core index']
  #allocation1 [shape = 'u32[144,128]{1,0:T(1,128)}', space=vmem, size = 0x12000, scoped, tag = 'internal scratch']
  #allocation2 [shape = 'f32[16,128]{1,0:T(8,128)}', space=vmem, size = 0x2000, scoped, tag = 'scratch operand']
  %s0 = inlined_call_operand.vmem [shape: bf16[128,128], index: 0, kind: input, shape index: {}, may-alias: {0,1}]
  %s1 = inlined_call_operand.vmem [shape: bf16[128,128], index: 1, kind: input, shape index: {}, may-alias: {0,1}]
  %s2 = inlined_call_operand.hbm [shape: bf16[4,512,32], index: 2, kind: input, shape index: {}]
  %s3 = inlined_call_operand.vmem [shape: f32[4,8,32], index: 3, kind: input, shape index: {}]
  %s4 = inlined_call_operand.vmem [shape: f32[8,128], index: 4, kind: input, shape index: {}]
  %s5 = inlined_call_operand.vmem [shape: bf16[128,128], index: 5, kind: output, shape index: {}]
  %s6 = sld [smem:[#allocation0]]
  $region65: #{wr_xformer_single_forward.14} parent=0
    _
  %s8 = ssub.s32 1, %s6
  %s9 = scalar_select 0, %s8, %s6
  $region1: #{wr_xformer_single_forward.14} parent=0
    #allocation3 [shape = 'u8[262144]{0}', space=vmem, size = 0x40000, scoped, tag = 'input window, operand 2']
    #allocation4 [shape = 's32[2]{0}', space=sflag, size = 0x8, scoped, tag = 'scoped memory for wr_xformer_single_forward.14']
    %10 = vsyncpa [#allocation4], 0
    %s11 = scalar_lea.sflag [#allocation4], 1
    %12 = vsyncpa %s11, 0
    loop: start=0, step=1, limit=34
    $region2: #{wr_xformer_single_forward.14} parent=1 // loop_pre_header
      _
    $region3: #{wr_xformer_single_forward.14} parent=1 // loop_header
      %s14 = sphi 0, %s18
      %p15 = scmp.ge.s32.totalorder %s14, 34
      %s21 = sphi 0, %s33
      %s22 = sphi 0, %s29
      %s23 = sphi 0, %s21
      %s24 = sphi 0, %s22
      %s25 = sphi 0, %s23
      %s26 = sphi 0, %s24
      %s36 = sphi 0, %s38
      %s39 = sphi 0, %s36
      %s40 = sphi 0, %s39
      %s56 = sphi 0, %s40
      %s62 = sphi 0, %s64
      %s65 = sphi 0, %s62
      %s66 = sphi 0, %s65
      %s82 = sphi 0, %s66
      %s88 = sphi 0, %s90
      %s91 = sphi 0, %s88
      %s92 = sphi 0, %s91
      %s108 = sphi 0, %s92
      %s114 = sphi 0, %s116
      %s117 = sphi 0, %s114
      %s118 = sphi 0, %s117
      %s134 = sphi 0, %s118
      %s138 = sphi 0, %s138
      %s140 = sphi 0, %s138
      %s141 = sphi 0, %s140
      %s155 = sphi 0, %s141
      %s161 = sphi 0, %s163
      %s164 = sphi 0, %s161
      %s165 = sphi 0, %s164
      %s181 = sphi 0, %s165
    $region4: #{wr_xformer_single_forward.14} parent=1 // loop_header_branch
      %17 = sbr.rel (%p15) target = $region8
    $region5: #{wr_xformer_single_forward.14} parent=1 // loop_body
      %s19 = ssub.s32 %s14, 1
      %s20 = ssub.s32 %s14, 2
      %s27 = sadd.s32 1, %s22
      %p28 = scmp.ge.s32.totalorder %s27, 4
      %s29 = scalar_select %p28, 0, %s27
      %s30 = sadd.s32 1, %s21
      %s31 = scalar_select %p28, %s30, %s21
      %p32 = scmp.ge.s32.totalorder %s31, 8
      %s33 = scalar_select %p32, 0, %s31
      %s34 = ssub.s32 %s21, %s33
      %p35 = scmp.eq.s32.totalorder %s34, 0
      %s37 = sadd.s32 %s36, 1
      %s38 = scalar_select %p35, %s36, %s37
      %p41 = pneg %p35
      %p42 = scmp.eq.s32.totalorder %s14, 31
      %p43 = por %p41, %p42
      %p44 = scmp.ne.s32.totalorder %s36, %s39
      %p45 = scmp.eq.s32.totalorder %s14, 0
      %p46 = por %p44, %p45
      %p47 = scmp.ne.s32.totalorder %s36, %s39
      %p48 = scmp.eq.s32.totalorder %s19, 31
      %p49 = por %p47, %p48
      %p50 = scmp.ne.s32.totalorder %s39, %s40
      %p51 = scmp.eq.s32.totalorder %s19, 0
      %p52 = por %p50, %p51
      %p53 = scmp.ne.s32.totalorder %s39, %s40
      %p54 = scmp.eq.s32.totalorder %s20, 31
      %p55 = por %p53, %p54
      %p57 = scmp.ne.s32.totalorder %s40, %s56
      %p58 = scmp.eq.s32.totalorder %s20, 0
      %p59 = por %p57, %p58
      %s60 = ssub.s32 %s21, %s33
      %p61 = scmp.eq.s32.totalorder %s60, 0
      %s63 = sadd.s32 %s62, 1
      %s64 = scalar_select %p61, %s62, %s63
      %p67 = pneg %p61
      %p68 = scmp.eq.s32.totalorder %s14, 31
      %p69 = por %p67, %p68
      %p70 = scmp.ne.s32.totalorder %s62, %s65
      %p71 = scmp.eq.s32.totalorder %s14, 0
      %p72 = por %p70, %p71
      %p73 = scmp.ne.s32.totalorder %s62, %s65
      %p74 = scmp.eq.s32.totalorder %s19, 31
      %p75 = por %p73, %p74
      %p76 = scmp.ne.s32.totalorder %s65, %s66
      %p77 = scmp.eq.s32.totalorder %s19, 0
      %p78 = por %p76, %p77
      %p79 = scmp.ne.s32.totalorder %s65, %s66
      %p80 = scmp.eq.s32.totalorder %s20, 31
      %p81 = por %p79, %p80
      %p83 = scmp.ne.s32.totalorder %s66, %s82
      %p84 = scmp.eq.s32.totalorder %s20, 0
      %p85 = por %p83, %p84
      %s86 = ssub.s32 %s22, %s29
      %p87 = scmp.eq.s32.totalorder %s86, 0
      %s89 = sadd.s32 %s88, 1
      %s90 = scalar_select %p87, %s88, %s89
      %p93 = pneg %p87
      %p94 = scmp.eq.s32.totalorder %s14, 31
      %p95 = por %p93, %p94
      %p96 = scmp.ne.s32.totalorder %s88, %s91
      %p97 = scmp.eq.s32.totalorder %s14, 0
      %p98 = por %p96, %p97
      %p99 = scmp.ne.s32.totalorder %s88, %s91
      %p100 = scmp.eq.s32.totalorder %s19, 31
      %p101 = por %p99, %p100
      %p102 = scmp.ne.s32.totalorder %s91, %s92
      %p103 = scmp.eq.s32.totalorder %s19, 0
      %p104 = por %p102, %p103
      %p105 = scmp.ne.s32.totalorder %s91, %s92
      %p106 = scmp.eq.s32.totalorder %s20, 31
      %p107 = por %p105, %p106
      %p109 = scmp.ne.s32.totalorder %s92, %s108
      %p110 = scmp.eq.s32.totalorder %s20, 0
      %p111 = por %p109, %p110
      %s112 = ssub.s32 %s22, %s29
      %p113 = scmp.eq.s32.totalorder %s112, 0
      %s115 = sadd.s32 %s114, 1
      %s116 = scalar_select %p113, %s114, %s115
      %p119 = pneg %p113
      %p120 = scmp.eq.s32.totalorder %s14, 31
      %p121 = por %p119, %p120
      %p122 = scmp.ne.s32.totalorder %s114, %s117
      %p123 = scmp.eq.s32.totalorder %s14, 0
      %p124 = por %p122, %p123
      %p125 = scmp.ne.s32.totalorder %s114, %s117
      %p126 = scmp.eq.s32.totalorder %s19, 31
      %p127 = por %p125, %p126
      %p128 = scmp.ne.s32.totalorder %s117, %s118
      %p129 = scmp.eq.s32.totalorder %s19, 0
      %p130 = por %p128, %p129
      %p131 = scmp.ne.s32.totalorder %s117, %s118
      %p132 = scmp.eq.s32.totalorder %s20, 31
      %p133 = por %p131, %p132
      %p135 = scmp.ne.s32.totalorder %s118, %s134
      %p136 = scmp.eq.s32.totalorder %s20, 0
      %p137 = por %p135, %p136
      %s139 = sadd.s32 %s138, 1
      %p142 = scmp.eq.s32.totalorder %s14, 31
      %p143 = scmp.ne.s32.totalorder %s138, %s140
      %p144 = scmp.eq.s32.totalorder %s14, 0
      %p145 = por %p143, %p144
      %p146 = scmp.ne.s32.totalorder %s138, %s140
      %p147 = scmp.eq.s32.totalorder %s19, 31
      %p148 = por %p146, %p147
      %p149 = scmp.ne.s32.totalorder %s140, %s141
      %p150 = scmp.eq.s32.totalorder %s19, 0
      %p151 = por %p149, %p150
      %p152 = scmp.ne.s32.totalorder %s140, %s141
      %p153 = scmp.eq.s32.totalorder %s20, 31
      %p154 = por %p152, %p153
      %p156 = scmp.ne.s32.totalorder %s141, %s155
      %p157 = scmp.eq.s32.totalorder %s20, 0
      %p158 = por %p156, %p157
      %s159 = ssub.s32 %s21, %s33
      %p160 = scmp.eq.s32.totalorder %s159, 0
      %s162 = sadd.s32 %s161, 1
      %s163 = scalar_select %p160, %s161, %s162
      %p166 = pneg %p160
      %p167 = scmp.eq.s32.totalorder %s14, 31
      %p168 = por %p166, %p167
      %p169 = scmp.ne.s32.totalorder %s161, %s164
      %p170 = scmp.eq.s32.totalorder %s14, 0
      %p171 = por %p169, %p170
      %p172 = scmp.ne.s32.totalorder %s161, %s164
      %p173 = scmp.eq.s32.totalorder %s19, 31
      %p174 = por %p172, %p173
      %p175 = scmp.ne.s32.totalorder %s164, %s165
      %p176 = scmp.eq.s32.totalorder %s19, 0
      %p177 = por %p175, %p176
      %p178 = scmp.ne.s32.totalorder %s164, %s165
      %p179 = scmp.eq.s32.totalorder %s20, 31
      %p180 = por %p178, %p179
      %p182 = scmp.ne.s32.totalorder %s165, %s181
      %p183 = scmp.eq.s32.totalorder %s20, 0
      %p184 = por %p182, %p183
      %p185 = scmp.le.s32.totalorder 1, %s14
      %p186 = scmp.lt.s32.totalorder %s14, 33
      %p187 = pnand %p185, %p186
      %p188 = pneg %p187
      // Predicated region
      $region9: #{wr_xformer_single_forward.14} parent=5 // pred_check
        _
      $region10: #{wr_xformer_single_forward.14} parent=5 // pred_check_branch
        %190 = sbr.rel (%p187) target = $region12
      $region11: #{wr_xformer_single_forward.14} parent=5 // pred_region
        %s191 = ssub.s32 %s14, 1
        // Predicated region
        $region13: #{wr_xformer_single_forward.14} parent=11 // pred_check
          %p192 = pneg %p151
        $region14: #{wr_xformer_single_forward.14} parent=11 // pred_check_branch
          %194 = sbr.rel (%p192) target = $region16
        $region15: #{wr_xformer_single_forward.14} parent=11 // pred_region
          _
        $region16: #{wr_xformer_single_forward.14} parent=11 // pred_fallthru
          _
      $region12: #{wr_xformer_single_forward.14} parent=5 // pred_fallthru
        _
      %p195 = scmp.lt.s32.totalorder %s14, 32
      // Predicated region
      $region17: #{wr_xformer_single_forward.14} parent=5 // pred_check
        %p196 = pneg %p195
      $region18: #{wr_xformer_single_forward.14} parent=5 // pred_check_branch
        %198 = sbr.rel (%p196) target = $region20
      $region19: #{wr_xformer_single_forward.14} parent=5 // pred_region
        // Predicated region
        $region21: #{wr_xformer_single_forward.14} parent=19 // pred_check
          %p199 = pneg %p46
        $region22: #{wr_xformer_single_forward.14} parent=19 // pred_check_branch
          %201 = sbr.rel (%p199) target = $region24
        $region23: #{wr_xformer_single_forward.14} parent=19 // pred_region
          %s202 = smul.u32 2, %s21
          %p203 = scmp.lt.s32.totalorder %s202, 15
          %s204 = scalar_select %p203, %s202, 15
          %s205 = smul.addr %s204, 4
          %s206 = scalar_lea.vmem %s0, %s205
          %s207 = smul.u32 2, %s21
        $region24: #{wr_xformer_single_forward.14} parent=19 // pred_fallthru
          _
        // Predicated region
        $region25: #{wr_xformer_single_forward.14} parent=19 // pred_check
          %p208 = pneg %p72
        $region26: #{wr_xformer_single_forward.14} parent=19 // pred_check_branch
          %210 = sbr.rel (%p208) target = $region28
        $region27: #{wr_xformer_single_forward.14} parent=19 // pred_region
          %s211 = smul.u32 2, %s21
          %p212 = scmp.lt.s32.totalorder %s211, 15
          %s213 = scalar_select %p212, %s211, 15
          %s214 = smul.addr %s213, 4
          %s215 = scalar_lea.vmem %s1, %s214
          %s216 = smul.u32 2, %s21
        $region28: #{wr_xformer_single_forward.14} parent=19 // pred_fallthru
          _
        // Predicated region
        $region29: #{wr_xformer_single_forward.14} parent=19 // pred_check
          %p217 = pneg %p98
        $region30: #{wr_xformer_single_forward.14} parent=19 // pred_check_branch
          %219 = sbr.rel (%p217) target = $region32
        $region31: #{wr_xformer_single_forward.14} parent=19 // pred_region
          %s220 = sand.u32 %s88, 1
          %s221 = scalar_lea.sflag [#allocation4], %s220
          %s222 = sand.u32 %s88, 1
          %s223 = smul.addr %s222, 256
          %s224 = scalar_lea.vmem [#allocation3], %s223
          %s226 = ssub.s32 4096, 4096
          %227 = vsyncadd %s221, %s226
          %s228 = smul.addr %s22, 64
          %s229 = smul.addr %s228, 64
          %s230 = scalar_lea.hbm %s2, %s229
          %s231 = sshll.u32 %s224, 4
          %s232 = int_to_ptr.vmem [resolvable:$true] %s231
          %237 = dma.hbm_to_vmem [thread:$0]  %s230, 4096, %s232, %s221, 64, 64, 4
        $region32: #{wr_xformer_single_forward.14} parent=19 // pred_fallthru
          _
        // Predicated region
        $region33: #{wr_xformer_single_forward.14} parent=19 // pred_check
          %p238 = pneg %p124
        $region34: #{wr_xformer_single_forward.14} parent=19 // pred_check_branch
          %240 = sbr.rel (%p238) target = $region36
        $region35: #{wr_xformer_single_forward.14} parent=19 // pred_region
          %p241 = scmp.lt.s32.totalorder %s22, 3
          %s242 = scalar_select %p241, %s22, 3
          %s243 = smul.addr %s242, 8
          %s244 = scalar_lea.vmem %s3, %s243
        $region36: #{wr_xformer_single_forward.14} parent=19 // pred_fallthru
          _
      $region20: #{wr_xformer_single_forward.14} parent=5 // pred_fallthru
        _
      %p245 = scmp.le.s32.totalorder 1, %s14
      %p246 = scmp.lt.s32.totalorder %s14, 33
      %p247 = pnand %p245, %p246
      %p248 = pneg %p247
      // Predicated region
      $region37: #{wr_xformer_single_forward.14} parent=5 // pred_check
        _
      $region38: #{wr_xformer_single_forward.14} parent=5 // pred_check_branch
        %250 = sbr.rel (%p247) target = $region40
      $region39: #{wr_xformer_single_forward.14} parent=5 // pred_region
        %s251 = ssub.s32 %s14, 1
        %s252 = sand.u32 %s91, 1
        %s253 = scalar_lea.sflag [#allocation4], %s252
        %s254 = sand.u32 %s91, 1
        %s255 = smul.addr %s254, 256
        %s256 = scalar_lea.vmem [#allocation3], %s255
        // Predicated region
        $region41: #{wr_xformer_single_forward.14} parent=39 // pred_check
          %p257 = pneg %p104
        $region42: #{wr_xformer_single_forward.14} parent=39 // pred_check_branch
          %259 = sbr.rel (%p257) target = $region44
        $region43: #{wr_xformer_single_forward.14} parent=39 // pred_region
          %260 = dma.done %s253, 4096
        $region44: #{wr_xformer_single_forward.14} parent=39 // pred_fallthru
          _
        %s261 = smul.u32 2, %s23
        %p262 = scmp.lt.s32.totalorder %s261, 15
        %s263 = scalar_select %p262, %s261, 15
        %s264 = smul.addr %s263, 4
        %s265 = scalar_lea.vmem %s0, %s264
        %p266 = pneg %p52
        %p267 = pneg %p49
        %s268 = smul.u32 2, %s23
        %p269 = scmp.lt.s32.totalorder %s268, 15
        %s270 = scalar_select %p269, %s268, 15
        %s271 = smul.addr %s270, 4
        %s272 = scalar_lea.vmem %s1, %s271
        %p273 = pneg %p78
        %p274 = pneg %p75
        %s275 = sand.u32 %s91, 1
        %s276 = scalar_lea.sflag [#allocation4], %s275
        %s277 = sand.u32 %s91, 1
        %s278 = smul.addr %s277, 256
        %s279 = scalar_lea.vmem [#allocation3], %s278
        %p280 = pneg %p104
        %p281 = pneg %p101
        %p282 = scmp.lt.s32.totalorder %s24, 3
        %s283 = scalar_select %p282, %s24, 3
        %s284 = smul.addr %s283, 8
        %s285 = scalar_lea.vmem %s3, %s284
        %p286 = pneg %p130
        %p287 = pneg %p127
        %p288 = pneg %p151
        %p289 = pneg %p148
        %p290 = pneg %p177
        %p291 = pneg %p174
        %s292 = smul.u32 2, %s23
        %p293 = scmp.lt.s32.totalorder %s292, 15
        %s294 = scalar_select %p293, %s292, 15
        %s295 = smul.addr %s294, 4
        %s296 = scalar_lea.vmem %s5, %s295
        %s297 = smul.u32 2, %s23
        %p298 = scmp.lt.s32.totalorder %s297, 15
        %s299 = scalar_select %p298, %s297, 15
        %s300 = smul.addr %s299, 4
        %s301 = scalar_lea.vmem %s0, %s300
        %s302 = smul.u32 2, %s23
        %s303 = smul.u32 2, %s23
        %p304 = scmp.lt.s32.totalorder %s303, 15
        %s305 = scalar_select %p304, %s303, 15
        %s306 = smul.addr %s305, 4
        %s307 = scalar_lea.vmem %s1, %s306
        %s308 = smul.u32 2, %s23
        %p309 = scmp.lt.s32.totalorder %s24, 3
        %s310 = scalar_select %p309, %s24, 3
        %s311 = smul.addr %s310, 8
        %s312 = scalar_lea.vmem %s3, %s311
        %s313 = smul.u32 2, %s23
        %p314 = scmp.lt.s32.totalorder %s313, 15
        %s315 = scalar_select %p314, %s313, 15
        %s316 = smul.addr %s315, 4
        %s317 = scalar_lea.vmem %s5, %s316
        %s318 = smul.u32 2, %s23
        %p320 = scmp.eq.s32.totalorder %s24, 0
        // Predicated region
        $region45: #{wr_xformer_single_forward.14} parent=39 // pred_check
          %p321 = pneg %p320
        $region46: #{wr_xformer_single_forward.14} parent=39 // pred_check_branch
          %323 = sbr.rel (%p321) target = $region48
        $region47: #{wr_xformer_single_forward.14} parent=39 // pred_region
          %324 = vst [vmem:[#allocation2] sm:$0xff] 0.0
          %325 = vst [vmem:[#allocation2 + $0x8] sm:$0xff] 0.0
        $region48: #{wr_xformer_single_forward.14} parent=39 // pred_fallthru
          _
        %v326 = vld [vmem:[%s301] sm:$0xf]
        %v327 = vld [vmem:[%s301 + $0x4] sm:$0xf]
        %v328 = vld [vmem:[%s307] sm:$0xf]
        %v329 = vld [vmem:[%s307 + $0x4] sm:$0xf]
        %v330 = vld [vmem:[%s256] sm:$0xf]
        %v331 = vld [vmem:[%s256 + $0x4] sm:$0xf]
        %v332 = vld [vmem:[%s256 + $0x8] sm:$0xf]
        %v333 = vld [vmem:[%s256 + $0xc] sm:$0xf]
        %v334 = vld [vmem:[%s256 + $0x10] sm:$0xf]
        %v335 = vld [vmem:[%s256 + $0x14] sm:$0xf]
        %v336 = vld [vmem:[%s256 + $0x18] sm:$0xf]
        %v337 = vld [vmem:[%s256 + $0x1c] sm:$0xf]
        %v338 = vld [vmem:[%s256 + $0x20] sm:$0xf]
        %v339 = vld [vmem:[%s256 + $0x24] sm:$0xf]
        %v340 = vld [vmem:[%s256 + $0x28] sm:$0xf]
        %v341 = vld [vmem:[%s256 + $0x2c] sm:$0xf]
        %v342 = vld [vmem:[%s256 + $0x30] sm:$0xf]
        %v343 = vld [vmem:[%s256 + $0x34] sm:$0xf]
        %v344 = vld [vmem:[%s256 + $0x38] sm:$0xf]
        %v345 = vld [vmem:[%s256 + $0x3c] sm:$0xf]
        %v346 = vld [vmem:[%s256 + $0x40] sm:$0xf]
        %v347 = vld [vmem:[%s256 + $0x44] sm:$0xf]
        %v348 = vld [vmem:[%s256 + $0x48] sm:$0xf]
        %v349 = vld [vmem:[%s256 + $0x4c] sm:$0xf]
        %v350 = vld [vmem:[%s256 + $0x50] sm:$0xf]
        %v351 = vld [vmem:[%s256 + $0x54] sm:$0xf]
        %v352 = vld [vmem:[%s256 + $0x58] sm:$0xf]
        %v353 = vld [vmem:[%s256 + $0x5c] sm:$0xf]
        %v354 = vld [vmem:[%s256 + $0x60] sm:$0xf]
        %v355 = vld [vmem:[%s256 + $0x64] sm:$0xf]
        %v356 = vld [vmem:[%s256 + $0x68] sm:$0xf]
        %v357 = vld [vmem:[%s256 + $0x6c] sm:$0xf]
        %v358 = vld [vmem:[%s256 + $0x70] sm:$0xf]
        %v359 = vld [vmem:[%s256 + $0x74] sm:$0xf]
        %v360 = vld [vmem:[%s256 + $0x78] sm:$0xf]
        %v361 = vld [vmem:[%s256 + $0x7c] sm:$0xf]
        %v362 = vld [vmem:[%s256 + $0x80] sm:$0xf]
        %v363 = vld [vmem:[%s256 + $0x84] sm:$0xf]
        %v364 = vld [vmem:[%s256 + $0x88] sm:$0xf]
        %v365 = vld [vmem:[%s256 + $0x8c] sm:$0xf]
        %v366 = vld [vmem:[%s256 + $0x90] sm:$0xf]
        %v367 = vld [vmem:[%s256 + $0x94] sm:$0xf]
        %v368 = vld [vmem:[%s256 + $0x98] sm:$0xf]
        %v369 = vld [vmem:[%s256 + $0x9c] sm:$0xf]
        %v370 = vld [vmem:[%s256 + $0xa0] sm:$0xf]
        %v371 = vld [vmem:[%s256 + $0xa4] sm:$0xf]
        %v372 = vld [vmem:[%s256 + $0xa8] sm:$0xf]
        %v373 = vld [vmem:[%s256 + $0xac] sm:$0xf]
        %v374 = vld [vmem:[%s256 + $0xb0] sm:$0xf]
        %v375 = vld [vmem:[%s256 + $0xb4] sm:$0xf]
        %v376 = vld [vmem:[%s256 + $0xb8] sm:$0xf]
        %v377 = vld [vmem:[%s256 + $0xbc] sm:$0xf]
        %v378 = vld [vmem:[%s256 + $0xc0] sm:$0xf]
        %v379 = vld [vmem:[%s256 + $0xc4] sm:$0xf]
        %v380 = vld [vmem:[%s256 + $0xc8] sm:$0xf]
        %v381 = vld [vmem:[%s256 + $0xcc] sm:$0xf]
        %v382 = vld [vmem:[%s256 + $0xd0] sm:$0xf]
        %v383 = vld [vmem:[%s256 + $0xd4] sm:$0xf]
        %v384 = vld [vmem:[%s256 + $0xd8] sm:$0xf]
        %v385 = vld [vmem:[%s256 + $0xdc] sm:$0xf]
        %v386 = vld [vmem:[%s256 + $0xe0] sm:$0xf]
        %v387 = vld [vmem:[%s256 + $0xe4] sm:$0xf]
        %v388 = vld [vmem:[%s256 + $0xe8] sm:$0xf]
        %v389 = vld [vmem:[%s256 + $0xec] sm:$0xf]
        %v390 = vld [vmem:[%s256 + $0xf0] sm:$0xf]
        %v391 = vld [vmem:[%s256 + $0xf4] sm:$0xf]
        %v392 = vld [vmem:[%s256 + $0xf8] sm:$0xf]
        %v393 = vld [vmem:[%s256 + $0xfc] sm:$0xf]
        %v394 = vld [vmem:[%s312] sm:$0xff]
        %v395 = vlaneseq
        %v396 = vshrl.u32 %v395, 7
        %v397 = vsub.s32 0, %v396
        %v398 = vrot.slane %v394, %v397
        %v401 = vunpack.c.l.b16 %v326
        %v402 = vunpack.c.l.b16 %v327
        %v403 = vpack.c.b16 %v402, %v401
        %v421 = vunpack.c.l.b16 %v330
        %v422 = vunpack.c.l.b16 %v331
        %v423 = vunpack.c.l.b16 %v332
        %v424 = vunpack.c.l.b16 %v333
        %v425 = vunpack.c.l.b16 %v334
        %v426 = vunpack.c.l.b16 %v335
        %v427 = vunpack.c.l.b16 %v336
        %v428 = vunpack.c.l.b16 %v337
        %v429 = vunpack.c.l.b16 %v338
        %v430 = vunpack.c.l.b16 %v339
        %v431 = vunpack.c.l.b16 %v340
        %v432 = vunpack.c.l.b16 %v341
        %v433 = vunpack.c.l.b16 %v342
        %v434 = vunpack.c.l.b16 %v343
        %v435 = vunpack.c.l.b16 %v344
        %v436 = vunpack.c.l.b16 %v345
        %v437 = vpack.c.b16 %v422, %v421
        %v438 = vpack.c.b16 %v424, %v423
        %v439 = vpack.c.b16 %v426, %v425
        %v440 = vpack.c.b16 %v428, %v427
        %v441 = vpack.c.b16 %v430, %v429
        %v442 = vpack.c.b16 %v432, %v431
        %v443 = vpack.c.b16 %v434, %v433
        %v444 = vpack.c.b16 %v436, %v435
        %453 = vmatprep.subr.bf16.mxu0 0
        %454 = vmatpush1.bf16.msra.mxu0 %v444
        %455 = vmatprep.subr.bf16.mxu0 0
        %456 = vmatpush1.bf16.msra.mxu0 %v443
        %457 = vmatprep.subr.bf16.mxu0 0
        %458 = vmatpush1.bf16.msra.mxu0 %v442
        %459 = vmatprep.subr.bf16.mxu0 0
        %460 = vmatpush1.bf16.msra.mxu0 %v441
        %461 = vmatprep.subr.bf16.mxu0 0
        %462 = vmatpush1.bf16.msra.mxu0 %v440
        %463 = vmatprep.subr.bf16.mxu0 0
        %464 = vmatpush1.bf16.msra.mxu0 %v439
        %465 = vmatprep.subr.bf16.mxu0 0
        %466 = vmatpush1.bf16.msra.mxu0 %v438
        %467 = vmatprep.subr.bf16.mxu0 0
        %468 = vmatpush1.bf16.msra.mxu0 %v437
        %469 = vmatprep.subr.bf16.mxu0 0
        %470 = vmatpush2.bf16.msra.mxu0 0
        %471 = vmatprep.subr.bf16.mxu0 0
        %472 = vmatpush2.bf16.msra.mxu0 0
        %473 = vmatprep.subr.bf16.mxu0 0
        %474 = vmatpush2.bf16.msra.mxu0 0
        %475 = vmatprep.subr.bf16.mxu0 0
        %476 = vmatpush2.bf16.msra.mxu0 0
        %477 = vmatprep.subr.bf16.mxu0 0
        %478 = vmatpush2.bf16.msra.mxu0 0
        %479 = vmatprep.subr.bf16.mxu0 0
        %480 = vmatpush2.bf16.msra.mxu0 0
        %481 = vmatprep.subr.bf16.mxu0 0
        %482 = vmatpush2.bf16.msra.mxu0 0
        %483 = vmatprep.subr.bf16.mxu0 0
        %484 = vmatpush2.bf16.msra.mxu0 0
        %485 = vmatprep.mubr.bf16.mxu0 0
        %486 = vmatmul.mubr.bf16.gmra.mxu0 %v403
        %v487 = vpop.f32.mrf.mxu0
        %v488 = vadd.f32 %v398, %v487
        %v489 = vpop.f32.mrf.mxu0
        %v490 = vpop.f32.mrf.mxu0
        %v491 = vadd.f32 %v398, %v490
        %v492 = vpop.f32.mrf.mxu0
        %493 = vdwg.mxu0
        %v494 = vlaneseq
        %v495 = vshrl.u32 %v494, 7
        %v496 = vsub.s32 1, %v495
        %v497 = vrot.slane %v394, %v496
        %v500 = vunpack.c.l.b16 %v328
        %v501 = vunpack.c.l.b16 %v329
        %v502 = vpack.c.b16 %v501, %v500
        %v520 = vunpack.c.l.b16 %v346
        %v521 = vunpack.c.l.b16 %v347
        %v522 = vunpack.c.l.b16 %v348
        %v523 = vunpack.c.l.b16 %v349
        %v524 = vunpack.c.l.b16 %v350
        %v525 = vunpack.c.l.b16 %v351
        %v526 = vunpack.c.l.b16 %v352
        %v527 = vunpack.c.l.b16 %v353
        %v528 = vunpack.c.l.b16 %v354
        %v529 = vunpack.c.l.b16 %v355
        %v530 = vunpack.c.l.b16 %v356
        %v531 = vunpack.c.l.b16 %v357
        %v532 = vunpack.c.l.b16 %v358
        %v533 = vunpack.c.l.b16 %v359
        %v534 = vunpack.c.l.b16 %v360
        %v535 = vunpack.c.l.b16 %v361
        %v536 = vpack.c.b16 %v521, %v520
        %v537 = vpack.c.b16 %v523, %v522
        %v538 = vpack.c.b16 %v525, %v524
        %v539 = vpack.c.b16 %v527, %v526
        %v540 = vpack.c.b16 %v529, %v528
        %v541 = vpack.c.b16 %v531, %v530
        %v542 = vpack.c.b16 %v533, %v532
        %v543 = vpack.c.b16 %v535, %v534
        %552 = vmatprep.subr.bf16.mxu0 0
        %553 = vmatpush1.bf16.msra.mxu0 %v543
        %554 = vmatprep.subr.bf16.mxu0 0
        %555 = vmatpush1.bf16.msra.mxu0 %v542
        %556 = vmatprep.subr.bf16.mxu0 0
        %557 = vmatpush1.bf16.msra.mxu0 %v541
        %558 = vmatprep.subr.bf16.mxu0 0
        %559 = vmatpush1.bf16.msra.mxu0 %v540
        %560 = vmatprep.subr.bf16.mxu0 0
        %561 = vmatpush1.bf16.msra.mxu0 %v539
        %562 = vmatprep.subr.bf16.mxu0 0
        %563 = vmatpush1.bf16.msra.mxu0 %v538
        %564 = vmatprep.subr.bf16.mxu0 0
        %565 = vmatpush1.bf16.msra.mxu0 %v537
        %566 = vmatprep.subr.bf16.mxu0 0
        %567 = vmatpush1.bf16.msra.mxu0 %v536
        %568 = vmatprep.subr.bf16.mxu0 0
        %569 = vmatpush2.bf16.msra.mxu0 0
        %570 = vmatprep.subr.bf16.mxu0 0
        %571 = vmatpush2.bf16.msra.mxu0 0
        %572 = vmatprep.subr.bf16.mxu0 0
        %573 = vmatpush2.bf16.msra.mxu0 0
        %574 = vmatprep.subr.bf16.mxu0 0
        %575 = vmatpush2.bf16.msra.mxu0 0
        %576 = vmatprep.subr.bf16.mxu0 0
        %577 = vmatpush2.bf16.msra.mxu0 0
        %578 = vmatprep.subr.bf16.mxu0 0
        %579 = vmatpush2.bf16.msra.mxu0 0
        %580 = vmatprep.subr.bf16.mxu0 0
        %581 = vmatpush2.bf16.msra.mxu0 0
        %582 = vmatprep.subr.bf16.mxu0 0
        %583 = vmatpush2.bf16.msra.mxu0 0
        %584 = vmatprep.mubr.bf16.mxu0 0
        %585 = vmatmul.mubr.bf16.gmra.mxu0 %v502
        %v586 = vpop.f32.mrf.mxu0
        %v587 = vadd.f32 %v497, %v586
        %v588 = vpop.f32.mrf.mxu0
        %v589 = vpop.f32.mrf.mxu0
        %v590 = vadd.f32 %v497, %v589
        %v591 = vpop.f32.mrf.mxu0
        %592 = vdwg.mxu0
        %v593 = vlaneseq
        %v594 = vshrl.u32 %v593, 7
        %v595 = vsub.s32 2, %v594
        %v596 = vrot.slane %v394, %v595
        %v613 = vunpack.c.l.b16 %v362
        %v614 = vunpack.c.l.b16 %v363
        %v615 = vunpack.c.l.b16 %v364
        %v616 = vunpack.c.l.b16 %v365
        %v617 = vunpack.c.l.b16 %v366
        %v618 = vunpack.c.l.b16 %v367
        %v619 = vunpack.c.l.b16 %v368
        %v620 = vunpack.c.l.b16 %v369
        %v621 = vunpack.c.l.b16 %v370
        %v622 = vunpack.c.l.b16 %v371
        %v623 = vunpack.c.l.b16 %v372
        %v624 = vunpack.c.l.b16 %v373
        %v625 = vunpack.c.l.b16 %v374
        %v626 = vunpack.c.l.b16 %v375
        %v627 = vunpack.c.l.b16 %v376
        %v628 = vunpack.c.l.b16 %v377
        %v629 = vpack.c.b16 %v614, %v613
        %v630 = vpack.c.b16 %v616, %v615
        %v631 = vpack.c.b16 %v618, %v617
        %v632 = vpack.c.b16 %v620, %v619
        %v633 = vpack.c.b16 %v622, %v621
        %v634 = vpack.c.b16 %v624, %v623
        %v635 = vpack.c.b16 %v626, %v625
        %v636 = vpack.c.b16 %v628, %v627
        %645 = vmatprep.subr.bf16.mxu0 0
        %646 = vmatpush1.bf16.msra.mxu0 %v636
        %647 = vmatprep.subr.bf16.mxu0 0
        %648 = vmatpush1.bf16.msra.mxu0 %v635
        %649 = vmatprep.subr.bf16.mxu0 0
        %650 = vmatpush1.bf16.msra.mxu0 %v634
        %651 = vmatprep.subr.bf16.mxu0 0
        %652 = vmatpush1.bf16.msra.mxu0 %v633
        %653 = vmatprep.subr.bf16.mxu0 0
        %654 = vmatpush1.bf16.msra.mxu0 %v632
        %655 = vmatprep.subr.bf16.mxu0 0
        %656 = vmatpush1.bf16.msra.mxu0 %v631
        %657 = vmatprep.subr.bf16.mxu0 0
        %658 = vmatpush1.bf16.msra.mxu0 %v630
        %659 = vmatprep.subr.bf16.mxu0 0
        %660 = vmatpush1.bf16.msra.mxu0 %v629
        %661 = vmatprep.subr.bf16.mxu0 0
        %662 = vmatpush2.bf16.msra.mxu0 0
        %663 = vmatprep.subr.bf16.mxu0 0
        %664 = vmatpush2.bf16.msra.mxu0 0
        %665 = vmatprep.subr.bf16.mxu0 0
        %666 = vmatpush2.bf16.msra.mxu0 0
        %667 = vmatprep.subr.bf16.mxu0 0
        %668 = vmatpush2.bf16.msra.mxu0 0
        %669 = vmatprep.subr.bf16.mxu0 0
        %670 = vmatpush2.bf16.msra.mxu0 0
        %671 = vmatprep.subr.bf16.mxu0 0
        %672 = vmatpush2.bf16.msra.mxu0 0
        %673 = vmatprep.subr.bf16.mxu0 0
        %674 = vmatpush2.bf16.msra.mxu0 0
        %675 = vmatprep.subr.bf16.mxu0 0
        %676 = vmatpush2.bf16.msra.mxu0 0
        %677 = vmatprep.mubr.bf16.mxu0 0
        %678 = vmatmul.mubr.bf16.gmra.mxu0 %v502
        %v679 = vpop.f32.mrf.mxu0
        %v680 = vadd.f32 %v596, %v679
        %v681 = vpop.f32.mrf.mxu0
        %v682 = vpop.f32.mrf.mxu0
        %v683 = vadd.f32 %v596, %v682
        %v684 = vpop.f32.mrf.mxu0
        %685 = vdwg.mxu0
        %v686 = vpack.c.bf16 %v491, %v488
        %v687 = vpack.c.bf16 %v590, %v587
        %vm688 = vcmask 261120
        %v690 = vsel %vm688, %v686, 0
        %v693 = vsel %vm688, %v687, 0
        %695 = vmatprep.subr.bf16.mxu0 0
        %696 = vmatpush1.bf16.xpose.msra.mxu0 0
        %697 = vmatprep.subr.bf16.mxu0 0
        %698 = vmatpush1.bf16.xpose.msra.mxu0 0
        %699 = vmatprep.subr.bf16.mxu0 0
        %700 = vmatpush1.bf16.xpose.msra.mxu0 0
        %701 = vmatprep.subr.bf16.mxu0 0
        %702 = vmatpush1.bf16.xpose.msra.mxu0 0
        %703 = vmatprep.subr.bf16.mxu0 0
        %704 = vmatpush1.bf16.xpose.msra.mxu0 0
        %705 = vmatprep.subr.bf16.mxu0 0
        %706 = vmatpush1.bf16.xpose.msra.mxu0 0
        %707 = vmatprep.subr.bf16.mxu0 0
        %708 = vmatpush1.bf16.xpose.msra.mxu0 0
        %709 = vmatprep.subr.bf16.mxu0 0
        %710 = vmatpush1.bf16.xpose.msra.mxu0 %v693
        %711 = vmatprep.subr.bf16.mxu0 0
        %712 = vmatpush2.bf16.xpose.msra.mxu0 0
        %713 = vmatprep.subr.bf16.mxu0 0
        %714 = vmatpush2.bf16.xpose.msra.mxu0 0
        %715 = vmatprep.subr.bf16.mxu0 0
        %716 = vmatpush2.bf16.xpose.msra.mxu0 0
        %717 = vmatprep.subr.bf16.mxu0 0
        %718 = vmatpush2.bf16.xpose.msra.mxu0 0
        %719 = vmatprep.subr.bf16.mxu0 0
        %720 = vmatpush2.bf16.xpose.msra.mxu0 0
        %721 = vmatprep.subr.bf16.mxu0 0
        %722 = vmatpush2.bf16.xpose.msra.mxu0 0
        %723 = vmatprep.subr.bf16.mxu0 0
        %724 = vmatpush2.bf16.xpose.msra.mxu0 0
        %725 = vmatprep.subr.bf16.mxu0 0
        %726 = vmatpush2.bf16.xpose.msra.mxu0 0
        %727 = vmatprep.mubr.bf16.mxu0 0
        %728 = vmatmul.mubr.bf16.gmra.mxu0 %v690
        %v729 = vpop.f32.mrf.mxu0
        %v730 = vadd.f32 0.0, %v729
        %v731 = vpop.f32.mrf.mxu0
        %v732 = vpop.f32.mrf.mxu0
        %v733 = vadd.f32 0.0, %v732
        %v734 = vpop.f32.mrf.mxu0
        %735 = vdwg.mxu0
        %v736 = vlaneseq
        %v737 = vshrl.u32 %v736, 7
        %v738 = vadd.s32 %v737, 8
        %v739 = vlaneseq
        %v740 = vand.u32 %v739, 127
        %vm741 = vcmp.le.s32.totalorder %v740, %v737
        %vm742 = vcmp.le.s32.totalorder %v740, %v738
        %v743 = vsel %vm741, %v730, -1e+30
        %v744 = vsel %vm742, %v733, -1e+30
        %vm745 = vcmask 130048
        %v746 = vsel %vm745, %v743, -inf
        %747 = vmax.xlane.f32.xlu0 %v746
        %v748 = vpop.xlane.xlu0 %747
        %v749 = vsel %vm745, %v744, -inf
        %750 = vmax.xlane.f32.xlu0 %v749
        %v751 = vpop.xlane.xlu0 %750
        %v752 = vsub.f32 %v743, %v748
        %v753 = vsub.f32 %v744, %v751
        %v754 = vmul.f32 %v752, 1.442695
        %v755 = vpow.pop %v754
        %v756 = vmul.f32 %v753, 1.442695
        %v757 = vpow.pop %v756
        %v758 = vsel %vm745, %v755, 0.0
        %759 = vadd.xlane.f32.xlu0 %v758
        %v760 = vpop.xlane.xlu0 %759
        %v761 = vsel %vm745, %v757, 0.0
        %762 = vadd.xlane.f32.xlu0 %v761
        %v763 = vpop.xlane.xlu0 %762
        %v764 = vrcp.pop %v760
        %v765 = vrcp.pop %v763
        %v766 = vmul.f32 %v755, %v764
        %v767 = vmul.f32 %v757, %v765
        %v768 = vpack.c.bf16 %v767, %v766
        %v769 = vpack.c.bf16 %v683, %v680
        %v771 = vsel %vm745, %v768, 0
        %773 = vmatprep.subr.bf16.mxu0 0
        %774 = vmatpush1.bf16.msra.mxu0 0
        %775 = vmatprep.subr.bf16.mxu0 0
        %776 = vmatpush1.bf16.msra.mxu0 0
        %777 = vmatprep.subr.bf16.mxu0 0
        %778 = vmatpush1.bf16.msra.mxu0 0
        %779 = vmatprep.subr.bf16.mxu0 0
        %780 = vmatpush1.bf16.msra.mxu0 0
        %781 = vmatprep.subr.bf16.mxu0 0
        %782 = vmatpush1.bf16.msra.mxu0 0
        %783 = vmatprep.subr.bf16.mxu0 0
        %784 = vmatpush1.bf16.msra.mxu0 0
        %785 = vmatprep.subr.bf16.mxu0 0
        %786 = vmatpush1.bf16.msra.mxu0 0
        %787 = vmatprep.subr.bf16.mxu0 0
        %788 = vmatpush1.bf16.msra.mxu0 %v769
        %789 = vmatprep.subr.bf16.mxu0 0
        %790 = vmatpush2.bf16.msra.mxu0 0
        %791 = vmatprep.subr.bf16.mxu0 0
        %792 = vmatpush2.bf16.msra.mxu0 0
        %793 = vmatprep.subr.bf16.mxu0 0
        %794 = vmatpush2.bf16.msra.mxu0 0
        %795 = vmatprep.subr.bf16.mxu0 0
        %796 = vmatpush2.bf16.msra.mxu0 0
        %797 = vmatprep.subr.bf16.mxu0 0
        %798 = vmatpush2.bf16.msra.mxu0 0
        %799 = vmatprep.subr.bf16.mxu0 0
        %800 = vmatpush2.bf16.msra.mxu0 0
        %801 = vmatprep.subr.bf16.mxu0 0
        %802 = vmatpush2.bf16.msra.mxu0 0
        %803 = vmatprep.subr.bf16.mxu0 0
        %804 = vmatpush2.bf16.msra.mxu0 0
        %805 = vmatprep.mubr.bf16.mxu0 0
        %806 = vmatmul.mubr.bf16.gmra.mxu0 %v771
        %v807 = vpop.f32.mrf.mxu0
        %v808 = vadd.f32 0.0, %v807
        %v809 = vpop.f32.mrf.mxu0
        %v810 = vpop.f32.mrf.mxu0
        %v811 = vadd.f32 0.0, %v810
        %v812 = vpop.f32.mrf.mxu0
        %813 = vdwg.mxu0
        %v814 = vld [vmem:[#allocation2] sm:$0xff]
        %v815 = vld [vmem:[#allocation2 + $0x8] sm:$0xff]
        %v816 = vpack.c.bf16 %v811, %v808
        %v833 = vunpack.c.l.b16 %v378
        %v834 = vunpack.c.l.b16 %v379
        %v835 = vunpack.c.l.b16 %v380
        %v836 = vunpack.c.l.b16 %v381
        %v837 = vunpack.c.l.b16 %v382
        %v838 = vunpack.c.l.b16 %v383
        %v839 = vunpack.c.l.b16 %v384
        %v840 = vunpack.c.l.b16 %v385
        %v841 = vunpack.c.l.b16 %v386
        %v842 = vunpack.c.l.b16 %v387
        %v843 = vunpack.c.l.b16 %v388
        %v844 = vunpack.c.l.b16 %v389
        %v845 = vunpack.c.l.b16 %v390
        %v846 = vunpack.c.l.b16 %v391
        %v847 = vunpack.c.l.b16 %v392
        %v848 = vunpack.c.l.b16 %v393
        %v849 = vpack.c.b16 %v834, %v833
        %v850 = vpack.c.b16 %v836, %v835
        %v851 = vpack.c.b16 %v838, %v837
        %v852 = vpack.c.b16 %v840, %v839
        %v853 = vpack.c.b16 %v842, %v841
        %v854 = vpack.c.b16 %v844, %v843
        %v855 = vpack.c.b16 %v846, %v845
        %v856 = vpack.c.b16 %v848, %v847
        %v858 = vsel %vm688, %v816, 0
        %v861 = vsel %vm688, %v849, 0
        %v864 = vsel %vm688, %v850, 0
        %v867 = vsel %vm688, %v851, 0
        %v870 = vsel %vm688, %v852, 0
        %v873 = vsel %vm688, %v853, 0
        %v876 = vsel %vm688, %v854, 0
        %v879 = vsel %vm688, %v855, 0
        %v882 = vsel %vm688, %v856, 0
        %884 = vmatprep.subr.bf16.mxu0 0
        %885 = vmatpush1.bf16.xpose.msra.mxu0 %v882
        %886 = vmatprep.subr.bf16.mxu0 0
        %887 = vmatpush1.bf16.xpose.msra.mxu0 %v879
        %888 = vmatprep.subr.bf16.mxu0 0
        %889 = vmatpush1.bf16.xpose.msra.mxu0 %v876
        %890 = vmatprep.subr.bf16.mxu0 0
        %891 = vmatpush1.bf16.xpose.msra.mxu0 %v873
        %892 = vmatprep.subr.bf16.mxu0 0
        %893 = vmatpush1.bf16.xpose.msra.mxu0 %v870
        %894 = vmatprep.subr.bf16.mxu0 0
        %895 = vmatpush1.bf16.xpose.msra.mxu0 %v867
        %896 = vmatprep.subr.bf16.mxu0 0
        %897 = vmatpush1.bf16.xpose.msra.mxu0 %v864
        %898 = vmatprep.subr.bf16.mxu0 0
        %899 = vmatpush1.bf16.xpose.msra.mxu0 %v861
        %900 = vmatprep.subr.bf16.mxu0 0
        %901 = vmatpush2.bf16.xpose.msra.mxu0 0
        %902 = vmatprep.subr.bf16.mxu0 0
        %903 = vmatpush2.bf16.xpose.msra.mxu0 0
        %904 = vmatprep.subr.bf16.mxu0 0
        %905 = vmatpush2.bf16.xpose.msra.mxu0 0
        %906 = vmatprep.subr.bf16.mxu0 0
        %907 = vmatpush2.bf16.xpose.msra.mxu0 0
        %908 = vmatprep.subr.bf16.mxu0 0
        %909 = vmatpush2.bf16.xpose.msra.mxu0 0
        %910 = vmatprep.subr.bf16.mxu0 0
        %911 = vmatpush2.bf16.xpose.msra.mxu0 0
        %912 = vmatprep.subr.bf16.mxu0 0
        %913 = vmatpush2.bf16.xpose.msra.mxu0 0
        %914 = vmatprep.subr.bf16.mxu0 0
        %915 = vmatpush2.bf16.xpose.msra.mxu0 0
        %916 = vmatprep.mubr.bf16.mxu0 0
        %917 = vmatmul.mubr.bf16.gmra.mxu0 %v858
        %v918 = vpop.f32.mrf.mxu0
        %v919 = vadd.f32 0.0, %v918
        %v920 = vpop.f32.mrf.mxu0
        %v921 = vpop.f32.mrf.mxu0
        %v922 = vadd.f32 0.0, %v921
        %v923 = vpop.f32.mrf.mxu0
        %924 = vdwg.mxu0
        %v925 = vadd.f32 %v814, %v919
        %v926 = vadd.f32 %v815, %v922
        %927 = vst [vmem:[#allocation2] sm:$0xff] %v925
        %928 = vst [vmem:[#allocation2 + $0x8] sm:$0xff] %v926
        %p929 = scmp.eq.s32.totalorder %s24, 3
        // Predicated region
        $region49: #{wr_xformer_single_forward.14} parent=39 // pred_check
          %p930 = pneg %p929
        $region50: #{wr_xformer_single_forward.14} parent=39 // pred_check_branch
          %932 = sbr.rel (%p930) target = $region52
        $region51: #{wr_xformer_single_forward.14} parent=39 // pred_region
          %v933 = vld [vmem:[%s4] sm:$0xff]
          %v934 = vunpack.c.l.bf16 %v326
          %v935 = vunpack.c.l.bf16 %v327
          %v936 = vld [vmem:[#allocation2] sm:$0xff]
          %v937 = vld [vmem:[#allocation2 + $0x8] sm:$0xff]
          %v938 = vadd.f32 %v934, %v936
          %v939 = vadd.f32 %v935, %v937
          %v940 = vlaneseq
          %v941 = vshrl.u32 %v940, 7
          %v942 = vsub.s32 0, %v941
          %v943 = vrot.slane %v933, %v942
          %v944 = vadd.f32 %v938, %v943
          %v945 = vadd.f32 %v939, %v943
          %946 = vadd.xlane.f32.xlu0 %v944
          %v947 = vpop.xlane.xlu0 %946
          %948 = vadd.xlane.f32.xlu0 %v945
          %v949 = vpop.xlane.xlu0 %948
          %v950 = vrcp.pop 128.0
          %v951 = vmul.f32 %v947, %v950
          %v952 = vmul.f32 %v949, %v950
          %v953 = vsub.f32 %v944, %v951
          %v954 = vsub.f32 %v945, %v952
          %v955 = vmul.f32 %v953, %v953
          %v956 = vmul.f32 %v954, %v954
          %957 = vadd.xlane.f32.xlu0 %v955
          %v958 = vpop.xlane.xlu0 %957
          %959 = vadd.xlane.f32.xlu0 %v956
          %v960 = vpop.xlane.xlu0 %959
          %v961 = vmul.f32 %v958, %v950
          %v962 = vmul.f32 %v960, %v950
          %v963 = vadd.f32 %v961, 1e-05
          %v964 = vadd.f32 %v962, 1e-05
          %v965 = vrsqrt.pop %v963
          %v966 = vrsqrt.pop %v964
          %v967 = vmul.f32 %v953, %v965
          %v968 = vmul.f32 %v954, %v966
          %v969 = vlaneseq
          %v970 = vshrl.u32 %v969, 7
          %v971 = vsub.s32 1, %v970
          %v972 = vrot.slane %v933, %v971
          %v973 = vmul.f32 %v967, %v972
          %v974 = vmul.f32 %v968, %v972
          %v975 = vlaneseq
          %v976 = vshrl.u32 %v975, 7
          %v977 = vsub.s32 2, %v976
          %v978 = vrot.slane %v933, %v977
          %v979 = vadd.f32 %v973, %v978
          %v980 = vadd.f32 %v974, %v978
          %v981 = vpack.c.bf16 %v980, %v979
          %v983 = vunpack.c.l.b16 %v981
          %v984 = vunpack.c.h.b16 %v981
          %v985 = vpack.c.b16 %v983, %v983
          %v986 = vpack.c.b16 %v984, %v984
          %989 = vst [vmem:[%s317] sm:$0xf] %v985
          %990 = vst [vmem:[%s317 + $0x4] sm:$0xf] %v986
        $region52: #{wr_xformer_single_forward.14} parent=39 // pred_fallthru
          _
        %s991 = smul.u32 2, %s23
        %p992 = scmp.lt.s32.totalorder %s991, 15
        %s993 = scalar_select %p992, %s991, 15
        %s994 = smul.addr %s993, 4
        %s995 = scalar_lea.vmem %s5, %s994
        // Predicated region
        $region53: #{wr_xformer_single_forward.14} parent=39 // pred_check
          %p996 = pneg %p174
        $region54: #{wr_xformer_single_forward.14} parent=39 // pred_check_branch
          %998 = sbr.rel (%p996) target = $region56
        $region55: #{wr_xformer_single_forward.14} parent=39 // pred_region
          %s999 = smul.u32 2, %s23
        $region56: #{wr_xformer_single_forward.14} parent=39 // pred_fallthru
          _
      $region40: #{wr_xformer_single_forward.14} parent=5 // pred_fallthru
        _
      %p1000 = scmp.le.s32.totalorder 2, %s14
      // Predicated region
      $region57: #{wr_xformer_single_forward.14} parent=5 // pred_check
        %p1001 = pneg %p1000
      $region58: #{wr_xformer_single_forward.14} parent=5 // pred_check_branch
        %1003 = sbr.rel (%p1001) target = $region60
      $region59: #{wr_xformer_single_forward.14} parent=5 // pred_region
        %s1004 = ssub.s32 %s14, 2
        // Predicated region
        $region61: #{wr_xformer_single_forward.14} parent=59 // pred_check
          %p1005 = pneg %p180
        $region62: #{wr_xformer_single_forward.14} parent=59 // pred_check_branch
          %1007 = sbr.rel (%p1005) target = $region64
        $region63: #{wr_xformer_single_forward.14} parent=59 // pred_region
          %s1008 = smul.u32 2, %s25
          %p1009 = scmp.lt.s32.totalorder %s1008, 15
          %s1010 = scalar_select %p1009, %s1008, 15
          %s1011 = smul.addr %s1010, 4
          %s1012 = scalar_lea.vmem %s5, %s1011
        $region64: #{wr_xformer_single_forward.14} parent=59 // pred_fallthru
          _
      $region60: #{wr_xformer_single_forward.14} parent=5 // pred_fallthru
        _
    $region6: #{wr_xformer_single_forward.14} parent=1 // loop_footer
      %s18 = sadd.s32 1, %s14
    $region7: #{wr_xformer_single_forward.14} parent=1 // loop_footer_branch
      %13 = sbr.rel target = $region3
    $region8: #{wr_xformer_single_forward.14} parent=1 // loop_exit
      _
    %1013 = vsyncpa [#allocation4], 1
    %s1014 = scalar_lea.sflag [#allocation4], 1
    %1015 = vsyncpa %s1014, 1

// kernel: wr_xformer_single_forward.10
$region0: #{wr_xformer_single_forward.10}
  #allocation0 [shape = 'u32[]', space=smem, size = 0x4, offset = 0x4, fixed_abs, tag = 'smem constant byte address 0x4 - core index']
  #allocation1 [shape = 'u32[144,128]{1,0:T(1,128)}', space=vmem, size = 0x12000, scoped, tag = 'internal scratch']
  #allocation2 [shape = 'f32[8,128]{1,0:T(8,128)}', space=vmem, size = 0x1000, scoped, tag = 'scratch operand']
  %s0 = inlined_call_operand.vmem [shape: bf16[64,128], index: 0, kind: input, shape index: {}, may-alias: {0,1}]
  %s1 = inlined_call_operand.vmem [shape: bf16[64,128], index: 1, kind: input, shape index: {}, may-alias: {0,1}]
  %s2 = inlined_call_operand.vmem [shape: bf16[4,512,32], index: 2, kind: input, shape index: {}]
  %s3 = inlined_call_operand.vmem [shape: f32[4,8,32], index: 3, kind: input, shape index: {}]
  %s4 = inlined_call_operand.vmem [shape: f32[8,128], index: 4, kind: input, shape index: {}]
  %s5 = inlined_call_operand.vmem [shape: bf16[64,128], index: 5, kind: output, shape index: {}]
  %s6 = sld [smem:[#allocation0]]
  $region61: #{wr_xformer_single_forward.10} parent=0
    _
  %s8 = ssub.s32 1, %s6
  %s9 = scalar_select 0, %s8, %s6
  loop: start=0, step=1, limit=34
  $region2: #{wr_xformer_single_forward.10} parent=0 // loop_pre_header
    _
  $region3: #{wr_xformer_single_forward.10} parent=0 // loop_header
    %s11 = sphi 0, %s15
    %p12 = scmp.ge.s32.totalorder %s11, 34
    %s18 = sphi 0, %s30
    %s19 = sphi 0, %s26
    %s20 = sphi 0, %s18
    %s21 = sphi 0, %s19
    %s22 = sphi 0, %s20
    %s23 = sphi 0, %s21
    %s33 = sphi 0, %s35
    %s36 = sphi 0, %s33
    %s37 = sphi 0, %s36
    %s53 = sphi 0, %s37
    %s59 = sphi 0, %s61
    %s62 = sphi 0, %s59
    %s63 = sphi 0, %s62
    %s79 = sphi 0, %s63
    %s85 = sphi 0, %s87
    %s88 = sphi 0, %s85
    %s89 = sphi 0, %s88
    %s105 = sphi 0, %s89
    %s111 = sphi 0, %s113
    %s114 = sphi 0, %s111
    %s115 = sphi 0, %s114
    %s131 = sphi 0, %s115
    %s135 = sphi 0, %s135
    %s137 = sphi 0, %s135
    %s138 = sphi 0, %s137
    %s152 = sphi 0, %s138
    %s158 = sphi 0, %s160
    %s161 = sphi 0, %s158
    %s162 = sphi 0, %s161
    %s178 = sphi 0, %s162
  $region4: #{wr_xformer_single_forward.10} parent=0 // loop_header_branch
    %14 = sbr.rel (%p12) target = $region8
  $region5: #{wr_xformer_single_forward.10} parent=0 // loop_body
    %s16 = ssub.s32 %s11, 1
    %s17 = ssub.s32 %s11, 2
    %s24 = sadd.s32 1, %s19
    %p25 = scmp.ge.s32.totalorder %s24, 4
    %s26 = scalar_select %p25, 0, %s24
    %s27 = sadd.s32 1, %s18
    %s28 = scalar_select %p25, %s27, %s18
    %p29 = scmp.ge.s32.totalorder %s28, 8
    %s30 = scalar_select %p29, 0, %s28
    %s31 = ssub.s32 %s18, %s30
    %p32 = scmp.eq.s32.totalorder %s31, 0
    %s34 = sadd.s32 %s33, 1
    %s35 = scalar_select %p32, %s33, %s34
    %p38 = pneg %p32
    %p39 = scmp.eq.s32.totalorder %s11, 31
    %p40 = por %p38, %p39
    %p41 = scmp.ne.s32.totalorder %s33, %s36
    %p42 = scmp.eq.s32.totalorder %s11, 0
    %p43 = por %p41, %p42
    %p44 = scmp.ne.s32.totalorder %s33, %s36
    %p45 = scmp.eq.s32.totalorder %s16, 31
    %p46 = por %p44, %p45
    %p47 = scmp.ne.s32.totalorder %s36, %s37
    %p48 = scmp.eq.s32.totalorder %s16, 0
    %p49 = por %p47, %p48
    %p50 = scmp.ne.s32.totalorder %s36, %s37
    %p51 = scmp.eq.s32.totalorder %s17, 31
    %p52 = por %p50, %p51
    %p54 = scmp.ne.s32.totalorder %s37, %s53
    %p55 = scmp.eq.s32.totalorder %s17, 0
    %p56 = por %p54, %p55
    %s57 = ssub.s32 %s18, %s30
    %p58 = scmp.eq.s32.totalorder %s57, 0
    %s60 = sadd.s32 %s59, 1
    %s61 = scalar_select %p58, %s59, %s60
    %p64 = pneg %p58
    %p65 = scmp.eq.s32.totalorder %s11, 31
    %p66 = por %p64, %p65
    %p67 = scmp.ne.s32.totalorder %s59, %s62
    %p68 = scmp.eq.s32.totalorder %s11, 0
    %p69 = por %p67, %p68
    %p70 = scmp.ne.s32.totalorder %s59, %s62
    %p71 = scmp.eq.s32.totalorder %s16, 31
    %p72 = por %p70, %p71
    %p73 = scmp.ne.s32.totalorder %s62, %s63
    %p74 = scmp.eq.s32.totalorder %s16, 0
    %p75 = por %p73, %p74
    %p76 = scmp.ne.s32.totalorder %s62, %s63
    %p77 = scmp.eq.s32.totalorder %s17, 31
    %p78 = por %p76, %p77
    %p80 = scmp.ne.s32.totalorder %s63, %s79
    %p81 = scmp.eq.s32.totalorder %s17, 0
    %p82 = por %p80, %p81
    %s83 = ssub.s32 %s19, %s26
    %p84 = scmp.eq.s32.totalorder %s83, 0
    %s86 = sadd.s32 %s85, 1
    %s87 = scalar_select %p84, %s85, %s86
    %p90 = pneg %p84
    %p91 = scmp.eq.s32.totalorder %s11, 31
    %p92 = por %p90, %p91
    %p93 = scmp.ne.s32.totalorder %s85, %s88
    %p94 = scmp.eq.s32.totalorder %s11, 0
    %p95 = por %p93, %p94
    %p96 = scmp.ne.s32.totalorder %s85, %s88
    %p97 = scmp.eq.s32.totalorder %s16, 31
    %p98 = por %p96, %p97
    %p99 = scmp.ne.s32.totalorder %s88, %s89
    %p100 = scmp.eq.s32.totalorder %s16, 0
    %p101 = por %p99, %p100
    %p102 = scmp.ne.s32.totalorder %s88, %s89
    %p103 = scmp.eq.s32.totalorder %s17, 31
    %p104 = por %p102, %p103
    %p106 = scmp.ne.s32.totalorder %s89, %s105
    %p107 = scmp.eq.s32.totalorder %s17, 0
    %p108 = por %p106, %p107
    %s109 = ssub.s32 %s19, %s26
    %p110 = scmp.eq.s32.totalorder %s109, 0
    %s112 = sadd.s32 %s111, 1
    %s113 = scalar_select %p110, %s111, %s112
    %p116 = pneg %p110
    %p117 = scmp.eq.s32.totalorder %s11, 31
    %p118 = por %p116, %p117
    %p119 = scmp.ne.s32.totalorder %s111, %s114
    %p120 = scmp.eq.s32.totalorder %s11, 0
    %p121 = por %p119, %p120
    %p122 = scmp.ne.s32.totalorder %s111, %s114
    %p123 = scmp.eq.s32.totalorder %s16, 31
    %p124 = por %p122, %p123
    %p125 = scmp.ne.s32.totalorder %s114, %s115
    %p126 = scmp.eq.s32.totalorder %s16, 0
    %p127 = por %p125, %p126
    %p128 = scmp.ne.s32.totalorder %s114, %s115
    %p129 = scmp.eq.s32.totalorder %s17, 31
    %p130 = por %p128, %p129
    %p132 = scmp.ne.s32.totalorder %s115, %s131
    %p133 = scmp.eq.s32.totalorder %s17, 0
    %p134 = por %p132, %p133
    %s136 = sadd.s32 %s135, 1
    %p139 = scmp.eq.s32.totalorder %s11, 31
    %p140 = scmp.ne.s32.totalorder %s135, %s137
    %p141 = scmp.eq.s32.totalorder %s11, 0
    %p142 = por %p140, %p141
    %p143 = scmp.ne.s32.totalorder %s135, %s137
    %p144 = scmp.eq.s32.totalorder %s16, 31
    %p145 = por %p143, %p144
    %p146 = scmp.ne.s32.totalorder %s137, %s138
    %p147 = scmp.eq.s32.totalorder %s16, 0
    %p148 = por %p146, %p147
    %p149 = scmp.ne.s32.totalorder %s137, %s138
    %p150 = scmp.eq.s32.totalorder %s17, 31
    %p151 = por %p149, %p150
    %p153 = scmp.ne.s32.totalorder %s138, %s152
    %p154 = scmp.eq.s32.totalorder %s17, 0
    %p155 = por %p153, %p154
    %s156 = ssub.s32 %s18, %s30
    %p157 = scmp.eq.s32.totalorder %s156, 0
    %s159 = sadd.s32 %s158, 1
    %s160 = scalar_select %p157, %s158, %s159
    %p163 = pneg %p157
    %p164 = scmp.eq.s32.totalorder %s11, 31
    %p165 = por %p163, %p164
    %p166 = scmp.ne.s32.totalorder %s158, %s161
    %p167 = scmp.eq.s32.totalorder %s11, 0
    %p168 = por %p166, %p167
    %p169 = scmp.ne.s32.totalorder %s158, %s161
    %p170 = scmp.eq.s32.totalorder %s16, 31
    %p171 = por %p169, %p170
    %p172 = scmp.ne.s32.totalorder %s161, %s162
    %p173 = scmp.eq.s32.totalorder %s16, 0
    %p174 = por %p172, %p173
    %p175 = scmp.ne.s32.totalorder %s161, %s162
    %p176 = scmp.eq.s32.totalorder %s17, 31
    %p177 = por %p175, %p176
    %p179 = scmp.ne.s32.totalorder %s162, %s178
    %p180 = scmp.eq.s32.totalorder %s17, 0
    %p181 = por %p179, %p180
    %p182 = scmp.le.s32.totalorder 1, %s11
    %p183 = scmp.lt.s32.totalorder %s11, 33
    %p184 = pnand %p182, %p183
    %p185 = pneg %p184
    // Predicated region
    $region9: #{wr_xformer_single_forward.10} parent=5 // pred_check
      _
    $region10: #{wr_xformer_single_forward.10} parent=5 // pred_check_branch
      %187 = sbr.rel (%p184) target = $region12
    $region11: #{wr_xformer_single_forward.10} parent=5 // pred_region
      %s188 = ssub.s32 %s11, 1
      // Predicated region
      $region13: #{wr_xformer_single_forward.10} parent=11 // pred_check
        %p189 = pneg %p148
      $region14: #{wr_xformer_single_forward.10} parent=11 // pred_check_branch
        %191 = sbr.rel (%p189) target = $region16
      $region15: #{wr_xformer_single_forward.10} parent=11 // pred_region
        _
      $region16: #{wr_xformer_single_forward.10} parent=11 // pred_fallthru
        _
    $region12: #{wr_xformer_single_forward.10} parent=5 // pred_fallthru
      _
    %p192 = scmp.lt.s32.totalorder %s11, 32
    // Predicated region
    $region17: #{wr_xformer_single_forward.10} parent=5 // pred_check
      %p193 = pneg %p192
    $region18: #{wr_xformer_single_forward.10} parent=5 // pred_check_branch
      %195 = sbr.rel (%p193) target = $region20
    $region19: #{wr_xformer_single_forward.10} parent=5 // pred_region
      // Predicated region
      $region21: #{wr_xformer_single_forward.10} parent=19 // pred_check
        %p196 = pneg %p43
      $region22: #{wr_xformer_single_forward.10} parent=19 // pred_check_branch
        %198 = sbr.rel (%p196) target = $region24
      $region23: #{wr_xformer_single_forward.10} parent=19 // pred_region
        %p199 = scmp.lt.s32.totalorder %s18, 7
        %s200 = scalar_select %p199, %s18, 7
        %s201 = smul.addr %s200, 4
        %s202 = scalar_lea.vmem %s0, %s201
      $region24: #{wr_xformer_single_forward.10} parent=19 // pred_fallthru
        _
      // Predicated region
      $region25: #{wr_xformer_single_forward.10} parent=19 // pred_check
        %p203 = pneg %p69
      $region26: #{wr_xformer_single_forward.10} parent=19 // pred_check_branch
        %205 = sbr.rel (%p203) target = $region28
      $region27: #{wr_xformer_single_forward.10} parent=19 // pred_region
        %p206 = scmp.lt.s32.totalorder %s18, 7
        %s207 = scalar_select %p206, %s18, 7
        %s208 = smul.addr %s207, 4
        %s209 = scalar_lea.vmem %s1, %s208
      $region28: #{wr_xformer_single_forward.10} parent=19 // pred_fallthru
        _
      // Predicated region
      $region29: #{wr_xformer_single_forward.10} parent=19 // pred_check
        %p210 = pneg %p95
      $region30: #{wr_xformer_single_forward.10} parent=19 // pred_check_branch
        %212 = sbr.rel (%p210) target = $region32
      $region31: #{wr_xformer_single_forward.10} parent=19 // pred_region
        %p213 = scmp.lt.s32.totalorder %s19, 3
        %s214 = scalar_select %p213, %s19, 3
        %s215 = smul.addr %s214, 64
        %s216 = smul.addr %s215, 4
        %s217 = scalar_lea.vmem %s2, %s216
      $region32: #{wr_xformer_single_forward.10} parent=19 // pred_fallthru
        _
      // Predicated region
      $region33: #{wr_xformer_single_forward.10} parent=19 // pred_check
        %p218 = pneg %p121
      $region34: #{wr_xformer_single_forward.10} parent=19 // pred_check_branch
        %220 = sbr.rel (%p218) target = $region36
      $region35: #{wr_xformer_single_forward.10} parent=19 // pred_region
        %p221 = scmp.lt.s32.totalorder %s19, 3
        %s222 = scalar_select %p221, %s19, 3
        %s223 = smul.addr %s222, 8
        %s224 = scalar_lea.vmem %s3, %s223
      $region36: #{wr_xformer_single_forward.10} parent=19 // pred_fallthru
        _
    $region20: #{wr_xformer_single_forward.10} parent=5 // pred_fallthru
      _
    %p225 = scmp.le.s32.totalorder 1, %s11
    %p226 = scmp.lt.s32.totalorder %s11, 33
    %p227 = pnand %p225, %p226
    %p228 = pneg %p227
    // Predicated region
    $region37: #{wr_xformer_single_forward.10} parent=5 // pred_check
      _
    $region38: #{wr_xformer_single_forward.10} parent=5 // pred_check_branch
      %230 = sbr.rel (%p227) target = $region40
    $region39: #{wr_xformer_single_forward.10} parent=5 // pred_region
      %s231 = ssub.s32 %s11, 1
      %p232 = scmp.lt.s32.totalorder %s20, 7
      %s233 = scalar_select %p232, %s20, 7
      %s234 = smul.addr %s233, 4
      %s235 = scalar_lea.vmem %s0, %s234
      %p236 = pneg %p49
      %p237 = pneg %p46
      %p238 = scmp.lt.s32.totalorder %s20, 7
      %s239 = scalar_select %p238, %s20, 7
      %s240 = smul.addr %s239, 4
      %s241 = scalar_lea.vmem %s1, %s240
      %p242 = pneg %p75
      %p243 = pneg %p72
      %p244 = scmp.lt.s32.totalorder %s21, 3
      %s245 = scalar_select %p244, %s21, 3
      %s246 = smul.addr %s245, 64
      %s247 = smul.addr %s246, 4
      %s248 = scalar_lea.vmem %s2, %s247
      %p249 = pneg %p101
      %p250 = pneg %p98
      %p251 = scmp.lt.s32.totalorder %s21, 3
      %s252 = scalar_select %p251, %s21, 3
      %s253 = smul.addr %s252, 8
      %s254 = scalar_lea.vmem %s3, %s253
      %p255 = pneg %p127
      %p256 = pneg %p124
      %p257 = pneg %p148
      %p258 = pneg %p145
      %p259 = pneg %p174
      %p260 = pneg %p171
      %p261 = scmp.lt.s32.totalorder %s20, 7
      %s262 = scalar_select %p261, %s20, 7
      %s263 = smul.addr %s262, 4
      %s264 = scalar_lea.vmem %s5, %s263
      %p265 = scmp.lt.s32.totalorder %s20, 7
      %s266 = scalar_select %p265, %s20, 7
      %s267 = smul.addr %s266, 4
      %s268 = scalar_lea.vmem %s0, %s267
      %p269 = scmp.lt.s32.totalorder %s20, 7
      %s270 = scalar_select %p269, %s20, 7
      %s271 = smul.addr %s270, 4
      %s272 = scalar_lea.vmem %s1, %s271
      %p273 = scmp.lt.s32.totalorder %s21, 3
      %s274 = scalar_select %p273, %s21, 3
      %s275 = smul.addr %s274, 64
      %s276 = smul.addr %s275, 4
      %s277 = scalar_lea.vmem %s2, %s276
      %p278 = scmp.lt.s32.totalorder %s21, 3
      %s279 = scalar_select %p278, %s21, 3
      %s280 = smul.addr %s279, 8
      %s281 = scalar_lea.vmem %s3, %s280
      %p282 = scmp.lt.s32.totalorder %s20, 7
      %s283 = scalar_select %p282, %s20, 7
      %s284 = smul.addr %s283, 4
      %s285 = scalar_lea.vmem %s5, %s284
      %p287 = scmp.eq.s32.totalorder %s21, 0
      // Predicated region
      $region41: #{wr_xformer_single_forward.10} parent=39 // pred_check
        %p288 = pneg %p287
      $region42: #{wr_xformer_single_forward.10} parent=39 // pred_check_branch
        %290 = sbr.rel (%p288) target = $region44
      $region43: #{wr_xformer_single_forward.10} parent=39 // pred_region
        %291 = vst [vmem:[#allocation2] sm:$0xff] 0.0
      $region44: #{wr_xformer_single_forward.10} parent=39 // pred_fallthru
        _
      %v292 = vld [vmem:[%s268] sm:$0xf]
      %v293 = vld [vmem:[%s272] sm:$0xf]
      %v294 = vld [vmem:[%s277] sm:$0xf]
      %v295 = vld [vmem:[%s277 + $0x4] sm:$0xf]
      %v296 = vld [vmem:[%s277 + $0x8] sm:$0xf]
      %v297 = vld [vmem:[%s277 + $0xc] sm:$0xf]
      %v298 = vld [vmem:[%s277 + $0x10] sm:$0xf]
      %v299 = vld [vmem:[%s277 + $0x14] sm:$0xf]
      %v300 = vld [vmem:[%s277 + $0x18] sm:$0xf]
      %v301 = vld [vmem:[%s277 + $0x1c] sm:$0xf]
      %v302 = vld [vmem:[%s277 + $0x20] sm:$0xf]
      %v303 = vld [vmem:[%s277 + $0x24] sm:$0xf]
      %v304 = vld [vmem:[%s277 + $0x28] sm:$0xf]
      %v305 = vld [vmem:[%s277 + $0x2c] sm:$0xf]
      %v306 = vld [vmem:[%s277 + $0x30] sm:$0xf]
      %v307 = vld [vmem:[%s277 + $0x34] sm:$0xf]
      %v308 = vld [vmem:[%s277 + $0x38] sm:$0xf]
      %v309 = vld [vmem:[%s277 + $0x3c] sm:$0xf]
      %v310 = vld [vmem:[%s277 + $0x40] sm:$0xf]
      %v311 = vld [vmem:[%s277 + $0x44] sm:$0xf]
      %v312 = vld [vmem:[%s277 + $0x48] sm:$0xf]
      %v313 = vld [vmem:[%s277 + $0x4c] sm:$0xf]
      %v314 = vld [vmem:[%s277 + $0x50] sm:$0xf]
      %v315 = vld [vmem:[%s277 + $0x54] sm:$0xf]
      %v316 = vld [vmem:[%s277 + $0x58] sm:$0xf]
      %v317 = vld [vmem:[%s277 + $0x5c] sm:$0xf]
      %v318 = vld [vmem:[%s277 + $0x60] sm:$0xf]
      %v319 = vld [vmem:[%s277 + $0x64] sm:$0xf]
      %v320 = vld [vmem:[%s277 + $0x68] sm:$0xf]
      %v321 = vld [vmem:[%s277 + $0x6c] sm:$0xf]
      %v322 = vld [vmem:[%s277 + $0x70] sm:$0xf]
      %v323 = vld [vmem:[%s277 + $0x74] sm:$0xf]
      %v324 = vld [vmem:[%s277 + $0x78] sm:$0xf]
      %v325 = vld [vmem:[%s277 + $0x7c] sm:$0xf]
      %v326 = vld [vmem:[%s277 + $0x80] sm:$0xf]
      %v327 = vld [vmem:[%s277 + $0x84] sm:$0xf]
      %v328 = vld [vmem:[%s277 + $0x88] sm:$0xf]
      %v329 = vld [vmem:[%s277 + $0x8c] sm:$0xf]
      %v330 = vld [vmem:[%s277 + $0x90] sm:$0xf]
      %v331 = vld [vmem:[%s277 + $0x94] sm:$0xf]
      %v332 = vld [vmem:[%s277 + $0x98] sm:$0xf]
      %v333 = vld [vmem:[%s277 + $0x9c] sm:$0xf]
      %v334 = vld [vmem:[%s277 + $0xa0] sm:$0xf]
      %v335 = vld [vmem:[%s277 + $0xa4] sm:$0xf]
      %v336 = vld [vmem:[%s277 + $0xa8] sm:$0xf]
      %v337 = vld [vmem:[%s277 + $0xac] sm:$0xf]
      %v338 = vld [vmem:[%s277 + $0xb0] sm:$0xf]
      %v339 = vld [vmem:[%s277 + $0xb4] sm:$0xf]
      %v340 = vld [vmem:[%s277 + $0xb8] sm:$0xf]
      %v341 = vld [vmem:[%s277 + $0xbc] sm:$0xf]
      %v342 = vld [vmem:[%s277 + $0xc0] sm:$0xf]
      %v343 = vld [vmem:[%s277 + $0xc4] sm:$0xf]
      %v344 = vld [vmem:[%s277 + $0xc8] sm:$0xf]
      %v345 = vld [vmem:[%s277 + $0xcc] sm:$0xf]
      %v346 = vld [vmem:[%s277 + $0xd0] sm:$0xf]
      %v347 = vld [vmem:[%s277 + $0xd4] sm:$0xf]
      %v348 = vld [vmem:[%s277 + $0xd8] sm:$0xf]
      %v349 = vld [vmem:[%s277 + $0xdc] sm:$0xf]
      %v350 = vld [vmem:[%s277 + $0xe0] sm:$0xf]
      %v351 = vld [vmem:[%s277 + $0xe4] sm:$0xf]
      %v352 = vld [vmem:[%s277 + $0xe8] sm:$0xf]
      %v353 = vld [vmem:[%s277 + $0xec] sm:$0xf]
      %v354 = vld [vmem:[%s277 + $0xf0] sm:$0xf]
      %v355 = vld [vmem:[%s277 + $0xf4] sm:$0xf]
      %v356 = vld [vmem:[%s277 + $0xf8] sm:$0xf]
      %v357 = vld [vmem:[%s277 + $0xfc] sm:$0xf]
      %v358 = vld [vmem:[%s281] sm:$0xff]
      %v359 = vlaneseq
      %v360 = vshrl.u32 %v359, 7
      %v361 = vsub.s32 0, %v360
      %v362 = vrot.slane %v358, %v361
      %v379 = vunpack.c.l.b16 %v294
      %v380 = vunpack.c.l.b16 %v295
      %v381 = vunpack.c.l.b16 %v296
      %v382 = vunpack.c.l.b16 %v297
      %v383 = vunpack.c.l.b16 %v298
      %v384 = vunpack.c.l.b16 %v299
      %v385 = vunpack.c.l.b16 %v300
      %v386 = vunpack.c.l.b16 %v301
      %v387 = vunpack.c.l.b16 %v302
      %v388 = vunpack.c.l.b16 %v303
      %v389 = vunpack.c.l.b16 %v304
      %v390 = vunpack.c.l.b16 %v305
      %v391 = vunpack.c.l.b16 %v306
      %v392 = vunpack.c.l.b16 %v307
      %v393 = vunpack.c.l.b16 %v308
      %v394 = vunpack.c.l.b16 %v309
      %v395 = vpack.c.b16 %v380, %v379
      %v396 = vpack.c.b16 %v382, %v381
      %v397 = vpack.c.b16 %v384, %v383
      %v398 = vpack.c.b16 %v386, %v385
      %v399 = vpack.c.b16 %v388, %v387
      %v400 = vpack.c.b16 %v390, %v389
      %v401 = vpack.c.b16 %v392, %v391
      %v402 = vpack.c.b16 %v394, %v393
      %411 = vmatprep.subr.bf16.mxu0 0
      %412 = vmatpush1.bf16.msra.mxu0 %v402
      %413 = vmatprep.subr.bf16.mxu0 0
      %414 = vmatpush1.bf16.msra.mxu0 %v401
      %415 = vmatprep.subr.bf16.mxu0 0
      %416 = vmatpush1.bf16.msra.mxu0 %v400
      %417 = vmatprep.subr.bf16.mxu0 0
      %418 = vmatpush1.bf16.msra.mxu0 %v399
      %419 = vmatprep.subr.bf16.mxu0 0
      %420 = vmatpush1.bf16.msra.mxu0 %v398
      %421 = vmatprep.subr.bf16.mxu0 0
      %422 = vmatpush1.bf16.msra.mxu0 %v397
      %423 = vmatprep.subr.bf16.mxu0 0
      %424 = vmatpush1.bf16.msra.mxu0 %v396
      %425 = vmatprep.subr.bf16.mxu0 0
      %426 = vmatpush1.bf16.msra.mxu0 %v395
      %427 = vmatprep.subr.bf16.mxu0 0
      %428 = vmatpush2.bf16.msra.mxu0 0
      %429 = vmatprep.subr.bf16.mxu0 0
      %430 = vmatpush2.bf16.msra.mxu0 0
      %431 = vmatprep.subr.bf16.mxu0 0
      %432 = vmatpush2.bf16.msra.mxu0 0
      %433 = vmatprep.subr.bf16.mxu0 0
      %434 = vmatpush2.bf16.msra.mxu0 0
      %435 = vmatprep.subr.bf16.mxu0 0
      %436 = vmatpush2.bf16.msra.mxu0 0
      %437 = vmatprep.subr.bf16.mxu0 0
      %438 = vmatpush2.bf16.msra.mxu0 0
      %439 = vmatprep.subr.bf16.mxu0 0
      %440 = vmatpush2.bf16.msra.mxu0 0
      %441 = vmatprep.subr.bf16.mxu0 0
      %442 = vmatpush2.bf16.msra.mxu0 0
      %443 = vmatprep.mubr.bf16.mxu0 0
      %444 = vmatmul.mubr.bf16.gmra.mxu0 %v292
      %v445 = vpop.f32.mrf.mxu0
      %v446 = vadd.f32 %v362, %v445
      %v447 = vpop.f32.mrf.mxu0
      %v448 = vpop.f32.mrf.mxu0
      %v449 = vpop.f32.mrf.mxu0
      %450 = vdwg.mxu0
      %v451 = vlaneseq
      %v452 = vshrl.u32 %v451, 7
      %v453 = vsub.s32 1, %v452
      %v454 = vrot.slane %v358, %v453
      %v471 = vunpack.c.l.b16 %v310
      %v472 = vunpack.c.l.b16 %v311
      %v473 = vunpack.c.l.b16 %v312
      %v474 = vunpack.c.l.b16 %v313
      %v475 = vunpack.c.l.b16 %v314
      %v476 = vunpack.c.l.b16 %v315
      %v477 = vunpack.c.l.b16 %v316
      %v478 = vunpack.c.l.b16 %v317
      %v479 = vunpack.c.l.b16 %v318
      %v480 = vunpack.c.l.b16 %v319
      %v481 = vunpack.c.l.b16 %v320
      %v482 = vunpack.c.l.b16 %v321
      %v483 = vunpack.c.l.b16 %v322
      %v484 = vunpack.c.l.b16 %v323
      %v485 = vunpack.c.l.b16 %v324
      %v486 = vunpack.c.l.b16 %v325
      %v487 = vpack.c.b16 %v472, %v471
      %v488 = vpack.c.b16 %v474, %v473
      %v489 = vpack.c.b16 %v476, %v475
      %v490 = vpack.c.b16 %v478, %v477
      %v491 = vpack.c.b16 %v480, %v479
      %v492 = vpack.c.b16 %v482, %v481
      %v493 = vpack.c.b16 %v484, %v483
      %v494 = vpack.c.b16 %v486, %v485
      %503 = vmatprep.subr.bf16.mxu0 0
      %504 = vmatpush1.bf16.msra.mxu0 %v494
      %505 = vmatprep.subr.bf16.mxu0 0
      %506 = vmatpush1.bf16.msra.mxu0 %v493
      %507 = vmatprep.subr.bf16.mxu0 0
      %508 = vmatpush1.bf16.msra.mxu0 %v492
      %509 = vmatprep.subr.bf16.mxu0 0
      %510 = vmatpush1.bf16.msra.mxu0 %v491
      %511 = vmatprep.subr.bf16.mxu0 0
      %512 = vmatpush1.bf16.msra.mxu0 %v490
      %513 = vmatprep.subr.bf16.mxu0 0
      %514 = vmatpush1.bf16.msra.mxu0 %v489
      %515 = vmatprep.subr.bf16.mxu0 0
      %516 = vmatpush1.bf16.msra.mxu0 %v488
      %517 = vmatprep.subr.bf16.mxu0 0
      %518 = vmatpush1.bf16.msra.mxu0 %v487
      %519 = vmatprep.subr.bf16.mxu0 0
      %520 = vmatpush2.bf16.msra.mxu0 0
      %521 = vmatprep.subr.bf16.mxu0 0
      %522 = vmatpush2.bf16.msra.mxu0 0
      %523 = vmatprep.subr.bf16.mxu0 0
      %524 = vmatpush2.bf16.msra.mxu0 0
      %525 = vmatprep.subr.bf16.mxu0 0
      %526 = vmatpush2.bf16.msra.mxu0 0
      %527 = vmatprep.subr.bf16.mxu0 0
      %528 = vmatpush2.bf16.msra.mxu0 0
      %529 = vmatprep.subr.bf16.mxu0 0
      %530 = vmatpush2.bf16.msra.mxu0 0
      %531 = vmatprep.subr.bf16.mxu0 0
      %532 = vmatpush2.bf16.msra.mxu0 0
      %533 = vmatprep.subr.bf16.mxu0 0
      %534 = vmatpush2.bf16.msra.mxu0 0
      %535 = vmatprep.mubr.bf16.mxu0 0
      %536 = vmatmul.mubr.bf16.gmra.mxu0 %v293
      %v537 = vpop.f32.mrf.mxu0
      %v538 = vadd.f32 %v454, %v537
      %v539 = vpop.f32.mrf.mxu0
      %v540 = vpop.f32.mrf.mxu0
      %v541 = vpop.f32.mrf.mxu0
      %542 = vdwg.mxu0
      %v543 = vlaneseq
      %v544 = vshrl.u32 %v543, 7
      %v545 = vsub.s32 2, %v544
      %v546 = vrot.slane %v358, %v545
      %v563 = vunpack.c.l.b16 %v326
      %v564 = vunpack.c.l.b16 %v327
      %v565 = vunpack.c.l.b16 %v328
      %v566 = vunpack.c.l.b16 %v329
      %v567 = vunpack.c.l.b16 %v330
      %v568 = vunpack.c.l.b16 %v331
      %v569 = vunpack.c.l.b16 %v332
      %v570 = vunpack.c.l.b16 %v333
      %v571 = vunpack.c.l.b16 %v334
      %v572 = vunpack.c.l.b16 %v335
      %v573 = vunpack.c.l.b16 %v336
      %v574 = vunpack.c.l.b16 %v337
      %v575 = vunpack.c.l.b16 %v338
      %v576 = vunpack.c.l.b16 %v339
      %v577 = vunpack.c.l.b16 %v340
      %v578 = vunpack.c.l.b16 %v341
      %v579 = vpack.c.b16 %v564, %v563
      %v580 = vpack.c.b16 %v566, %v565
      %v581 = vpack.c.b16 %v568, %v567
      %v582 = vpack.c.b16 %v570, %v569
      %v583 = vpack.c.b16 %v572, %v571
      %v584 = vpack.c.b16 %v574, %v573
      %v585 = vpack.c.b16 %v576, %v575
      %v586 = vpack.c.b16 %v578, %v577
      %595 = vmatprep.subr.bf16.mxu0 0
      %596 = vmatpush1.bf16.msra.mxu0 %v586
      %597 = vmatprep.subr.bf16.mxu0 0
      %598 = vmatpush1.bf16.msra.mxu0 %v585
      %599 = vmatprep.subr.bf16.mxu0 0
      %600 = vmatpush1.bf16.msra.mxu0 %v584
      %601 = vmatprep.subr.bf16.mxu0 0
      %602 = vmatpush1.bf16.msra.mxu0 %v583
      %603 = vmatprep.subr.bf16.mxu0 0
      %604 = vmatpush1.bf16.msra.mxu0 %v582
      %605 = vmatprep.subr.bf16.mxu0 0
      %606 = vmatpush1.bf16.msra.mxu0 %v581
      %607 = vmatprep.subr.bf16.mxu0 0
      %608 = vmatpush1.bf16.msra.mxu0 %v580
      %609 = vmatprep.subr.bf16.mxu0 0
      %610 = vmatpush1.bf16.msra.mxu0 %v579
      %611 = vmatprep.subr.bf16.mxu0 0
      %612 = vmatpush2.bf16.msra.mxu0 0
      %613 = vmatprep.subr.bf16.mxu0 0
      %614 = vmatpush2.bf16.msra.mxu0 0
      %615 = vmatprep.subr.bf16.mxu0 0
      %616 = vmatpush2.bf16.msra.mxu0 0
      %617 = vmatprep.subr.bf16.mxu0 0
      %618 = vmatpush2.bf16.msra.mxu0 0
      %619 = vmatprep.subr.bf16.mxu0 0
      %620 = vmatpush2.bf16.msra.mxu0 0
      %621 = vmatprep.subr.bf16.mxu0 0
      %622 = vmatpush2.bf16.msra.mxu0 0
      %623 = vmatprep.subr.bf16.mxu0 0
      %624 = vmatpush2.bf16.msra.mxu0 0
      %625 = vmatprep.subr.bf16.mxu0 0
      %626 = vmatpush2.bf16.msra.mxu0 0
      %627 = vmatprep.mubr.bf16.mxu0 0
      %628 = vmatmul.mubr.bf16.gmra.mxu0 %v293
      %v629 = vpop.f32.mrf.mxu0
      %v630 = vadd.f32 %v546, %v629
      %v631 = vpop.f32.mrf.mxu0
      %v632 = vpop.f32.mrf.mxu0
      %v633 = vpop.f32.mrf.mxu0
      %634 = vdwg.mxu0
      %v635 = vpack.c.bf16 %v446, %v446
      %v636 = vpack.c.bf16 %v538, %v538
      %vm637 = vcmask 261120
      %v639 = vsel %vm637, %v635, 0
      %v642 = vsel %vm637, %v636, 0
      %644 = vmatprep.subr.bf16.mxu0 0
      %645 = vmatpush1.bf16.xpose.msra.mxu0 0
      %646 = vmatprep.subr.bf16.mxu0 0
      %647 = vmatpush1.bf16.xpose.msra.mxu0 0
      %648 = vmatprep.subr.bf16.mxu0 0
      %649 = vmatpush1.bf16.xpose.msra.mxu0 0
      %650 = vmatprep.subr.bf16.mxu0 0
      %651 = vmatpush1.bf16.xpose.msra.mxu0 0
      %652 = vmatprep.subr.bf16.mxu0 0
      %653 = vmatpush1.bf16.xpose.msra.mxu0 0
      %654 = vmatprep.subr.bf16.mxu0 0
      %655 = vmatpush1.bf16.xpose.msra.mxu0 0
      %656 = vmatprep.subr.bf16.mxu0 0
      %657 = vmatpush1.bf16.xpose.msra.mxu0 0
      %658 = vmatprep.subr.bf16.mxu0 0
      %659 = vmatpush1.bf16.xpose.msra.mxu0 %v642
      %660 = vmatprep.subr.bf16.mxu0 0
      %661 = vmatpush2.bf16.xpose.msra.mxu0 0
      %662 = vmatprep.subr.bf16.mxu0 0
      %663 = vmatpush2.bf16.xpose.msra.mxu0 0
      %664 = vmatprep.subr.bf16.mxu0 0
      %665 = vmatpush2.bf16.xpose.msra.mxu0 0
      %666 = vmatprep.subr.bf16.mxu0 0
      %667 = vmatpush2.bf16.xpose.msra.mxu0 0
      %668 = vmatprep.subr.bf16.mxu0 0
      %669 = vmatpush2.bf16.xpose.msra.mxu0 0
      %670 = vmatprep.subr.bf16.mxu0 0
      %671 = vmatpush2.bf16.xpose.msra.mxu0 0
      %672 = vmatprep.subr.bf16.mxu0 0
      %673 = vmatpush2.bf16.xpose.msra.mxu0 0
      %674 = vmatprep.subr.bf16.mxu0 0
      %675 = vmatpush2.bf16.xpose.msra.mxu0 0
      %676 = vmatprep.mubr.bf16.mxu0 0
      %677 = vmatmul.mubr.bf16.gmra.mxu0 %v639
      %v678 = vpop.f32.mrf.mxu0
      %v679 = vadd.f32 0.0, %v678
      %v680 = vpop.f32.mrf.mxu0
      %v681 = vpop.f32.mrf.mxu0
      %v682 = vpop.f32.mrf.mxu0
      %683 = vdwg.mxu0
      %vm684 = vcmask 64512
      %v685 = vsel %vm684, %v679, -inf
      %686 = vmax.xlane.f32.xlu0 %v685
      %v687 = vpop.xlane.xlu0 %686
      %v688 = vsub.f32 %v679, %v687
      %v689 = vmul.f32 %v688, 1.442695
      %v690 = vpow.pop %v689
      %v691 = vsel %vm684, %v690, 0.0
      %692 = vadd.xlane.f32.xlu0 %v691
      %v693 = vpop.xlane.xlu0 %692
      %v694 = vrcp.pop %v693
      %v695 = vmul.f32 %v690, %v694
      %v696 = vpack.c.bf16 %v695, %v695
      %v697 = vpack.c.bf16 %v630, %v630
      %v699 = vsel %vm684, %v696, 0
      %vm701 = vcmask 1043456
      %v703 = vsel %vm701, %v697, 0
      %705 = vmatprep.subr.bf16.mxu0 0
      %706 = vmatpush1.bf16.msra.mxu0 0
      %707 = vmatprep.subr.bf16.mxu0 0
      %708 = vmatpush1.bf16.msra.mxu0 0
      %709 = vmatprep.subr.bf16.mxu0 0
      %710 = vmatpush1.bf16.msra.mxu0 0
      %711 = vmatprep.subr.bf16.mxu0 0
      %712 = vmatpush1.bf16.msra.mxu0 0
      %713 = vmatprep.subr.bf16.mxu0 0
      %714 = vmatpush1.bf16.msra.mxu0 0
      %715 = vmatprep.subr.bf16.mxu0 0
      %716 = vmatpush1.bf16.msra.mxu0 0
      %717 = vmatprep.subr.bf16.mxu0 0
      %718 = vmatpush1.bf16.msra.mxu0 0
      %719 = vmatprep.subr.bf16.mxu0 0
      %720 = vmatpush1.bf16.msra.mxu0 %v703
      %721 = vmatprep.subr.bf16.mxu0 0
      %722 = vmatpush2.bf16.msra.mxu0 0
      %723 = vmatprep.subr.bf16.mxu0 0
      %724 = vmatpush2.bf16.msra.mxu0 0
      %725 = vmatprep.subr.bf16.mxu0 0
      %726 = vmatpush2.bf16.msra.mxu0 0
      %727 = vmatprep.subr.bf16.mxu0 0
      %728 = vmatpush2.bf16.msra.mxu0 0
      %729 = vmatprep.subr.bf16.mxu0 0
      %730 = vmatpush2.bf16.msra.mxu0 0
      %731 = vmatprep.subr.bf16.mxu0 0
      %732 = vmatpush2.bf16.msra.mxu0 0
      %733 = vmatprep.subr.bf16.mxu0 0
      %734 = vmatpush2.bf16.msra.mxu0 0
      %735 = vmatprep.subr.bf16.mxu0 0
      %736 = vmatpush2.bf16.msra.mxu0 0
      %737 = vmatprep.mubr.bf16.mxu0 0
      %738 = vmatmul.mubr.bf16.gmra.mxu0 %v699
      %v739 = vpop.f32.mrf.mxu0
      %v740 = vadd.f32 0.0, %v739
      %v741 = vpop.f32.mrf.mxu0
      %v742 = vpop.f32.mrf.mxu0
      %v743 = vpop.f32.mrf.mxu0
      %744 = vdwg.mxu0
      %v745 = vld [vmem:[#allocation2] sm:$0xff]
      %v746 = vpack.c.bf16 %v740, %v740
      %v763 = vunpack.c.l.b16 %v342
      %v764 = vunpack.c.l.b16 %v343
      %v765 = vunpack.c.l.b16 %v344
      %v766 = vunpack.c.l.b16 %v345
      %v767 = vunpack.c.l.b16 %v346
      %v768 = vunpack.c.l.b16 %v347
      %v769 = vunpack.c.l.b16 %v348
      %v770 = vunpack.c.l.b16 %v349
      %v771 = vunpack.c.l.b16 %v350
      %v772 = vunpack.c.l.b16 %v351
      %v773 = vunpack.c.l.b16 %v352
      %v774 = vunpack.c.l.b16 %v353
      %v775 = vunpack.c.l.b16 %v354
      %v776 = vunpack.c.l.b16 %v355
      %v777 = vunpack.c.l.b16 %v356
      %v778 = vunpack.c.l.b16 %v357
      %v779 = vpack.c.b16 %v764, %v763
      %v780 = vpack.c.b16 %v766, %v765
      %v781 = vpack.c.b16 %v768, %v767
      %v782 = vpack.c.b16 %v770, %v769
      %v783 = vpack.c.b16 %v772, %v771
      %v784 = vpack.c.b16 %v774, %v773
      %v785 = vpack.c.b16 %v776, %v775
      %v786 = vpack.c.b16 %v778, %v777
      %v788 = vsel %vm637, %v746, 0
      %v791 = vsel %vm637, %v779, 0
      %v794 = vsel %vm637, %v780, 0
      %v797 = vsel %vm637, %v781, 0
      %v800 = vsel %vm637, %v782, 0
      %v803 = vsel %vm637, %v783, 0
      %v806 = vsel %vm637, %v784, 0
      %v809 = vsel %vm637, %v785, 0
      %v812 = vsel %vm637, %v786, 0
      %814 = vmatprep.subr.bf16.mxu0 0
      %815 = vmatpush1.bf16.xpose.msra.mxu0 %v812
      %816 = vmatprep.subr.bf16.mxu0 0
      %817 = vmatpush1.bf16.xpose.msra.mxu0 %v809
      %818 = vmatprep.subr.bf16.mxu0 0
      %819 = vmatpush1.bf16.xpose.msra.mxu0 %v806
      %820 = vmatprep.subr.bf16.mxu0 0
      %821 = vmatpush1.bf16.xpose.msra.mxu0 %v803
      %822 = vmatprep.subr.bf16.mxu0 0
      %823 = vmatpush1.bf16.xpose.msra.mxu0 %v800
      %824 = vmatprep.subr.bf16.mxu0 0
      %825 = vmatpush1.bf16.xpose.msra.mxu0 %v797
      %826 = vmatprep.subr.bf16.mxu0 0
      %827 = vmatpush1.bf16.xpose.msra.mxu0 %v794
      %828 = vmatprep.subr.bf16.mxu0 0
      %829 = vmatpush1.bf16.xpose.msra.mxu0 %v791
      %830 = vmatprep.subr.bf16.mxu0 0
      %831 = vmatpush2.bf16.xpose.msra.mxu0 0
      %832 = vmatprep.subr.bf16.mxu0 0
      %833 = vmatpush2.bf16.xpose.msra.mxu0 0
      %834 = vmatprep.subr.bf16.mxu0 0
      %835 = vmatpush2.bf16.xpose.msra.mxu0 0
      %836 = vmatprep.subr.bf16.mxu0 0
      %837 = vmatpush2.bf16.xpose.msra.mxu0 0
      %838 = vmatprep.subr.bf16.mxu0 0
      %839 = vmatpush2.bf16.xpose.msra.mxu0 0
      %840 = vmatprep.subr.bf16.mxu0 0
      %841 = vmatpush2.bf16.xpose.msra.mxu0 0
      %842 = vmatprep.subr.bf16.mxu0 0
      %843 = vmatpush2.bf16.xpose.msra.mxu0 0
      %844 = vmatprep.subr.bf16.mxu0 0
      %845 = vmatpush2.bf16.xpose.msra.mxu0 0
      %846 = vmatprep.mubr.bf16.mxu0 0
      %847 = vmatmul.mubr.bf16.gmra.mxu0 %v788
      %v848 = vpop.f32.mrf.mxu0
      %v849 = vadd.f32 0.0, %v848
      %v850 = vpop.f32.mrf.mxu0
      %v851 = vpop.f32.mrf.mxu0
      %v852 = vpop.f32.mrf.mxu0
      %853 = vdwg.mxu0
      %v854 = vadd.f32 %v745, %v849
      %855 = vst [vmem:[#allocation2] sm:$0xff] %v854
      %p856 = scmp.eq.s32.totalorder %s21, 3
      // Predicated region
      $region45: #{wr_xformer_single_forward.10} parent=39 // pred_check
        %p857 = pneg %p856
      $region46: #{wr_xformer_single_forward.10} parent=39 // pred_check_branch
        %859 = sbr.rel (%p857) target = $region48
      $region47: #{wr_xformer_single_forward.10} parent=39 // pred_region
        %v860 = vld [vmem:[%s4] sm:$0xff]
        %v861 = vunpack.c.l.bf16 %v292
        %v862 = vld [vmem:[#allocation2] sm:$0xff]
        %v863 = vadd.f32 %v861, %v862
        %v864 = vlaneseq
        %v865 = vshrl.u32 %v864, 7
        %v866 = vsub.s32 0, %v865
        %v867 = vrot.slane %v860, %v866
        %v868 = vadd.f32 %v863, %v867
        %869 = vadd.xlane.f32.xlu0 %v868
        %v870 = vpop.xlane.xlu0 %869
        %v871 = vrcp.pop 128.0
        %v872 = vmul.f32 %v870, %v871
        %v873 = vsub.f32 %v868, %v872
        %v874 = vmul.f32 %v873, %v873
        %875 = vadd.xlane.f32.xlu0 %v874
        %v876 = vpop.xlane.xlu0 %875
        %v877 = vmul.f32 %v876, %v871
        %v878 = vadd.f32 %v877, 1e-05
        %v879 = vrsqrt.pop %v878
        %v880 = vmul.f32 %v873, %v879
        %v881 = vlaneseq
        %v882 = vshrl.u32 %v881, 7
        %v883 = vsub.s32 1, %v882
        %v884 = vrot.slane %v860, %v883
        %v885 = vmul.f32 %v880, %v884
        %v886 = vlaneseq
        %v887 = vshrl.u32 %v886, 7
        %v888 = vsub.s32 2, %v887
        %v889 = vrot.slane %v860, %v888
        %v890 = vadd.f32 %v885, %v889
        %v891 = vpack.c.bf16 %v890, %v890
        %892 = vst [vmem:[%s285] sm:$0xf] %v891
      $region48: #{wr_xformer_single_forward.10} parent=39 // pred_fallthru
        _
      %p893 = scmp.lt.s32.totalorder %s20, 7
      %s894 = scalar_select %p893, %s20, 7
      %s895 = smul.addr %s894, 4
      %s896 = scalar_lea.vmem %s5, %s895
      // Predicated region
      $region49: #{wr_xformer_single_forward.10} parent=39 // pred_check
        %p897 = pneg %p171
      $region50: #{wr_xformer_single_forward.10} parent=39 // pred_check_branch
        %899 = sbr.rel (%p897) target = $region52
      $region51: #{wr_xformer_single_forward.10} parent=39 // pred_region
        _
      $region52: #{wr_xformer_single_forward.10} parent=39 // pred_fallthru
        _
    $region40: #{wr_xformer_single_forward.10} parent=5 // pred_fallthru
      _
    %p900 = scmp.le.s32.totalorder 2, %s11
    // Predicated region
    $region53: #{wr_xformer_single_forward.10} parent=5 // pred_check
      %p901 = pneg %p900
    $region54: #{wr_xformer_single_forward.10} parent=5 // pred_check_branch
      %903 = sbr.rel (%p901) target = $region56
    $region55: #{wr_xformer_single_forward.10} parent=5 // pred_region
      %s904 = ssub.s32 %s11, 2
      // Predicated region
      $region57: #{wr_xformer_single_forward.10} parent=55 // pred_check
        %p905 = pneg %p177
      $region58: #{wr_xformer_single_forward.10} parent=55 // pred_check_branch
        %907 = sbr.rel (%p905) target = $region60
      $region59: #{wr_xformer_single_forward.10} parent=55 // pred_region
        %p908 = scmp.lt.s32.totalorder %s22, 7
        %s909 = scalar_select %p908, %s22, 7
        %s910 = smul.addr %s909, 4
        %s911 = scalar_lea.vmem %s5, %s910
      $region60: #{wr_xformer_single_forward.10} parent=55 // pred_fallthru
        _
    $region56: #{wr_xformer_single_forward.10} parent=5 // pred_fallthru
      _
  $region6: #{wr_xformer_single_forward.10} parent=0 // loop_footer
    %s15 = sadd.s32 1, %s11
  $region7: #{wr_xformer_single_forward.10} parent=0 // loop_footer_branch
    %10 = sbr.rel target = $region3
  $region8: #{wr_xformer_single_forward.10} parent=0 // loop_exit
    _

// kernel: wr_xformer_single_forward.12
$region0: #{wr_xformer_single_forward.12}
  #allocation0 [shape = 'u32[]', space=smem, size = 0x4, offset = 0x4, fixed_abs, tag = 'smem constant byte address 0x4 - core index']
  #allocation1 [shape = 'u32[144,128]{1,0:T(1,128)}', space=vmem, size = 0x12000, scoped, tag = 'internal scratch']
  %s0 = inlined_call_operand.vmem [shape: bf16[64,128], index: 0, kind: input, shape index: {}]
  %s1 = inlined_call_operand.vmem [shape: f32[8,128], index: 1, kind: input, shape index: {}]
  %s2 = inlined_call_operand.vmem [shape: bf16[64,128], index: 2, kind: output, shape index: {}]
  %s3 = sld [smem:[#allocation0]]
  $region18: #{wr_xformer_single_forward.12} parent=0
    _
  %s5 = ssub.s32 1, %s3
  %s6 = scalar_select 0, %s5, %s3
  // Predicated region
  $region2: #{wr_xformer_single_forward.12} parent=0 // pred_check
    _
  $region3: #{wr_xformer_single_forward.12} parent=0 // pred_check_branch
    %8 = sbr.rel (0) target = $region5
  $region4: #{wr_xformer_single_forward.12} parent=0 // pred_region
    _
  $region5: #{wr_xformer_single_forward.12} parent=0 // pred_fallthru
    _
  // Predicated region
  $region6: #{wr_xformer_single_forward.12} parent=0 // pred_check
    _
  $region7: #{wr_xformer_single_forward.12} parent=0 // pred_check_branch
    %10 = sbr.rel (0) target = $region9
  $region8: #{wr_xformer_single_forward.12} parent=0 // pred_region
    _
  $region9: #{wr_xformer_single_forward.12} parent=0 // pred_fallthru
    _
  %v11 = vld [vmem:[%s1] sm:$0xff]
  %v12 = vld [vmem:[%s0] sm:$0xf]
  %v13 = vld [vmem:[%s0 + $0x4] sm:$0xf]
  %v14 = vld [vmem:[%s0 + $0x8] sm:$0xf]
  %v15 = vld [vmem:[%s0 + $0xc] sm:$0xf]
  %v16 = vld [vmem:[%s0 + $0x10] sm:$0xf]
  %v17 = vld [vmem:[%s0 + $0x14] sm:$0xf]
  %v18 = vld [vmem:[%s0 + $0x18] sm:$0xf]
  %v19 = vld [vmem:[%s0 + $0x1c] sm:$0xf]
  %v20 = vunpack.c.l.bf16 %v12
  %v21 = vunpack.c.l.bf16 %v13
  %v22 = vunpack.c.l.bf16 %v14
  %v23 = vunpack.c.l.bf16 %v15
  %v24 = vunpack.c.l.bf16 %v16
  %v25 = vunpack.c.l.bf16 %v17
  %v26 = vunpack.c.l.bf16 %v18
  %v27 = vunpack.c.l.bf16 %v19
  %28 = vadd.xlane.f32.xlu0 %v20
  %v29 = vpop.xlane.xlu0 %28
  %30 = vadd.xlane.f32.xlu0 %v21
  %v31 = vpop.xlane.xlu0 %30
  %32 = vadd.xlane.f32.xlu0 %v22
  %v33 = vpop.xlane.xlu0 %32
  %34 = vadd.xlane.f32.xlu0 %v23
  %v35 = vpop.xlane.xlu0 %34
  %36 = vadd.xlane.f32.xlu0 %v24
  %v37 = vpop.xlane.xlu0 %36
  %38 = vadd.xlane.f32.xlu0 %v25
  %v39 = vpop.xlane.xlu0 %38
  %40 = vadd.xlane.f32.xlu0 %v26
  %v41 = vpop.xlane.xlu0 %40
  %42 = vadd.xlane.f32.xlu0 %v27
  %v43 = vpop.xlane.xlu0 %42
  %v44 = vrcp.pop 128.0
  %v45 = vmul.f32 %v29, %v44
  %v46 = vmul.f32 %v31, %v44
  %v47 = vmul.f32 %v33, %v44
  %v48 = vmul.f32 %v35, %v44
  %v49 = vmul.f32 %v37, %v44
  %v50 = vmul.f32 %v39, %v44
  %v51 = vmul.f32 %v41, %v44
  %v52 = vmul.f32 %v43, %v44
  %v53 = vsub.f32 %v20, %v45
  %v54 = vsub.f32 %v21, %v46
  %v55 = vsub.f32 %v22, %v47
  %v56 = vsub.f32 %v23, %v48
  %v57 = vsub.f32 %v24, %v49
  %v58 = vsub.f32 %v25, %v50
  %v59 = vsub.f32 %v26, %v51
  %v60 = vsub.f32 %v27, %v52
  %v61 = vmul.f32 %v53, %v53
  %v62 = vmul.f32 %v54, %v54
  %v63 = vmul.f32 %v55, %v55
  %v64 = vmul.f32 %v56, %v56
  %v65 = vmul.f32 %v57, %v57
  %v66 = vmul.f32 %v58, %v58
  %v67 = vmul.f32 %v59, %v59
  %v68 = vmul.f32 %v60, %v60
  %69 = vadd.xlane.f32.xlu0 %v61
  %v70 = vpop.xlane.xlu0 %69
  %71 = vadd.xlane.f32.xlu0 %v62
  %v72 = vpop.xlane.xlu0 %71
  %73 = vadd.xlane.f32.xlu0 %v63
  %v74 = vpop.xlane.xlu0 %73
  %75 = vadd.xlane.f32.xlu0 %v64
  %v76 = vpop.xlane.xlu0 %75
  %77 = vadd.xlane.f32.xlu0 %v65
  %v78 = vpop.xlane.xlu0 %77
  %79 = vadd.xlane.f32.xlu0 %v66
  %v80 = vpop.xlane.xlu0 %79
  %81 = vadd.xlane.f32.xlu0 %v67
  %v82 = vpop.xlane.xlu0 %81
  %83 = vadd.xlane.f32.xlu0 %v68
  %v84 = vpop.xlane.xlu0 %83
  %v85 = vmul.f32 %v70, %v44
  %v86 = vmul.f32 %v72, %v44
  %v87 = vmul.f32 %v74, %v44
  %v88 = vmul.f32 %v76, %v44
  %v89 = vmul.f32 %v78, %v44
  %v90 = vmul.f32 %v80, %v44
  %v91 = vmul.f32 %v82, %v44
  %v92 = vmul.f32 %v84, %v44
  %v93 = vadd.f32 %v85, 1e-05
  %v94 = vadd.f32 %v86, 1e-05
  %v95 = vadd.f32 %v87, 1e-05
  %v96 = vadd.f32 %v88, 1e-05
  %v97 = vadd.f32 %v89, 1e-05
  %v98 = vadd.f32 %v90, 1e-05
  %v99 = vadd.f32 %v91, 1e-05
  %v100 = vadd.f32 %v92, 1e-05
  %v101 = vrsqrt.pop %v93
  %v102 = vrsqrt.pop %v94
  %v103 = vrsqrt.pop %v95
  %v104 = vrsqrt.pop %v96
  %v105 = vrsqrt.pop %v97
  %v106 = vrsqrt.pop %v98
  %v107 = vrsqrt.pop %v99
  %v108 = vrsqrt.pop %v100
  %v109 = vmul.f32 %v53, %v101
  %v110 = vmul.f32 %v54, %v102
  %v111 = vmul.f32 %v55, %v103
  %v112 = vmul.f32 %v56, %v104
  %v113 = vmul.f32 %v57, %v105
  %v114 = vmul.f32 %v58, %v106
  %v115 = vmul.f32 %v59, %v107
  %v116 = vmul.f32 %v60, %v108
  %v117 = vlaneseq
  %v118 = vshrl.u32 %v117, 7
  %v119 = vsub.s32 1, %v118
  %v120 = vrot.slane %v11, %v119
  %v121 = vmul.f32 %v109, %v120
  %v122 = vmul.f32 %v110, %v120
  %v123 = vmul.f32 %v111, %v120
  %v124 = vmul.f32 %v112, %v120
  %v125 = vmul.f32 %v113, %v120
  %v126 = vmul.f32 %v114, %v120
  %v127 = vmul.f32 %v115, %v120
  %v128 = vmul.f32 %v116, %v120
  %v129 = vlaneseq
  %v130 = vshrl.u32 %v129, 7
  %v131 = vsub.s32 2, %v130
  %v132 = vrot.slane %v11, %v131
  %v133 = vadd.f32 %v121, %v132
  %v134 = vadd.f32 %v122, %v132
  %v135 = vadd.f32 %v123, %v132
  %v136 = vadd.f32 %v124, %v132
  %v137 = vadd.f32 %v125, %v132
  %v138 = vadd.f32 %v126, %v132
  %v139 = vadd.f32 %v127, %v132
  %v140 = vadd.f32 %v128, %v132
  %v141 = vpack.c.bf16 %v134, %v133
  %v142 = vpack.c.bf16 %v136, %v135
  %v143 = vpack.c.bf16 %v138, %v137
  %v144 = vpack.c.bf16 %v140, %v139
  %v149 = vunpack.c.l.b16 %v141
  %v150 = vunpack.c.h.b16 %v141
  %v151 = vunpack.c.l.b16 %v142
  %v152 = vunpack.c.h.b16 %v142
  %v153 = vunpack.c.l.b16 %v143
  %v154 = vunpack.c.h.b16 %v143
  %v155 = vunpack.c.l.b16 %v144
  %v156 = vunpack.c.h.b16 %v144
  %v157 = vpack.c.b16 %v149, %v149
  %v158 = vpack.c.b16 %v150, %v150
  %v159 = vpack.c.b16 %v151, %v151
  %v160 = vpack.c.b16 %v152, %v152
  %v161 = vpack.c.b16 %v153, %v153
  %v162 = vpack.c.b16 %v154, %v154
  %v163 = vpack.c.b16 %v155, %v155
  %v164 = vpack.c.b16 %v156, %v156
  %173 = vst [vmem:[%s2] sm:$0xf] %v157
  %174 = vst [vmem:[%s2 + $0x4] sm:$0xf] %v158
  %175 = vst [vmem:[%s2 + $0x8] sm:$0xf] %v159
  %176 = vst [vmem:[%s2 + $0xc] sm:$0xf] %v160
  %177 = vst [vmem:[%s2 + $0x10] sm:$0xf] %v161
  %178 = vst [vmem:[%s2 + $0x14] sm:$0xf] %v162
  %179 = vst [vmem:[%s2 + $0x18] sm:$0xf] %v163
  %180 = vst [vmem:[%s2 + $0x1c] sm:$0xf] %v164
  // Predicated region
  $region10: #{wr_xformer_single_forward.12} parent=0 // pred_check
    _
  $region11: #{wr_xformer_single_forward.12} parent=0 // pred_check_branch
    %182 = sbr.rel (0) target = $region13
  $region12: #{wr_xformer_single_forward.12} parent=0 // pred_region
    _
  $region13: #{wr_xformer_single_forward.12} parent=0 // pred_fallthru
    _
  // Predicated region
  $region14: #{wr_xformer_single_forward.12} parent=0 // pred_check
    _
  $region15: #{wr_xformer_single_forward.12} parent=0 // pred_check_branch
    %184 = sbr.rel (0) target = $region17
  $region16: #{wr_xformer_single_forward.12} parent=0 // pred_region
    _
  $region17: #{wr_xformer_single_forward.12} parent=0 // pred_fallthru
    _

// kernel: wr_xformer_single_forward.11
$region0: #{wr_xformer_single_forward.11}
  #allocation0 [shape = 'u32[]', space=smem, size = 0x4, offset = 0x4, fixed_abs, tag = 'smem constant byte address 0x4 - core index']
  #allocation1 [shape = 'u32[144,128]{1,0:T(1,128)}', space=vmem, size = 0x12000, scoped, tag = 'internal scratch']
  %s0 = inlined_call_operand.vmem [shape: bf16[64,128], index: 0, kind: input, shape index: {}]
  %s1 = inlined_call_operand.vmem [shape: bf16[128,256], index: 1, kind: input, shape index: {}]
  %s2 = inlined_call_operand.vmem [shape: f32[1,256], index: 2, kind: input, shape index: {}]
  %s3 = inlined_call_operand.vmem [shape: bf16[256,128], index: 3, kind: input, shape index: {}]
  %s4 = inlined_call_operand.vmem [shape: f32[8,128], index: 4, kind: input, shape index: {}]
  %s5 = inlined_call_operand.vmem [shape: bf16[64,128], index: 5, kind: output, shape index: {}]
  %s6 = sld [smem:[#allocation0]]
  $region30: #{wr_xformer_single_forward.11} parent=0
    _
  %s8 = ssub.s32 1, %s6
  %s9 = scalar_select 0, %s8, %s6
  // Predicated region
  $region2: #{wr_xformer_single_forward.11} parent=0 // pred_check
    _
  $region3: #{wr_xformer_single_forward.11} parent=0 // pred_check_branch
    %11 = sbr.rel (0) target = $region5
  $region4: #{wr_xformer_single_forward.11} parent=0 // pred_region
    _
  $region5: #{wr_xformer_single_forward.11} parent=0 // pred_fallthru
    _
  // Predicated region
  $region6: #{wr_xformer_single_forward.11} parent=0 // pred_check
    _
  $region7: #{wr_xformer_single_forward.11} parent=0 // pred_check_branch
    %13 = sbr.rel (0) target = $region9
  $region8: #{wr_xformer_single_forward.11} parent=0 // pred_region
    _
  $region9: #{wr_xformer_single_forward.11} parent=0 // pred_fallthru
    _
  // Predicated region
  $region10: #{wr_xformer_single_forward.11} parent=0 // pred_check
    _
  $region11: #{wr_xformer_single_forward.11} parent=0 // pred_check_branch
    %15 = sbr.rel (0) target = $region13
  $region12: #{wr_xformer_single_forward.11} parent=0 // pred_region
    _
  $region13: #{wr_xformer_single_forward.11} parent=0 // pred_fallthru
    _
  // Predicated region
  $region14: #{wr_xformer_single_forward.11} parent=0 // pred_check
    _
  $region15: #{wr_xformer_single_forward.11} parent=0 // pred_check_branch
    %17 = sbr.rel (0) target = $region17
  $region16: #{wr_xformer_single_forward.11} parent=0 // pred_region
    _
  $region17: #{wr_xformer_single_forward.11} parent=0 // pred_fallthru
    _
  // Predicated region
  $region18: #{wr_xformer_single_forward.11} parent=0 // pred_check
    _
  $region19: #{wr_xformer_single_forward.11} parent=0 // pred_check_branch
    %19 = sbr.rel (0) target = $region21
  $region20: #{wr_xformer_single_forward.11} parent=0 // pred_region
    _
  $region21: #{wr_xformer_single_forward.11} parent=0 // pred_fallthru
    _
  %v21 = vld [vmem:[%s0] sm:$0xf]
  %v22 = vld [vmem:[%s0 + $0x4] sm:$0xf]
  %v23 = vld [vmem:[%s0 + $0x8] sm:$0xf]
  %v24 = vld [vmem:[%s0 + $0xc] sm:$0xf]
  %v25 = vld [vmem:[%s0 + $0x10] sm:$0xf]
  %v26 = vld [vmem:[%s0 + $0x14] sm:$0xf]
  %v27 = vld [vmem:[%s0 + $0x18] sm:$0xf]
  %v28 = vld [vmem:[%s0 + $0x1c] sm:$0xf]
  %v29 = vld [vmem:[%s1] sm:$0xff]
  %v30 = vld [vmem:[%s1 + $0x8] sm:$0xff]
  %v31 = vld [vmem:[%s1 + $0x10] sm:$0xff]
  %v32 = vld [vmem:[%s1 + $0x18] sm:$0xff]
  %v33 = vld [vmem:[%s1 + $0x20] sm:$0xff]
  %v34 = vld [vmem:[%s1 + $0x28] sm:$0xff]
  %v35 = vld [vmem:[%s1 + $0x30] sm:$0xff]
  %v36 = vld [vmem:[%s1 + $0x38] sm:$0xff]
  %v37 = vld [vmem:[%s1 + $0x40] sm:$0xff]
  %v38 = vld [vmem:[%s1 + $0x48] sm:$0xff]
  %v39 = vld [vmem:[%s1 + $0x50] sm:$0xff]
  %v40 = vld [vmem:[%s1 + $0x58] sm:$0xff]
  %v41 = vld [vmem:[%s1 + $0x60] sm:$0xff]
  %v42 = vld [vmem:[%s1 + $0x68] sm:$0xff]
  %v43 = vld [vmem:[%s1 + $0x70] sm:$0xff]
  %v44 = vld [vmem:[%s1 + $0x78] sm:$0xff]
  %v45 = vld [vmem:[%s2] sm:$0x3]
  %v47 = vlaneseq
  %v48 = vshrl.u32 %v47, 7
  %v49 = vsub.s32 0, %v48
  %v50 = vrot.slane %v45, %v49
  %v51 = vlaneseq
  %v52 = vshrl.u32 %v51, 7
  %v53 = vsub.s32 1, %v52
  %v54 = vrot.slane %v45, %v53
  %v65 = vunpack.c.l.b16 %v21
  %v66 = vunpack.c.l.b16 %v22
  %v67 = vunpack.c.l.b16 %v23
  %v68 = vunpack.c.l.b16 %v24
  %v69 = vunpack.c.l.b16 %v25
  %v70 = vunpack.c.l.b16 %v26
  %v71 = vunpack.c.l.b16 %v27
  %v72 = vunpack.c.l.b16 %v28
  %v73 = vpack.c.b16 %v66, %v65
  %v74 = vpack.c.b16 %v68, %v67
  %v75 = vpack.c.b16 %v70, %v69
  %v76 = vpack.c.b16 %v72, %v71
  %v97 = vunpack.c.l.b16 %v29
  %v98 = vunpack.c.h.b16 %v29
  %v99 = vunpack.c.l.b16 %v30
  %v100 = vunpack.c.h.b16 %v30
  %v101 = vunpack.c.l.b16 %v31
  %v102 = vunpack.c.h.b16 %v31
  %v103 = vunpack.c.l.b16 %v32
  %v104 = vunpack.c.h.b16 %v32
  %v105 = vunpack.c.l.b16 %v33
  %v106 = vunpack.c.h.b16 %v33
  %v107 = vunpack.c.l.b16 %v34
  %v108 = vunpack.c.h.b16 %v34
  %v109 = vunpack.c.l.b16 %v35
  %v110 = vunpack.c.h.b16 %v35
  %v111 = vunpack.c.l.b16 %v36
  %v112 = vunpack.c.h.b16 %v36
  %v113 = vunpack.c.l.b16 %v37
  %v114 = vunpack.c.h.b16 %v37
  %v115 = vunpack.c.l.b16 %v38
  %v116 = vunpack.c.h.b16 %v38
  %v117 = vunpack.c.l.b16 %v39
  %v118 = vunpack.c.h.b16 %v39
  %v119 = vunpack.c.l.b16 %v40
  %v120 = vunpack.c.h.b16 %v40
  %v121 = vunpack.c.l.b16 %v41
  %v122 = vunpack.c.h.b16 %v41
  %v123 = vunpack.c.l.b16 %v42
  %v124 = vunpack.c.h.b16 %v42
  %v125 = vunpack.c.l.b16 %v43
  %v126 = vunpack.c.h.b16 %v43
  %v127 = vunpack.c.l.b16 %v44
  %v128 = vunpack.c.h.b16 %v44
  %v129 = vpack.c.b16 %v99, %v97
  %v130 = vpack.c.b16 %v100, %v98
  %v131 = vpack.c.b16 %v103, %v101
  %v132 = vpack.c.b16 %v104, %v102
  %v133 = vpack.c.b16 %v107, %v105
  %v134 = vpack.c.b16 %v108, %v106
  %v135 = vpack.c.b16 %v111, %v109
  %v136 = vpack.c.b16 %v112, %v110
  %v137 = vpack.c.b16 %v115, %v113
  %v138 = vpack.c.b16 %v116, %v114
  %v139 = vpack.c.b16 %v119, %v117
  %v140 = vpack.c.b16 %v120, %v118
  %v141 = vpack.c.b16 %v123, %v121
  %v142 = vpack.c.b16 %v124, %v122
  %v143 = vpack.c.b16 %v127, %v125
  %v144 = vpack.c.b16 %v128, %v126
  %161 = vmatprep.subr.bf16.mxu0 %v144
  %162 = vmatpush1.bf16.msra.mxu0 %v143
  %163 = vmatprep.subr.bf16.mxu0 %v142
  %164 = vmatpush1.bf16.msra.mxu0 %v141
  %165 = vmatprep.subr.bf16.mxu0 %v140
  %166 = vmatpush1.bf16.msra.mxu0 %v139
  %167 = vmatprep.subr.bf16.mxu0 %v138
  %168 = vmatpush1.bf16.msra.mxu0 %v137
  %169 = vmatprep.subr.bf16.mxu0 %v136
  %170 = vmatpush1.bf16.msra.mxu0 %v135
  %171 = vmatprep.subr.bf16.mxu0 %v134
  %172 = vmatpush1.bf16.msra.mxu0 %v133
  %173 = vmatprep.subr.bf16.mxu0 %v132
  %174 = vmatpush1.bf16.msra.mxu0 %v131
  %175 = vmatprep.subr.bf16.mxu0 %v130
  %176 = vmatpush1.bf16.msra.mxu0 %v129
  %177 = vmatprep.subr.bf16.mxu0 0
  %178 = vmatpush2.bf16.msra.mxu0 0
  %179 = vmatprep.subr.bf16.mxu0 0
  %180 = vmatpush2.bf16.msra.mxu0 0
  %181 = vmatprep.subr.bf16.mxu0 0
  %182 = vmatpush2.bf16.msra.mxu0 0
  %183 = vmatprep.subr.bf16.mxu0 0
  %184 = vmatpush2.bf16.msra.mxu0 0
  %185 = vmatprep.subr.bf16.mxu0 0
  %186 = vmatpush2.bf16.msra.mxu0 0
  %187 = vmatprep.subr.bf16.mxu0 0
  %188 = vmatpush2.bf16.msra.mxu0 0
  %189 = vmatprep.subr.bf16.mxu0 0
  %190 = vmatpush2.bf16.msra.mxu0 0
  %191 = vmatprep.subr.bf16.mxu0 0
  %192 = vmatpush2.bf16.msra.mxu0 0
  %193 = vmatprep.mubr.bf16.mxu0 0
  %194 = vmatmul.mubr.bf16.gmra.mxu0 %v73
  %v195 = vpop.f32.mrf.mxu0
  %v196 = vadd.f32 %v50, %v195
  %v197 = vpop.f32.mrf.mxu0
  %v198 = vadd.f32 %v54, %v197
  %v199 = vpop.f32.mrf.mxu0
  %v200 = vadd.f32 %v50, %v199
  %v201 = vpop.f32.mrf.mxu0
  %v202 = vadd.f32 %v54, %v201
  %203 = vmatprep.mubr.bf16.mxu0 0
  %204 = vmatmul.mubr.bf16.gmra.mxu0 %v74
  %v205 = vpop.f32.mrf.mxu0
  %v206 = vadd.f32 %v50, %v205
  %v207 = vpop.f32.mrf.mxu0
  %v208 = vadd.f32 %v54, %v207
  %v209 = vpop.f32.mrf.mxu0
  %v210 = vadd.f32 %v50, %v209
  %v211 = vpop.f32.mrf.mxu0
  %v212 = vadd.f32 %v54, %v211
  %213 = vmatprep.mubr.bf16.mxu0 0
  %214 = vmatmul.mubr.bf16.gmra.mxu0 %v75
  %v215 = vpop.f32.mrf.mxu0
  %v216 = vadd.f32 %v50, %v215
  %v217 = vpop.f32.mrf.mxu0
  %v218 = vadd.f32 %v54, %v217
  %v219 = vpop.f32.mrf.mxu0
  %v220 = vadd.f32 %v50, %v219
  %v221 = vpop.f32.mrf.mxu0
  %v222 = vadd.f32 %v54, %v221
  %223 = vmatprep.mubr.bf16.mxu0 0
  %224 = vmatmul.mubr.bf16.gmra.mxu0 %v76
  %v225 = vpop.f32.mrf.mxu0
  %v226 = vadd.f32 %v50, %v225
  %v227 = vpop.f32.mrf.mxu0
  %v228 = vadd.f32 %v54, %v227
  %v229 = vpop.f32.mrf.mxu0
  %v230 = vadd.f32 %v50, %v229
  %v231 = vpop.f32.mrf.mxu0
  %v232 = vadd.f32 %v54, %v231
  %233 = vdwg.mxu0
  %v234 = vmul.f32 %v196, %v196
  %v235 = vmul.f32 %v198, %v198
  %v236 = vmul.f32 %v200, %v200
  %v237 = vmul.f32 %v202, %v202
  %v238 = vmul.f32 %v206, %v206
  %v239 = vmul.f32 %v208, %v208
  %v240 = vmul.f32 %v210, %v210
  %v241 = vmul.f32 %v212, %v212
  %v242 = vmul.f32 %v216, %v216
  %v243 = vmul.f32 %v218, %v218
  %v244 = vmul.f32 %v220, %v220
  %v245 = vmul.f32 %v222, %v222
  %v246 = vmul.f32 %v226, %v226
  %v247 = vmul.f32 %v228, %v228
  %v248 = vmul.f32 %v230, %v230
  %v249 = vmul.f32 %v232, %v232
  %v250 = vmul.f32 %v196, %v234
  %v251 = vmul.f32 %v198, %v235
  %v252 = vmul.f32 %v200, %v236
  %v253 = vmul.f32 %v202, %v237
  %v254 = vmul.f32 %v206, %v238
  %v255 = vmul.f32 %v208, %v239
  %v256 = vmul.f32 %v210, %v240
  %v257 = vmul.f32 %v212, %v241
  %v258 = vmul.f32 %v216, %v242
  %v259 = vmul.f32 %v218, %v243
  %v260 = vmul.f32 %v220, %v244
  %v261 = vmul.f32 %v222, %v245
  %v262 = vmul.f32 %v226, %v246
  %v263 = vmul.f32 %v228, %v247
  %v264 = vmul.f32 %v230, %v248
  %v265 = vmul.f32 %v232, %v249
  %v266 = vmul.f32 %v250, 0.044715
  %v267 = vmul.f32 %v251, 0.044715
  %v268 = vmul.f32 %v252, 0.044715
  %v269 = vmul.f32 %v253, 0.044715
  %v270 = vmul.f32 %v254, 0.044715
  %v271 = vmul.f32 %v255, 0.044715
  %v272 = vmul.f32 %v256, 0.044715
  %v273 = vmul.f32 %v257, 0.044715
  %v274 = vmul.f32 %v258, 0.044715
  %v275 = vmul.f32 %v259, 0.044715
  %v276 = vmul.f32 %v260, 0.044715
  %v277 = vmul.f32 %v261, 0.044715
  %v278 = vmul.f32 %v262, 0.044715
  %v279 = vmul.f32 %v263, 0.044715
  %v280 = vmul.f32 %v264, 0.044715
  %v281 = vmul.f32 %v265, 0.044715
  %v282 = vadd.f32 %v196, %v266
  %v283 = vadd.f32 %v198, %v267
  %v284 = vadd.f32 %v200, %v268
  %v285 = vadd.f32 %v202, %v269
  %v286 = vadd.f32 %v206, %v270
  %v287 = vadd.f32 %v208, %v271
  %v288 = vadd.f32 %v210, %v272
  %v289 = vadd.f32 %v212, %v273
  %v290 = vadd.f32 %v216, %v274
  %v291 = vadd.f32 %v218, %v275
  %v292 = vadd.f32 %v220, %v276
  %v293 = vadd.f32 %v222, %v277
  %v294 = vadd.f32 %v226, %v278
  %v295 = vadd.f32 %v228, %v279
  %v296 = vadd.f32 %v230, %v280
  %v297 = vadd.f32 %v232, %v281
  %v298 = vmul.f32 %v282, 0.7978846
  %v299 = vmul.f32 %v283, 0.7978846
  %v300 = vmul.f32 %v284, 0.7978846
  %v301 = vmul.f32 %v285, 0.7978846
  %v302 = vmul.f32 %v286, 0.7978846
  %v303 = vmul.f32 %v287, 0.7978846
  %v304 = vmul.f32 %v288, 0.7978846
  %v305 = vmul.f32 %v289, 0.7978846
  %v306 = vmul.f32 %v290, 0.7978846
  %v307 = vmul.f32 %v291, 0.7978846
  %v308 = vmul.f32 %v292, 0.7978846
  %v309 = vmul.f32 %v293, 0.7978846
  %v310 = vmul.f32 %v294, 0.7978846
  %v311 = vmul.f32 %v295, 0.7978846
  %v312 = vmul.f32 %v296, 0.7978846
  %v313 = vmul.f32 %v297, 0.7978846
  %v314 = vtanh.pop %v298
  %v315 = vtanh.pop %v299
  %v316 = vtanh.pop %v300
  %v317 = vtanh.pop %v301
  %v318 = vtanh.pop %v302
  %v319 = vtanh.pop %v303
  %v320 = vtanh.pop %v304
  %v321 = vtanh.pop %v305
  %v322 = vtanh.pop %v306
  %v323 = vtanh.pop %v307
  %v324 = vtanh.pop %v308
  %v325 = vtanh.pop %v309
  %v326 = vtanh.pop %v310
  %v327 = vtanh.pop %v311
  %v328 = vtanh.pop %v312
  %v329 = vtanh.pop %v313
  %v330 = vadd.f32 %v314, 1.0
  %v331 = vadd.f32 %v315, 1.0
  %v332 = vadd.f32 %v316, 1.0
  %v333 = vadd.f32 %v317, 1.0
  %v334 = vadd.f32 %v318, 1.0
  %v335 = vadd.f32 %v319, 1.0
  %v336 = vadd.f32 %v320, 1.0
  %v337 = vadd.f32 %v321, 1.0
  %v338 = vadd.f32 %v322, 1.0
  %v339 = vadd.f32 %v323, 1.0
  %v340 = vadd.f32 %v324, 1.0
  %v341 = vadd.f32 %v325, 1.0
  %v342 = vadd.f32 %v326, 1.0
  %v343 = vadd.f32 %v327, 1.0
  %v344 = vadd.f32 %v328, 1.0
  %v345 = vadd.f32 %v329, 1.0
  %v346 = vmul.f32 %v330, 0.5
  %v347 = vmul.f32 %v331, 0.5
  %v348 = vmul.f32 %v332, 0.5
  %v349 = vmul.f32 %v333, 0.5
  %v350 = vmul.f32 %v334, 0.5
  %v351 = vmul.f32 %v335, 0.5
  %v352 = vmul.f32 %v336, 0.5
  %v353 = vmul.f32 %v337, 0.5
  %v354 = vmul.f32 %v338, 0.5
  %v355 = vmul.f32 %v339, 0.5
  %v356 = vmul.f32 %v340, 0.5
  %v357 = vmul.f32 %v341, 0.5
  %v358 = vmul.f32 %v342, 0.5
  %v359 = vmul.f32 %v343, 0.5
  %v360 = vmul.f32 %v344, 0.5
  %v361 = vmul.f32 %v345, 0.5
  %v362 = vmul.f32 %v196, %v346
  %v363 = vmul.f32 %v198, %v347
  %v364 = vmul.f32 %v200, %v348
  %v365 = vmul.f32 %v202, %v349
  %v366 = vmul.f32 %v206, %v350
  %v367 = vmul.f32 %v208, %v351
  %v368 = vmul.f32 %v210, %v352
  %v369 = vmul.f32 %v212, %v353
  %v370 = vmul.f32 %v216, %v354
  %v371 = vmul.f32 %v218, %v355
  %v372 = vmul.f32 %v220, %v356
  %v373 = vmul.f32 %v222, %v357
  %v374 = vmul.f32 %v226, %v358
  %v375 = vmul.f32 %v228, %v359
  %v376 = vmul.f32 %v230, %v360
  %v377 = vmul.f32 %v232, %v361
  %v378 = vpack.c.bf16 %v364, %v362
  %v379 = vpack.c.bf16 %v365, %v363
  %v380 = vpack.c.bf16 %v368, %v366
  %v381 = vpack.c.bf16 %v369, %v367
  %v382 = vpack.c.bf16 %v372, %v370
  %v383 = vpack.c.bf16 %v373, %v371
  %v384 = vpack.c.bf16 %v376, %v374
  %v385 = vpack.c.bf16 %v377, %v375
  %v386 = vld [vmem:[%s3] sm:$0xf]
  %v387 = vld [vmem:[%s3 + $0x4] sm:$0xf]
  %v388 = vld [vmem:[%s3 + $0x8] sm:$0xf]
  %v389 = vld [vmem:[%s3 + $0xc] sm:$0xf]
  %v390 = vld [vmem:[%s3 + $0x10] sm:$0xf]
  %v391 = vld [vmem:[%s3 + $0x14] sm:$0xf]
  %v392 = vld [vmem:[%s3 + $0x18] sm:$0xf]
  %v393 = vld [vmem:[%s3 + $0x1c] sm:$0xf]
  %v394 = vld [vmem:[%s3 + $0x20] sm:$0xf]
  %v395 = vld [vmem:[%s3 + $0x24] sm:$0xf]
  %v396 = vld [vmem:[%s3 + $0x28] sm:$0xf]
  %v397 = vld [vmem:[%s3 + $0x2c] sm:$0xf]
  %v398 = vld [vmem:[%s3 + $0x30] sm:$0xf]
  %v399 = vld [vmem:[%s3 + $0x34] sm:$0xf]
  %v400 = vld [vmem:[%s3 + $0x38] sm:$0xf]
  %v401 = vld [vmem:[%s3 + $0x3c] sm:$0xf]
  %v402 = vld [vmem:[%s3 + $0x40] sm:$0xf]
  %v403 = vld [vmem:[%s3 + $0x44] sm:$0xf]
  %v404 = vld [vmem:[%s3 + $0x48] sm:$0xf]
  %v405 = vld [vmem:[%s3 + $0x4c] sm:$0xf]
  %v406 = vld [vmem:[%s3 + $0x50] sm:$0xf]
  %v407 = vld [vmem:[%s3 + $0x54] sm:$0xf]
  %v408 = vld [vmem:[%s3 + $0x58] sm:$0xf]
  %v409 = vld [vmem:[%s3 + $0x5c] sm:$0xf]
  %v410 = vld [vmem:[%s3 + $0x60] sm:$0xf]
  %v411 = vld [vmem:[%s3 + $0x64] sm:$0xf]
  %v412 = vld [vmem:[%s3 + $0x68] sm:$0xf]
  %v413 = vld [vmem:[%s3 + $0x6c] sm:$0xf]
  %v414 = vld [vmem:[%s3 + $0x70] sm:$0xf]
  %v415 = vld [vmem:[%s3 + $0x74] sm:$0xf]
  %v416 = vld [vmem:[%s3 + $0x78] sm:$0xf]
  %v417 = vld [vmem:[%s3 + $0x7c] sm:$0xf]
  %v450 = vunpack.c.l.b16 %v386
  %v451 = vunpack.c.l.b16 %v387
  %v452 = vunpack.c.l.b16 %v388
  %v453 = vunpack.c.l.b16 %v389
  %v454 = vunpack.c.l.b16 %v390
  %v455 = vunpack.c.l.b16 %v391
  %v456 = vunpack.c.l.b16 %v392
  %v457 = vunpack.c.l.b16 %v393
  %v458 = vunpack.c.l.b16 %v394
  %v459 = vunpack.c.l.b16 %v395
  %v460 = vunpack.c.l.b16 %v396
  %v461 = vunpack.c.l.b16 %v397
  %v462 = vunpack.c.l.b16 %v398
  %v463 = vunpack.c.l.b16 %v399
  %v464 = vunpack.c.l.b16 %v400
  %v465 = vunpack.c.l.b16 %v401
  %v466 = vunpack.c.l.b16 %v402
  %v467 = vunpack.c.l.b16 %v403
  %v468 = vunpack.c.l.b16 %v404
  %v469 = vunpack.c.l.b16 %v405
  %v470 = vunpack.c.l.b16 %v406
  %v471 = vunpack.c.l.b16 %v407
  %v472 = vunpack.c.l.b16 %v408
  %v473 = vunpack.c.l.b16 %v409
  %v474 = vunpack.c.l.b16 %v410
  %v475 = vunpack.c.l.b16 %v411
  %v476 = vunpack.c.l.b16 %v412
  %v477 = vunpack.c.l.b16 %v413
  %v478 = vunpack.c.l.b16 %v414
  %v479 = vunpack.c.l.b16 %v415
  %v480 = vunpack.c.l.b16 %v416
  %v481 = vunpack.c.l.b16 %v417
  %v482 = vpack.c.b16 %v451, %v450
  %v483 = vpack.c.b16 %v453, %v452
  %v484 = vpack.c.b16 %v455, %v454
  %v485 = vpack.c.b16 %v457, %v456
  %v486 = vpack.c.b16 %v459, %v458
  %v487 = vpack.c.b16 %v461, %v460
  %v488 = vpack.c.b16 %v463, %v462
  %v489 = vpack.c.b16 %v465, %v464
  %v490 = vpack.c.b16 %v467, %v466
  %v491 = vpack.c.b16 %v469, %v468
  %v492 = vpack.c.b16 %v471, %v470
  %v493 = vpack.c.b16 %v473, %v472
  %v494 = vpack.c.b16 %v475, %v474
  %v495 = vpack.c.b16 %v477, %v476
  %v496 = vpack.c.b16 %v479, %v478
  %v497 = vpack.c.b16 %v481, %v480
  %514 = vmatprep.subr.bf16.mxu0 0
  %515 = vmatpush1.bf16.msra.mxu0 %v489
  %516 = vmatprep.subr.bf16.mxu0 0
  %517 = vmatpush1.bf16.msra.mxu0 %v488
  %518 = vmatprep.subr.bf16.mxu0 0
  %519 = vmatpush1.bf16.msra.mxu0 %v487
  %520 = vmatprep.subr.bf16.mxu0 0
  %521 = vmatpush1.bf16.msra.mxu0 %v486
  %522 = vmatprep.subr.bf16.mxu0 0
  %523 = vmatpush1.bf16.msra.mxu0 %v485
  %524 = vmatprep.subr.bf16.mxu0 0
  %525 = vmatpush1.bf16.msra.mxu0 %v484
  %526 = vmatprep.subr.bf16.mxu0 0
  %527 = vmatpush1.bf16.msra.mxu0 %v483
  %528 = vmatprep.subr.bf16.mxu0 0
  %529 = vmatpush1.bf16.msra.mxu0 %v482
  %530 = vmatprep.subr.bf16.mxu0 0
  %531 = vmatpush2.bf16.msra.mxu0 %v497
  %532 = vmatprep.subr.bf16.mxu0 0
  %533 = vmatpush2.bf16.msra.mxu0 %v496
  %534 = vmatprep.subr.bf16.mxu0 0
  %535 = vmatpush2.bf16.msra.mxu0 %v495
  %536 = vmatprep.subr.bf16.mxu0 0
  %537 = vmatpush2.bf16.msra.mxu0 %v494
  %538 = vmatprep.subr.bf16.mxu0 0
  %539 = vmatpush2.bf16.msra.mxu0 %v493
  %540 = vmatprep.subr.bf16.mxu0 0
  %541 = vmatpush2.bf16.msra.mxu0 %v492
  %542 = vmatprep.subr.bf16.mxu0 0
  %543 = vmatpush2.bf16.msra.mxu0 %v491
  %544 = vmatprep.subr.bf16.mxu0 0
  %545 = vmatpush2.bf16.msra.mxu0 %v490
  %546 = vmatprep.mubr.bf16.mxu0 %v379
  %547 = vmatmul.mubr.bf16.gmra.mxu0 %v378
  %v548 = vpop.f32.mrf.mxu0
  %v549 = vadd.f32 0.0, %v548
  %v550 = vpop.f32.mrf.mxu0
  %v551 = vpop.f32.mrf.mxu0
  %v552 = vadd.f32 0.0, %v551
  %v553 = vpop.f32.mrf.mxu0
  %554 = vmatprep.mubr.bf16.mxu0 %v381
  %555 = vmatmul.mubr.bf16.gmra.mxu0 %v380
  %v556 = vpop.f32.mrf.mxu0
  %v557 = vadd.f32 0.0, %v556
  %v558 = vpop.f32.mrf.mxu0
  %v559 = vpop.f32.mrf.mxu0
  %v560 = vadd.f32 0.0, %v559
  %v561 = vpop.f32.mrf.mxu0
  %562 = vmatprep.mubr.bf16.mxu0 %v383
  %563 = vmatmul.mubr.bf16.gmra.mxu0 %v382
  %v564 = vpop.f32.mrf.mxu0
  %v565 = vadd.f32 0.0, %v564
  %v566 = vpop.f32.mrf.mxu0
  %v567 = vpop.f32.mrf.mxu0
  %v568 = vadd.f32 0.0, %v567
  %v569 = vpop.f32.mrf.mxu0
  %570 = vmatprep.mubr.bf16.mxu0 %v385
  %571 = vmatmul.mubr.bf16.gmra.mxu0 %v384
  %v572 = vpop.f32.mrf.mxu0
  %v573 = vadd.f32 0.0, %v572
  %v574 = vpop.f32.mrf.mxu0
  %v575 = vpop.f32.mrf.mxu0
  %v576 = vadd.f32 0.0, %v575
  %v577 = vpop.f32.mrf.mxu0
  %578 = vdwg.mxu0
  %v579 = vld [vmem:[%s4] sm:$0xff]
  %v580 = vunpack.c.l.bf16 %v21
  %v581 = vunpack.c.l.bf16 %v22
  %v582 = vunpack.c.l.bf16 %v23
  %v583 = vunpack.c.l.bf16 %v24
  %v584 = vunpack.c.l.bf16 %v25
  %v585 = vunpack.c.l.bf16 %v26
  %v586 = vunpack.c.l.bf16 %v27
  %v587 = vunpack.c.l.bf16 %v28
  %v588 = vadd.f32 %v580, %v549
  %v589 = vadd.f32 %v581, %v552
  %v590 = vadd.f32 %v582, %v557
  %v591 = vadd.f32 %v583, %v560
  %v592 = vadd.f32 %v584, %v565
  %v593 = vadd.f32 %v585, %v568
  %v594 = vadd.f32 %v586, %v573
  %v595 = vadd.f32 %v587, %v576
  %v596 = vlaneseq
  %v597 = vshrl.u32 %v596, 7
  %v598 = vsub.s32 0, %v597
  %v599 = vrot.slane %v579, %v598
  %v600 = vadd.f32 %v588, %v599
  %v601 = vadd.f32 %v589, %v599
  %v602 = vadd.f32 %v590, %v599
  %v603 = vadd.f32 %v591, %v599
  %v604 = vadd.f32 %v592, %v599
  %v605 = vadd.f32 %v593, %v599
  %v606 = vadd.f32 %v594, %v599
  %v607 = vadd.f32 %v595, %v599
  %608 = vadd.xlane.f32.xlu0 %v600
  %v609 = vpop.xlane.xlu0 %608
  %610 = vadd.xlane.f32.xlu0 %v601
  %v611 = vpop.xlane.xlu0 %610
  %612 = vadd.xlane.f32.xlu0 %v602
  %v613 = vpop.xlane.xlu0 %612
  %614 = vadd.xlane.f32.xlu0 %v603
  %v615 = vpop.xlane.xlu0 %614
  %616 = vadd.xlane.f32.xlu0 %v604
  %v617 = vpop.xlane.xlu0 %616
  %618 = vadd.xlane.f32.xlu0 %v605
  %v619 = vpop.xlane.xlu0 %618
  %620 = vadd.xlane.f32.xlu0 %v606
  %v621 = vpop.xlane.xlu0 %620
  %622 = vadd.xlane.f32.xlu0 %v607
  %v623 = vpop.xlane.xlu0 %622
  %v624 = vrcp.pop 128.0
  %v625 = vmul.f32 %v609, %v624
  %v626 = vmul.f32 %v611, %v624
  %v627 = vmul.f32 %v613, %v624
  %v628 = vmul.f32 %v615, %v624
  %v629 = vmul.f32 %v617, %v624
  %v630 = vmul.f32 %v619, %v624
  %v631 = vmul.f32 %v621, %v624
  %v632 = vmul.f32 %v623, %v624
  %v633 = vsub.f32 %v600, %v625
  %v634 = vsub.f32 %v601, %v626
  %v635 = vsub.f32 %v602, %v627
  %v636 = vsub.f32 %v603, %v628
  %v637 = vsub.f32 %v604, %v629
  %v638 = vsub.f32 %v605, %v630
  %v639 = vsub.f32 %v606, %v631
  %v640 = vsub.f32 %v607, %v632
  %v641 = vmul.f32 %v633, %v633
  %v642 = vmul.f32 %v634, %v634
  %v643 = vmul.f32 %v635, %v635
  %v644 = vmul.f32 %v636, %v636
  %v645 = vmul.f32 %v637, %v637
  %v646 = vmul.f32 %v638, %v638
  %v647 = vmul.f32 %v639, %v639
  %v648 = vmul.f32 %v640, %v640
  %649 = vadd.xlane.f32.xlu0 %v641
  %v650 = vpop.xlane.xlu0 %649
  %651 = vadd.xlane.f32.xlu0 %v642
  %v652 = vpop.xlane.xlu0 %651
  %653 = vadd.xlane.f32.xlu0 %v643
  %v654 = vpop.xlane.xlu0 %653
  %655 = vadd.xlane.f32.xlu0 %v644
  %v656 = vpop.xlane.xlu0 %655
  %657 = vadd.xlane.f32.xlu0 %v645
  %v658 = vpop.xlane.xlu0 %657
  %659 = vadd.xlane.f32.xlu0 %v646
  %v660 = vpop.xlane.xlu0 %659
  %661 = vadd.xlane.f32.xlu0 %v647
  %v662 = vpop.xlane.xlu0 %661
  %663 = vadd.xlane.f32.xlu0 %v648
  %v664 = vpop.xlane.xlu0 %663
  %v665 = vmul.f32 %v650, %v624
  %v666 = vmul.f32 %v652, %v624
  %v667 = vmul.f32 %v654, %v624
  %v668 = vmul.f32 %v656, %v624
  %v669 = vmul.f32 %v658, %v624
  %v670 = vmul.f32 %v660, %v624
  %v671 = vmul.f32 %v662, %v624
  %v672 = vmul.f32 %v664, %v624
  %v673 = vadd.f32 %v665, 1e-05
  %v674 = vadd.f32 %v666, 1e-05
  %v675 = vadd.f32 %v667, 1e-05
  %v676 = vadd.f32 %v668, 1e-05
  %v677 = vadd.f32 %v669, 1e-05
  %v678 = vadd.f32 %v670, 1e-05
  %v679 = vadd.f32 %v671, 1e-05
  %v680 = vadd.f32 %v672, 1e-05
  %v681 = vrsqrt.pop %v673
  %v682 = vrsqrt.pop %v674
  %v683 = vrsqrt.pop %v675
  %v684 = vrsqrt.pop %v676
  %v685 = vrsqrt.pop %v677
  %v686 = vrsqrt.pop %v678
  %v687 = vrsqrt.pop %v679
  %v688 = vrsqrt.pop %v680
  %v689 = vmul.f32 %v633, %v681
  %v690 = vmul.f32 %v634, %v682
  %v691 = vmul.f32 %v635, %v683
  %v692 = vmul.f32 %v636, %v684
  %v693 = vmul.f32 %v637, %v685
  %v694 = vmul.f32 %v638, %v686
  %v695 = vmul.f32 %v639, %v687
  %v696 = vmul.f32 %v640, %v688
  %v697 = vlaneseq
  %v698 = vshrl.u32 %v697, 7
  %v699 = vsub.s32 1, %v698
  %v700 = vrot.slane %v579, %v699
  %v701 = vmul.f32 %v689, %v700
  %v702 = vmul.f32 %v690, %v700
  %v703 = vmul.f32 %v691, %v700
  %v704 = vmul.f32 %v692, %v700
  %v705 = vmul.f32 %v693, %v700
  %v706 = vmul.f32 %v694, %v700
  %v707 = vmul.f32 %v695, %v700
  %v708 = vmul.f32 %v696, %v700
  %v709 = vlaneseq
  %v710 = vshrl.u32 %v709, 7
  %v711 = vsub.s32 2, %v710
  %v712 = vrot.slane %v579, %v711
  %v713 = vadd.f32 %v701, %v712
  %v714 = vadd.f32 %v702, %v712
  %v715 = vadd.f32 %v703, %v712
  %v716 = vadd.f32 %v704, %v712
  %v717 = vadd.f32 %v705, %v712
  %v718 = vadd.f32 %v706, %v712
  %v719 = vadd.f32 %v707, %v712
  %v720 = vadd.f32 %v708, %v712
  %v721 = vpack.c.bf16 %v714, %v713
  %v722 = vpack.c.bf16 %v716, %v715
  %v723 = vpack.c.bf16 %v718, %v717
  %v724 = vpack.c.bf16 %v720, %v719
  %v729 = vunpack.c.l.b16 %v721
  %v730 = vunpack.c.h.b16 %v721
  %v731 = vunpack.c.l.b16 %v722
  %v732 = vunpack.c.h.b16 %v722
  %v733 = vunpack.c.l.b16 %v723
  %v734 = vunpack.c.h.b16 %v723
  %v735 = vunpack.c.l.b16 %v724
  %v736 = vunpack.c.h.b16 %v724
  %v737 = vpack.c.b16 %v729, %v729
  %v738 = vpack.c.b16 %v730, %v730
  %v739 = vpack.c.b16 %v731, %v731
  %v740 = vpack.c.b16 %v732, %v732
  %v741 = vpack.c.b16 %v733, %v733
  %v742 = vpack.c.b16 %v734, %v734
  %v743 = vpack.c.b16 %v735, %v735
  %v744 = vpack.c.b16 %v736, %v736
  %753 = vst [vmem:[%s5] sm:$0xf] %v737
  %754 = vst [vmem:[%s5 + $0x4] sm:$0xf] %v738
  %755 = vst [vmem:[%s5 + $0x8] sm:$0xf] %v739
  %756 = vst [vmem:[%s5 + $0xc] sm:$0xf] %v740
  %757 = vst [vmem:[%s5 + $0x10] sm:$0xf] %v741
  %758 = vst [vmem:[%s5 + $0x14] sm:$0xf] %v742
  %759 = vst [vmem:[%s5 + $0x18] sm:$0xf] %v743
  %760 = vst [vmem:[%s5 + $0x1c] sm:$0xf] %v744
  // Predicated region
  $region22: #{wr_xformer_single_forward.11} parent=0 // pred_check
    _
  $region23: #{wr_xformer_single_forward.11} parent=0 // pred_check_branch
    %762 = sbr.rel (0) target = $region25
  $region24: #{wr_xformer_single_forward.11} parent=0 // pred_region
    _
  $region25: #{wr_xformer_single_forward.11} parent=0 // pred_fallthru
    _
  // Predicated region
  $region26: #{wr_xformer_single_forward.11} parent=0 // pred_check
    _
  $region27: #{wr_xformer_single_forward.11} parent=0 // pred_check_branch
    %764 = sbr.rel (0) target = $region29
  $region28: #{wr_xformer_single_forward.11} parent=0 // pred_region
    _
  $region29: #{wr_xformer_single_forward.11} parent=0 // pred_fallthru
    _

// kernel: wr_xformer_single_forward.15
$region0: #{wr_xformer_single_forward.15}
  #allocation0 [shape = 'u32[]', space=smem, size = 0x4, offset = 0x4, fixed_abs, tag = 'smem constant byte address 0x4 - core index']
  #allocation1 [shape = 'u32[144,128]{1,0:T(1,128)}', space=vmem, size = 0x12000, scoped, tag = 'internal scratch']
  #allocation2 [shape = 'f32[16,128]{1,0:T(8,128)}', space=vmem, size = 0x2000, scoped, tag = 'scratch operand']
  %s0 = inlined_call_operand.vmem [shape: bf16[128,128], index: 0, kind: input, shape index: {}]
  %s1 = inlined_call_operand.vmem [shape: bf16[64,128], index: 1, kind: input, shape index: {}]
  %s2 = inlined_call_operand.vmem [shape: bf16[4,512,32], index: 2, kind: input, shape index: {}]
  %s3 = inlined_call_operand.vmem [shape: f32[4,8,32], index: 3, kind: input, shape index: {}]
  %s4 = inlined_call_operand.vmem [shape: f32[8,128], index: 4, kind: input, shape index: {}]
  %s5 = inlined_call_operand.vmem [shape: bf16[128,128], index: 5, kind: output, shape index: {}]
  %s6 = sld [smem:[#allocation0]]
  $region61: #{wr_xformer_single_forward.15} parent=0
    _
  %s8 = ssub.s32 1, %s6
  %s9 = scalar_select 0, %s8, %s6
  loop: start=0, step=1, limit=34
  $region2: #{wr_xformer_single_forward.15} parent=0 // loop_pre_header
    _
  $region3: #{wr_xformer_single_forward.15} parent=0 // loop_header
    %s11 = sphi 0, %s15
    %p12 = scmp.ge.s32.totalorder %s11, 34
    %s18 = sphi 0, %s30
    %s19 = sphi 0, %s26
    %s20 = sphi 0, %s18
    %s21 = sphi 0, %s19
    %s22 = sphi 0, %s20
    %s23 = sphi 0, %s21
    %s33 = sphi 0, %s35
    %s36 = sphi 0, %s33
    %s37 = sphi 0, %s36
    %s53 = sphi 0, %s37
    %s59 = sphi 0, %s61
    %s62 = sphi 0, %s59
    %s63 = sphi 0, %s62
    %s79 = sphi 0, %s63
    %s85 = sphi 0, %s87
    %s88 = sphi 0, %s85
    %s89 = sphi 0, %s88
    %s105 = sphi 0, %s89
    %s111 = sphi 0, %s113
    %s114 = sphi 0, %s111
    %s115 = sphi 0, %s114
    %s131 = sphi 0, %s115
    %s135 = sphi 0, %s135
    %s137 = sphi 0, %s135
    %s138 = sphi 0, %s137
    %s152 = sphi 0, %s138
    %s158 = sphi 0, %s160
    %s161 = sphi 0, %s158
    %s162 = sphi 0, %s161
    %s178 = sphi 0, %s162
  $region4: #{wr_xformer_single_forward.15} parent=0 // loop_header_branch
    %14 = sbr.rel (%p12) target = $region8
  $region5: #{wr_xformer_single_forward.15} parent=0 // loop_body
    %s16 = ssub.s32 %s11, 1
    %s17 = ssub.s32 %s11, 2
    %s24 = sadd.s32 1, %s19
    %p25 = scmp.ge.s32.totalorder %s24, 4
    %s26 = scalar_select %p25, 0, %s24
    %s27 = sadd.s32 1, %s18
    %s28 = scalar_select %p25, %s27, %s18
    %p29 = scmp.ge.s32.totalorder %s28, 8
    %s30 = scalar_select %p29, 0, %s28
    %s31 = ssub.s32 %s18, %s30
    %p32 = scmp.eq.s32.totalorder %s31, 0
    %s34 = sadd.s32 %s33, 1
    %s35 = scalar_select %p32, %s33, %s34
    %p38 = pneg %p32
    %p39 = scmp.eq.s32.totalorder %s11, 31
    %p40 = por %p38, %p39
    %p41 = scmp.ne.s32.totalorder %s33, %s36
    %p42 = scmp.eq.s32.totalorder %s11, 0
    %p43 = por %p41, %p42
    %p44 = scmp.ne.s32.totalorder %s33, %s36
    %p45 = scmp.eq.s32.totalorder %s16, 31
    %p46 = por %p44, %p45
    %p47 = scmp.ne.s32.totalorder %s36, %s37
    %p48 = scmp.eq.s32.totalorder %s16, 0
    %p49 = por %p47, %p48
    %p50 = scmp.ne.s32.totalorder %s36, %s37
    %p51 = scmp.eq.s32.totalorder %s17, 31
    %p52 = por %p50, %p51
    %p54 = scmp.ne.s32.totalorder %s37, %s53
    %p55 = scmp.eq.s32.totalorder %s17, 0
    %p56 = por %p54, %p55
    %s57 = ssub.s32 %s18, %s30
    %p58 = scmp.eq.s32.totalorder %s57, 0
    %s60 = sadd.s32 %s59, 1
    %s61 = scalar_select %p58, %s59, %s60
    %p64 = pneg %p58
    %p65 = scmp.eq.s32.totalorder %s11, 31
    %p66 = por %p64, %p65
    %p67 = scmp.ne.s32.totalorder %s59, %s62
    %p68 = scmp.eq.s32.totalorder %s11, 0
    %p69 = por %p67, %p68
    %p70 = scmp.ne.s32.totalorder %s59, %s62
    %p71 = scmp.eq.s32.totalorder %s16, 31
    %p72 = por %p70, %p71
    %p73 = scmp.ne.s32.totalorder %s62, %s63
    %p74 = scmp.eq.s32.totalorder %s16, 0
    %p75 = por %p73, %p74
    %p76 = scmp.ne.s32.totalorder %s62, %s63
    %p77 = scmp.eq.s32.totalorder %s17, 31
    %p78 = por %p76, %p77
    %p80 = scmp.ne.s32.totalorder %s63, %s79
    %p81 = scmp.eq.s32.totalorder %s17, 0
    %p82 = por %p80, %p81
    %s83 = ssub.s32 %s19, %s26
    %p84 = scmp.eq.s32.totalorder %s83, 0
    %s86 = sadd.s32 %s85, 1
    %s87 = scalar_select %p84, %s85, %s86
    %p90 = pneg %p84
    %p91 = scmp.eq.s32.totalorder %s11, 31
    %p92 = por %p90, %p91
    %p93 = scmp.ne.s32.totalorder %s85, %s88
    %p94 = scmp.eq.s32.totalorder %s11, 0
    %p95 = por %p93, %p94
    %p96 = scmp.ne.s32.totalorder %s85, %s88
    %p97 = scmp.eq.s32.totalorder %s16, 31
    %p98 = por %p96, %p97
    %p99 = scmp.ne.s32.totalorder %s88, %s89
    %p100 = scmp.eq.s32.totalorder %s16, 0
    %p101 = por %p99, %p100
    %p102 = scmp.ne.s32.totalorder %s88, %s89
    %p103 = scmp.eq.s32.totalorder %s17, 31
    %p104 = por %p102, %p103
    %p106 = scmp.ne.s32.totalorder %s89, %s105
    %p107 = scmp.eq.s32.totalorder %s17, 0
    %p108 = por %p106, %p107
    %s109 = ssub.s32 %s19, %s26
    %p110 = scmp.eq.s32.totalorder %s109, 0
    %s112 = sadd.s32 %s111, 1
    %s113 = scalar_select %p110, %s111, %s112
    %p116 = pneg %p110
    %p117 = scmp.eq.s32.totalorder %s11, 31
    %p118 = por %p116, %p117
    %p119 = scmp.ne.s32.totalorder %s111, %s114
    %p120 = scmp.eq.s32.totalorder %s11, 0
    %p121 = por %p119, %p120
    %p122 = scmp.ne.s32.totalorder %s111, %s114
    %p123 = scmp.eq.s32.totalorder %s16, 31
    %p124 = por %p122, %p123
    %p125 = scmp.ne.s32.totalorder %s114, %s115
    %p126 = scmp.eq.s32.totalorder %s16, 0
    %p127 = por %p125, %p126
    %p128 = scmp.ne.s32.totalorder %s114, %s115
    %p129 = scmp.eq.s32.totalorder %s17, 31
    %p130 = por %p128, %p129
    %p132 = scmp.ne.s32.totalorder %s115, %s131
    %p133 = scmp.eq.s32.totalorder %s17, 0
    %p134 = por %p132, %p133
    %s136 = sadd.s32 %s135, 1
    %p139 = scmp.eq.s32.totalorder %s11, 31
    %p140 = scmp.ne.s32.totalorder %s135, %s137
    %p141 = scmp.eq.s32.totalorder %s11, 0
    %p142 = por %p140, %p141
    %p143 = scmp.ne.s32.totalorder %s135, %s137
    %p144 = scmp.eq.s32.totalorder %s16, 31
    %p145 = por %p143, %p144
    %p146 = scmp.ne.s32.totalorder %s137, %s138
    %p147 = scmp.eq.s32.totalorder %s16, 0
    %p148 = por %p146, %p147
    %p149 = scmp.ne.s32.totalorder %s137, %s138
    %p150 = scmp.eq.s32.totalorder %s17, 31
    %p151 = por %p149, %p150
    %p153 = scmp.ne.s32.totalorder %s138, %s152
    %p154 = scmp.eq.s32.totalorder %s17, 0
    %p155 = por %p153, %p154
    %s156 = ssub.s32 %s18, %s30
    %p157 = scmp.eq.s32.totalorder %s156, 0
    %s159 = sadd.s32 %s158, 1
    %s160 = scalar_select %p157, %s158, %s159
    %p163 = pneg %p157
    %p164 = scmp.eq.s32.totalorder %s11, 31
    %p165 = por %p163, %p164
    %p166 = scmp.ne.s32.totalorder %s158, %s161
    %p167 = scmp.eq.s32.totalorder %s11, 0
    %p168 = por %p166, %p167
    %p169 = scmp.ne.s32.totalorder %s158, %s161
    %p170 = scmp.eq.s32.totalorder %s16, 31
    %p171 = por %p169, %p170
    %p172 = scmp.ne.s32.totalorder %s161, %s162
    %p173 = scmp.eq.s32.totalorder %s16, 0
    %p174 = por %p172, %p173
    %p175 = scmp.ne.s32.totalorder %s161, %s162
    %p176 = scmp.eq.s32.totalorder %s17, 31
    %p177 = por %p175, %p176
    %p179 = scmp.ne.s32.totalorder %s162, %s178
    %p180 = scmp.eq.s32.totalorder %s17, 0
    %p181 = por %p179, %p180
    %p182 = scmp.le.s32.totalorder 1, %s11
    %p183 = scmp.lt.s32.totalorder %s11, 33
    %p184 = pnand %p182, %p183
    %p185 = pneg %p184
    // Predicated region
    $region9: #{wr_xformer_single_forward.15} parent=5 // pred_check
      _
    $region10: #{wr_xformer_single_forward.15} parent=5 // pred_check_branch
      %187 = sbr.rel (%p184) target = $region12
    $region11: #{wr_xformer_single_forward.15} parent=5 // pred_region
      %s188 = ssub.s32 %s11, 1
      // Predicated region
      $region13: #{wr_xformer_single_forward.15} parent=11 // pred_check
        %p189 = pneg %p148
      $region14: #{wr_xformer_single_forward.15} parent=11 // pred_check_branch
        %191 = sbr.rel (%p189) target = $region16
      $region15: #{wr_xformer_single_forward.15} parent=11 // pred_region
        _
      $region16: #{wr_xformer_single_forward.15} parent=11 // pred_fallthru
        _
    $region12: #{wr_xformer_single_forward.15} parent=5 // pred_fallthru
      _
    %p192 = scmp.lt.s32.totalorder %s11, 32
    // Predicated region
    $region17: #{wr_xformer_single_forward.15} parent=5 // pred_check
      %p193 = pneg %p192
    $region18: #{wr_xformer_single_forward.15} parent=5 // pred_check_branch
      %195 = sbr.rel (%p193) target = $region20
    $region19: #{wr_xformer_single_forward.15} parent=5 // pred_region
      // Predicated region
      $region21: #{wr_xformer_single_forward.15} parent=19 // pred_check
        %p196 = pneg %p43
      $region22: #{wr_xformer_single_forward.15} parent=19 // pred_check_branch
        %198 = sbr.rel (%p196) target = $region24
      $region23: #{wr_xformer_single_forward.15} parent=19 // pred_region
        %s199 = smul.u32 2, %s18
        %p200 = scmp.lt.s32.totalorder %s199, 15
        %s201 = scalar_select %p200, %s199, 15
        %s202 = smul.addr %s201, 4
        %s203 = scalar_lea.vmem %s0, %s202
        %s204 = smul.u32 2, %s18
      $region24: #{wr_xformer_single_forward.15} parent=19 // pred_fallthru
        _
      // Predicated region
      $region25: #{wr_xformer_single_forward.15} parent=19 // pred_check
        %p205 = pneg %p69
      $region26: #{wr_xformer_single_forward.15} parent=19 // pred_check_branch
        %207 = sbr.rel (%p205) target = $region28
      $region27: #{wr_xformer_single_forward.15} parent=19 // pred_region
        %p208 = scmp.lt.s32.totalorder %s18, 7
        %s209 = scalar_select %p208, %s18, 7
        %s210 = smul.addr %s209, 4
        %s211 = scalar_lea.vmem %s1, %s210
      $region28: #{wr_xformer_single_forward.15} parent=19 // pred_fallthru
        _
      // Predicated region
      $region29: #{wr_xformer_single_forward.15} parent=19 // pred_check
        %p212 = pneg %p95
      $region30: #{wr_xformer_single_forward.15} parent=19 // pred_check_branch
        %214 = sbr.rel (%p212) target = $region32
      $region31: #{wr_xformer_single_forward.15} parent=19 // pred_region
        %p215 = scmp.lt.s32.totalorder %s19, 3
        %s216 = scalar_select %p215, %s19, 3
        %s217 = smul.addr %s216, 64
        %s218 = smul.addr %s217, 4
        %s219 = scalar_lea.vmem %s2, %s218
      $region32: #{wr_xformer_single_forward.15} parent=19 // pred_fallthru
        _
      // Predicated region
      $region33: #{wr_xformer_single_forward.15} parent=19 // pred_check
        %p220 = pneg %p121
      $region34: #{wr_xformer_single_forward.15} parent=19 // pred_check_branch
        %222 = sbr.rel (%p220) target = $region36
      $region35: #{wr_xformer_single_forward.15} parent=19 // pred_region
        %p223 = scmp.lt.s32.totalorder %s19, 3
        %s224 = scalar_select %p223, %s19, 3
        %s225 = smul.addr %s224, 8
        %s226 = scalar_lea.vmem %s3, %s225
      $region36: #{wr_xformer_single_forward.15} parent=19 // pred_fallthru
        _
    $region20: #{wr_xformer_single_forward.15} parent=5 // pred_fallthru
      _
    %p227 = scmp.le.s32.totalorder 1, %s11
    %p228 = scmp.lt.s32.totalorder %s11, 33
    %p229 = pnand %p227, %p228
    %p230 = pneg %p229
    // Predicated region
    $region37: #{wr_xformer_single_forward.15} parent=5 // pred_check
      _
    $region38: #{wr_xformer_single_forward.15} parent=5 // pred_check_branch
      %232 = sbr.rel (%p229) target = $region40
    $region39: #{wr_xformer_single_forward.15} parent=5 // pred_region
      %s233 = ssub.s32 %s11, 1
      %s234 = smul.u32 2, %s20
      %p235 = scmp.lt.s32.totalorder %s234, 15
      %s236 = scalar_select %p235, %s234, 15
      %s237 = smul.addr %s236, 4
      %s238 = scalar_lea.vmem %s0, %s237
      %p239 = pneg %p49
      %p240 = pneg %p46
      %p241 = scmp.lt.s32.totalorder %s20, 7
      %s242 = scalar_select %p241, %s20, 7
      %s243 = smul.addr %s242, 4
      %s244 = scalar_lea.vmem %s1, %s243
      %p245 = pneg %p75
      %p246 = pneg %p72
      %p247 = scmp.lt.s32.totalorder %s21, 3
      %s248 = scalar_select %p247, %s21, 3
      %s249 = smul.addr %s248, 64
      %s250 = smul.addr %s249, 4
      %s251 = scalar_lea.vmem %s2, %s250
      %p252 = pneg %p101
      %p253 = pneg %p98
      %p254 = scmp.lt.s32.totalorder %s21, 3
      %s255 = scalar_select %p254, %s21, 3
      %s256 = smul.addr %s255, 8
      %s257 = scalar_lea.vmem %s3, %s256
      %p258 = pneg %p127
      %p259 = pneg %p124
      %p260 = pneg %p148
      %p261 = pneg %p145
      %p262 = pneg %p174
      %p263 = pneg %p171
      %s264 = smul.u32 2, %s20
      %p265 = scmp.lt.s32.totalorder %s264, 15
      %s266 = scalar_select %p265, %s264, 15
      %s267 = smul.addr %s266, 4
      %s268 = scalar_lea.vmem %s5, %s267
      %s269 = smul.u32 2, %s20
      %p270 = scmp.lt.s32.totalorder %s269, 15
      %s271 = scalar_select %p270, %s269, 15
      %s272 = smul.addr %s271, 4
      %s273 = scalar_lea.vmem %s0, %s272
      %s274 = smul.u32 2, %s20
      %p275 = scmp.lt.s32.totalorder %s20, 7
      %s276 = scalar_select %p275, %s20, 7
      %s277 = smul.addr %s276, 4
      %s278 = scalar_lea.vmem %s1, %s277
      %p279 = scmp.lt.s32.totalorder %s21, 3
      %s280 = scalar_select %p279, %s21, 3
      %s281 = smul.addr %s280, 64
      %s282 = smul.addr %s281, 4
      %s283 = scalar_lea.vmem %s2, %s282
      %p284 = scmp.lt.s32.totalorder %s21, 3
      %s285 = scalar_select %p284, %s21, 3
      %s286 = smul.addr %s285, 8
      %s287 = scalar_lea.vmem %s3, %s286
      %s288 = smul.u32 2, %s20
      %p289 = scmp.lt.s32.totalorder %s288, 15
      %s290 = scalar_select %p289, %s288, 15
      %s291 = smul.addr %s290, 4
      %s292 = scalar_lea.vmem %s5, %s291
      %s293 = smul.u32 2, %s20
      %p295 = scmp.eq.s32.totalorder %s21, 0
      // Predicated region
      $region41: #{wr_xformer_single_forward.15} parent=39 // pred_check
        %p296 = pneg %p295
      $region42: #{wr_xformer_single_forward.15} parent=39 // pred_check_branch
        %298 = sbr.rel (%p296) target = $region44
      $region43: #{wr_xformer_single_forward.15} parent=39 // pred_region
        %299 = vst [vmem:[#allocation2] sm:$0xff] 0.0
        %300 = vst [vmem:[#allocation2 + $0x8] sm:$0xff] 0.0
      $region44: #{wr_xformer_single_forward.15} parent=39 // pred_fallthru
        _
      %v301 = vld [vmem:[%s273] sm:$0xf]
      %v302 = vld [vmem:[%s273 + $0x4] sm:$0xf]
      %v303 = vld [vmem:[%s278] sm:$0xf]
      %v304 = vld [vmem:[%s283] sm:$0xf]
      %v305 = vld [vmem:[%s283 + $0x4] sm:$0xf]
      %v306 = vld [vmem:[%s283 + $0x8] sm:$0xf]
      %v307 = vld [vmem:[%s283 + $0xc] sm:$0xf]
      %v308 = vld [vmem:[%s283 + $0x10] sm:$0xf]
      %v309 = vld [vmem:[%s283 + $0x14] sm:$0xf]
      %v310 = vld [vmem:[%s283 + $0x18] sm:$0xf]
      %v311 = vld [vmem:[%s283 + $0x1c] sm:$0xf]
      %v312 = vld [vmem:[%s283 + $0x20] sm:$0xf]
      %v313 = vld [vmem:[%s283 + $0x24] sm:$0xf]
      %v314 = vld [vmem:[%s283 + $0x28] sm:$0xf]
      %v315 = vld [vmem:[%s283 + $0x2c] sm:$0xf]
      %v316 = vld [vmem:[%s283 + $0x30] sm:$0xf]
      %v317 = vld [vmem:[%s283 + $0x34] sm:$0xf]
      %v318 = vld [vmem:[%s283 + $0x38] sm:$0xf]
      %v319 = vld [vmem:[%s283 + $0x3c] sm:$0xf]
      %v320 = vld [vmem:[%s283 + $0x40] sm:$0xf]
      %v321 = vld [vmem:[%s283 + $0x44] sm:$0xf]
      %v322 = vld [vmem:[%s283 + $0x48] sm:$0xf]
      %v323 = vld [vmem:[%s283 + $0x4c] sm:$0xf]
      %v324 = vld [vmem:[%s283 + $0x50] sm:$0xf]
      %v325 = vld [vmem:[%s283 + $0x54] sm:$0xf]
      %v326 = vld [vmem:[%s283 + $0x58] sm:$0xf]
      %v327 = vld [vmem:[%s283 + $0x5c] sm:$0xf]
      %v328 = vld [vmem:[%s283 + $0x60] sm:$0xf]
      %v329 = vld [vmem:[%s283 + $0x64] sm:$0xf]
      %v330 = vld [vmem:[%s283 + $0x68] sm:$0xf]
      %v331 = vld [vmem:[%s283 + $0x6c] sm:$0xf]
      %v332 = vld [vmem:[%s283 + $0x70] sm:$0xf]
      %v333 = vld [vmem:[%s283 + $0x74] sm:$0xf]
      %v334 = vld [vmem:[%s283 + $0x78] sm:$0xf]
      %v335 = vld [vmem:[%s283 + $0x7c] sm:$0xf]
      %v336 = vld [vmem:[%s283 + $0x80] sm:$0xf]
      %v337 = vld [vmem:[%s283 + $0x84] sm:$0xf]
      %v338 = vld [vmem:[%s283 + $0x88] sm:$0xf]
      %v339 = vld [vmem:[%s283 + $0x8c] sm:$0xf]
      %v340 = vld [vmem:[%s283 + $0x90] sm:$0xf]
      %v341 = vld [vmem:[%s283 + $0x94] sm:$0xf]
      %v342 = vld [vmem:[%s283 + $0x98] sm:$0xf]
      %v343 = vld [vmem:[%s283 + $0x9c] sm:$0xf]
      %v344 = vld [vmem:[%s283 + $0xa0] sm:$0xf]
      %v345 = vld [vmem:[%s283 + $0xa4] sm:$0xf]
      %v346 = vld [vmem:[%s283 + $0xa8] sm:$0xf]
      %v347 = vld [vmem:[%s283 + $0xac] sm:$0xf]
      %v348 = vld [vmem:[%s283 + $0xb0] sm:$0xf]
      %v349 = vld [vmem:[%s283 + $0xb4] sm:$0xf]
      %v350 = vld [vmem:[%s283 + $0xb8] sm:$0xf]
      %v351 = vld [vmem:[%s283 + $0xbc] sm:$0xf]
      %v352 = vld [vmem:[%s283 + $0xc0] sm:$0xf]
      %v353 = vld [vmem:[%s283 + $0xc4] sm:$0xf]
      %v354 = vld [vmem:[%s283 + $0xc8] sm:$0xf]
      %v355 = vld [vmem:[%s283 + $0xcc] sm:$0xf]
      %v356 = vld [vmem:[%s283 + $0xd0] sm:$0xf]
      %v357 = vld [vmem:[%s283 + $0xd4] sm:$0xf]
      %v358 = vld [vmem:[%s283 + $0xd8] sm:$0xf]
      %v359 = vld [vmem:[%s283 + $0xdc] sm:$0xf]
      %v360 = vld [vmem:[%s283 + $0xe0] sm:$0xf]
      %v361 = vld [vmem:[%s283 + $0xe4] sm:$0xf]
      %v362 = vld [vmem:[%s283 + $0xe8] sm:$0xf]
      %v363 = vld [vmem:[%s283 + $0xec] sm:$0xf]
      %v364 = vld [vmem:[%s283 + $0xf0] sm:$0xf]
      %v365 = vld [vmem:[%s283 + $0xf4] sm:$0xf]
      %v366 = vld [vmem:[%s283 + $0xf8] sm:$0xf]
      %v367 = vld [vmem:[%s283 + $0xfc] sm:$0xf]
      %v368 = vld [vmem:[%s287] sm:$0xff]
      %v369 = vlaneseq
      %v370 = vshrl.u32 %v369, 7
      %v371 = vsub.s32 0, %v370
      %v372 = vrot.slane %v368, %v371
      %v375 = vunpack.c.l.b16 %v301
      %v376 = vunpack.c.l.b16 %v302
      %v377 = vpack.c.b16 %v376, %v375
      %v395 = vunpack.c.l.b16 %v304
      %v396 = vunpack.c.l.b16 %v305
      %v397 = vunpack.c.l.b16 %v306
      %v398 = vunpack.c.l.b16 %v307
      %v399 = vunpack.c.l.b16 %v308
      %v400 = vunpack.c.l.b16 %v309
      %v401 = vunpack.c.l.b16 %v310
      %v402 = vunpack.c.l.b16 %v311
      %v403 = vunpack.c.l.b16 %v312
      %v404 = vunpack.c.l.b16 %v313
      %v405 = vunpack.c.l.b16 %v314
      %v406 = vunpack.c.l.b16 %v315
      %v407 = vunpack.c.l.b16 %v316
      %v408 = vunpack.c.l.b16 %v317
      %v409 = vunpack.c.l.b16 %v318
      %v410 = vunpack.c.l.b16 %v319
      %v411 = vpack.c.b16 %v396, %v395
      %v412 = vpack.c.b16 %v398, %v397
      %v413 = vpack.c.b16 %v400, %v399
      %v414 = vpack.c.b16 %v402, %v401
      %v415 = vpack.c.b16 %v404, %v403
      %v416 = vpack.c.b16 %v406, %v405
      %v417 = vpack.c.b16 %v408, %v407
      %v418 = vpack.c.b16 %v410, %v409
      %427 = vmatprep.subr.bf16.mxu0 0
      %428 = vmatpush1.bf16.msra.mxu0 %v418
      %429 = vmatprep.subr.bf16.mxu0 0
      %430 = vmatpush1.bf16.msra.mxu0 %v417
      %431 = vmatprep.subr.bf16.mxu0 0
      %432 = vmatpush1.bf16.msra.mxu0 %v416
      %433 = vmatprep.subr.bf16.mxu0 0
      %434 = vmatpush1.bf16.msra.mxu0 %v415
      %435 = vmatprep.subr.bf16.mxu0 0
      %436 = vmatpush1.bf16.msra.mxu0 %v414
      %437 = vmatprep.subr.bf16.mxu0 0
      %438 = vmatpush1.bf16.msra.mxu0 %v413
      %439 = vmatprep.subr.bf16.mxu0 0
      %440 = vmatpush1.bf16.msra.mxu0 %v412
      %441 = vmatprep.subr.bf16.mxu0 0
      %442 = vmatpush1.bf16.msra.mxu0 %v411
      %443 = vmatprep.subr.bf16.mxu0 0
      %444 = vmatpush2.bf16.msra.mxu0 0
      %445 = vmatprep.subr.bf16.mxu0 0
      %446 = vmatpush2.bf16.msra.mxu0 0
      %447 = vmatprep.subr.bf16.mxu0 0
      %448 = vmatpush2.bf16.msra.mxu0 0
      %449 = vmatprep.subr.bf16.mxu0 0
      %450 = vmatpush2.bf16.msra.mxu0 0
      %451 = vmatprep.subr.bf16.mxu0 0
      %452 = vmatpush2.bf16.msra.mxu0 0
      %453 = vmatprep.subr.bf16.mxu0 0
      %454 = vmatpush2.bf16.msra.mxu0 0
      %455 = vmatprep.subr.bf16.mxu0 0
      %456 = vmatpush2.bf16.msra.mxu0 0
      %457 = vmatprep.subr.bf16.mxu0 0
      %458 = vmatpush2.bf16.msra.mxu0 0
      %459 = vmatprep.mubr.bf16.mxu0 0
      %460 = vmatmul.mubr.bf16.gmra.mxu0 %v377
      %v461 = vpop.f32.mrf.mxu0
      %v462 = vadd.f32 %v372, %v461
      %v463 = vpop.f32.mrf.mxu0
      %v464 = vpop.f32.mrf.mxu0
      %v465 = vadd.f32 %v372, %v464
      %v466 = vpop.f32.mrf.mxu0
      %467 = vdwg.mxu0
      %v468 = vlaneseq
      %v469 = vshrl.u32 %v468, 7
      %v470 = vsub.s32 1, %v469
      %v471 = vrot.slane %v368, %v470
      %v488 = vunpack.c.l.b16 %v320
      %v489 = vunpack.c.l.b16 %v321
      %v490 = vunpack.c.l.b16 %v322
      %v491 = vunpack.c.l.b16 %v323
      %v492 = vunpack.c.l.b16 %v324
      %v493 = vunpack.c.l.b16 %v325
      %v494 = vunpack.c.l.b16 %v326
      %v495 = vunpack.c.l.b16 %v327
      %v496 = vunpack.c.l.b16 %v328
      %v497 = vunpack.c.l.b16 %v329
      %v498 = vunpack.c.l.b16 %v330
      %v499 = vunpack.c.l.b16 %v331
      %v500 = vunpack.c.l.b16 %v332
      %v501 = vunpack.c.l.b16 %v333
      %v502 = vunpack.c.l.b16 %v334
      %v503 = vunpack.c.l.b16 %v335
      %v504 = vpack.c.b16 %v489, %v488
      %v505 = vpack.c.b16 %v491, %v490
      %v506 = vpack.c.b16 %v493, %v492
      %v507 = vpack.c.b16 %v495, %v494
      %v508 = vpack.c.b16 %v497, %v496
      %v509 = vpack.c.b16 %v499, %v498
      %v510 = vpack.c.b16 %v501, %v500
      %v511 = vpack.c.b16 %v503, %v502
      %520 = vmatprep.subr.bf16.mxu0 0
      %521 = vmatpush1.bf16.msra.mxu0 %v511
      %522 = vmatprep.subr.bf16.mxu0 0
      %523 = vmatpush1.bf16.msra.mxu0 %v510
      %524 = vmatprep.subr.bf16.mxu0 0
      %525 = vmatpush1.bf16.msra.mxu0 %v509
      %526 = vmatprep.subr.bf16.mxu0 0
      %527 = vmatpush1.bf16.msra.mxu0 %v508
      %528 = vmatprep.subr.bf16.mxu0 0
      %529 = vmatpush1.bf16.msra.mxu0 %v507
      %530 = vmatprep.subr.bf16.mxu0 0
      %531 = vmatpush1.bf16.msra.mxu0 %v506
      %532 = vmatprep.subr.bf16.mxu0 0
      %533 = vmatpush1.bf16.msra.mxu0 %v505
      %534 = vmatprep.subr.bf16.mxu0 0
      %535 = vmatpush1.bf16.msra.mxu0 %v504
      %536 = vmatprep.subr.bf16.mxu0 0
      %537 = vmatpush2.bf16.msra.mxu0 0
      %538 = vmatprep.subr.bf16.mxu0 0
      %539 = vmatpush2.bf16.msra.mxu0 0
      %540 = vmatprep.subr.bf16.mxu0 0
      %541 = vmatpush2.bf16.msra.mxu0 0
      %542 = vmatprep.subr.bf16.mxu0 0
      %543 = vmatpush2.bf16.msra.mxu0 0
      %544 = vmatprep.subr.bf16.mxu0 0
      %545 = vmatpush2.bf16.msra.mxu0 0
      %546 = vmatprep.subr.bf16.mxu0 0
      %547 = vmatpush2.bf16.msra.mxu0 0
      %548 = vmatprep.subr.bf16.mxu0 0
      %549 = vmatpush2.bf16.msra.mxu0 0
      %550 = vmatprep.subr.bf16.mxu0 0
      %551 = vmatpush2.bf16.msra.mxu0 0
      %552 = vmatprep.mubr.bf16.mxu0 0
      %553 = vmatmul.mubr.bf16.gmra.mxu0 %v303
      %v554 = vpop.f32.mrf.mxu0
      %v555 = vadd.f32 %v471, %v554
      %v556 = vpop.f32.mrf.mxu0
      %v557 = vpop.f32.mrf.mxu0
      %v558 = vpop.f32.mrf.mxu0
      %559 = vdwg.mxu0
      %v560 = vlaneseq
      %v561 = vshrl.u32 %v560, 7
      %v562 = vsub.s32 2, %v561
      %v563 = vrot.slane %v368, %v562
      %v580 = vunpack.c.l.b16 %v336
      %v581 = vunpack.c.l.b16 %v337
      %v582 = vunpack.c.l.b16 %v338
      %v583 = vunpack.c.l.b16 %v339
      %v584 = vunpack.c.l.b16 %v340
      %v585 = vunpack.c.l.b16 %v341
      %v586 = vunpack.c.l.b16 %v342
      %v587 = vunpack.c.l.b16 %v343
      %v588 = vunpack.c.l.b16 %v344
      %v589 = vunpack.c.l.b16 %v345
      %v590 = vunpack.c.l.b16 %v346
      %v591 = vunpack.c.l.b16 %v347
      %v592 = vunpack.c.l.b16 %v348
      %v593 = vunpack.c.l.b16 %v349
      %v594 = vunpack.c.l.b16 %v350
      %v595 = vunpack.c.l.b16 %v351
      %v596 = vpack.c.b16 %v581, %v580
      %v597 = vpack.c.b16 %v583, %v582
      %v598 = vpack.c.b16 %v585, %v584
      %v599 = vpack.c.b16 %v587, %v586
      %v600 = vpack.c.b16 %v589, %v588
      %v601 = vpack.c.b16 %v591, %v590
      %v602 = vpack.c.b16 %v593, %v592
      %v603 = vpack.c.b16 %v595, %v594
      %612 = vmatprep.subr.bf16.mxu0 0
      %613 = vmatpush1.bf16.msra.mxu0 %v603
      %614 = vmatprep.subr.bf16.mxu0 0
      %615 = vmatpush1.bf16.msra.mxu0 %v602
      %616 = vmatprep.subr.bf16.mxu0 0
      %617 = vmatpush1.bf16.msra.mxu0 %v601
      %618 = vmatprep.subr.bf16.mxu0 0
      %619 = vmatpush1.bf16.msra.mxu0 %v600
      %620 = vmatprep.subr.bf16.mxu0 0
      %621 = vmatpush1.bf16.msra.mxu0 %v599
      %622 = vmatprep.subr.bf16.mxu0 0
      %623 = vmatpush1.bf16.msra.mxu0 %v598
      %624 = vmatprep.subr.bf16.mxu0 0
      %625 = vmatpush1.bf16.msra.mxu0 %v597
      %626 = vmatprep.subr.bf16.mxu0 0
      %627 = vmatpush1.bf16.msra.mxu0 %v596
      %628 = vmatprep.subr.bf16.mxu0 0
      %629 = vmatpush2.bf16.msra.mxu0 0
      %630 = vmatprep.subr.bf16.mxu0 0
      %631 = vmatpush2.bf16.msra.mxu0 0
      %632 = vmatprep.subr.bf16.mxu0 0
      %633 = vmatpush2.bf16.msra.mxu0 0
      %634 = vmatprep.subr.bf16.mxu0 0
      %635 = vmatpush2.bf16.msra.mxu0 0
      %636 = vmatprep.subr.bf16.mxu0 0
      %637 = vmatpush2.bf16.msra.mxu0 0
      %638 = vmatprep.subr.bf16.mxu0 0
      %639 = vmatpush2.bf16.msra.mxu0 0
      %640 = vmatprep.subr.bf16.mxu0 0
      %641 = vmatpush2.bf16.msra.mxu0 0
      %642 = vmatprep.subr.bf16.mxu0 0
      %643 = vmatpush2.bf16.msra.mxu0 0
      %644 = vmatprep.mubr.bf16.mxu0 0
      %645 = vmatmul.mubr.bf16.gmra.mxu0 %v303
      %v646 = vpop.f32.mrf.mxu0
      %v647 = vadd.f32 %v563, %v646
      %v648 = vpop.f32.mrf.mxu0
      %v649 = vpop.f32.mrf.mxu0
      %v650 = vpop.f32.mrf.mxu0
      %651 = vdwg.mxu0
      %v652 = vpack.c.bf16 %v465, %v462
      %v653 = vpack.c.bf16 %v555, %v555
      %vm654 = vcmask 261120
      %v656 = vsel %vm654, %v652, 0
      %v659 = vsel %vm654, %v653, 0
      %661 = vmatprep.subr.bf16.mxu0 0
      %662 = vmatpush1.bf16.xpose.msra.mxu0 0
      %663 = vmatprep.subr.bf16.mxu0 0
      %664 = vmatpush1.bf16.xpose.msra.mxu0 0
      %665 = vmatprep.subr.bf16.mxu0 0
      %666 = vmatpush1.bf16.xpose.msra.mxu0 0
      %667 = vmatprep.subr.bf16.mxu0 0
      %668 = vmatpush1.bf16.xpose.msra.mxu0 0
      %669 = vmatprep.subr.bf16.mxu0 0
      %670 = vmatpush1.bf16.xpose.msra.mxu0 0
      %671 = vmatprep.subr.bf16.mxu0 0
      %672 = vmatpush1.bf16.xpose.msra.mxu0 0
      %673 = vmatprep.subr.bf16.mxu0 0
      %674 = vmatpush1.bf16.xpose.msra.mxu0 0
      %675 = vmatprep.subr.bf16.mxu0 0
      %676 = vmatpush1.bf16.xpose.msra.mxu0 %v659
      %677 = vmatprep.subr.bf16.mxu0 0
      %678 = vmatpush2.bf16.xpose.msra.mxu0 0
      %679 = vmatprep.subr.bf16.mxu0 0
      %680 = vmatpush2.bf16.xpose.msra.mxu0 0
      %681 = vmatprep.subr.bf16.mxu0 0
      %682 = vmatpush2.bf16.xpose.msra.mxu0 0
      %683 = vmatprep.subr.bf16.mxu0 0
      %684 = vmatpush2.bf16.xpose.msra.mxu0 0
      %685 = vmatprep.subr.bf16.mxu0 0
      %686 = vmatpush2.bf16.xpose.msra.mxu0 0
      %687 = vmatprep.subr.bf16.mxu0 0
      %688 = vmatpush2.bf16.xpose.msra.mxu0 0
      %689 = vmatprep.subr.bf16.mxu0 0
      %690 = vmatpush2.bf16.xpose.msra.mxu0 0
      %691 = vmatprep.subr.bf16.mxu0 0
      %692 = vmatpush2.bf16.xpose.msra.mxu0 0
      %693 = vmatprep.mubr.bf16.mxu0 0
      %694 = vmatmul.mubr.bf16.gmra.mxu0 %v656
      %v695 = vpop.f32.mrf.mxu0
      %v696 = vadd.f32 0.0, %v695
      %v697 = vpop.f32.mrf.mxu0
      %v698 = vpop.f32.mrf.mxu0
      %v699 = vadd.f32 0.0, %v698
      %v700 = vpop.f32.mrf.mxu0
      %701 = vdwg.mxu0
      %vm702 = vcmask 64512
      %v703 = vsel %vm702, %v696, -inf
      %704 = vmax.xlane.f32.xlu0 %v703
      %v705 = vpop.xlane.xlu0 %704
      %v706 = vsel %vm702, %v699, -inf
      %707 = vmax.xlane.f32.xlu0 %v706
      %v708 = vpop.xlane.xlu0 %707
      %v709 = vsub.f32 %v696, %v705
      %v710 = vsub.f32 %v699, %v708
      %v711 = vmul.f32 %v709, 1.442695
      %v712 = vpow.pop %v711
      %v713 = vmul.f32 %v710, 1.442695
      %v714 = vpow.pop %v713
      %v715 = vsel %vm702, %v712, 0.0
      %716 = vadd.xlane.f32.xlu0 %v715
      %v717 = vpop.xlane.xlu0 %716
      %v718 = vsel %vm702, %v714, 0.0
      %719 = vadd.xlane.f32.xlu0 %v718
      %v720 = vpop.xlane.xlu0 %719
      %v721 = vrcp.pop %v717
      %v722 = vrcp.pop %v720
      %v723 = vmul.f32 %v712, %v721
      %v724 = vmul.f32 %v714, %v722
      %v725 = vpack.c.bf16 %v724, %v723
      %v726 = vpack.c.bf16 %v647, %v647
      %v728 = vsel %vm702, %v725, 0
      %vm730 = vcmask 1043456
      %v732 = vsel %vm730, %v726, 0
      %734 = vmatprep.subr.bf16.mxu0 0
      %735 = vmatpush1.bf16.msra.mxu0 0
      %736 = vmatprep.subr.bf16.mxu0 0
      %737 = vmatpush1.bf16.msra.mxu0 0
      %738 = vmatprep.subr.bf16.mxu0 0
      %739 = vmatpush1.bf16.msra.mxu0 0
      %740 = vmatprep.subr.bf16.mxu0 0
      %741 = vmatpush1.bf16.msra.mxu0 0
      %742 = vmatprep.subr.bf16.mxu0 0
      %743 = vmatpush1.bf16.msra.mxu0 0
      %744 = vmatprep.subr.bf16.mxu0 0
      %745 = vmatpush1.bf16.msra.mxu0 0
      %746 = vmatprep.subr.bf16.mxu0 0
      %747 = vmatpush1.bf16.msra.mxu0 0
      %748 = vmatprep.subr.bf16.mxu0 0
      %749 = vmatpush1.bf16.msra.mxu0 %v732
      %750 = vmatprep.subr.bf16.mxu0 0
      %751 = vmatpush2.bf16.msra.mxu0 0
      %752 = vmatprep.subr.bf16.mxu0 0
      %753 = vmatpush2.bf16.msra.mxu0 0
      %754 = vmatprep.subr.bf16.mxu0 0
      %755 = vmatpush2.bf16.msra.mxu0 0
      %756 = vmatprep.subr.bf16.mxu0 0
      %757 = vmatpush2.bf16.msra.mxu0 0
      %758 = vmatprep.subr.bf16.mxu0 0
      %759 = vmatpush2.bf16.msra.mxu0 0
      %760 = vmatprep.subr.bf16.mxu0 0
      %761 = vmatpush2.bf16.msra.mxu0 0
      %762 = vmatprep.subr.bf16.mxu0 0
      %763 = vmatpush2.bf16.msra.mxu0 0
      %764 = vmatprep.subr.bf16.mxu0 0
      %765 = vmatpush2.bf16.msra.mxu0 0
      %766 = vmatprep.mubr.bf16.mxu0 0
      %767 = vmatmul.mubr.bf16.gmra.mxu0 %v728
      %v768 = vpop.f32.mrf.mxu0
      %v769 = vadd.f32 0.0, %v768
      %v770 = vpop.f32.mrf.mxu0
      %v771 = vpop.f32.mrf.mxu0
      %v772 = vadd.f32 0.0, %v771
      %v773 = vpop.f32.mrf.mxu0
      %774 = vdwg.mxu0
      %v775 = vld [vmem:[#allocation2] sm:$0xff]
      %v776 = vld [vmem:[#allocation2 + $0x8] sm:$0xff]
      %v777 = vpack.c.bf16 %v772, %v769
      %v794 = vunpack.c.l.b16 %v352
      %v795 = vunpack.c.l.b16 %v353
      %v796 = vunpack.c.l.b16 %v354
      %v797 = vunpack.c.l.b16 %v355
      %v798 = vunpack.c.l.b16 %v356
      %v799 = vunpack.c.l.b16 %v357
      %v800 = vunpack.c.l.b16 %v358
      %v801 = vunpack.c.l.b16 %v359
      %v802 = vunpack.c.l.b16 %v360
      %v803 = vunpack.c.l.b16 %v361
      %v804 = vunpack.c.l.b16 %v362
      %v805 = vunpack.c.l.b16 %v363
      %v806 = vunpack.c.l.b16 %v364
      %v807 = vunpack.c.l.b16 %v365
      %v808 = vunpack.c.l.b16 %v366
      %v809 = vunpack.c.l.b16 %v367
      %v810 = vpack.c.b16 %v795, %v794
      %v811 = vpack.c.b16 %v797, %v796
      %v812 = vpack.c.b16 %v799, %v798
      %v813 = vpack.c.b16 %v801, %v800
      %v814 = vpack.c.b16 %v803, %v802
      %v815 = vpack.c.b16 %v805, %v804
      %v816 = vpack.c.b16 %v807, %v806
      %v817 = vpack.c.b16 %v809, %v808
      %v819 = vsel %vm654, %v777, 0
      %v822 = vsel %vm654, %v810, 0
      %v825 = vsel %vm654, %v811, 0
      %v828 = vsel %vm654, %v812, 0
      %v831 = vsel %vm654, %v813, 0
      %v834 = vsel %vm654, %v814, 0
      %v837 = vsel %vm654, %v815, 0
      %v840 = vsel %vm654, %v816, 0
      %v843 = vsel %vm654, %v817, 0
      %845 = vmatprep.subr.bf16.mxu0 0
      %846 = vmatpush1.bf16.xpose.msra.mxu0 %v843
      %847 = vmatprep.subr.bf16.mxu0 0
      %848 = vmatpush1.bf16.xpose.msra.mxu0 %v840
      %849 = vmatprep.subr.bf16.mxu0 0
      %850 = vmatpush1.bf16.xpose.msra.mxu0 %v837
      %851 = vmatprep.subr.bf16.mxu0 0
      %852 = vmatpush1.bf16.xpose.msra.mxu0 %v834
      %853 = vmatprep.subr.bf16.mxu0 0
      %854 = vmatpush1.bf16.xpose.msra.mxu0 %v831
      %855 = vmatprep.subr.bf16.mxu0 0
      %856 = vmatpush1.bf16.xpose.msra.mxu0 %v828
      %857 = vmatprep.subr.bf16.mxu0 0
      %858 = vmatpush1.bf16.xpose.msra.mxu0 %v825
      %859 = vmatprep.subr.bf16.mxu0 0
      %860 = vmatpush1.bf16.xpose.msra.mxu0 %v822
      %861 = vmatprep.subr.bf16.mxu0 0
      %862 = vmatpush2.bf16.xpose.msra.mxu0 0
      %863 = vmatprep.subr.bf16.mxu0 0
      %864 = vmatpush2.bf16.xpose.msra.mxu0 0
      %865 = vmatprep.subr.bf16.mxu0 0
      %866 = vmatpush2.bf16.xpose.msra.mxu0 0
      %867 = vmatprep.subr.bf16.mxu0 0
      %868 = vmatpush2.bf16.xpose.msra.mxu0 0
      %869 = vmatprep.subr.bf16.mxu0 0
      %870 = vmatpush2.bf16.xpose.msra.mxu0 0
      %871 = vmatprep.subr.bf16.mxu0 0
      %872 = vmatpush2.bf16.xpose.msra.mxu0 0
      %873 = vmatprep.subr.bf16.mxu0 0
      %874 = vmatpush2.bf16.xpose.msra.mxu0 0
      %875 = vmatprep.subr.bf16.mxu0 0
      %876 = vmatpush2.bf16.xpose.msra.mxu0 0
      %877 = vmatprep.mubr.bf16.mxu0 0
      %878 = vmatmul.mubr.bf16.gmra.mxu0 %v819
      %v879 = vpop.f32.mrf.mxu0
      %v880 = vadd.f32 0.0, %v879
      %v881 = vpop.f32.mrf.mxu0
      %v882 = vpop.f32.mrf.mxu0
      %v883 = vadd.f32 0.0, %v882
      %v884 = vpop.f32.mrf.mxu0
      %885 = vdwg.mxu0
      %v886 = vadd.f32 %v775, %v880
      %v887 = vadd.f32 %v776, %v883
      %888 = vst [vmem:[#allocation2] sm:$0xff] %v886
      %889 = vst [vmem:[#allocation2 + $0x8] sm:$0xff] %v887
      %p890 = scmp.eq.s32.totalorder %s21, 3
      // Predicated region
      $region45: #{wr_xformer_single_forward.15} parent=39 // pred_check
        %p891 = pneg %p890
      $region46: #{wr_xformer_single_forward.15} parent=39 // pred_check_branch
        %893 = sbr.rel (%p891) target = $region48
      $region47: #{wr_xformer_single_forward.15} parent=39 // pred_region
        %v894 = vld [vmem:[%s4] sm:$0xff]
        %v895 = vunpack.c.l.bf16 %v301
        %v896 = vunpack.c.l.bf16 %v302
        %v897 = vld [vmem:[#allocation2] sm:$0xff]
        %v898 = vld [vmem:[#allocation2 + $0x8] sm:$0xff]
        %v899 = vadd.f32 %v895, %v897
        %v900 = vadd.f32 %v896, %v898
        %v901 = vlaneseq
        %v902 = vshrl.u32 %v901, 7
        %v903 = vsub.s32 0, %v902
        %v904 = vrot.slane %v894, %v903
        %v905 = vadd.f32 %v899, %v904
        %v906 = vadd.f32 %v900, %v904
        %907 = vadd.xlane.f32.xlu0 %v905
        %v908 = vpop.xlane.xlu0 %907
        %909 = vadd.xlane.f32.xlu0 %v906
        %v910 = vpop.xlane.xlu0 %909
        %v911 = vrcp.pop 128.0
        %v912 = vmul.f32 %v908, %v911
        %v913 = vmul.f32 %v910, %v911
        %v914 = vsub.f32 %v905, %v912
        %v915 = vsub.f32 %v906, %v913
        %v916 = vmul.f32 %v914, %v914
        %v917 = vmul.f32 %v915, %v915
        %918 = vadd.xlane.f32.xlu0 %v916
        %v919 = vpop.xlane.xlu0 %918
        %920 = vadd.xlane.f32.xlu0 %v917
        %v921 = vpop.xlane.xlu0 %920
        %v922 = vmul.f32 %v919, %v911
        %v923 = vmul.f32 %v921, %v911
        %v924 = vadd.f32 %v922, 1e-05
        %v925 = vadd.f32 %v923, 1e-05
        %v926 = vrsqrt.pop %v924
        %v927 = vrsqrt.pop %v925
        %v928 = vmul.f32 %v914, %v926
        %v929 = vmul.f32 %v915, %v927
        %v930 = vlaneseq
        %v931 = vshrl.u32 %v930, 7
        %v932 = vsub.s32 1, %v931
        %v933 = vrot.slane %v894, %v932
        %v934 = vmul.f32 %v928, %v933
        %v935 = vmul.f32 %v929, %v933
        %v936 = vlaneseq
        %v937 = vshrl.u32 %v936, 7
        %v938 = vsub.s32 2, %v937
        %v939 = vrot.slane %v894, %v938
        %v940 = vadd.f32 %v934, %v939
        %v941 = vadd.f32 %v935, %v939
        %v942 = vpack.c.bf16 %v941, %v940
        %v944 = vunpack.c.l.b16 %v942
        %v945 = vunpack.c.h.b16 %v942
        %v946 = vpack.c.b16 %v944, %v944
        %v947 = vpack.c.b16 %v945, %v945
        %950 = vst [vmem:[%s292] sm:$0xf] %v946
        %951 = vst [vmem:[%s292 + $0x4] sm:$0xf] %v947
      $region48: #{wr_xformer_single_forward.15} parent=39 // pred_fallthru
        _
      %s952 = smul.u32 2, %s20
      %p953 = scmp.lt.s32.totalorder %s952, 15
      %s954 = scalar_select %p953, %s952, 15
      %s955 = smul.addr %s954, 4
      %s956 = scalar_lea.vmem %s5, %s955
      // Predicated region
      $region49: #{wr_xformer_single_forward.15} parent=39 // pred_check
        %p957 = pneg %p171
      $region50: #{wr_xformer_single_forward.15} parent=39 // pred_check_branch
        %959 = sbr.rel (%p957) target = $region52
      $region51: #{wr_xformer_single_forward.15} parent=39 // pred_region
        %s960 = smul.u32 2, %s20
      $region52: #{wr_xformer_single_forward.15} parent=39 // pred_fallthru
        _
    $region40: #{wr_xformer_single_forward.15} parent=5 // pred_fallthru
      _
    %p961 = scmp.le.s32.totalorder 2, %s11
    // Predicated region
    $region53: #{wr_xformer_single_forward.15} parent=5 // pred_check
      %p962 = pneg %p961
    $region54: #{wr_xformer_single_forward.15} parent=5 // pred_check_branch
      %964 = sbr.rel (%p962) target = $region56
    $region55: #{wr_xformer_single_forward.15} parent=5 // pred_region
      %s965 = ssub.s32 %s11, 2
      // Predicated region
      $region57: #{wr_xformer_single_forward.15} parent=55 // pred_check
        %p966 = pneg %p177
      $region58: #{wr_xformer_single_forward.15} parent=55 // pred_check_branch
        %968 = sbr.rel (%p966) target = $region60
      $region59: #{wr_xformer_single_forward.15} parent=55 // pred_region
        %s969 = smul.u32 2, %s22
        %p970 = scmp.lt.s32.totalorder %s969, 15
        %s971 = scalar_select %p970, %s969, 15
        %s972 = smul.addr %s971, 4
        %s973 = scalar_lea.vmem %s5, %s972
      $region60: #{wr_xformer_single_forward.15} parent=55 // pred_fallthru
        _
    $region56: #{wr_xformer_single_forward.15} parent=5 // pred_fallthru
      _
  $region6: #{wr_xformer_single_forward.15} parent=0 // loop_footer
    %s15 = sadd.s32 1, %s11
  $region7: #{wr_xformer_single_forward.15} parent=0 // loop_footer_branch
    %10 = sbr.rel target = $region3
  $region8: #{wr_xformer_single_forward.15} parent=0 // loop_exit
    _

// kernel: wr_xformer_single_forward.17
$region0: #{wr_xformer_single_forward.17}
  #allocation0 [shape = 'u32[]', space=smem, size = 0x4, offset = 0x4, fixed_abs, tag = 'smem constant byte address 0x4 - core index']
  #allocation1 [shape = 'u32[144,128]{1,0:T(1,128)}', space=vmem, size = 0x12000, scoped, tag = 'internal scratch']
  %s0 = inlined_call_operand.vmem [shape: bf16[128,128], index: 0, kind: input, shape index: {}]
  %s1 = inlined_call_operand.vmem [shape: f32[8,128], index: 1, kind: input, shape index: {}]
  %s2 = inlined_call_operand.vmem [shape: bf16[128,128], index: 2, kind: input, shape index: {}]
  %s3 = inlined_call_operand.vmem [shape: f32[1,128], index: 3, kind: input, shape index: {}]
  %s4 = inlined_call_operand.vmem [shape: f32[128,128], index: 4, kind: output, shape index: {}]
  %s5 = sld [smem:[#allocation0]]
  $region26: #{wr_xformer_single_forward.17} parent=0
    _
  %s7 = ssub.s32 1, %s5
  %s8 = scalar_select 0, %s7, %s5
  // Predicated region
  $region2: #{wr_xformer_single_forward.17} parent=0 // pred_check
    _
  $region3: #{wr_xformer_single_forward.17} parent=0 // pred_check_branch
    %10 = sbr.rel (0) target = $region5
  $region4: #{wr_xformer_single_forward.17} parent=0 // pred_region
    _
  $region5: #{wr_xformer_single_forward.17} parent=0 // pred_fallthru
    _
  // Predicated region
  $region6: #{wr_xformer_single_forward.17} parent=0 // pred_check
    _
  $region7: #{wr_xformer_single_forward.17} parent=0 // pred_check_branch
    %12 = sbr.rel (0) target = $region9
  $region8: #{wr_xformer_single_forward.17} parent=0 // pred_region
    _
  $region9: #{wr_xformer_single_forward.17} parent=0 // pred_fallthru
    _
  // Predicated region
  $region10: #{wr_xformer_single_forward.17} parent=0 // pred_check
    _
  $region11: #{wr_xformer_single_forward.17} parent=0 // pred_check_branch
    %14 = sbr.rel (0) target = $region13
  $region12: #{wr_xformer_single_forward.17} parent=0 // pred_region
    _
  $region13: #{wr_xformer_single_forward.17} parent=0 // pred_fallthru
    _
  // Predicated region
  $region14: #{wr_xformer_single_forward.17} parent=0 // pred_check
    _
  $region15: #{wr_xformer_single_forward.17} parent=0 // pred_check_branch
    %16 = sbr.rel (0) target = $region17
  $region16: #{wr_xformer_single_forward.17} parent=0 // pred_region
    _
  $region17: #{wr_xformer_single_forward.17} parent=0 // pred_fallthru
    _
  %v18 = vld [vmem:[%s1] sm:$0xff]
  %v19 = vld [vmem:[%s0] sm:$0xf]
  %v20 = vld [vmem:[%s0 + $0x4] sm:$0xf]
  %v21 = vld [vmem:[%s0 + $0x8] sm:$0xf]
  %v22 = vld [vmem:[%s0 + $0xc] sm:$0xf]
  %v23 = vld [vmem:[%s0 + $0x10] sm:$0xf]
  %v24 = vld [vmem:[%s0 + $0x14] sm:$0xf]
  %v25 = vld [vmem:[%s0 + $0x18] sm:$0xf]
  %v26 = vld [vmem:[%s0 + $0x1c] sm:$0xf]
  %v27 = vld [vmem:[%s0 + $0x20] sm:$0xf]
  %v28 = vld [vmem:[%s0 + $0x24] sm:$0xf]
  %v29 = vld [vmem:[%s0 + $0x28] sm:$0xf]
  %v30 = vld [vmem:[%s0 + $0x2c] sm:$0xf]
  %v31 = vld [vmem:[%s0 + $0x30] sm:$0xf]
  %v32 = vld [vmem:[%s0 + $0x34] sm:$0xf]
  %v33 = vld [vmem:[%s0 + $0x38] sm:$0xf]
  %v34 = vld [vmem:[%s0 + $0x3c] sm:$0xf]
  %v35 = vunpack.c.l.bf16 %v19
  %v36 = vunpack.c.l.bf16 %v20
  %v37 = vunpack.c.l.bf16 %v21
  %v38 = vunpack.c.l.bf16 %v22
  %v39 = vunpack.c.l.bf16 %v23
  %v40 = vunpack.c.l.bf16 %v24
  %v41 = vunpack.c.l.bf16 %v25
  %v42 = vunpack.c.l.bf16 %v26
  %v43 = vunpack.c.l.bf16 %v27
  %v44 = vunpack.c.l.bf16 %v28
  %v45 = vunpack.c.l.bf16 %v29
  %v46 = vunpack.c.l.bf16 %v30
  %v47 = vunpack.c.l.bf16 %v31
  %v48 = vunpack.c.l.bf16 %v32
  %v49 = vunpack.c.l.bf16 %v33
  %v50 = vunpack.c.l.bf16 %v34
  %51 = vadd.xlane.f32.xlu0 %v35
  %v52 = vpop.xlane.xlu0 %51
  %53 = vadd.xlane.f32.xlu0 %v36
  %v54 = vpop.xlane.xlu0 %53
  %55 = vadd.xlane.f32.xlu0 %v37
  %v56 = vpop.xlane.xlu0 %55
  %57 = vadd.xlane.f32.xlu0 %v38
  %v58 = vpop.xlane.xlu0 %57
  %59 = vadd.xlane.f32.xlu0 %v39
  %v60 = vpop.xlane.xlu0 %59
  %61 = vadd.xlane.f32.xlu0 %v40
  %v62 = vpop.xlane.xlu0 %61
  %63 = vadd.xlane.f32.xlu0 %v41
  %v64 = vpop.xlane.xlu0 %63
  %65 = vadd.xlane.f32.xlu0 %v42
  %v66 = vpop.xlane.xlu0 %65
  %67 = vadd.xlane.f32.xlu0 %v43
  %v68 = vpop.xlane.xlu0 %67
  %69 = vadd.xlane.f32.xlu0 %v44
  %v70 = vpop.xlane.xlu0 %69
  %71 = vadd.xlane.f32.xlu0 %v45
  %v72 = vpop.xlane.xlu0 %71
  %73 = vadd.xlane.f32.xlu0 %v46
  %v74 = vpop.xlane.xlu0 %73
  %75 = vadd.xlane.f32.xlu0 %v47
  %v76 = vpop.xlane.xlu0 %75
  %77 = vadd.xlane.f32.xlu0 %v48
  %v78 = vpop.xlane.xlu0 %77
  %79 = vadd.xlane.f32.xlu0 %v49
  %v80 = vpop.xlane.xlu0 %79
  %81 = vadd.xlane.f32.xlu0 %v50
  %v82 = vpop.xlane.xlu0 %81
  %v83 = vrcp.pop 128.0
  %v84 = vmul.f32 %v52, %v83
  %v85 = vmul.f32 %v54, %v83
  %v86 = vmul.f32 %v56, %v83
  %v87 = vmul.f32 %v58, %v83
  %v88 = vmul.f32 %v60, %v83
  %v89 = vmul.f32 %v62, %v83
  %v90 = vmul.f32 %v64, %v83
  %v91 = vmul.f32 %v66, %v83
  %v92 = vmul.f32 %v68, %v83
  %v93 = vmul.f32 %v70, %v83
  %v94 = vmul.f32 %v72, %v83
  %v95 = vmul.f32 %v74, %v83
  %v96 = vmul.f32 %v76, %v83
  %v97 = vmul.f32 %v78, %v83
  %v98 = vmul.f32 %v80, %v83
  %v99 = vmul.f32 %v82, %v83
  %v100 = vsub.f32 %v35, %v84
  %v101 = vsub.f32 %v36, %v85
  %v102 = vsub.f32 %v37, %v86
  %v103 = vsub.f32 %v38, %v87
  %v104 = vsub.f32 %v39, %v88
  %v105 = vsub.f32 %v40, %v89
  %v106 = vsub.f32 %v41, %v90
  %v107 = vsub.f32 %v42, %v91
  %v108 = vsub.f32 %v43, %v92
  %v109 = vsub.f32 %v44, %v93
  %v110 = vsub.f32 %v45, %v94
  %v111 = vsub.f32 %v46, %v95
  %v112 = vsub.f32 %v47, %v96
  %v113 = vsub.f32 %v48, %v97
  %v114 = vsub.f32 %v49, %v98
  %v115 = vsub.f32 %v50, %v99
  %v116 = vmul.f32 %v100, %v100
  %v117 = vmul.f32 %v101, %v101
  %v118 = vmul.f32 %v102, %v102
  %v119 = vmul.f32 %v103, %v103
  %v120 = vmul.f32 %v104, %v104
  %v121 = vmul.f32 %v105, %v105
  %v122 = vmul.f32 %v106, %v106
  %v123 = vmul.f32 %v107, %v107
  %v124 = vmul.f32 %v108, %v108
  %v125 = vmul.f32 %v109, %v109
  %v126 = vmul.f32 %v110, %v110
  %v127 = vmul.f32 %v111, %v111
  %v128 = vmul.f32 %v112, %v112
  %v129 = vmul.f32 %v113, %v113
  %v130 = vmul.f32 %v114, %v114
  %v131 = vmul.f32 %v115, %v115
  %132 = vadd.xlane.f32.xlu0 %v116
  %v133 = vpop.xlane.xlu0 %132
  %134 = vadd.xlane.f32.xlu0 %v117
  %v135 = vpop.xlane.xlu0 %134
  %136 = vadd.xlane.f32.xlu0 %v118
  %v137 = vpop.xlane.xlu0 %136
  %138 = vadd.xlane.f32.xlu0 %v119
  %v139 = vpop.xlane.xlu0 %138
  %140 = vadd.xlane.f32.xlu0 %v120
  %v141 = vpop.xlane.xlu0 %140
  %142 = vadd.xlane.f32.xlu0 %v121
  %v143 = vpop.xlane.xlu0 %142
  %144 = vadd.xlane.f32.xlu0 %v122
  %v145 = vpop.xlane.xlu0 %144
  %146 = vadd.xlane.f32.xlu0 %v123
  %v147 = vpop.xlane.xlu0 %146
  %148 = vadd.xlane.f32.xlu0 %v124
  %v149 = vpop.xlane.xlu0 %148
  %150 = vadd.xlane.f32.xlu0 %v125
  %v151 = vpop.xlane.xlu0 %150
  %152 = vadd.xlane.f32.xlu0 %v126
  %v153 = vpop.xlane.xlu0 %152
  %154 = vadd.xlane.f32.xlu0 %v127
  %v155 = vpop.xlane.xlu0 %154
  %156 = vadd.xlane.f32.xlu0 %v128
  %v157 = vpop.xlane.xlu0 %156
  %158 = vadd.xlane.f32.xlu0 %v129
  %v159 = vpop.xlane.xlu0 %158
  %160 = vadd.xlane.f32.xlu0 %v130
  %v161 = vpop.xlane.xlu0 %160
  %162 = vadd.xlane.f32.xlu0 %v131
  %v163 = vpop.xlane.xlu0 %162
  %v164 = vmul.f32 %v133, %v83
  %v165 = vmul.f32 %v135, %v83
  %v166 = vmul.f32 %v137, %v83
  %v167 = vmul.f32 %v139, %v83
  %v168 = vmul.f32 %v141, %v83
  %v169 = vmul.f32 %v143, %v83
  %v170 = vmul.f32 %v145, %v83
  %v171 = vmul.f32 %v147, %v83
  %v172 = vmul.f32 %v149, %v83
  %v173 = vmul.f32 %v151, %v83
  %v174 = vmul.f32 %v153, %v83
  %v175 = vmul.f32 %v155, %v83
  %v176 = vmul.f32 %v157, %v83
  %v177 = vmul.f32 %v159, %v83
  %v178 = vmul.f32 %v161, %v83
  %v179 = vmul.f32 %v163, %v83
  %v180 = vadd.f32 %v164, 1e-05
  %v181 = vadd.f32 %v165, 1e-05
  %v182 = vadd.f32 %v166, 1e-05
  %v183 = vadd.f32 %v167, 1e-05
  %v184 = vadd.f32 %v168, 1e-05
  %v185 = vadd.f32 %v169, 1e-05
  %v186 = vadd.f32 %v170, 1e-05
  %v187 = vadd.f32 %v171, 1e-05
  %v188 = vadd.f32 %v172, 1e-05
  %v189 = vadd.f32 %v173, 1e-05
  %v190 = vadd.f32 %v174, 1e-05
  %v191 = vadd.f32 %v175, 1e-05
  %v192 = vadd.f32 %v176, 1e-05
  %v193 = vadd.f32 %v177, 1e-05
  %v194 = vadd.f32 %v178, 1e-05
  %v195 = vadd.f32 %v179, 1e-05
  %v196 = vrsqrt.pop %v180
  %v197 = vrsqrt.pop %v181
  %v198 = vrsqrt.pop %v182
  %v199 = vrsqrt.pop %v183
  %v200 = vrsqrt.pop %v184
  %v201 = vrsqrt.pop %v185
  %v202 = vrsqrt.pop %v186
  %v203 = vrsqrt.pop %v187
  %v204 = vrsqrt.pop %v188
  %v205 = vrsqrt.pop %v189
  %v206 = vrsqrt.pop %v190
  %v207 = vrsqrt.pop %v191
  %v208 = vrsqrt.pop %v192
  %v209 = vrsqrt.pop %v193
  %v210 = vrsqrt.pop %v194
  %v211 = vrsqrt.pop %v195
  %v212 = vmul.f32 %v100, %v196
  %v213 = vmul.f32 %v101, %v197
  %v214 = vmul.f32 %v102, %v198
  %v215 = vmul.f32 %v103, %v199
  %v216 = vmul.f32 %v104, %v200
  %v217 = vmul.f32 %v105, %v201
  %v218 = vmul.f32 %v106, %v202
  %v219 = vmul.f32 %v107, %v203
  %v220 = vmul.f32 %v108, %v204
  %v221 = vmul.f32 %v109, %v205
  %v222 = vmul.f32 %v110, %v206
  %v223 = vmul.f32 %v111, %v207
  %v224 = vmul.f32 %v112, %v208
  %v225 = vmul.f32 %v113, %v209
  %v226 = vmul.f32 %v114, %v210
  %v227 = vmul.f32 %v115, %v211
  %v228 = vlaneseq
  %v229 = vshrl.u32 %v228, 7
  %v230 = vsub.s32 1, %v229
  %v231 = vrot.slane %v18, %v230
  %v232 = vmul.f32 %v212, %v231
  %v233 = vmul.f32 %v213, %v231
  %v234 = vmul.f32 %v214, %v231
  %v235 = vmul.f32 %v215, %v231
  %v236 = vmul.f32 %v216, %v231
  %v237 = vmul.f32 %v217, %v231
  %v238 = vmul.f32 %v218, %v231
  %v239 = vmul.f32 %v219, %v231
  %v240 = vmul.f32 %v220, %v231
  %v241 = vmul.f32 %v221, %v231
  %v242 = vmul.f32 %v222, %v231
  %v243 = vmul.f32 %v223, %v231
  %v244 = vmul.f32 %v224, %v231
  %v245 = vmul.f32 %v225, %v231
  %v246 = vmul.f32 %v226, %v231
  %v247 = vmul.f32 %v227, %v231
  %v248 = vlaneseq
  %v249 = vshrl.u32 %v248, 7
  %v250 = vsub.s32 2, %v249
  %v251 = vrot.slane %v18, %v250
  %v252 = vadd.f32 %v232, %v251
  %v253 = vadd.f32 %v233, %v251
  %v254 = vadd.f32 %v234, %v251
  %v255 = vadd.f32 %v235, %v251
  %v256 = vadd.f32 %v236, %v251
  %v257 = vadd.f32 %v237, %v251
  %v258 = vadd.f32 %v238, %v251
  %v259 = vadd.f32 %v239, %v251
  %v260 = vadd.f32 %v240, %v251
  %v261 = vadd.f32 %v241, %v251
  %v262 = vadd.f32 %v242, %v251
  %v263 = vadd.f32 %v243, %v251
  %v264 = vadd.f32 %v244, %v251
  %v265 = vadd.f32 %v245, %v251
  %v266 = vadd.f32 %v246, %v251
  %v267 = vadd.f32 %v247, %v251
  %v268 = vpack.c.bf16 %v253, %v252
  %v269 = vpack.c.bf16 %v255, %v254
  %v270 = vpack.c.bf16 %v257, %v256
  %v271 = vpack.c.bf16 %v259, %v258
  %v272 = vpack.c.bf16 %v261, %v260
  %v273 = vpack.c.bf16 %v263, %v262
  %v274 = vpack.c.bf16 %v265, %v264
  %v275 = vpack.c.bf16 %v267, %v266
  %v276 = vld [vmem:[%s2] sm:$0xf]
  %v277 = vld [vmem:[%s2 + $0x4] sm:$0xf]
  %v278 = vld [vmem:[%s2 + $0x8] sm:$0xf]
  %v279 = vld [vmem:[%s2 + $0xc] sm:$0xf]
  %v280 = vld [vmem:[%s2 + $0x10] sm:$0xf]
  %v281 = vld [vmem:[%s2 + $0x14] sm:$0xf]
  %v282 = vld [vmem:[%s2 + $0x18] sm:$0xf]
  %v283 = vld [vmem:[%s2 + $0x1c] sm:$0xf]
  %v284 = vld [vmem:[%s2 + $0x20] sm:$0xf]
  %v285 = vld [vmem:[%s2 + $0x24] sm:$0xf]
  %v286 = vld [vmem:[%s2 + $0x28] sm:$0xf]
  %v287 = vld [vmem:[%s2 + $0x2c] sm:$0xf]
  %v288 = vld [vmem:[%s2 + $0x30] sm:$0xf]
  %v289 = vld [vmem:[%s2 + $0x34] sm:$0xf]
  %v290 = vld [vmem:[%s2 + $0x38] sm:$0xf]
  %v291 = vld [vmem:[%s2 + $0x3c] sm:$0xf]
  %v292 = vld [vmem:[%s3] sm:$0x1]
  %v294 = vlaneseq
  %v295 = vshrl.u32 %v294, 7
  %v296 = vsub.s32 0, %v295
  %v297 = vrot.slane %v292, %v296
  %v315 = vunpack.c.l.b16 %v276
  %v316 = vunpack.c.l.b16 %v277
  %v317 = vunpack.c.l.b16 %v278
  %v318 = vunpack.c.l.b16 %v279
  %v319 = vunpack.c.l.b16 %v280
  %v320 = vunpack.c.l.b16 %v281
  %v321 = vunpack.c.l.b16 %v282
  %v322 = vunpack.c.l.b16 %v283
  %v323 = vunpack.c.l.b16 %v284
  %v324 = vunpack.c.l.b16 %v285
  %v325 = vunpack.c.l.b16 %v286
  %v326 = vunpack.c.l.b16 %v287
  %v327 = vunpack.c.l.b16 %v288
  %v328 = vunpack.c.l.b16 %v289
  %v329 = vunpack.c.l.b16 %v290
  %v330 = vunpack.c.l.b16 %v291
  %v331 = vpack.c.b16 %v316, %v315
  %v332 = vpack.c.b16 %v318, %v317
  %v333 = vpack.c.b16 %v320, %v319
  %v334 = vpack.c.b16 %v322, %v321
  %v335 = vpack.c.b16 %v324, %v323
  %v336 = vpack.c.b16 %v326, %v325
  %v337 = vpack.c.b16 %v328, %v327
  %v338 = vpack.c.b16 %v330, %v329
  %347 = vmatprep.subr.bf16.mxu0 0
  %348 = vmatpush1.bf16.msra.mxu0 %v338
  %349 = vmatprep.subr.bf16.mxu0 0
  %350 = vmatpush1.bf16.msra.mxu0 %v337
  %351 = vmatprep.subr.bf16.mxu0 0
  %352 = vmatpush1.bf16.msra.mxu0 %v336
  %353 = vmatprep.subr.bf16.mxu0 0
  %354 = vmatpush1.bf16.msra.mxu0 %v335
  %355 = vmatprep.subr.bf16.mxu0 0
  %356 = vmatpush1.bf16.msra.mxu0 %v334
  %357 = vmatprep.subr.bf16.mxu0 0
  %358 = vmatpush1.bf16.msra.mxu0 %v333
  %359 = vmatprep.subr.bf16.mxu0 0
  %360 = vmatpush1.bf16.msra.mxu0 %v332
  %361 = vmatprep.subr.bf16.mxu0 0
  %362 = vmatpush1.bf16.msra.mxu0 %v331
  %363 = vmatprep.subr.bf16.mxu0 0
  %364 = vmatpush2.bf16.msra.mxu0 0
  %365 = vmatprep.subr.bf16.mxu0 0
  %366 = vmatpush2.bf16.msra.mxu0 0
  %367 = vmatprep.subr.bf16.mxu0 0
  %368 = vmatpush2.bf16.msra.mxu0 0
  %369 = vmatprep.subr.bf16.mxu0 0
  %370 = vmatpush2.bf16.msra.mxu0 0
  %371 = vmatprep.subr.bf16.mxu0 0
  %372 = vmatpush2.bf16.msra.mxu0 0
  %373 = vmatprep.subr.bf16.mxu0 0
  %374 = vmatpush2.bf16.msra.mxu0 0
  %375 = vmatprep.subr.bf16.mxu0 0
  %376 = vmatpush2.bf16.msra.mxu0 0
  %377 = vmatprep.subr.bf16.mxu0 0
  %378 = vmatpush2.bf16.msra.mxu0 0
  %379 = vmatprep.mubr.bf16.mxu0 0
  %380 = vmatmul.mubr.bf16.gmra.mxu0 %v268
  %v381 = vpop.f32.mrf.mxu0
  %v382 = vadd.f32 %v297, %v381
  %v383 = vpop.f32.mrf.mxu0
  %v384 = vpop.f32.mrf.mxu0
  %v385 = vadd.f32 %v297, %v384
  %v386 = vpop.f32.mrf.mxu0
  %387 = vmatprep.mubr.bf16.mxu0 0
  %388 = vmatmul.mubr.bf16.gmra.mxu0 %v269
  %v389 = vpop.f32.mrf.mxu0
  %v390 = vadd.f32 %v297, %v389
  %v391 = vpop.f32.mrf.mxu0
  %v392 = vpop.f32.mrf.mxu0
  %v393 = vadd.f32 %v297, %v392
  %v394 = vpop.f32.mrf.mxu0
  %395 = vmatprep.mubr.bf16.mxu0 0
  %396 = vmatmul.mubr.bf16.gmra.mxu0 %v270
  %v397 = vpop.f32.mrf.mxu0
  %v398 = vadd.f32 %v297, %v397
  %v399 = vpop.f32.mrf.mxu0
  %v400 = vpop.f32.mrf.mxu0
  %v401 = vadd.f32 %v297, %v400
  %v402 = vpop.f32.mrf.mxu0
  %403 = vmatprep.mubr.bf16.mxu0 0
  %404 = vmatmul.mubr.bf16.gmra.mxu0 %v271
  %v405 = vpop.f32.mrf.mxu0
  %v406 = vadd.f32 %v297, %v405
  %v407 = vpop.f32.mrf.mxu0
  %v408 = vpop.f32.mrf.mxu0
  %v409 = vadd.f32 %v297, %v408
  %v410 = vpop.f32.mrf.mxu0
  %411 = vmatprep.mubr.bf16.mxu0 0
  %412 = vmatmul.mubr.bf16.gmra.mxu0 %v272
  %v413 = vpop.f32.mrf.mxu0
  %v414 = vadd.f32 %v297, %v413
  %v415 = vpop.f32.mrf.mxu0
  %v416 = vpop.f32.mrf.mxu0
  %v417 = vadd.f32 %v297, %v416
  %v418 = vpop.f32.mrf.mxu0
  %419 = vmatprep.mubr.bf16.mxu0 0
  %420 = vmatmul.mubr.bf16.gmra.mxu0 %v273
  %v421 = vpop.f32.mrf.mxu0
  %v422 = vadd.f32 %v297, %v421
  %v423 = vpop.f32.mrf.mxu0
  %v424 = vpop.f32.mrf.mxu0
  %v425 = vadd.f32 %v297, %v424
  %v426 = vpop.f32.mrf.mxu0
  %427 = vmatprep.mubr.bf16.mxu0 0
  %428 = vmatmul.mubr.bf16.gmra.mxu0 %v274
  %v429 = vpop.f32.mrf.mxu0
  %v430 = vadd.f32 %v297, %v429
  %v431 = vpop.f32.mrf.mxu0
  %v432 = vpop.f32.mrf.mxu0
  %v433 = vadd.f32 %v297, %v432
  %v434 = vpop.f32.mrf.mxu0
  %435 = vmatprep.mubr.bf16.mxu0 0
  %436 = vmatmul.mubr.bf16.gmra.mxu0 %v275
  %v437 = vpop.f32.mrf.mxu0
  %v438 = vadd.f32 %v297, %v437
  %v439 = vpop.f32.mrf.mxu0
  %v440 = vpop.f32.mrf.mxu0
  %v441 = vadd.f32 %v297, %v440
  %v442 = vpop.f32.mrf.mxu0
  %443 = vdwg.mxu0
  %444 = vst [vmem:[%s4] sm:$0xff] %v382
  %445 = vst [vmem:[%s4 + $0x8] sm:$0xff] %v385
  %446 = vst [vmem:[%s4 + $0x10] sm:$0xff] %v390
  %447 = vst [vmem:[%s4 + $0x18] sm:$0xff] %v393
  %448 = vst [vmem:[%s4 + $0x20] sm:$0xff] %v398
  %449 = vst [vmem:[%s4 + $0x28] sm:$0xff] %v401
  %450 = vst [vmem:[%s4 + $0x30] sm:$0xff] %v406
  %451 = vst [vmem:[%s4 + $0x38] sm:$0xff] %v409
  %452 = vst [vmem:[%s4 + $0x40] sm:$0xff] %v414
  %453 = vst [vmem:[%s4 + $0x48] sm:$0xff] %v417
  %454 = vst [vmem:[%s4 + $0x50] sm:$0xff] %v422
  %455 = vst [vmem:[%s4 + $0x58] sm:$0xff] %v425
  %456 = vst [vmem:[%s4 + $0x60] sm:$0xff] %v430
  %457 = vst [vmem:[%s4 + $0x68] sm:$0xff] %v433
  %458 = vst [vmem:[%s4 + $0x70] sm:$0xff] %v438
  %459 = vst [vmem:[%s4 + $0x78] sm:$0xff] %v441
  // Predicated region
  $region18: #{wr_xformer_single_forward.17} parent=0 // pred_check
    _
  $region19: #{wr_xformer_single_forward.17} parent=0 // pred_check_branch
    %461 = sbr.rel (0) target = $region21
  $region20: #{wr_xformer_single_forward.17} parent=0 // pred_region
    _
  $region21: #{wr_xformer_single_forward.17} parent=0 // pred_fallthru
    _
  // Predicated region
  $region22: #{wr_xformer_single_forward.17} parent=0 // pred_check
    _
  $region23: #{wr_xformer_single_forward.17} parent=0 // pred_check_branch
    %463 = sbr.rel (0) target = $region25
  $region24: #{wr_xformer_single_forward.17} parent=0 // pred_region
    _
  $region25: #{wr_xformer_single_forward.17} parent=0 // pred_fallthru
    _

// kernel: wr_xformer_single_forward.16
$region0: #{wr_xformer_single_forward.16}
  #allocation0 [shape = 'u32[]', space=smem, size = 0x4, offset = 0x4, fixed_abs, tag = 'smem constant byte address 0x4 - core index']
  #allocation1 [shape = 'u32[144,128]{1,0:T(1,128)}', space=vmem, size = 0x12000, scoped, tag = 'internal scratch']
  %s0 = inlined_call_operand.vmem [shape: bf16[128,128], index: 0, kind: input, shape index: {}]
  %s1 = inlined_call_operand.vmem [shape: bf16[128,256], index: 1, kind: input, shape index: {}]
  %s2 = inlined_call_operand.vmem [shape: f32[1,256], index: 2, kind: input, shape index: {}]
  %s3 = inlined_call_operand.vmem [shape: bf16[256,128], index: 3, kind: input, shape index: {}]
  %s4 = inlined_call_operand.vmem [shape: f32[8,128], index: 4, kind: input, shape index: {}]
  %s5 = inlined_call_operand.vmem [shape: bf16[128,128], index: 5, kind: output, shape index: {}]
  %s6 = sld [smem:[#allocation0]]
  $region30: #{wr_xformer_single_forward.16} parent=0
    _
  %s8 = ssub.s32 1, %s6
  %s9 = scalar_select 0, %s8, %s6
  // Predicated region
  $region2: #{wr_xformer_single_forward.16} parent=0 // pred_check
    _
  $region3: #{wr_xformer_single_forward.16} parent=0 // pred_check_branch
    %11 = sbr.rel (0) target = $region5
  $region4: #{wr_xformer_single_forward.16} parent=0 // pred_region
    _
  $region5: #{wr_xformer_single_forward.16} parent=0 // pred_fallthru
    _
  // Predicated region
  $region6: #{wr_xformer_single_forward.16} parent=0 // pred_check
    _
  $region7: #{wr_xformer_single_forward.16} parent=0 // pred_check_branch
    %13 = sbr.rel (0) target = $region9
  $region8: #{wr_xformer_single_forward.16} parent=0 // pred_region
    _
  $region9: #{wr_xformer_single_forward.16} parent=0 // pred_fallthru
    _
  // Predicated region
  $region10: #{wr_xformer_single_forward.16} parent=0 // pred_check
    _
  $region11: #{wr_xformer_single_forward.16} parent=0 // pred_check_branch
    %15 = sbr.rel (0) target = $region13
  $region12: #{wr_xformer_single_forward.16} parent=0 // pred_region
    _
  $region13: #{wr_xformer_single_forward.16} parent=0 // pred_fallthru
    _
  // Predicated region
  $region14: #{wr_xformer_single_forward.16} parent=0 // pred_check
    _
  $region15: #{wr_xformer_single_forward.16} parent=0 // pred_check_branch
    %17 = sbr.rel (0) target = $region17
  $region16: #{wr_xformer_single_forward.16} parent=0 // pred_region
    _
  $region17: #{wr_xformer_single_forward.16} parent=0 // pred_fallthru
    _
  // Predicated region
  $region18: #{wr_xformer_single_forward.16} parent=0 // pred_check
    _
  $region19: #{wr_xformer_single_forward.16} parent=0 // pred_check_branch
    %19 = sbr.rel (0) target = $region21
  $region20: #{wr_xformer_single_forward.16} parent=0 // pred_region
    _
  $region21: #{wr_xformer_single_forward.16} parent=0 // pred_fallthru
    _
  %v21 = vld [vmem:[%s0] sm:$0xf]
  %v22 = vld [vmem:[%s0 + $0x4] sm:$0xf]
  %v23 = vld [vmem:[%s0 + $0x8] sm:$0xf]
  %v24 = vld [vmem:[%s0 + $0xc] sm:$0xf]
  %v25 = vld [vmem:[%s0 + $0x10] sm:$0xf]
  %v26 = vld [vmem:[%s0 + $0x14] sm:$0xf]
  %v27 = vld [vmem:[%s0 + $0x18] sm:$0xf]
  %v28 = vld [vmem:[%s0 + $0x1c] sm:$0xf]
  %v29 = vld [vmem:[%s0 + $0x20] sm:$0xf]
  %v30 = vld [vmem:[%s0 + $0x24] sm:$0xf]
  %v31 = vld [vmem:[%s0 + $0x28] sm:$0xf]
  %v32 = vld [vmem:[%s0 + $0x2c] sm:$0xf]
  %v33 = vld [vmem:[%s0 + $0x30] sm:$0xf]
  %v34 = vld [vmem:[%s0 + $0x34] sm:$0xf]
  %v35 = vld [vmem:[%s0 + $0x38] sm:$0xf]
  %v36 = vld [vmem:[%s0 + $0x3c] sm:$0xf]
  %v37 = vld [vmem:[%s1] sm:$0xff]
  %v38 = vld [vmem:[%s1 + $0x8] sm:$0xff]
  %v39 = vld [vmem:[%s1 + $0x10] sm:$0xff]
  %v40 = vld [vmem:[%s1 + $0x18] sm:$0xff]
  %v41 = vld [vmem:[%s1 + $0x20] sm:$0xff]
  %v42 = vld [vmem:[%s1 + $0x28] sm:$0xff]
  %v43 = vld [vmem:[%s1 + $0x30] sm:$0xff]
  %v44 = vld [vmem:[%s1 + $0x38] sm:$0xff]
  %v45 = vld [vmem:[%s1 + $0x40] sm:$0xff]
  %v46 = vld [vmem:[%s1 + $0x48] sm:$0xff]
  %v47 = vld [vmem:[%s1 + $0x50] sm:$0xff]
  %v48 = vld [vmem:[%s1 + $0x58] sm:$0xff]
  %v49 = vld [vmem:[%s1 + $0x60] sm:$0xff]
  %v50 = vld [vmem:[%s1 + $0x68] sm:$0xff]
  %v51 = vld [vmem:[%s1 + $0x70] sm:$0xff]
  %v52 = vld [vmem:[%s1 + $0x78] sm:$0xff]
  %v53 = vld [vmem:[%s2] sm:$0x3]
  %v55 = vlaneseq
  %v56 = vshrl.u32 %v55, 7
  %v57 = vsub.s32 0, %v56
  %v58 = vrot.slane %v53, %v57
  %v59 = vlaneseq
  %v60 = vshrl.u32 %v59, 7
  %v61 = vsub.s32 1, %v60
  %v62 = vrot.slane %v53, %v61
  %v81 = vunpack.c.l.b16 %v21
  %v82 = vunpack.c.l.b16 %v22
  %v83 = vunpack.c.l.b16 %v23
  %v84 = vunpack.c.l.b16 %v24
  %v85 = vunpack.c.l.b16 %v25
  %v86 = vunpack.c.l.b16 %v26
  %v87 = vunpack.c.l.b16 %v27
  %v88 = vunpack.c.l.b16 %v28
  %v89 = vunpack.c.l.b16 %v29
  %v90 = vunpack.c.l.b16 %v30
  %v91 = vunpack.c.l.b16 %v31
  %v92 = vunpack.c.l.b16 %v32
  %v93 = vunpack.c.l.b16 %v33
  %v94 = vunpack.c.l.b16 %v34
  %v95 = vunpack.c.l.b16 %v35
  %v96 = vunpack.c.l.b16 %v36
  %v97 = vpack.c.b16 %v82, %v81
  %v98 = vpack.c.b16 %v84, %v83
  %v99 = vpack.c.b16 %v86, %v85
  %v100 = vpack.c.b16 %v88, %v87
  %v101 = vpack.c.b16 %v90, %v89
  %v102 = vpack.c.b16 %v92, %v91
  %v103 = vpack.c.b16 %v94, %v93
  %v104 = vpack.c.b16 %v96, %v95
  %v129 = vunpack.c.l.b16 %v37
  %v130 = vunpack.c.h.b16 %v37
  %v131 = vunpack.c.l.b16 %v38
  %v132 = vunpack.c.h.b16 %v38
  %v133 = vunpack.c.l.b16 %v39
  %v134 = vunpack.c.h.b16 %v39
  %v135 = vunpack.c.l.b16 %v40
  %v136 = vunpack.c.h.b16 %v40
  %v137 = vunpack.c.l.b16 %v41
  %v138 = vunpack.c.h.b16 %v41
  %v139 = vunpack.c.l.b16 %v42
  %v140 = vunpack.c.h.b16 %v42
  %v141 = vunpack.c.l.b16 %v43
  %v142 = vunpack.c.h.b16 %v43
  %v143 = vunpack.c.l.b16 %v44
  %v144 = vunpack.c.h.b16 %v44
  %v145 = vunpack.c.l.b16 %v45
  %v146 = vunpack.c.h.b16 %v45
  %v147 = vunpack.c.l.b16 %v46
  %v148 = vunpack.c.h.b16 %v46
  %v149 = vunpack.c.l.b16 %v47
  %v150 = vunpack.c.h.b16 %v47
  %v151 = vunpack.c.l.b16 %v48
  %v152 = vunpack.c.h.b16 %v48
  %v153 = vunpack.c.l.b16 %v49
  %v154 = vunpack.c.h.b16 %v49
  %v155 = vunpack.c.l.b16 %v50
  %v156 = vunpack.c.h.b16 %v50
  %v157 = vunpack.c.l.b16 %v51
  %v158 = vunpack.c.h.b16 %v51
  %v159 = vunpack.c.l.b16 %v52
  %v160 = vunpack.c.h.b16 %v52
  %v161 = vpack.c.b16 %v131, %v129
  %v162 = vpack.c.b16 %v132, %v130
  %v163 = vpack.c.b16 %v135, %v133
  %v164 = vpack.c.b16 %v136, %v134
  %v165 = vpack.c.b16 %v139, %v137
  %v166 = vpack.c.b16 %v140, %v138
  %v167 = vpack.c.b16 %v143, %v141
  %v168 = vpack.c.b16 %v144, %v142
  %v169 = vpack.c.b16 %v147, %v145
  %v170 = vpack.c.b16 %v148, %v146
  %v171 = vpack.c.b16 %v151, %v149
  %v172 = vpack.c.b16 %v152, %v150
  %v173 = vpack.c.b16 %v155, %v153
  %v174 = vpack.c.b16 %v156, %v154
  %v175 = vpack.c.b16 %v159, %v157
  %v176 = vpack.c.b16 %v160, %v158
  %193 = vmatprep.subr.bf16.mxu0 %v176
  %194 = vmatpush1.bf16.msra.mxu0 %v175
  %195 = vmatprep.subr.bf16.mxu0 %v174
  %196 = vmatpush1.bf16.msra.mxu0 %v173
  %197 = vmatprep.subr.bf16.mxu0 %v172
  %198 = vmatpush1.bf16.msra.mxu0 %v171
  %199 = vmatprep.subr.bf16.mxu0 %v170
  %200 = vmatpush1.bf16.msra.mxu0 %v169
  %201 = vmatprep.subr.bf16.mxu0 %v168
  %202 = vmatpush1.bf16.msra.mxu0 %v167
  %203 = vmatprep.subr.bf16.mxu0 %v166
  %204 = vmatpush1.bf16.msra.mxu0 %v165
  %205 = vmatprep.subr.bf16.mxu0 %v164
  %206 = vmatpush1.bf16.msra.mxu0 %v163
  %207 = vmatprep.subr.bf16.mxu0 %v162
  %208 = vmatpush1.bf16.msra.mxu0 %v161
  %209 = vmatprep.subr.bf16.mxu0 0
  %210 = vmatpush2.bf16.msra.mxu0 0
  %211 = vmatprep.subr.bf16.mxu0 0
  %212 = vmatpush2.bf16.msra.mxu0 0
  %213 = vmatprep.subr.bf16.mxu0 0
  %214 = vmatpush2.bf16.msra.mxu0 0
  %215 = vmatprep.subr.bf16.mxu0 0
  %216 = vmatpush2.bf16.msra.mxu0 0
  %217 = vmatprep.subr.bf16.mxu0 0
  %218 = vmatpush2.bf16.msra.mxu0 0
  %219 = vmatprep.subr.bf16.mxu0 0
  %220 = vmatpush2.bf16.msra.mxu0 0
  %221 = vmatprep.subr.bf16.mxu0 0
  %222 = vmatpush2.bf16.msra.mxu0 0
  %223 = vmatprep.subr.bf16.mxu0 0
  %224 = vmatpush2.bf16.msra.mxu0 0
  %225 = vmatprep.mubr.bf16.mxu0 0
  %226 = vmatmul.mubr.bf16.gmra.mxu0 %v97
  %v227 = vpop.f32.mrf.mxu0
  %v228 = vadd.f32 %v58, %v227
  %v229 = vpop.f32.mrf.mxu0
  %v230 = vadd.f32 %v62, %v229
  %v231 = vpop.f32.mrf.mxu0
  %v232 = vadd.f32 %v58, %v231
  %v233 = vpop.f32.mrf.mxu0
  %v234 = vadd.f32 %v62, %v233
  %235 = vmatprep.mubr.bf16.mxu0 0
  %236 = vmatmul.mubr.bf16.gmra.mxu0 %v98
  %v237 = vpop.f32.mrf.mxu0
  %v238 = vadd.f32 %v58, %v237
  %v239 = vpop.f32.mrf.mxu0
  %v240 = vadd.f32 %v62, %v239
  %v241 = vpop.f32.mrf.mxu0
  %v242 = vadd.f32 %v58, %v241
  %v243 = vpop.f32.mrf.mxu0
  %v244 = vadd.f32 %v62, %v243
  %245 = vmatprep.mubr.bf16.mxu0 0
  %246 = vmatmul.mubr.bf16.gmra.mxu0 %v99
  %v247 = vpop.f32.mrf.mxu0
  %v248 = vadd.f32 %v58, %v247
  %v249 = vpop.f32.mrf.mxu0
  %v250 = vadd.f32 %v62, %v249
  %v251 = vpop.f32.mrf.mxu0
  %v252 = vadd.f32 %v58, %v251
  %v253 = vpop.f32.mrf.mxu0
  %v254 = vadd.f32 %v62, %v253
  %255 = vmatprep.mubr.bf16.mxu0 0
  %256 = vmatmul.mubr.bf16.gmra.mxu0 %v100
  %v257 = vpop.f32.mrf.mxu0
  %v258 = vadd.f32 %v58, %v257
  %v259 = vpop.f32.mrf.mxu0
  %v260 = vadd.f32 %v62, %v259
  %v261 = vpop.f32.mrf.mxu0
  %v262 = vadd.f32 %v58, %v261
  %v263 = vpop.f32.mrf.mxu0
  %v264 = vadd.f32 %v62, %v263
  %265 = vmatprep.mubr.bf16.mxu0 0
  %266 = vmatmul.mubr.bf16.gmra.mxu0 %v101
  %v267 = vpop.f32.mrf.mxu0
  %v268 = vadd.f32 %v58, %v267
  %v269 = vpop.f32.mrf.mxu0
  %v270 = vadd.f32 %v62, %v269
  %v271 = vpop.f32.mrf.mxu0
  %v272 = vadd.f32 %v58, %v271
  %v273 = vpop.f32.mrf.mxu0
  %v274 = vadd.f32 %v62, %v273
  %275 = vmatprep.mubr.bf16.mxu0 0
  %276 = vmatmul.mubr.bf16.gmra.mxu0 %v102
  %v277 = vpop.f32.mrf.mxu0
  %v278 = vadd.f32 %v58, %v277
  %v279 = vpop.f32.mrf.mxu0
  %v280 = vadd.f32 %v62, %v279
  %v281 = vpop.f32.mrf.mxu0
  %v282 = vadd.f32 %v58, %v281
  %v283 = vpop.f32.mrf.mxu0
  %v284 = vadd.f32 %v62, %v283
  %285 = vmatprep.mubr.bf16.mxu0 0
  %286 = vmatmul.mubr.bf16.gmra.mxu0 %v103
  %v287 = vpop.f32.mrf.mxu0
  %v288 = vadd.f32 %v58, %v287
  %v289 = vpop.f32.mrf.mxu0
  %v290 = vadd.f32 %v62, %v289
  %v291 = vpop.f32.mrf.mxu0
  %v292 = vadd.f32 %v58, %v291
  %v293 = vpop.f32.mrf.mxu0
  %v294 = vadd.f32 %v62, %v293
  %295 = vmatprep.mubr.bf16.mxu0 0
  %296 = vmatmul.mubr.bf16.gmra.mxu0 %v104
  %v297 = vpop.f32.mrf.mxu0
  %v298 = vadd.f32 %v58, %v297
  %v299 = vpop.f32.mrf.mxu0
  %v300 = vadd.f32 %v62, %v299
  %v301 = vpop.f32.mrf.mxu0
  %v302 = vadd.f32 %v58, %v301
  %v303 = vpop.f32.mrf.mxu0
  %v304 = vadd.f32 %v62, %v303
  %305 = vdwg.mxu0
  %v306 = vmul.f32 %v228, %v228
  %v307 = vmul.f32 %v230, %v230
  %v308 = vmul.f32 %v232, %v232
  %v309 = vmul.f32 %v234, %v234
  %v310 = vmul.f32 %v238, %v238
  %v311 = vmul.f32 %v240, %v240
  %v312 = vmul.f32 %v242, %v242
  %v313 = vmul.f32 %v244, %v244
  %v314 = vmul.f32 %v248, %v248
  %v315 = vmul.f32 %v250, %v250
  %v316 = vmul.f32 %v252, %v252
  %v317 = vmul.f32 %v254, %v254
  %v318 = vmul.f32 %v258, %v258
  %v319 = vmul.f32 %v260, %v260
  %v320 = vmul.f32 %v262, %v262
  %v321 = vmul.f32 %v264, %v264
  %v322 = vmul.f32 %v268, %v268
  %v323 = vmul.f32 %v270, %v270
  %v324 = vmul.f32 %v272, %v272
  %v325 = vmul.f32 %v274, %v274
  %v326 = vmul.f32 %v278, %v278
  %v327 = vmul.f32 %v280, %v280
  %v328 = vmul.f32 %v282, %v282
  %v329 = vmul.f32 %v284, %v284
  %v330 = vmul.f32 %v288, %v288
  %v331 = vmul.f32 %v290, %v290
  %v332 = vmul.f32 %v292, %v292
  %v333 = vmul.f32 %v294, %v294
  %v334 = vmul.f32 %v298, %v298
  %v335 = vmul.f32 %v300, %v300
  %v336 = vmul.f32 %v302, %v302
  %v337 = vmul.f32 %v304, %v304
  %v338 = vmul.f32 %v228, %v306
  %v339 = vmul.f32 %v230, %v307
  %v340 = vmul.f32 %v232, %v308
  %v341 = vmul.f32 %v234, %v309
  %v342 = vmul.f32 %v238, %v310
  %v343 = vmul.f32 %v240, %v311
  %v344 = vmul.f32 %v242, %v312
  %v345 = vmul.f32 %v244, %v313
  %v346 = vmul.f32 %v248, %v314
  %v347 = vmul.f32 %v250, %v315
  %v348 = vmul.f32 %v252, %v316
  %v349 = vmul.f32 %v254, %v317
  %v350 = vmul.f32 %v258, %v318
  %v351 = vmul.f32 %v260, %v319
  %v352 = vmul.f32 %v262, %v320
  %v353 = vmul.f32 %v264, %v321
  %v354 = vmul.f32 %v268, %v322
  %v355 = vmul.f32 %v270, %v323
  %v356 = vmul.f32 %v272, %v324
  %v357 = vmul.f32 %v274, %v325
  %v358 = vmul.f32 %v278, %v326
  %v359 = vmul.f32 %v280, %v327
  %v360 = vmul.f32 %v282, %v328
  %v361 = vmul.f32 %v284, %v329
  %v362 = vmul.f32 %v288, %v330
  %v363 = vmul.f32 %v290, %v331
  %v364 = vmul.f32 %v292, %v332
  %v365 = vmul.f32 %v294, %v333
  %v366 = vmul.f32 %v298, %v334
  %v367 = vmul.f32 %v300, %v335
  %v368 = vmul.f32 %v302, %v336
  %v369 = vmul.f32 %v304, %v337
  %v370 = vmul.f32 %v338, 0.044715
  %v371 = vmul.f32 %v339, 0.044715
  %v372 = vmul.f32 %v340, 0.044715
  %v373 = vmul.f32 %v341, 0.044715
  %v374 = vmul.f32 %v342, 0.044715
  %v375 = vmul.f32 %v343, 0.044715
  %v376 = vmul.f32 %v344, 0.044715
  %v377 = vmul.f32 %v345, 0.044715
  %v378 = vmul.f32 %v346, 0.044715
  %v379 = vmul.f32 %v347, 0.044715
  %v380 = vmul.f32 %v348, 0.044715
  %v381 = vmul.f32 %v349, 0.044715
  %v382 = vmul.f32 %v350, 0.044715
  %v383 = vmul.f32 %v351, 0.044715
  %v384 = vmul.f32 %v352, 0.044715
  %v385 = vmul.f32 %v353, 0.044715
  %v386 = vmul.f32 %v354, 0.044715
  %v387 = vmul.f32 %v355, 0.044715
  %v388 = vmul.f32 %v356, 0.044715
  %v389 = vmul.f32 %v357, 0.044715
  %v390 = vmul.f32 %v358, 0.044715
  %v391 = vmul.f32 %v359, 0.044715
  %v392 = vmul.f32 %v360, 0.044715
  %v393 = vmul.f32 %v361, 0.044715
  %v394 = vmul.f32 %v362, 0.044715
  %v395 = vmul.f32 %v363, 0.044715
  %v396 = vmul.f32 %v364, 0.044715
  %v397 = vmul.f32 %v365, 0.044715
  %v398 = vmul.f32 %v366, 0.044715
  %v399 = vmul.f32 %v367, 0.044715
  %v400 = vmul.f32 %v368, 0.044715
  %v401 = vmul.f32 %v369, 0.044715
  %v402 = vadd.f32 %v228, %v370
  %v403 = vadd.f32 %v230, %v371
  %v404 = vadd.f32 %v232, %v372
  %v405 = vadd.f32 %v234, %v373
  %v406 = vadd.f32 %v238, %v374
  %v407 = vadd.f32 %v240, %v375
  %v408 = vadd.f32 %v242, %v376
  %v409 = vadd.f32 %v244, %v377
  %v410 = vadd.f32 %v248, %v378
  %v411 = vadd.f32 %v250, %v379
  %v412 = vadd.f32 %v252, %v380
  %v413 = vadd.f32 %v254, %v381
  %v414 = vadd.f32 %v258, %v382
  %v415 = vadd.f32 %v260, %v383
  %v416 = vadd.f32 %v262, %v384
  %v417 = vadd.f32 %v264, %v385
  %v418 = vadd.f32 %v268, %v386
  %v419 = vadd.f32 %v270, %v387
  %v420 = vadd.f32 %v272, %v388
  %v421 = vadd.f32 %v274, %v389
  %v422 = vadd.f32 %v278, %v390
  %v423 = vadd.f32 %v280, %v391
  %v424 = vadd.f32 %v282, %v392
  %v425 = vadd.f32 %v284, %v393
  %v426 = vadd.f32 %v288, %v394
  %v427 = vadd.f32 %v290, %v395
  %v428 = vadd.f32 %v292, %v396
  %v429 = vadd.f32 %v294, %v397
  %v430 = vadd.f32 %v298, %v398
  %v431 = vadd.f32 %v300, %v399
  %v432 = vadd.f32 %v302, %v400
  %v433 = vadd.f32 %v304, %v401
  %v434 = vmul.f32 %v402, 0.7978846
  %v435 = vmul.f32 %v403, 0.7978846
  %v436 = vmul.f32 %v404, 0.7978846
  %v437 = vmul.f32 %v405, 0.7978846
  %v438 = vmul.f32 %v406, 0.7978846
  %v439 = vmul.f32 %v407, 0.7978846
  %v440 = vmul.f32 %v408, 0.7978846
  %v441 = vmul.f32 %v409, 0.7978846
  %v442 = vmul.f32 %v410, 0.7978846
  %v443 = vmul.f32 %v411, 0.7978846
  %v444 = vmul.f32 %v412, 0.7978846
  %v445 = vmul.f32 %v413, 0.7978846
  %v446 = vmul.f32 %v414, 0.7978846
  %v447 = vmul.f32 %v415, 0.7978846
  %v448 = vmul.f32 %v416, 0.7978846
  %v449 = vmul.f32 %v417, 0.7978846
  %v450 = vmul.f32 %v418, 0.7978846
  %v451 = vmul.f32 %v419, 0.7978846
  %v452 = vmul.f32 %v420, 0.7978846
  %v453 = vmul.f32 %v421, 0.7978846
  %v454 = vmul.f32 %v422, 0.7978846
  %v455 = vmul.f32 %v423, 0.7978846
  %v456 = vmul.f32 %v424, 0.7978846
  %v457 = vmul.f32 %v425, 0.7978846
  %v458 = vmul.f32 %v426, 0.7978846
  %v459 = vmul.f32 %v427, 0.7978846
  %v460 = vmul.f32 %v428, 0.7978846
  %v461 = vmul.f32 %v429, 0.7978846
  %v462 = vmul.f32 %v430, 0.7978846
  %v463 = vmul.f32 %v431, 0.7978846
  %v464 = vmul.f32 %v432, 0.7978846
  %v465 = vmul.f32 %v433, 0.7978846
  %v466 = vtanh.pop %v434
  %v467 = vtanh.pop %v435
  %v468 = vtanh.pop %v436
  %v469 = vtanh.pop %v437
  %v470 = vtanh.pop %v438
  %v471 = vtanh.pop %v439
  %v472 = vtanh.pop %v440
  %v473 = vtanh.pop %v441
  %v474 = vtanh.pop %v442
  %v475 = vtanh.pop %v443
  %v476 = vtanh.pop %v444
  %v477 = vtanh.pop %v445
  %v478 = vtanh.pop %v446
  %v479 = vtanh.pop %v447
  %v480 = vtanh.pop %v448
  %v481 = vtanh.pop %v449
  %v482 = vtanh.pop %v450
  %v483 = vtanh.pop %v451
  %v484 = vtanh.pop %v452
  %v485 = vtanh.pop %v453
  %v486 = vtanh.pop %v454
  %v487 = vtanh.pop %v455
  %v488 = vtanh.pop %v456
  %v489 = vtanh.pop %v457
  %v490 = vtanh.pop %v458
  %v491 = vtanh.pop %v459
  %v492 = vtanh.pop %v460
  %v493 = vtanh.pop %v461
  %v494 = vtanh.pop %v462
  %v495 = vtanh.pop %v463
  %v496 = vtanh.pop %v464
  %v497 = vtanh.pop %v465
  %v498 = vadd.f32 %v466, 1.0
  %v499 = vadd.f32 %v467, 1.0
  %v500 = vadd.f32 %v468, 1.0
  %v501 = vadd.f32 %v469, 1.0
  %v502 = vadd.f32 %v470, 1.0
  %v503 = vadd.f32 %v471, 1.0
  %v504 = vadd.f32 %v472, 1.0
  %v505 = vadd.f32 %v473, 1.0
  %v506 = vadd.f32 %v474, 1.0
  %v507 = vadd.f32 %v475, 1.0
  %v508 = vadd.f32 %v476, 1.0
  %v509 = vadd.f32 %v477, 1.0
  %v510 = vadd.f32 %v478, 1.0
  %v511 = vadd.f32 %v479, 1.0
  %v512 = vadd.f32 %v480, 1.0
  %v513 = vadd.f32 %v481, 1.0
  %v514 = vadd.f32 %v482, 1.0
  %v515 = vadd.f32 %v483, 1.0
  %v516 = vadd.f32 %v484, 1.0
  %v517 = vadd.f32 %v485, 1.0
  %v518 = vadd.f32 %v486, 1.0
  %v519 = vadd.f32 %v487, 1.0
  %v520 = vadd.f32 %v488, 1.0
  %v521 = vadd.f32 %v489, 1.0
  %v522 = vadd.f32 %v490, 1.0
  %v523 = vadd.f32 %v491, 1.0
  %v524 = vadd.f32 %v492, 1.0
  %v525 = vadd.f32 %v493, 1.0
  %v526 = vadd.f32 %v494, 1.0
  %v527 = vadd.f32 %v495, 1.0
  %v528 = vadd.f32 %v496, 1.0
  %v529 = vadd.f32 %v497, 1.0
  %v530 = vmul.f32 %v498, 0.5
  %v531 = vmul.f32 %v499, 0.5
  %v532 = vmul.f32 %v500, 0.5
  %v533 = vmul.f32 %v501, 0.5
  %v534 = vmul.f32 %v502, 0.5
  %v535 = vmul.f32 %v503, 0.5
  %v536 = vmul.f32 %v504, 0.5
  %v537 = vmul.f32 %v505, 0.5
  %v538 = vmul.f32 %v506, 0.5
  %v539 = vmul.f32 %v507, 0.5
  %v540 = vmul.f32 %v508, 0.5
  %v541 = vmul.f32 %v509, 0.5
  %v542 = vmul.f32 %v510, 0.5
  %v543 = vmul.f32 %v511, 0.5
  %v544 = vmul.f32 %v512, 0.5
  %v545 = vmul.f32 %v513, 0.5
  %v546 = vmul.f32 %v514, 0.5
  %v547 = vmul.f32 %v515, 0.5
  %v548 = vmul.f32 %v516, 0.5
  %v549 = vmul.f32 %v517, 0.5
  %v550 = vmul.f32 %v518, 0.5
  %v551 = vmul.f32 %v519, 0.5
  %v552 = vmul.f32 %v520, 0.5
  %v553 = vmul.f32 %v521, 0.5
  %v554 = vmul.f32 %v522, 0.5
  %v555 = vmul.f32 %v523, 0.5
  %v556 = vmul.f32 %v524, 0.5
  %v557 = vmul.f32 %v525, 0.5
  %v558 = vmul.f32 %v526, 0.5
  %v559 = vmul.f32 %v527, 0.5
  %v560 = vmul.f32 %v528, 0.5
  %v561 = vmul.f32 %v529, 0.5
  %v562 = vmul.f32 %v228, %v530
  %v563 = vmul.f32 %v230, %v531
  %v564 = vmul.f32 %v232, %v532
  %v565 = vmul.f32 %v234, %v533
  %v566 = vmul.f32 %v238, %v534
  %v567 = vmul.f32 %v240, %v535
  %v568 = vmul.f32 %v242, %v536
  %v569 = vmul.f32 %v244, %v537
  %v570 = vmul.f32 %v248, %v538
  %v571 = vmul.f32 %v250, %v539
  %v572 = vmul.f32 %v252, %v540
  %v573 = vmul.f32 %v254, %v541
  %v574 = vmul.f32 %v258, %v542
  %v575 = vmul.f32 %v260, %v543
  %v576 = vmul.f32 %v262, %v544
  %v577 = vmul.f32 %v264, %v545
  %v578 = vmul.f32 %v268, %v546
  %v579 = vmul.f32 %v270, %v547
  %v580 = vmul.f32 %v272, %v548
  %v581 = vmul.f32 %v274, %v549
  %v582 = vmul.f32 %v278, %v550
  %v583 = vmul.f32 %v280, %v551
  %v584 = vmul.f32 %v282, %v552
  %v585 = vmul.f32 %v284, %v553
  %v586 = vmul.f32 %v288, %v554
  %v587 = vmul.f32 %v290, %v555
  %v588 = vmul.f32 %v292, %v556
  %v589 = vmul.f32 %v294, %v557
  %v590 = vmul.f32 %v298, %v558
  %v591 = vmul.f32 %v300, %v559
  %v592 = vmul.f32 %v302, %v560
  %v593 = vmul.f32 %v304, %v561
  %v594 = vpack.c.bf16 %v564, %v562
  %v595 = vpack.c.bf16 %v565, %v563
  %v596 = vpack.c.bf16 %v568, %v566
  %v597 = vpack.c.bf16 %v569, %v567
  %v598 = vpack.c.bf16 %v572, %v570
  %v599 = vpack.c.bf16 %v573, %v571
  %v600 = vpack.c.bf16 %v576, %v574
  %v601 = vpack.c.bf16 %v577, %v575
  %v602 = vpack.c.bf16 %v580, %v578
  %v603 = vpack.c.bf16 %v581, %v579
  %v604 = vpack.c.bf16 %v584, %v582
  %v605 = vpack.c.bf16 %v585, %v583
  %v606 = vpack.c.bf16 %v588, %v586
  %v607 = vpack.c.bf16 %v589, %v587
  %v608 = vpack.c.bf16 %v592, %v590
  %v609 = vpack.c.bf16 %v593, %v591
  %v610 = vld [vmem:[%s3] sm:$0xf]
  %v611 = vld [vmem:[%s3 + $0x4] sm:$0xf]
  %v612 = vld [vmem:[%s3 + $0x8] sm:$0xf]
  %v613 = vld [vmem:[%s3 + $0xc] sm:$0xf]
  %v614 = vld [vmem:[%s3 + $0x10] sm:$0xf]
  %v615 = vld [vmem:[%s3 + $0x14] sm:$0xf]
  %v616 = vld [vmem:[%s3 + $0x18] sm:$0xf]
  %v617 = vld [vmem:[%s3 + $0x1c] sm:$0xf]
  %v618 = vld [vmem:[%s3 + $0x20] sm:$0xf]
  %v619 = vld [vmem:[%s3 + $0x24] sm:$0xf]
  %v620 = vld [vmem:[%s3 + $0x28] sm:$0xf]
  %v621 = vld [vmem:[%s3 + $0x2c] sm:$0xf]
  %v622 = vld [vmem:[%s3 + $0x30] sm:$0xf]
  %v623 = vld [vmem:[%s3 + $0x34] sm:$0xf]
  %v624 = vld [vmem:[%s3 + $0x38] sm:$0xf]
  %v625 = vld [vmem:[%s3 + $0x3c] sm:$0xf]
  %v626 = vld [vmem:[%s3 + $0x40] sm:$0xf]
  %v627 = vld [vmem:[%s3 + $0x44] sm:$0xf]
  %v628 = vld [vmem:[%s3 + $0x48] sm:$0xf]
  %v629 = vld [vmem:[%s3 + $0x4c] sm:$0xf]
  %v630 = vld [vmem:[%s3 + $0x50] sm:$0xf]
  %v631 = vld [vmem:[%s3 + $0x54] sm:$0xf]
  %v632 = vld [vmem:[%s3 + $0x58] sm:$0xf]
  %v633 = vld [vmem:[%s3 + $0x5c] sm:$0xf]
  %v634 = vld [vmem:[%s3 + $0x60] sm:$0xf]
  %v635 = vld [vmem:[%s3 + $0x64] sm:$0xf]
  %v636 = vld [vmem:[%s3 + $0x68] sm:$0xf]
  %v637 = vld [vmem:[%s3 + $0x6c] sm:$0xf]
  %v638 = vld [vmem:[%s3 + $0x70] sm:$0xf]
  %v639 = vld [vmem:[%s3 + $0x74] sm:$0xf]
  %v640 = vld [vmem:[%s3 + $0x78] sm:$0xf]
  %v641 = vld [vmem:[%s3 + $0x7c] sm:$0xf]
  %v674 = vunpack.c.l.b16 %v610
  %v675 = vunpack.c.l.b16 %v611
  %v676 = vunpack.c.l.b16 %v612
  %v677 = vunpack.c.l.b16 %v613
  %v678 = vunpack.c.l.b16 %v614
  %v679 = vunpack.c.l.b16 %v615
  %v680 = vunpack.c.l.b16 %v616
  %v681 = vunpack.c.l.b16 %v617
  %v682 = vunpack.c.l.b16 %v618
  %v683 = vunpack.c.l.b16 %v619
  %v684 = vunpack.c.l.b16 %v620
  %v685 = vunpack.c.l.b16 %v621
  %v686 = vunpack.c.l.b16 %v622
  %v687 = vunpack.c.l.b16 %v623
  %v688 = vunpack.c.l.b16 %v624
  %v689 = vunpack.c.l.b16 %v625
  %v690 = vunpack.c.l.b16 %v626
  %v691 = vunpack.c.l.b16 %v627
  %v692 = vunpack.c.l.b16 %v628
  %v693 = vunpack.c.l.b16 %v629
  %v694 = vunpack.c.l.b16 %v630
  %v695 = vunpack.c.l.b16 %v631
  %v696 = vunpack.c.l.b16 %v632
  %v697 = vunpack.c.l.b16 %v633
  %v698 = vunpack.c.l.b16 %v634
  %v699 = vunpack.c.l.b16 %v635
  %v700 = vunpack.c.l.b16 %v636
  %v701 = vunpack.c.l.b16 %v637
  %v702 = vunpack.c.l.b16 %v638
  %v703 = vunpack.c.l.b16 %v639
  %v704 = vunpack.c.l.b16 %v640
  %v705 = vunpack.c.l.b16 %v641
  %v706 = vpack.c.b16 %v675, %v674
  %v707 = vpack.c.b16 %v677, %v676
  %v708 = vpack.c.b16 %v679, %v678
  %v709 = vpack.c.b16 %v681, %v680
  %v710 = vpack.c.b16 %v683, %v682
  %v711 = vpack.c.b16 %v685, %v684
  %v712 = vpack.c.b16 %v687, %v686
  %v713 = vpack.c.b16 %v689, %v688
  %v714 = vpack.c.b16 %v691, %v690
  %v715 = vpack.c.b16 %v693, %v692
  %v716 = vpack.c.b16 %v695, %v694
  %v717 = vpack.c.b16 %v697, %v696
  %v718 = vpack.c.b16 %v699, %v698
  %v719 = vpack.c.b16 %v701, %v700
  %v720 = vpack.c.b16 %v703, %v702
  %v721 = vpack.c.b16 %v705, %v704
  %738 = vmatprep.subr.bf16.mxu0 0
  %739 = vmatpush1.bf16.msra.mxu0 %v713
  %740 = vmatprep.subr.bf16.mxu0 0
  %741 = vmatpush1.bf16.msra.mxu0 %v712
  %742 = vmatprep.subr.bf16.mxu0 0
  %743 = vmatpush1.bf16.msra.mxu0 %v711
  %744 = vmatprep.subr.bf16.mxu0 0
  %745 = vmatpush1.bf16.msra.mxu0 %v710
  %746 = vmatprep.subr.bf16.mxu0 0
  %747 = vmatpush1.bf16.msra.mxu0 %v709
  %748 = vmatprep.subr.bf16.mxu0 0
  %749 = vmatpush1.bf16.msra.mxu0 %v708
  %750 = vmatprep.subr.bf16.mxu0 0
  %751 = vmatpush1.bf16.msra.mxu0 %v707
  %752 = vmatprep.subr.bf16.mxu0 0
  %753 = vmatpush1.bf16.msra.mxu0 %v706
  %754 = vmatprep.subr.bf16.mxu0 0
  %755 = vmatpush2.bf16.msra.mxu0 %v721
  %756 = vmatprep.subr.bf16.mxu0 0
  %757 = vmatpush2.bf16.msra.mxu0 %v720
  %758 = vmatprep.subr.bf16.mxu0 0
  %759 = vmatpush2.bf16.msra.mxu0 %v719
  %760 = vmatprep.subr.bf16.mxu0 0
  %761 = vmatpush2.bf16.msra.mxu0 %v718
  %762 = vmatprep.subr.bf16.mxu0 0
  %763 = vmatpush2.bf16.msra.mxu0 %v717
  %764 = vmatprep.subr.bf16.mxu0 0
  %765 = vmatpush2.bf16.msra.mxu0 %v716
  %766 = vmatprep.subr.bf16.mxu0 0
  %767 = vmatpush2.bf16.msra.mxu0 %v715
  %768 = vmatprep.subr.bf16.mxu0 0
  %769 = vmatpush2.bf16.msra.mxu0 %v714
  %770 = vmatprep.mubr.bf16.mxu0 %v595
  %771 = vmatmul.mubr.bf16.gmra.mxu0 %v594
  %v772 = vpop.f32.mrf.mxu0
  %v773 = vadd.f32 0.0, %v772
  %v774 = vpop.f32.mrf.mxu0
  %v775 = vpop.f32.mrf.mxu0
  %v776 = vadd.f32 0.0, %v775
  %v777 = vpop.f32.mrf.mxu0
  %778 = vmatprep.mubr.bf16.mxu0 %v597
  %779 = vmatmul.mubr.bf16.gmra.mxu0 %v596
  %v780 = vpop.f32.mrf.mxu0
  %v781 = vadd.f32 0.0, %v780
  %v782 = vpop.f32.mrf.mxu0
  %v783 = vpop.f32.mrf.mxu0
  %v784 = vadd.f32 0.0, %v783
  %v785 = vpop.f32.mrf.mxu0
  %786 = vmatprep.mubr.bf16.mxu0 %v599
  %787 = vmatmul.mubr.bf16.gmra.mxu0 %v598
  %v788 = vpop.f32.mrf.mxu0
  %v789 = vadd.f32 0.0, %v788
  %v790 = vpop.f32.mrf.mxu0
  %v791 = vpop.f32.mrf.mxu0
  %v792 = vadd.f32 0.0, %v791
  %v793 = vpop.f32.mrf.mxu0
  %794 = vmatprep.mubr.bf16.mxu0 %v601
  %795 = vmatmul.mubr.bf16.gmra.mxu0 %v600
  %v796 = vpop.f32.mrf.mxu0
  %v797 = vadd.f32 0.0, %v796
  %v798 = vpop.f32.mrf.mxu0
  %v799 = vpop.f32.mrf.mxu0
  %v800 = vadd.f32 0.0, %v799
  %v801 = vpop.f32.mrf.mxu0
  %802 = vmatprep.mubr.bf16.mxu0 %v603
  %803 = vmatmul.mubr.bf16.gmra.mxu0 %v602
  %v804 = vpop.f32.mrf.mxu0
  %v805 = vadd.f32 0.0, %v804
  %v806 = vpop.f32.mrf.mxu0
  %v807 = vpop.f32.mrf.mxu0
  %v808 = vadd.f32 0.0, %v807
  %v809 = vpop.f32.mrf.mxu0
  %810 = vmatprep.mubr.bf16.mxu0 %v605
  %811 = vmatmul.mubr.bf16.gmra.mxu0 %v604
  %v812 = vpop.f32.mrf.mxu0
  %v813 = vadd.f32 0.0, %v812
  %v814 = vpop.f32.mrf.mxu0
  %v815 = vpop.f32.mrf.mxu0
  %v816 = vadd.f32 0.0, %v815
  %v817 = vpop.f32.mrf.mxu0
  %818 = vmatprep.mubr.bf16.mxu0 %v607
  %819 = vmatmul.mubr.bf16.gmra.mxu0 %v606
  %v820 = vpop.f32.mrf.mxu0
  %v821 = vadd.f32 0.0, %v820
  %v822 = vpop.f32.mrf.mxu0
  %v823 = vpop.f32.mrf.mxu0
  %v824 = vadd.f32 0.0, %v823
  %v825 = vpop.f32.mrf.mxu0
  %826 = vmatprep.mubr.bf16.mxu0 %v609
  %827 = vmatmul.mubr.bf16.gmra.mxu0 %v608
  %v828 = vpop.f32.mrf.mxu0
  %v829 = vadd.f32 0.0, %v828
  %v830 = vpop.f32.mrf.mxu0
  %v831 = vpop.f32.mrf.mxu0
  %v832 = vadd.f32 0.0, %v831
  %v833 = vpop.f32.mrf.mxu0
  %834 = vdwg.mxu0
  %v835 = vld [vmem:[%s4] sm:$0xff]
  %v836 = vunpack.c.l.bf16 %v21
  %v837 = vunpack.c.l.bf16 %v22
  %v838 = vunpack.c.l.bf16 %v23
  %v839 = vunpack.c.l.bf16 %v24
  %v840 = vunpack.c.l.bf16 %v25
  %v841 = vunpack.c.l.bf16 %v26
  %v842 = vunpack.c.l.bf16 %v27
  %v843 = vunpack.c.l.bf16 %v28
  %v844 = vunpack.c.l.bf16 %v29
  %v845 = vunpack.c.l.bf16 %v30
  %v846 = vunpack.c.l.bf16 %v31
  %v847 = vunpack.c.l.bf16 %v32
  %v848 = vunpack.c.l.bf16 %v33
  %v849 = vunpack.c.l.bf16 %v34
  %v850 = vunpack.c.l.bf16 %v35
  %v851 = vunpack.c.l.bf16 %v36
  %v852 = vadd.f32 %v836, %v773
  %v853 = vadd.f32 %v837, %v776
  %v854 = vadd.f32 %v838, %v781
  %v855 = vadd.f32 %v839, %v784
  %v856 = vadd.f32 %v840, %v789
  %v857 = vadd.f32 %v841, %v792
  %v858 = vadd.f32 %v842, %v797
  %v859 = vadd.f32 %v843, %v800
  %v860 = vadd.f32 %v844, %v805
  %v861 = vadd.f32 %v845, %v808
  %v862 = vadd.f32 %v846, %v813
  %v863 = vadd.f32 %v847, %v816
  %v864 = vadd.f32 %v848, %v821
  %v865 = vadd.f32 %v849, %v824
  %v866 = vadd.f32 %v850, %v829
  %v867 = vadd.f32 %v851, %v832
  %v868 = vlaneseq
  %v869 = vshrl.u32 %v868, 7
  %v870 = vsub.s32 0, %v869
  %v871 = vrot.slane %v835, %v870
  %v872 = vadd.f32 %v852, %v871
  %v873 = vadd.f32 %v853, %v871
  %v874 = vadd.f32 %v854, %v871
  %v875 = vadd.f32 %v855, %v871
  %v876 = vadd.f32 %v856, %v871
  %v877 = vadd.f32 %v857, %v871
  %v878 = vadd.f32 %v858, %v871
  %v879 = vadd.f32 %v859, %v871
  %v880 = vadd.f32 %v860, %v871
  %v881 = vadd.f32 %v861, %v871
  %v882 = vadd.f32 %v862, %v871
  %v883 = vadd.f32 %v863, %v871
  %v884 = vadd.f32 %v864, %v871
  %v885 = vadd.f32 %v865, %v871
  %v886 = vadd.f32 %v866, %v871
  %v887 = vadd.f32 %v867, %v871
  %888 = vadd.xlane.f32.xlu0 %v872
  %v889 = vpop.xlane.xlu0 %888
  %890 = vadd.xlane.f32.xlu0 %v873
  %v891 = vpop.xlane.xlu0 %890
  %892 = vadd.xlane.f32.xlu0 %v874
  %v893 = vpop.xlane.xlu0 %892
  %894 = vadd.xlane.f32.xlu0 %v875
  %v895 = vpop.xlane.xlu0 %894
  %896 = vadd.xlane.f32.xlu0 %v876
  %v897 = vpop.xlane.xlu0 %896
  %898 = vadd.xlane.f32.xlu0 %v877
  %v899 = vpop.xlane.xlu0 %898
  %900 = vadd.xlane.f32.xlu0 %v878
  %v901 = vpop.xlane.xlu0 %900
  %902 = vadd.xlane.f32.xlu0 %v879
  %v903 = vpop.xlane.xlu0 %902
  %904 = vadd.xlane.f32.xlu0 %v880
  %v905 = vpop.xlane.xlu0 %904
  %906 = vadd.xlane.f32.xlu0 %v881
  %v907 = vpop.xlane.xlu0 %906
  %908 = vadd.xlane.f32.xlu0 %v882
  %v909 = vpop.xlane.xlu0 %908
  %910 = vadd.xlane.f32.xlu0 %v883
  %v911 = vpop.xlane.xlu0 %910
  %912 = vadd.xlane.f32.xlu0 %v884
  %v913 = vpop.xlane.xlu0 %912
  %914 = vadd.xlane.f32.xlu0 %v885
  %v915 = vpop.xlane.xlu0 %914
  %916 = vadd.xlane.f32.xlu0 %v886
  %v917 = vpop.xlane.xlu0 %916
  %918 = vadd.xlane.f32.xlu0 %v887
  %v919 = vpop.xlane.xlu0 %918
  %v920 = vrcp.pop 128.0
  %v921 = vmul.f32 %v889, %v920
  %v922 = vmul.f32 %v891, %v920
  %v923 = vmul.f32 %v893, %v920
  %v924 = vmul.f32 %v895, %v920
  %v925 = vmul.f32 %v897, %v920
  %v926 = vmul.f32 %v899, %v920
  %v927 = vmul.f32 %v901, %v920
  %v928 = vmul.f32 %v903, %v920
  %v929 = vmul.f32 %v905, %v920
  %v930 = vmul.f32 %v907, %v920
  %v931 = vmul.f32 %v909, %v920
  %v932 = vmul.f32 %v911, %v920
  %v933 = vmul.f32 %v913, %v920
  %v934 = vmul.f32 %v915, %v920
  %v935 = vmul.f32 %v917, %v920
  %v936 = vmul.f32 %v919, %v920
  %v937 = vsub.f32 %v872, %v921
  %v938 = vsub.f32 %v873, %v922
  %v939 = vsub.f32 %v874, %v923
  %v940 = vsub.f32 %v875, %v924
  %v941 = vsub.f32 %v876, %v925
  %v942 = vsub.f32 %v877, %v926
  %v943 = vsub.f32 %v878, %v927
  %v944 = vsub.f32 %v879, %v928
  %v945 = vsub.f32 %v880, %v929
  %v946 = vsub.f32 %v881, %v930
  %v947 = vsub.f32 %v882, %v931
  %v948 = vsub.f32 %v883, %v932
  %v949 = vsub.f32 %v884, %v933
  %v950 = vsub.f32 %v885, %v934
  %v951 = vsub.f32 %v886, %v935
  %v952 = vsub.f32 %v887, %v936
  %v953 = vmul.f32 %v937, %v937
  %v954 = vmul.f32 %v938, %v938
  %v955 = vmul.f32 %v939, %v939
  %v956 = vmul.f32 %v940, %v940
  %v957 = vmul.f32 %v941, %v941
  %v958 = vmul.f32 %v942, %v942
  %v959 = vmul.f32 %v943, %v943
  %v960 = vmul.f32 %v944, %v944
  %v961 = vmul.f32 %v945, %v945
  %v962 = vmul.f32 %v946, %v946
  %v963 = vmul.f32 %v947, %v947
  %v964 = vmul.f32 %v948, %v948
  %v965 = vmul.f32 %v949, %v949
  %v966 = vmul.f32 %v950, %v950
  %v967 = vmul.f32 %v951, %v951
  %v968 = vmul.f32 %v952, %v952
  %969 = vadd.xlane.f32.xlu0 %v953
  %v970 = vpop.xlane.xlu0 %969
  %971 = vadd.xlane.f32.xlu0 %v954
  %v972 = vpop.xlane.xlu0 %971
  %973 = vadd.xlane.f32.xlu0 %v955
  %v974 = vpop.xlane.xlu0 %973
  %975 = vadd.xlane.f32.xlu0 %v956
  %v976 = vpop.xlane.xlu0 %975
  %977 = vadd.xlane.f32.xlu0 %v957
  %v978 = vpop.xlane.xlu0 %977
  %979 = vadd.xlane.f32.xlu0 %v958
  %v980 = vpop.xlane.xlu0 %979
  %981 = vadd.xlane.f32.xlu0 %v959
  %v982 = vpop.xlane.xlu0 %981
  %983 = vadd.xlane.f32.xlu0 %v960
  %v984 = vpop.xlane.xlu0 %983
  %985 = vadd.xlane.f32.xlu0 %v961
  %v986 = vpop.xlane.xlu0 %985
  %987 = vadd.xlane.f32.xlu0 %v962
  %v988 = vpop.xlane.xlu0 %987
  %989 = vadd.xlane.f32.xlu0 %v963
  %v990 = vpop.xlane.xlu0 %989
  %991 = vadd.xlane.f32.xlu0 %v964
  %v992 = vpop.xlane.xlu0 %991
  %993 = vadd.xlane.f32.xlu0 %v965
  %v994 = vpop.xlane.xlu0 %993
  %995 = vadd.xlane.f32.xlu0 %v966
  %v996 = vpop.xlane.xlu0 %995
  %997 = vadd.xlane.f32.xlu0 %v967
  %v998 = vpop.xlane.xlu0 %997
  %999 = vadd.xlane.f32.xlu0 %v968
  %v1000 = vpop.xlane.xlu0 %999
  %v1001 = vmul.f32 %v970, %v920
  %v1002 = vmul.f32 %v972, %v920
  %v1003 = vmul.f32 %v974, %v920
  %v1004 = vmul.f32 %v976, %v920
  %v1005 = vmul.f32 %v978, %v920
  %v1006 = vmul.f32 %v980, %v920
  %v1007 = vmul.f32 %v982, %v920
  %v1008 = vmul.f32 %v984, %v920
  %v1009 = vmul.f32 %v986, %v920
  %v1010 = vmul.f32 %v988, %v920
  %v1011 = vmul.f32 %v990, %v920
  %v1012 = vmul.f32 %v992, %v920
  %v1013 = vmul.f32 %v994, %v920
  %v1014 = vmul.f32 %v996, %v920
  %v1015 = vmul.f32 %v998, %v920
  %v1016 = vmul.f32 %v1000, %v920
  %v1017 = vadd.f32 %v1001, 1e-05
  %v1018 = vadd.f32 %v1002, 1e-05
  %v1019 = vadd.f32 %v1003, 1e-05
  %v1020 = vadd.f32 %v1004, 1e-05
  %v1021 = vadd.f32 %v1005, 1e-05
  %v1022 = vadd.f32 %v1006, 1e-05
  %v1023 = vadd.f32 %v1007, 1e-05
  %v1024 = vadd.f32 %v1008, 1e-05
  %v1025 = vadd.f32 %v1009, 1e-05
  %v1026 = vadd.f32 %v1010, 1e-05
  %v1027 = vadd.f32 %v1011, 1e-05
  %v1028 = vadd.f32 %v1012, 1e-05
  %v1029 = vadd.f32 %v1013, 1e-05
  %v1030 = vadd.f32 %v1014, 1e-05
  %v1031 = vadd.f32 %v1015, 1e-05
  %v1032 = vadd.f32 %v1016, 1e-05
  %v1033 = vrsqrt.pop %v1017
  %v1034 = vrsqrt.pop %v1018
  %v1035 = vrsqrt.pop %v1019
  %v1036 = vrsqrt.pop %v1020
  %v1037 = vrsqrt.pop %v1021
  %v1038 = vrsqrt.pop %v1022
  %v1039 = vrsqrt.pop %v1023
  %v1040 = vrsqrt.pop %v1024
  %v1041 = vrsqrt.pop %v1025
  %v1042 = vrsqrt.pop %v1026
  %v1043 = vrsqrt.pop %v1027
  %v1044 = vrsqrt.pop %v1028
  %v1045 = vrsqrt.pop %v1029
  %v1046 = vrsqrt.pop %v1030
  %v1047 = vrsqrt.pop %v1031
  %v1048 = vrsqrt.pop %v1032
  %v1049 = vmul.f32 %v937, %v1033
  %v1050 = vmul.f32 %v938, %v1034
  %v1051 = vmul.f32 %v939, %v1035
  %v1052 = vmul.f32 %v940, %v1036
  %v1053 = vmul.f32 %v941, %v1037
  %v1054 = vmul.f32 %v942, %v1038
  %v1055 = vmul.f32 %v943, %v1039
  %v1056 = vmul.f32 %v944, %v1040
  %v1057 = vmul.f32 %v945, %v1041
  %v1058 = vmul.f32 %v946, %v1042
  %v1059 = vmul.f32 %v947, %v1043
  %v1060 = vmul.f32 %v948, %v1044
  %v1061 = vmul.f32 %v949, %v1045
  %v1062 = vmul.f32 %v950, %v1046
  %v1063 = vmul.f32 %v951, %v1047
  %v1064 = vmul.f32 %v952, %v1048
  %v1065 = vlaneseq
  %v1066 = vshrl.u32 %v1065, 7
  %v1067 = vsub.s32 1, %v1066
  %v1068 = vrot.slane %v835, %v1067
  %v1069 = vmul.f32 %v1049, %v1068
  %v1070 = vmul.f32 %v1050, %v1068
  %v1071 = vmul.f32 %v1051, %v1068
  %v1072 = vmul.f32 %v1052, %v1068
  %v1073 = vmul.f32 %v1053, %v1068
  %v1074 = vmul.f32 %v1054, %v1068
  %v1075 = vmul.f32 %v1055, %v1068
  %v1076 = vmul.f32 %v1056, %v1068
  %v1077 = vmul.f32 %v1057, %v1068
  %v1078 = vmul.f32 %v1058, %v1068
  %v1079 = vmul.f32 %v1059, %v1068
  %v1080 = vmul.f32 %v1060, %v1068
  %v1081 = vmul.f32 %v1061, %v1068
  %v1082 = vmul.f32 %v1062, %v1068
  %v1083 = vmul.f32 %v1063, %v1068
  %v1084 = vmul.f32 %v1064, %v1068
  %v1085 = vlaneseq
  %v1086 = vshrl.u32 %v1085, 7
  %v1087 = vsub.s32 2, %v1086
  %v1088 = vrot.slane %v835, %v1087
  %v1089 = vadd.f32 %v1069, %v1088
  %v1090 = vadd.f32 %v1070, %v1088
  %v1091 = vadd.f32 %v1071, %v1088
  %v1092 = vadd.f32 %v1072, %v1088
  %v1093 = vadd.f32 %v1073, %v1088
  %v1094 = vadd.f32 %v1074, %v1088
  %v1095 = vadd.f32 %v1075, %v1088
  %v1096 = vadd.f32 %v1076, %v1088
  %v1097 = vadd.f32 %v1077, %v1088
  %v1098 = vadd.f32 %v1078, %v1088
  %v1099 = vadd.f32 %v1079, %v1088
  %v1100 = vadd.f32 %v1080, %v1088
  %v1101 = vadd.f32 %v1081, %v1088
  %v1102 = vadd.f32 %v1082, %v1088
  %v1103 = vadd.f32 %v1083, %v1088
  %v1104 = vadd.f32 %v1084, %v1088
  %v1105 = vpack.c.bf16 %v1090, %v1089
  %v1106 = vpack.c.bf16 %v1092, %v1091
  %v1107 = vpack.c.bf16 %v1094, %v1093
  %v1108 = vpack.c.bf16 %v1096, %v1095
  %v1109 = vpack.c.bf16 %v1098, %v1097
  %v1110 = vpack.c.bf16 %v1100, %v1099
  %v1111 = vpack.c.bf16 %v1102, %v1101
  %v1112 = vpack.c.bf16 %v1104, %v1103
  %v1121 = vunpack.c.l.b16 %v1105
  %v1122 = vunpack.c.h.b16 %v1105
  %v1123 = vunpack.c.l.b16 %v1106
  %v1124 = vunpack.c.h.b16 %v1106
  %v1125 = vunpack.c.l.b16 %v1107
  %v1126 = vunpack.c.h.b16 %v1107
  %v1127 = vunpack.c.l.b16 %v1108
  %v1128 = vunpack.c.h.b16 %v1108
  %v1129 = vunpack.c.l.b16 %v1109
  %v1130 = vunpack.c.h.b16 %v1109
  %v1131 = vunpack.c.l.b16 %v1110
  %v1132 = vunpack.c.h.b16 %v1110
  %v1133 = vunpack.c.l.b16 %v1111
  %v1134 = vunpack.c.h.b16 %v1111
  %v1135 = vunpack.c.l.b16 %v1112
  %v1136 = vunpack.c.h.b16 %v1112
  %v1137 = vpack.c.b16 %v1121, %v1121
  %v1138 = vpack.c.b16 %v1122, %v1122
  %v1139 = vpack.c.b16 %v1123, %v1123
  %v1140 = vpack.c.b16 %v1124, %v1124
  %v1141 = vpack.c.b16 %v1125, %v1125
  %v1142 = vpack.c.b16 %v1126, %v1126
  %v1143 = vpack.c.b16 %v1127, %v1127
  %v1144 = vpack.c.b16 %v1128, %v1128
  %v1145 = vpack.c.b16 %v1129, %v1129
  %v1146 = vpack.c.b16 %v1130, %v1130
  %v1147 = vpack.c.b16 %v1131, %v1131
  %v1148 = vpack.c.b16 %v1132, %v1132
  %v1149 = vpack.c.b16 %v1133, %v1133
  %v1150 = vpack.c.b16 %v1134, %v1134
  %v1151 = vpack.c.b16 %v1135, %v1135
  %v1152 = vpack.c.b16 %v1136, %v1136
  %1169 = vst [vmem:[%s5] sm:$0xf] %v1137
  %1170 = vst [vmem:[%s5 + $0x4] sm:$0xf] %v1138
  %1171 = vst [vmem:[%s5 + $0x8] sm:$0xf] %v1139
  %1172 = vst [vmem:[%s5 + $0xc] sm:$0xf] %v1140
  %1173 = vst [vmem:[%s5 + $0x10] sm:$0xf] %v1141
  %1174 = vst [vmem:[%s5 + $0x14] sm:$0xf] %v1142
  %1175 = vst [vmem:[%s5 + $0x18] sm:$0xf] %v1143
  %1176 = vst [vmem:[%s5 + $0x1c] sm:$0xf] %v1144
  %1177 = vst [vmem:[%s5 + $0x20] sm:$0xf] %v1145
  %1178 = vst [vmem:[%s5 + $0x24] sm:$0xf] %v1146
  %1179 = vst [vmem:[%s5 + $0x28] sm:$0xf] %v1147
  %1180 = vst [vmem:[%s5 + $0x2c] sm:$0xf] %v1148
  %1181 = vst [vmem:[%s5 + $0x30] sm:$0xf] %v1149
  %1182 = vst [vmem:[%s5 + $0x34] sm:$0xf] %v1150
  %1183 = vst [vmem:[%s5 + $0x38] sm:$0xf] %v1151
  %1184 = vst [vmem:[%s5 + $0x3c] sm:$0xf] %v1152
  // Predicated region
  $region22: #{wr_xformer_single_forward.16} parent=0 // pred_check
    _
  $region23: #{wr_xformer_single_forward.16} parent=0 // pred_check_branch
    %1186 = sbr.rel (0) target = $region25
  $region24: #{wr_xformer_single_forward.16} parent=0 // pred_region
    _
  $region25: #{wr_xformer_single_forward.16} parent=0 // pred_fallthru
    _
  // Predicated region
  $region26: #{wr_xformer_single_forward.16} parent=0 // pred_check
    _
  $region27: #{wr_xformer_single_forward.16} parent=0 // pred_check_branch
    %1188 = sbr.rel (0) target = $region29
  $region28: #{wr_xformer_single_forward.16} parent=0 // pred_region
    _
  $region29: #{wr_xformer_single_forward.16} parent=0 // pred_fallthru
    _

</llo_original>
